<compile_context>
chip_gen: v5e
topology: v5e:2x2
jax: 0.10.0
libtpu: 0.0.40
codegen_flags: <defaults>
</compile_context>

<pallas_src>
import jax
import jax.numpy as jnp
import numpy as np
from jax.experimental import pallas as pl
from jax.experimental.pallas import tpu as pltpu

_LANE = 128


def _round_up(x, m):
    return ((x + m - 1) // m) * m


# ----------------------------------------------------------------------------
# Kernel
# ----------------------------------------------------------------------------
def _make_kernel(use_im2col):
    def kernel(x_ref, w1_ref, b1_ref, w2_ref, b2_ref, wsc_ref, bsc_ref,
               o_ref, pad_ref, *maybe_col):
        col_ref = maybe_col[0] if use_im2col else None

        bb, H, W, Cinp = x_ref.shape
        Hd, Wd = H // 2, W // 2
        Coutp = o_ref.shape[3]
        M = bb * Hd * Wd
        Wp = pad_ref.shape[2]          # >= Wd + 2, sublane-aligned

        x = x_ref[...]                 # (bb, H, W, Cinp) f32

        def avgpool2x2(v):
            # pool W: split W -> (Wd, 2) keeping (2, C) as the minor dims
            v = v.reshape(bb * H * Wd, 2, Cinp)
            v = v[:, 0, :] + v[:, 1, :]                  # (bb*H*Wd, C)
            # pool H: split H -> (Hd, 2) on a leading dim
            v = v.reshape(bb, Hd, 2, Wd, Cinp)
            v = v[:, :, 0] + v[:, :, 1]                  # (bb, Hd, Wd, C)
            return v * 0.25

        # Zero only the 1-pixel halo (interior is fully overwritten each
        # branch).  Re-zeroed every grid step so correctness does not depend
        # on which TensorCore (with its own scratch) runs which grid index.
        zrow = jnp.zeros((bb, 1, Wp, Cinp), jnp.bfloat16)
        zcol = jnp.zeros((bb, Hd, 1, Cinp), jnp.bfloat16)
        pad_ref[:, 0:1, :, :] = zrow
        pad_ref[:, Hd + 1:Hd + 2, :, :] = zrow
        pad_ref[:, 1:Hd + 1, 0:1, :] = zcol
        pad_ref[:, 1:Hd + 1, Wd + 1:Wd + 2, :] = zcol

        def conv3x3(pooled_f32, w_ref, b_ref):
            # Cast once on write; every shifted-window read is bf16->bf16.
            pad_ref[:, 1:Hd + 1, 1:Wd + 1, :] = pooled_f32.astype(jnp.bfloat16)
            if use_im2col:
                # im2col: 9 shifted windows -> (M, 9*Cinp) bf16, one MXU dot.
                for kh in range(3):
                    for kw in range(3):
                        t = kh * 3 + kw
                        win = pad_ref[:, kh:kh + Hd, kw:kw + Wd, :]
                        col_ref[:, t * Cinp:(t + 1) * Cinp] = win.reshape(M, Cinp)
                y = jnp.dot(col_ref[...], w_ref[...],
                            preferred_element_type=jnp.float32)
            else:
                # small-Cin path: 9 accumulating per-tap matmuls straight from
                # pad_ref (no im2col store + reload), K = Cinp = 128 per tap.
                y = None
                for kh in range(3):
                    for kw in range(3):
                        t = kh * 3 + kw
                        win = pad_ref[:, kh:kh + Hd, kw:kw + Wd, :].reshape(M, Cinp)
                        d = jnp.dot(win, w_ref[t * Cinp:(t + 1) * Cinp, :],
                                    preferred_element_type=jnp.float32)
                        y = d if y is None else y + d
            return y + b_ref[...]                         # (M, Coutp) f32

        # ---- shortcut branch: AvgPool2 -> Conv3x3(p=1), stored into o_ref
        sc = conv3x3(avgpool2x2(x), wsc_ref, bsc_ref)
        o_ref[...] = sc.reshape(bb, Hd, Wd, Coutp).astype(o_ref.dtype)

        # ---- residual branch: ReLU -> AvgPool2 -> Conv3x3(p=1) -> ReLU -> Conv1x1
        h1 = jnp.maximum(
            conv3x3(avgpool2x2(jnp.maximum(x, 0.0)), w1_ref, b1_ref), 0.0)
        res = jnp.dot(h1.astype(jnp.bfloat16), w2_ref[...],
                      preferred_element_type=jnp.float32) + b2_ref[...]

        # single lane-dense final store of (shortcut + residual)
        o_ref[...] = (o_ref[...].astype(jnp.float32)
                      + res.reshape(bb, Hd, Wd, Coutp)).astype(o_ref.dtype)

    return kernel


# ----------------------------------------------------------------------------
# VMEM budgeting / block selection
# ----------------------------------------------------------------------------
def _pick_vmem_limit():
    # ~48 MiB on v7x (64 MiB physical / TC), ~96 MiB on v5e/v6e (128 MiB).
    try:
        cap = int(pltpu.get_tpu_info().vmem_capacity_bytes)
    except Exception:
        cap = 64 * 1024 * 1024          # conservative (v7x per-TC size)
    return min((cap * 3) // 4, 100 * 1024 * 1024)


def _vmem_per_step(bb, H, W, Cinp, Coutp, use_im2col, out_bytes):
    Hd, Wd = H // 2, W // 2
    Wp = _round_up(Wd + 2, 8)
    M = bb * Hd * Wd
    total = 2 * bb * H * W * Cinp * 4                 # input block (f32, x2 buf)
    total += 2 * bb * Hd * Wd * Coutp * out_bytes     # output block (x2 buf)
    total += bb * (Hd + 2) * Wp * Cinp * 2            # padded scratch (bf16)
    if use_im2col:
        total += M * 9 * Cinp * 2                     # im2col scratch (bf16)
    # weights/biases, single-buffered
    total += 2 * (9 * Cinp * Coutp * 2) + Coutp * Coutp * 2 + 3 * Coutp * 4
    return total


def _pick_batch_block(N, H, W, Cinp, Coutp, use_im2col, vmem_limit, out_bytes):
    budget = int(0.8 * vmem_limit)
    best, best_even = 1, None
    for cand in range(1, N + 1):
        if N % cand:
            continue
        if _vmem_per_step(cand, H, W, Cinp, Coutp, use_im2col, out_bytes) > budget:
            continue
        best = cand
        if (N // cand) % 2 == 0:        # even step count keeps both v7x TCs busy
            best_even = cand
    return best_even if best_even is not None else best


# ----------------------------------------------------------------------------
# Parameter packing (plain-JAX preprocessing, done once per layer)
# ----------------------------------------------------------------------------
def pack_params(params, in_channels, out_channels):
    Cin, Cout = in_channels, out_channels
    Cinp = _round_up(Cin, _LANE)
    Coutp = _round_up(Cout, _LANE)

    def conv3x3_weight(w):   # torch (Cout, Cin, 3, 3) -> (9*Cinp, Coutp) bf16
        w = jnp.transpose(w, (2, 3, 1, 0))                # (3, 3, Cin, Cout)
        w = jnp.pad(w, ((0, 0), (0, 0), (0, Cinp - Cin), (0, Coutp - Cout)))
        return w.reshape(9 * Cinp, Coutp).astype(jnp.bfloat16)

    def pad_bias(b):
        return jnp.pad(b, (0, Coutp - Cout)).reshape(1, Coutp).astype(jnp.float32)

    w2 = jnp.pad(jnp.transpose(params["w2"][:, :, 0, 0]),
                 ((0, Coutp - Cout), (0, Coutp - Cout))).astype(jnp.bfloat16)
    return dict(
        w1=conv3x3_weight(params["w1"]), b1=pad_bias(params["b1"]),
        w2=w2, b2=pad_bias(params["b2"]),
        wsc=conv3x3_weight(params["wsc"]), bsc=pad_bias(params["bsc"]))


# ----------------------------------------------------------------------------
# Forward — NHWC channel-padded entry point (no layout passes around the kernel)
# ----------------------------------------------------------------------------
def res_block_d_forward_nhwc(x_nhwc, packed, *, batch_block=None,
                             out_dtype=jnp.float32):
    N, H, W, Cinp = x_nhwc.shape
    Coutp = packed["w1"].shape[1]
    assert Cinp % _LANE == 0 and Coutp % _LANE == 0
    assert H % 2 == 0 and W % 2 == 0, "downsample=True needs even H, W"
    Hd, Wd = H // 2, W // 2
    use_im2col = Cinp > _LANE            # per-tap matmuls when Cin fits one lane group

    vmem_limit = _pick_vmem_limit()
    out_bytes = np.dtype(out_dtype).itemsize
    if batch_block is None:
        batch_block = _pick_batch_block(N, H, W, Cinp, Coutp, use_im2col,
                                        vmem_limit, out_bytes)
    assert N % batch_block == 0
    bb = batch_block
    steps = N // bb
    M = bb * Hd * Wd
    Wp = _round_up(Wd + 2, 8)            # sublane-aligned padded width

    scratch = [pltpu.VMEM((bb, Hd + 2, Wp, Cinp), jnp.bfloat16)]
    if use_im2col:
        scratch.append(pltpu.VMEM((M, 9 * Cinp), jnp.bfloat16))

    # TODO(synk): for very large H*W*Cin on v7x (64 MiB VMEM), add an Hd-tile
    # grid axis with a 1-row halo; unnecessary at these shapes.
    def build(single_buffer_weights):
        if single_buffer_weights:
            def wspec(shape):
                return pl.BlockSpec(shape, lambda n: (0, 0),
                                    pipeline_mode=pl.Buffered(1))
        else:
            def wspec(shape):
                return pl.BlockSpec(shape, lambda n: (0, 0))
        return pl.pallas_call(
            _make_kernel(use_im2col),
            out_shape=jax.ShapeDtypeStruct((N, Hd, Wd, Coutp), out_dtype),
            grid=(steps,),
            in_specs=[
                pl.BlockSpec((bb, H, W, Cinp), lambda n: (n, 0, 0, 0)),
                wspec((9 * Cinp, Coutp)), wspec((1, Coutp)),
                wspec((Coutp, Coutp)), wspec((1, Coutp)),
                wspec((9 * Cinp, Coutp)), wspec((1, Coutp)),
            ],
            out_specs=pl.BlockSpec((bb, Hd, Wd, Coutp), lambda n: (n, 0, 0, 0)),
            scratch_shapes=scratch,
            compiler_params=pltpu.CompilerParams(
                dimension_semantics=("parallel",),
                vmem_limit_bytes=vmem_limit),
        )

    args = (x_nhwc, packed["w1"], packed["b1"], packed["w2"], packed["b2"],
            packed["wsc"], packed["bsc"])
    try:
        return build(True)(*args)
    except Exception:
        # Fallback if single-buffered constant operands (pl.Buffered(1)) are
        # not supported by this jax/Mosaic version; weights double-buffer.
        return build(False)(*args)


# ----------------------------------------------------------------------------
# Forward — NCHW compat wrapper (matches the PyTorch module's interface)
# ----------------------------------------------------------------------------
def res_block_d_forward(x_nchw, params, *, batch_block=None):
    N, Cin, H, W = x_nchw.shape
    Cout = params["w1"].shape[0]
    Cinp = _round_up(Cin, _LANE)

    packed = pack_params(params, Cin, Cout)

    # TODO(synk): in a full model keep activations NHWC / channel-padded end to
    # end (use res_block_d_forward_nhwc) so these transpose/pad/slice HBM
    # passes disappear entirely.
    x = jnp.transpose(x_nchw, (0, 2, 3, 1)).astype(jnp.float32)
    x = jnp.pad(x, ((0, 0), (0, 0), (0, 0), (0, Cinp - Cin)))

    out_p = res_block_d_forward_nhwc(x, packed, batch_block=batch_block)
    out = out_p[:, :, :, :Cout]                          # drop channel padding
    return jnp.transpose(out, (0, 3, 1, 2))              # NHWC -> NCHW


# ----------------------------------------------------------------------------
# Deterministic parameter initialization (synthetic weights, not a checkpoint)
# ----------------------------------------------------------------------------
def _spectral_normalize(w, key, n_iters=5, eps=1e-12):
    # TODO(synk): PyTorch spectral_norm keeps a persistent `u` buffer updated
    # once per training forward; here a fixed deterministic power iteration at
    # parameter-setup time (plain JAX glue, outside the kernel).
    cout = w.shape[0]
    w_mat = w.reshape(cout, -1)
    u = jax.random.normal(key, (cout,), jnp.float32)
    u = u / (jnp.linalg.norm(u) + eps)
    v = w_mat.T @ u
    v = v / (jnp.linalg.norm(v) + eps)
    for _ in range(n_iters):
        v = w_mat.T @ u
        v = v / (jnp.linalg.norm(v) + eps)
        u = w_mat @ v
        u = u / (jnp.linalg.norm(u) + eps)
    sigma = u @ (w_mat @ v)
    return w / sigma


def init_params(key, in_channels, out_channels, kernel=3):
    kw1, kw2, kw3, kb1, kb2, kb3, ku1, ku2, ku3 = jax.random.split(key, 9)

    def xavier(k, shape):  # shape = (Cout, Cin, kh, kw), torch layout
        cout, cin, kh, kw = shape
        fan_in, fan_out = cin * kh * kw, cout * kh * kw
        bound = (6.0 / (fan_in + fan_out)) ** 0.5
        return jax.random.uniform(k, shape, jnp.float32, -bound, bound)

    def bias(k, cout, fan_in):  # PyTorch Conv2d default bias init
        bound = 1.0 / (fan_in ** 0.5)
        return jax.random.uniform(k, (cout,), jnp.float32, -bound, bound)

    w1 = _spectral_normalize(xavier(kw1, (out_channels, in_channels, kernel, kernel)), ku1)
    w2 = _spectral_normalize(xavier(kw2, (out_channels, out_channels, 1, 1)), ku2)
    wsc = _spectral_normalize(xavier(kw3, (out_channels, in_channels, kernel, kernel)), ku3)
    return dict(
        w1=w1, b1=bias(kb1, out_channels, in_channels * kernel * kernel),
        w2=w2, b2=bias(kb2, out_channels, out_channels),
        wsc=wsc, bsc=bias(kb3, out_channels, in_channels * kernel * kernel),
    )


# ----------------------------------------------------------------------------
# Pure-JAX reference (f32, for correctness check only)
# ----------------------------------------------------------------------------
def ref_forward(x_nchw, params):
    def conv(x, w, b, pad):
        y = jax.lax.conv_general_dilated(
            x, w, window_strides=(1, 1), padding=[(pad, pad), (pad, pad)],
            dimension_numbers=("NCHW", "OIHW", "NCHW"))
        return y + b.reshape(1, -1, 1, 1)

    def avgpool2(x):
        s = jax.lax.reduce_window(x, 0.0, jax.lax.add,
                                  (1, 1, 2, 2), (1, 1, 2, 2), "VALID")
        return s * 0.25

    r = jnp.maximum(x_nchw, 0.0)
    r = avgpool2(r)
    r = jnp.maximum(conv(r, params["w1"], params["b1"], 1), 0.0)
    r = conv(r, params["w2"], params["b2"], 0)
    s = conv(avgpool2(x_nchw), params["wsc"], params["bsc"], 1)
    return r + s


# ----------------------------------------------------------------------------
if __name__ == "__main__":
    key = jax.random.PRNGKey(0)
    kx, kp = jax.random.split(key)

    N, Cin, Cout, H, W = 2, 4, 8, 16, 16
    x = jax.random.normal(kx, (N, Cin, H, W), jnp.float32)      # NCHW, like PyTorch
    params = init_params(kp, Cin, Cout, kernel=3)

    out = res_block_d_forward(x, params)
    out = jax.block_until_ready(out)

    assert out.shape == (N, Cout, H // 2, W // 2), out.shape
    ref = ref_forward(x, params)
    # bf16 MXU operands with f32 accumulation -> loosened tolerance vs f32 ref.
    np.testing.assert_allclose(np.asarray(out), np.asarray(ref),
                               atol=2e-2, rtol=2e-2)
    print("KERNEL_OK")
</pallas_src>

<mosaic_0001>
module attributes {stable_mosaic.version = 11 : i64} {
  func.func @kernel(%arg0: i32, %arg1: memref<1x16x16x128xf32, #tpu.memory_space<vmem>>, %arg2: memref<1152x128xbf16, #tpu.memory_space<vmem>>, %arg3: memref<1x128xf32, #tpu.memory_space<vmem>>, %arg4: memref<128x128xbf16, #tpu.memory_space<vmem>>, %arg5: memref<1x128xf32, #tpu.memory_space<vmem>>, %arg6: memref<1152x128xbf16, #tpu.memory_space<vmem>>, %arg7: memref<1x128xf32, #tpu.memory_space<vmem>>, %arg8: memref<1x8x8x128xf32, #tpu.memory_space<vmem>>, %arg9: memref<1x10x16x128xbf16, #tpu.memory_space<vmem>>) attributes {dimension_semantics = [#tpu.dimension_semantics<parallel>], iteration_bounds = array<i64: 2>, scalar_prefetch = 0 : i64, scratch_operands = 1 : i64, tpu.core_type = #tpu.core_type<tc>, window_params = [{transform_indices = @transform_0, window_bounds = array<i64: 1, 16, 16, 128>}, {pipeline_mode = #tpu.pipeline_mode<synchronous>, transform_indices = @transform_1, window_bounds = array<i64: 1152, 128>}, {pipeline_mode = #tpu.pipeline_mode<synchronous>, transform_indices = @transform_2, window_bounds = array<i64: 1, 128>}, {pipeline_mode = #tpu.pipeline_mode<synchronous>, transform_indices = @transform_3, window_bounds = array<i64: 128, 128>}, {pipeline_mode = #tpu.pipeline_mode<synchronous>, transform_indices = @transform_4, window_bounds = array<i64: 1, 128>}, {pipeline_mode = #tpu.pipeline_mode<synchronous>, transform_indices = @transform_5, window_bounds = array<i64: 1152, 128>}, {pipeline_mode = #tpu.pipeline_mode<synchronous>, transform_indices = @transform_6, window_bounds = array<i64: 1, 128>}, {transform_indices = @transform_7, window_bounds = array<i64: 1, 8, 8, 128>}]} {
    %c0 = arith.constant 0 : index
    %c0_0 = arith.constant 0 : index
    %c0_1 = arith.constant 0 : index
    %c0_2 = arith.constant 0 : index
    %0 = vector.load %arg1[%c0, %c0_0, %c0_1, %c0_2] : memref<1x16x16x128xf32, #tpu.memory_space<vmem>>, vector<1x16x16x128xf32>
    %cst = arith.constant 0.000000e+00 : bf16
    %1 = vector.broadcast %cst : bf16 to vector<1x1x16x128xbf16>
    %cst_3 = arith.constant 0.000000e+00 : bf16
    %2 = vector.broadcast %cst_3 : bf16 to vector<1x8x1x128xbf16>
    %c0_4 = arith.constant 0 : index
    %c0_5 = arith.constant 0 : index
    %c0_6 = arith.constant 0 : index
    %c0_7 = arith.constant 0 : index
    %3 = vector.load %arg9[%c0_4, %c0_5, %c0_6, %c0_7] : memref<1x10x16x128xbf16, #tpu.memory_space<vmem>>, vector<1x1x16x128xbf16>
    tpu.vector_store %arg9[%c0_4, %c0_5, %c0_6, %c0_7], %1 {strides = array<i32>} : memref<1x10x16x128xbf16, #tpu.memory_space<vmem>>, vector<1x1x16x128xbf16>,
    %c0_8 = arith.constant 0 : index
    %c9 = arith.constant 9 : index
    %c0_9 = arith.constant 0 : index
    %c0_10 = arith.constant 0 : index
    %4 = vector.load %arg9[%c0_8, %c9, %c0_9, %c0_10] : memref<1x10x16x128xbf16, #tpu.memory_space<vmem>>, vector<1x1x16x128xbf16>
    tpu.vector_store %arg9[%c0_8, %c9, %c0_9, %c0_10], %1 {strides = array<i32>} : memref<1x10x16x128xbf16, #tpu.memory_space<vmem>>, vector<1x1x16x128xbf16>,
    %c0_11 = arith.constant 0 : index
    %c1 = arith.constant 1 : index
    %c0_12 = arith.constant 0 : index
    %c0_13 = arith.constant 0 : index
    %5 = vector.load %arg9[%c0_11, %c1, %c0_12, %c0_13] : memref<1x10x16x128xbf16, #tpu.memory_space<vmem>>, vector<1x8x1x128xbf16>
    tpu.vector_store %arg9[%c0_11, %c1, %c0_12, %c0_13], %2 {strides = array<i32>} : memref<1x10x16x128xbf16, #tpu.memory_space<vmem>>, vector<1x8x1x128xbf16>,
    %c0_14 = arith.constant 0 : index
    %c1_15 = arith.constant 1 : index
    %c9_16 = arith.constant 9 : index
    %c0_17 = arith.constant 0 : index
    %6 = vector.load %arg9[%c0_14, %c1_15, %c9_16, %c0_17] : memref<1x10x16x128xbf16, #tpu.memory_space<vmem>>, vector<1x8x1x128xbf16>
    tpu.vector_store %arg9[%c0_14, %c1_15, %c9_16, %c0_17], %2 {strides = array<i32>} : memref<1x10x16x128xbf16, #tpu.memory_space<vmem>>, vector<1x8x1x128xbf16>,
    %7 = vector.shape_cast %0 : vector<1x16x16x128xf32> to vector<128x2x128xf32>
    %8 = vector.extract_strided_slice %7 {offsets = [0, 0, 0], sizes = [128, 1, 128], strides = [1, 1, 1]} : vector<128x2x128xf32> to vector<128x1x128xf32>
    %9 = vector.shape_cast %8 : vector<128x1x128xf32> to vector<128x128xf32>
    %10 = vector.extract_strided_slice %7 {offsets = [0, 1, 0], sizes = [128, 1, 128], strides = [1, 1, 1]} : vector<128x2x128xf32> to vector<128x1x128xf32>
    %11 = vector.shape_cast %10 : vector<128x1x128xf32> to vector<128x128xf32>
    %12 = arith.addf %9, %11 : vector<128x128xf32>
    %13 = vector.shape_cast %12 : vector<128x128xf32> to vector<1x8x2x8x128xf32>
    %14 = vector.extract_strided_slice %13 {offsets = [0, 0, 0, 0, 0], sizes = [1, 8, 1, 8, 128], strides = [1, 1, 1, 1, 1]} : vector<1x8x2x8x128xf32> to vector<1x8x1x8x128xf32>
    %15 = vector.shape_cast %14 : vector<1x8x1x8x128xf32> to vector<1x8x8x128xf32>
    %16 = vector.extract_strided_slice %13 {offsets = [0, 0, 1, 0, 0], sizes = [1, 8, 1, 8, 128], strides = [1, 1, 1, 1, 1]} : vector<1x8x2x8x128xf32> to vector<1x8x1x8x128xf32>
    %17 = vector.shape_cast %16 : vector<1x8x1x8x128xf32> to vector<1x8x8x128xf32>
    %18 = arith.addf %15, %17 : vector<1x8x8x128xf32>
    %cst_18 = arith.constant 2.500000e-01 : f32
    %19 = vector.broadcast %cst_18 : f32 to vector<1x8x8x128xf32>
    %20 = arith.mulf %18, %19 : vector<1x8x8x128xf32>
    %21 = arith.truncf %20 : vector<1x8x8x128xf32> to vector<1x8x8x128xbf16>
    %c0_19 = arith.constant 0 : index
    %c1_20 = arith.constant 1 : index
    %c1_21 = arith.constant 1 : index
    %c0_22 = arith.constant 0 : index
    %22 = vector.load %arg9[%c0_19, %c1_20, %c1_21, %c0_22] : memref<1x10x16x128xbf16, #tpu.memory_space<vmem>>, vector<1x8x8x128xbf16>
    tpu.vector_store %arg9[%c0_19, %c1_20, %c1_21, %c0_22], %21 {strides = array<i32>} : memref<1x10x16x128xbf16, #tpu.memory_space<vmem>>, vector<1x8x8x128xbf16>,
    %c0_23 = arith.constant 0 : index
    %c0_24 = arith.constant 0 : index
    %c0_25 = arith.constant 0 : index
    %c0_26 = arith.constant 0 : index
    %23 = vector.load %arg9[%c0_23, %c0_24, %c0_25, %c0_26] : memref<1x10x16x128xbf16, #tpu.memory_space<vmem>>, vector<1x8x8x128xbf16>
    %24 = vector.shape_cast %23 : vector<1x8x8x128xbf16> to vector<64x128xbf16>
    %c0_27 = arith.constant 0 : index
    %c0_28 = arith.constant 0 : index
    %25 = vector.load %arg6[%c0_27, %c0_28] : memref<1152x128xbf16, #tpu.memory_space<vmem>>, vector<128x128xbf16>
    %cst_29 = arith.constant dense<0.000000e+00> : vector<64x128xf32>
    %26 = tpu.matmul %24, %25, %cst_29 {dimension_numbers = #tpu.dot_dimension_numbers<[1], [0], [0], [1], [0, 0, 1, 1], [], []>} : vector<64x128xbf16>, vector<128x128xbf16>, vector<64x128xf32> -> vector<64x128xf32>
    %c0_30 = arith.constant 0 : index
    %c0_31 = arith.constant 0 : index
    %c1_32 = arith.constant 1 : index
    %c0_33 = arith.constant 0 : index
    %27 = vector.load %arg9[%c0_30, %c0_31, %c1_32, %c0_33] : memref<1x10x16x128xbf16, #tpu.memory_space<vmem>>, vector<1x8x8x128xbf16>
    %28 = vector.shape_cast %27 : vector<1x8x8x128xbf16> to vector<64x128xbf16>
    %c128 = arith.constant 128 : index
    %c0_34 = arith.constant 0 : index
    %29 = vector.load %arg6[%c128, %c0_34] : memref<1152x128xbf16, #tpu.memory_space<vmem>>, vector<128x128xbf16>
    %cst_35 = arith.constant dense<0.000000e+00> : vector<64x128xf32>
    %30 = tpu.matmul %28, %29, %cst_35 {dimension_numbers = #tpu.dot_dimension_numbers<[1], [0], [0], [1], [0, 0, 1, 1], [], []>} : vector<64x128xbf16>, vector<128x128xbf16>, vector<64x128xf32> -> vector<64x128xf32>
    %31 = arith.addf %26, %30 : vector<64x128xf32>
    %c0_36 = arith.constant 0 : index
    %c0_37 = arith.constant 0 : index
    %c2 = arith.constant 2 : index
    %c0_38 = arith.constant 0 : index
    %32 = vector.load %arg9[%c0_36, %c0_37, %c2, %c0_38] : memref<1x10x16x128xbf16, #tpu.memory_space<vmem>>, vector<1x8x8x128xbf16>
    %33 = vector.shape_cast %32 : vector<1x8x8x128xbf16> to vector<64x128xbf16>
    %c256 = arith.constant 256 : index
    %c0_39 = arith.constant 0 : index
    %34 = vector.load %arg6[%c256, %c0_39] : memref<1152x128xbf16, #tpu.memory_space<vmem>>, vector<128x128xbf16>
    %cst_40 = arith.constant dense<0.000000e+00> : vector<64x128xf32>
    %35 = tpu.matmul %33, %34, %cst_40 {dimension_numbers = #tpu.dot_dimension_numbers<[1], [0], [0], [1], [0, 0, 1, 1], [], []>} : vector<64x128xbf16>, vector<128x128xbf16>, vector<64x128xf32> -> vector<64x128xf32>
    %36 = arith.addf %31, %35 : vector<64x128xf32>
    %c0_41 = arith.constant 0 : index
    %c1_42 = arith.constant 1 : index
    %c0_43 = arith.constant 0 : index
    %c0_44 = arith.constant 0 : index
    %37 = vector.load %arg9[%c0_41, %c1_42, %c0_43, %c0_44] : memref<1x10x16x128xbf16, #tpu.memory_space<vmem>>, vector<1x8x8x128xbf16>
    %38 = vector.shape_cast %37 : vector<1x8x8x128xbf16> to vector<64x128xbf16>
    %c384 = arith.constant 384 : index
    %c0_45 = arith.constant 0 : index
    %39 = vector.load %arg6[%c384, %c0_45] : memref<1152x128xbf16, #tpu.memory_space<vmem>>, vector<128x128xbf16>
    %cst_46 = arith.constant dense<0.000000e+00> : vector<64x128xf32>
    %40 = tpu.matmul %38, %39, %cst_46 {dimension_numbers = #tpu.dot_dimension_numbers<[1], [0], [0], [1], [0, 0, 1, 1], [], []>} : vector<64x128xbf16>, vector<128x128xbf16>, vector<64x128xf32> -> vector<64x128xf32>
    %41 = arith.addf %36, %40 : vector<64x128xf32>
    %c0_47 = arith.constant 0 : index
    %c1_48 = arith.constant 1 : index
    %c1_49 = arith.constant 1 : index
    %c0_50 = arith.constant 0 : index
    %42 = vector.load %arg9[%c0_47, %c1_48, %c1_49, %c0_50] : memref<1x10x16x128xbf16, #tpu.memory_space<vmem>>, vector<1x8x8x128xbf16>
    %43 = vector.shape_cast %42 : vector<1x8x8x128xbf16> to vector<64x128xbf16>
    %c512 = arith.constant 512 : index
    %c0_51 = arith.constant 0 : index
    %44 = vector.load %arg6[%c512, %c0_51] : memref<1152x128xbf16, #tpu.memory_space<vmem>>, vector<128x128xbf16>
    %cst_52 = arith.constant dense<0.000000e+00> : vector<64x128xf32>
    %45 = tpu.matmul %43, %44, %cst_52 {dimension_numbers = #tpu.dot_dimension_numbers<[1], [0], [0], [1], [0, 0, 1, 1], [], []>} : vector<64x128xbf16>, vector<128x128xbf16>, vector<64x128xf32> -> vector<64x128xf32>
    %46 = arith.addf %41, %45 : vector<64x128xf32>
    %c0_53 = arith.constant 0 : index
    %c1_54 = arith.constant 1 : index
    %c2_55 = arith.constant 2 : index
    %c0_56 = arith.constant 0 : index
    %47 = vector.load %arg9[%c0_53, %c1_54, %c2_55, %c0_56] : memref<1x10x16x128xbf16, #tpu.memory_space<vmem>>, vector<1x8x8x128xbf16>
    %48 = vector.shape_cast %47 : vector<1x8x8x128xbf16> to vector<64x128xbf16>
    %c640 = arith.constant 640 : index
    %c0_57 = arith.constant 0 : index
    %49 = vector.load %arg6[%c640, %c0_57] : memref<1152x128xbf16, #tpu.memory_space<vmem>>, vector<128x128xbf16>
    %cst_58 = arith.constant dense<0.000000e+00> : vector<64x128xf32>
    %50 = tpu.matmul %48, %49, %cst_58 {dimension_numbers = #tpu.dot_dimension_numbers<[1], [0], [0], [1], [0, 0, 1, 1], [], []>} : vector<64x128xbf16>, vector<128x128xbf16>, vector<64x128xf32> -> vector<64x128xf32>
    %51 = arith.addf %46, %50 : vector<64x128xf32>
    %c0_59 = arith.constant 0 : index
    %c2_60 = arith.constant 2 : index
    %c0_61 = arith.constant 0 : index
    %c0_62 = arith.constant 0 : index
    %52 = vector.load %arg9[%c0_59, %c2_60, %c0_61, %c0_62] : memref<1x10x16x128xbf16, #tpu.memory_space<vmem>>, vector<1x8x8x128xbf16>
    %53 = vector.shape_cast %52 : vector<1x8x8x128xbf16> to vector<64x128xbf16>
    %c768 = arith.constant 768 : index
    %c0_63 = arith.constant 0 : index
    %54 = vector.load %arg6[%c768, %c0_63] : memref<1152x128xbf16, #tpu.memory_space<vmem>>, vector<128x128xbf16>
    %cst_64 = arith.constant dense<0.000000e+00> : vector<64x128xf32>
    %55 = tpu.matmul %53, %54, %cst_64 {dimension_numbers = #tpu.dot_dimension_numbers<[1], [0], [0], [1], [0, 0, 1, 1], [], []>} : vector<64x128xbf16>, vector<128x128xbf16>, vector<64x128xf32> -> vector<64x128xf32>
    %56 = arith.addf %51, %55 : vector<64x128xf32>
    %c0_65 = arith.constant 0 : index
    %c2_66 = arith.constant 2 : index
    %c1_67 = arith.constant 1 : index
    %c0_68 = arith.constant 0 : index
    %57 = vector.load %arg9[%c0_65, %c2_66, %c1_67, %c0_68] : memref<1x10x16x128xbf16, #tpu.memory_space<vmem>>, vector<1x8x8x128xbf16>
    %58 = vector.shape_cast %57 : vector<1x8x8x128xbf16> to vector<64x128xbf16>
    %c896 = arith.constant 896 : index
    %c0_69 = arith.constant 0 : index
    %59 = vector.load %arg6[%c896, %c0_69] : memref<1152x128xbf16, #tpu.memory_space<vmem>>, vector<128x128xbf16>
    %cst_70 = arith.constant dense<0.000000e+00> : vector<64x128xf32>
    %60 = tpu.matmul %58, %59, %cst_70 {dimension_numbers = #tpu.dot_dimension_numbers<[1], [0], [0], [1], [0, 0, 1, 1], [], []>} : vector<64x128xbf16>, vector<128x128xbf16>, vector<64x128xf32> -> vector<64x128xf32>
    %61 = arith.addf %56, %60 : vector<64x128xf32>
    %c0_71 = arith.constant 0 : index
    %c2_72 = arith.constant 2 : index
    %c2_73 = arith.constant 2 : index
    %c0_74 = arith.constant 0 : index
    %62 = vector.load %arg9[%c0_71, %c2_72, %c2_73, %c0_74] : memref<1x10x16x128xbf16, #tpu.memory_space<vmem>>, vector<1x8x8x128xbf16>
    %63 = vector.shape_cast %62 : vector<1x8x8x128xbf16> to vector<64x128xbf16>
    %c1024 = arith.constant 1024 : index
    %c0_75 = arith.constant 0 : index
    %64 = vector.load %arg6[%c1024, %c0_75] : memref<1152x128xbf16, #tpu.memory_space<vmem>>, vector<128x128xbf16>
    %cst_76 = arith.constant dense<0.000000e+00> : vector<64x128xf32>
    %65 = tpu.matmul %63, %64, %cst_76 {dimension_numbers = #tpu.dot_dimension_numbers<[1], [0], [0], [1], [0, 0, 1, 1], [], []>} : vector<64x128xbf16>, vector<128x128xbf16>, vector<64x128xf32> -> vector<64x128xf32>
    %66 = arith.addf %61, %65 : vector<64x128xf32>
    %c0_77 = arith.constant 0 : index
    %c0_78 = arith.constant 0 : index
    %67 = vector.load %arg7[%c0_77, %c0_78] : memref<1x128xf32, #tpu.memory_space<vmem>>, vector<1x128xf32>
    %68 = vector.broadcast %67 : vector<1x128xf32> to vector<64x128xf32>
    %69 = arith.addf %66, %68 : vector<64x128xf32>
    %70 = vector.shape_cast %69 : vector<64x128xf32> to vector<1x8x8x128xf32>
    %c0_79 = arith.constant 0 : index
    %c0_80 = arith.constant 0 : index
    %c0_81 = arith.constant 0 : index
    %c0_82 = arith.constant 0 : index
    %71 = vector.load %arg8[%c0_79, %c0_80, %c0_81, %c0_82] : memref<1x8x8x128xf32, #tpu.memory_space<vmem>>, vector<1x8x8x128xf32>
    tpu.vector_store %arg8[%c0_79, %c0_80, %c0_81, %c0_82], %70 {strides = array<i32>} : memref<1x8x8x128xf32, #tpu.memory_space<vmem>>, vector<1x8x8x128xf32>,
    %cst_83 = arith.constant 0.000000e+00 : f32
    %72 = vector.broadcast %cst_83 : f32 to vector<1x16x16x128xf32>
    %73 = arith.maximumf %0, %72 : vector<1x16x16x128xf32>
    %74 = vector.shape_cast %73 : vector<1x16x16x128xf32> to vector<128x2x128xf32>
    %75 = vector.extract_strided_slice %74 {offsets = [0, 0, 0], sizes = [128, 1, 128], strides = [1, 1, 1]} : vector<128x2x128xf32> to vector<128x1x128xf32>
    %76 = vector.shape_cast %75 : vector<128x1x128xf32> to vector<128x128xf32>
    %77 = vector.extract_strided_slice %74 {offsets = [0, 1, 0], sizes = [128, 1, 128], strides = [1, 1, 1]} : vector<128x2x128xf32> to vector<128x1x128xf32>
    %78 = vector.shape_cast %77 : vector<128x1x128xf32> to vector<128x128xf32>
    %79 = arith.addf %76, %78 : vector<128x128xf32>
    %80 = vector.shape_cast %79 : vector<128x128xf32> to vector<1x8x2x8x128xf32>
    %81 = vector.extract_strided_slice %80 {offsets = [0, 0, 0, 0, 0], sizes = [1, 8, 1, 8, 128], strides = [1, 1, 1, 1, 1]} : vector<1x8x2x8x128xf32> to vector<1x8x1x8x128xf32>
    %82 = vector.shape_cast %81 : vector<1x8x1x8x128xf32> to vector<1x8x8x128xf32>
    %83 = vector.extract_strided_slice %80 {offsets = [0, 0, 1, 0, 0], sizes = [1, 8, 1, 8, 128], strides = [1, 1, 1, 1, 1]} : vector<1x8x2x8x128xf32> to vector<1x8x1x8x128xf32>
    %84 = vector.shape_cast %83 : vector<1x8x1x8x128xf32> to vector<1x8x8x128xf32>
    %85 = arith.addf %82, %84 : vector<1x8x8x128xf32>
    %cst_84 = arith.constant 2.500000e-01 : f32
    %86 = vector.broadcast %cst_84 : f32 to vector<1x8x8x128xf32>
    %87 = arith.mulf %85, %86 : vector<1x8x8x128xf32>
    %88 = arith.truncf %87 : vector<1x8x8x128xf32> to vector<1x8x8x128xbf16>
    %c0_85 = arith.constant 0 : index
    %c1_86 = arith.constant 1 : index
    %c1_87 = arith.constant 1 : index
    %c0_88 = arith.constant 0 : index
    %89 = vector.load %arg9[%c0_85, %c1_86, %c1_87, %c0_88] : memref<1x10x16x128xbf16, #tpu.memory_space<vmem>>, vector<1x8x8x128xbf16>
    tpu.vector_store %arg9[%c0_85, %c1_86, %c1_87, %c0_88], %88 {strides = array<i32>} : memref<1x10x16x128xbf16, #tpu.memory_space<vmem>>, vector<1x8x8x128xbf16>,
    %c0_89 = arith.constant 0 : index
    %c0_90 = arith.constant 0 : index
    %c0_91 = arith.constant 0 : index
    %c0_92 = arith.constant 0 : index
    %90 = vector.load %arg9[%c0_89, %c0_90, %c0_91, %c0_92] : memref<1x10x16x128xbf16, #tpu.memory_space<vmem>>, vector<1x8x8x128xbf16>
    %91 = vector.shape_cast %90 : vector<1x8x8x128xbf16> to vector<64x128xbf16>
    %c0_93 = arith.constant 0 : index
    %c0_94 = arith.constant 0 : index
    %92 = vector.load %arg2[%c0_93, %c0_94] : memref<1152x128xbf16, #tpu.memory_space<vmem>>, vector<128x128xbf16>
    %cst_95 = arith.constant dense<0.000000e+00> : vector<64x128xf32>
    %93 = tpu.matmul %91, %92, %cst_95 {dimension_numbers = #tpu.dot_dimension_numbers<[1], [0], [0], [1], [0, 0, 1, 1], [], []>} : vector<64x128xbf16>, vector<128x128xbf16>, vector<64x128xf32> -> vector<64x128xf32>
    %c0_96 = arith.constant 0 : index
    %c0_97 = arith.constant 0 : index
    %c1_98 = arith.constant 1 : index
    %c0_99 = arith.constant 0 : index
    %94 = vector.load %arg9[%c0_96, %c0_97, %c1_98, %c0_99] : memref<1x10x16x128xbf16, #tpu.memory_space<vmem>>, vector<1x8x8x128xbf16>
    %95 = vector.shape_cast %94 : vector<1x8x8x128xbf16> to vector<64x128xbf16>
    %c128_100 = arith.constant 128 : index
    %c0_101 = arith.constant 0 : index
    %96 = vector.load %arg2[%c128_100, %c0_101] : memref<1152x128xbf16, #tpu.memory_space<vmem>>, vector<128x128xbf16>
    %cst_102 = arith.constant dense<0.000000e+00> : vector<64x128xf32>
    %97 = tpu.matmul %95, %96, %cst_102 {dimension_numbers = #tpu.dot_dimension_numbers<[1], [0], [0], [1], [0, 0, 1, 1], [], []>} : vector<64x128xbf16>, vector<128x128xbf16>, vector<64x128xf32> -> vector<64x128xf32>
    %98 = arith.addf %93, %97 : vector<64x128xf32>
    %c0_103 = arith.constant 0 : index
    %c0_104 = arith.constant 0 : index
    %c2_105 = arith.constant 2 : index
    %c0_106 = arith.constant 0 : index
    %99 = vector.load %arg9[%c0_103, %c0_104, %c2_105, %c0_106] : memref<1x10x16x128xbf16, #tpu.memory_space<vmem>>, vector<1x8x8x128xbf16>
    %100 = vector.shape_cast %99 : vector<1x8x8x128xbf16> to vector<64x128xbf16>
    %c256_107 = arith.constant 256 : index
    %c0_108 = arith.constant 0 : index
    %101 = vector.load %arg2[%c256_107, %c0_108] : memref<1152x128xbf16, #tpu.memory_space<vmem>>, vector<128x128xbf16>
    %cst_109 = arith.constant dense<0.000000e+00> : vector<64x128xf32>
    %102 = tpu.matmul %100, %101, %cst_109 {dimension_numbers = #tpu.dot_dimension_numbers<[1], [0], [0], [1], [0, 0, 1, 1], [], []>} : vector<64x128xbf16>, vector<128x128xbf16>, vector<64x128xf32> -> vector<64x128xf32>
    %103 = arith.addf %98, %102 : vector<64x128xf32>
    %c0_110 = arith.constant 0 : index
    %c1_111 = arith.constant 1 : index
    %c0_112 = arith.constant 0 : index
    %c0_113 = arith.constant 0 : index
    %104 = vector.load %arg9[%c0_110, %c1_111, %c0_112, %c0_113] : memref<1x10x16x128xbf16, #tpu.memory_space<vmem>>, vector<1x8x8x128xbf16>
    %105 = vector.shape_cast %104 : vector<1x8x8x128xbf16> to vector<64x128xbf16>
    %c384_114 = arith.constant 384 : index
    %c0_115 = arith.constant 0 : index
    %106 = vector.load %arg2[%c384_114, %c0_115] : memref<1152x128xbf16, #tpu.memory_space<vmem>>, vector<128x128xbf16>
    %cst_116 = arith.constant dense<0.000000e+00> : vector<64x128xf32>
    %107 = tpu.matmul %105, %106, %cst_116 {dimension_numbers = #tpu.dot_dimension_numbers<[1], [0], [0], [1], [0, 0, 1, 1], [], []>} : vector<64x128xbf16>, vector<128x128xbf16>, vector<64x128xf32> -> vector<64x128xf32>
    %108 = arith.addf %103, %107 : vector<64x128xf32>
    %c0_117 = arith.constant 0 : index
    %c1_118 = arith.constant 1 : index
    %c1_119 = arith.constant 1 : index
    %c0_120 = arith.constant 0 : index
    %109 = vector.load %arg9[%c0_117, %c1_118, %c1_119, %c0_120] : memref<1x10x16x128xbf16, #tpu.memory_space<vmem>>, vector<1x8x8x128xbf16>
    %110 = vector.shape_cast %109 : vector<1x8x8x128xbf16> to vector<64x128xbf16>
    %c512_121 = arith.constant 512 : index
    %c0_122 = arith.constant 0 : index
    %111 = vector.load %arg2[%c512_121, %c0_122] : memref<1152x128xbf16, #tpu.memory_space<vmem>>, vector<128x128xbf16>
    %cst_123 = arith.constant dense<0.000000e+00> : vector<64x128xf32>
    %112 = tpu.matmul %110, %111, %cst_123 {dimension_numbers = #tpu.dot_dimension_numbers<[1], [0], [0], [1], [0, 0, 1, 1], [], []>} : vector<64x128xbf16>, vector<128x128xbf16>, vector<64x128xf32> -> vector<64x128xf32>
    %113 = arith.addf %108, %112 : vector<64x128xf32>
    %c0_124 = arith.constant 0 : index
    %c1_125 = arith.constant 1 : index
    %c2_126 = arith.constant 2 : index
    %c0_127 = arith.constant 0 : index
    %114 = vector.load %arg9[%c0_124, %c1_125, %c2_126, %c0_127] : memref<1x10x16x128xbf16, #tpu.memory_space<vmem>>, vector<1x8x8x128xbf16>
    %115 = vector.shape_cast %114 : vector<1x8x8x128xbf16> to vector<64x128xbf16>
    %c640_128 = arith.constant 640 : index
    %c0_129 = arith.constant 0 : index
    %116 = vector.load %arg2[%c640_128, %c0_129] : memref<1152x128xbf16, #tpu.memory_space<vmem>>, vector<128x128xbf16>
    %cst_130 = arith.constant dense<0.000000e+00> : vector<64x128xf32>
    %117 = tpu.matmul %115, %116, %cst_130 {dimension_numbers = #tpu.dot_dimension_numbers<[1], [0], [0], [1], [0, 0, 1, 1], [], []>} : vector<64x128xbf16>, vector<128x128xbf16>, vector<64x128xf32> -> vector<64x128xf32>
    %118 = arith.addf %113, %117 : vector<64x128xf32>
    %c0_131 = arith.constant 0 : index
    %c2_132 = arith.constant 2 : index
    %c0_133 = arith.constant 0 : index
    %c0_134 = arith.constant 0 : index
    %119 = vector.load %arg9[%c0_131, %c2_132, %c0_133, %c0_134] : memref<1x10x16x128xbf16, #tpu.memory_space<vmem>>, vector<1x8x8x128xbf16>
    %120 = vector.shape_cast %119 : vector<1x8x8x128xbf16> to vector<64x128xbf16>
    %c768_135 = arith.constant 768 : index
    %c0_136 = arith.constant 0 : index
    %121 = vector.load %arg2[%c768_135, %c0_136] : memref<1152x128xbf16, #tpu.memory_space<vmem>>, vector<128x128xbf16>
    %cst_137 = arith.constant dense<0.000000e+00> : vector<64x128xf32>
    %122 = tpu.matmul %120, %121, %cst_137 {dimension_numbers = #tpu.dot_dimension_numbers<[1], [0], [0], [1], [0, 0, 1, 1], [], []>} : vector<64x128xbf16>, vector<128x128xbf16>, vector<64x128xf32> -> vector<64x128xf32>
    %123 = arith.addf %118, %122 : vector<64x128xf32>
    %c0_138 = arith.constant 0 : index
    %c2_139 = arith.constant 2 : index
    %c1_140 = arith.constant 1 : index
    %c0_141 = arith.constant 0 : index
    %124 = vector.load %arg9[%c0_138, %c2_139, %c1_140, %c0_141] : memref<1x10x16x128xbf16, #tpu.memory_space<vmem>>, vector<1x8x8x128xbf16>
    %125 = vector.shape_cast %124 : vector<1x8x8x128xbf16> to vector<64x128xbf16>
    %c896_142 = arith.constant 896 : index
    %c0_143 = arith.constant 0 : index
    %126 = vector.load %arg2[%c896_142, %c0_143] : memref<1152x128xbf16, #tpu.memory_space<vmem>>, vector<128x128xbf16>
    %cst_144 = arith.constant dense<0.000000e+00> : vector<64x128xf32>
    %127 = tpu.matmul %125, %126, %cst_144 {dimension_numbers = #tpu.dot_dimension_numbers<[1], [0], [0], [1], [0, 0, 1, 1], [], []>} : vector<64x128xbf16>, vector<128x128xbf16>, vector<64x128xf32> -> vector<64x128xf32>
    %128 = arith.addf %123, %127 : vector<64x128xf32>
    %c0_145 = arith.constant 0 : index
    %c2_146 = arith.constant 2 : index
    %c2_147 = arith.constant 2 : index
    %c0_148 = arith.constant 0 : index
    %129 = vector.load %arg9[%c0_145, %c2_146, %c2_147, %c0_148] : memref<1x10x16x128xbf16, #tpu.memory_space<vmem>>, vector<1x8x8x128xbf16>
    %130 = vector.shape_cast %129 : vector<1x8x8x128xbf16> to vector<64x128xbf16>
    %c1024_149 = arith.constant 1024 : index
    %c0_150 = arith.constant 0 : index
    %131 = vector.load %arg2[%c1024_149, %c0_150] : memref<1152x128xbf16, #tpu.memory_space<vmem>>, vector<128x128xbf16>
    %cst_151 = arith.constant dense<0.000000e+00> : vector<64x128xf32>
    %132 = tpu.matmul %130, %131, %cst_151 {dimension_numbers = #tpu.dot_dimension_numbers<[1], [0], [0], [1], [0, 0, 1, 1], [], []>} : vector<64x128xbf16>, vector<128x128xbf16>, vector<64x128xf32> -> vector<64x128xf32>
    %133 = arith.addf %128, %132 : vector<64x128xf32>
    %c0_152 = arith.constant 0 : index
    %c0_153 = arith.constant 0 : index
    %134 = vector.load %arg3[%c0_152, %c0_153] : memref<1x128xf32, #tpu.memory_space<vmem>>, vector<1x128xf32>
    %135 = vector.broadcast %134 : vector<1x128xf32> to vector<64x128xf32>
    %136 = arith.addf %133, %135 : vector<64x128xf32>
    %cst_154 = arith.constant 0.000000e+00 : f32
    %137 = vector.broadcast %cst_154 : f32 to vector<64x128xf32>
    %138 = arith.maximumf %136, %137 : vector<64x128xf32>
    %139 = arith.truncf %138 : vector<64x128xf32> to vector<64x128xbf16>
    %c0_155 = arith.constant 0 : index
    %c0_156 = arith.constant 0 : index
    %140 = vector.load %arg4[%c0_155, %c0_156] : memref<128x128xbf16, #tpu.memory_space<vmem>>, vector<128x128xbf16>
    %cst_157 = arith.constant dense<0.000000e+00> : vector<64x128xf32>
    %141 = tpu.matmul %139, %140, %cst_157 {dimension_numbers = #tpu.dot_dimension_numbers<[1], [0], [0], [1], [0, 0, 1, 1], [], []>} : vector<64x128xbf16>, vector<128x128xbf16>, vector<64x128xf32> -> vector<64x128xf32>
    %c0_158 = arith.constant 0 : index
    %c0_159 = arith.constant 0 : index
    %142 = vector.load %arg5[%c0_158, %c0_159] : memref<1x128xf32, #tpu.memory_space<vmem>>, vector<1x128xf32>
    %143 = vector.broadcast %142 : vector<1x128xf32> to vector<64x128xf32>
    %144 = arith.addf %141, %143 : vector<64x128xf32>
    %c0_160 = arith.constant 0 : index
    %c0_161 = arith.constant 0 : index
    %c0_162 = arith.constant 0 : index
    %c0_163 = arith.constant 0 : index
    %145 = vector.load %arg8[%c0_160, %c0_161, %c0_162, %c0_163] : memref<1x8x8x128xf32, #tpu.memory_space<vmem>>, vector<1x8x8x128xf32>
    %146 = vector.shape_cast %144 : vector<64x128xf32> to vector<1x8x8x128xf32>
    %147 = arith.addf %145, %146 : vector<1x8x8x128xf32>
    %c0_164 = arith.constant 0 : index
    %c0_165 = arith.constant 0 : index
    %c0_166 = arith.constant 0 : index
    %c0_167 = arith.constant 0 : index
    %148 = vector.load %arg8[%c0_164, %c0_165, %c0_166, %c0_167] : memref<1x8x8x128xf32, #tpu.memory_space<vmem>>, vector<1x8x8x128xf32>
    tpu.vector_store %arg8[%c0_164, %c0_165, %c0_166, %c0_167], %147 {strides = array<i32>} : memref<1x8x8x128xf32, #tpu.memory_space<vmem>>, vector<1x8x8x128xf32>,
    return
  }
  func.func @transform_0(%arg0: i32) -> (i32, i32, i32, i32) {
    %c0_i32 = arith.constant 0 : i32
    %c0_i32_0 = arith.constant 0 : i32
    %c0_i32_1 = arith.constant 0 : i32
    %c0_i32_2 = arith.constant 0 : i32
    return %arg0, %c0_i32, %c0_i32_0, %c0_i32_1 : i32, i32, i32, i32
  }
  func.func @transform_1(%arg0: i32) -> (i32, i32) {
    %c0_i32 = arith.constant 0 : i32
    %c0_i32_0 = arith.constant 0 : i32
    %c0_i32_1 = arith.constant 0 : i32
    return %c0_i32, %c0_i32_0 : i32, i32
  }
  func.func @transform_2(%arg0: i32) -> (i32, i32) {
    %c0_i32 = arith.constant 0 : i32
    %c0_i32_0 = arith.constant 0 : i32
    %c0_i32_1 = arith.constant 0 : i32
    return %c0_i32, %c0_i32_0 : i32, i32
  }
  func.func @transform_3(%arg0: i32) -> (i32, i32) {
    %c0_i32 = arith.constant 0 : i32
    %c0_i32_0 = arith.constant 0 : i32
    %c0_i32_1 = arith.constant 0 : i32
    return %c0_i32, %c0_i32_0 : i32, i32
  }
  func.func @transform_4(%arg0: i32) -> (i32, i32) {
    %c0_i32 = arith.constant 0 : i32
    %c0_i32_0 = arith.constant 0 : i32
    %c0_i32_1 = arith.constant 0 : i32
    return %c0_i32, %c0_i32_0 : i32, i32
  }
  func.func @transform_5(%arg0: i32) -> (i32, i32) {
    %c0_i32 = arith.constant 0 : i32
    %c0_i32_0 = arith.constant 0 : i32
    %c0_i32_1 = arith.constant 0 : i32
    return %c0_i32, %c0_i32_0 : i32, i32
  }
  func.func @transform_6(%arg0: i32) -> (i32, i32) {
    %c0_i32 = arith.constant 0 : i32
    %c0_i32_0 = arith.constant 0 : i32
    %c0_i32_1 = arith.constant 0 : i32
    return %c0_i32, %c0_i32_0 : i32, i32
  }
  func.func @transform_7(%arg0: i32) -> (i32, i32, i32, i32) {
    %c0_i32 = arith.constant 0 : i32
    %c0_i32_0 = arith.constant 0 : i32
    %c0_i32_1 = arith.constant 0 : i32
    %c0_i32_2 = arith.constant 0 : i32
    return %arg0, %c0_i32, %c0_i32_0, %c0_i32_1 : i32, i32, i32, i32
  }
}

module attributes {stable_mosaic.version = 11 : i64} {
  func.func @kernel(%arg0: i32, %arg1: memref<1x16x16x128xf32, #tpu.memory_space<vmem>>, %arg2: memref<1152x128xbf16, #tpu.memory_space<vmem>>, %arg3: memref<1x128xf32, #tpu.memory_space<vmem>>, %arg4: memref<128x128xbf16, #tpu.memory_space<vmem>>, %arg5: memref<1x128xf32, #tpu.memory_space<vmem>>, %arg6: memref<1152x128xbf16, #tpu.memory_space<vmem>>, %arg7: memref<1x128xf32, #tpu.memory_space<vmem>>, %arg8: memref<1x8x8x128xf32, #tpu.memory_space<vmem>>, %arg9: memref<1x10x16x128xbf16, #tpu.memory_space<vmem>>) attributes {dimension_semantics = [#tpu.dimension_semantics<parallel>], iteration_bounds = array<i64: 2>, scalar_prefetch = 0 : i64, scratch_operands = 1 : i64, tpu.core_type = #tpu.core_type<tc>, window_params = [{transform_indices = @transform_0, window_bounds = array<i64: 1, 16, 16, 128>}, {pipeline_mode = #tpu.pipeline_mode<synchronous>, transform_indices = @transform_1, window_bounds = array<i64: 1152, 128>}, {pipeline_mode = #tpu.pipeline_mode<synchronous>, transform_indices = @transform_2, window_bounds = array<i64: 1, 128>}, {pipeline_mode = #tpu.pipeline_mode<synchronous>, transform_indices = @transform_3, window_bounds = array<i64: 128, 128>}, {pipeline_mode = #tpu.pipeline_mode<synchronous>, transform_indices = @transform_4, window_bounds = array<i64: 1, 128>}, {pipeline_mode = #tpu.pipeline_mode<synchronous>, transform_indices = @transform_5, window_bounds = array<i64: 1152, 128>}, {pipeline_mode = #tpu.pipeline_mode<synchronous>, transform_indices = @transform_6, window_bounds = array<i64: 1, 128>}, {transform_indices = @transform_7, window_bounds = array<i64: 1, 8, 8, 128>}]} {
    %c0 = arith.constant 0 : index
    %c0_0 = arith.constant 0 : index
    %c0_1 = arith.constant 0 : index
    %c0_2 = arith.constant 0 : index
    %0 = vector.load %arg1[%c0, %c0_0, %c0_1, %c0_2] : memref<1x16x16x128xf32, #tpu.memory_space<vmem>>, vector<1x16x16x128xf32>
    %cst = arith.constant 0.000000e+00 : bf16
    %1 = vector.broadcast %cst : bf16 to vector<1x1x16x128xbf16>
    %cst_3 = arith.constant 0.000000e+00 : bf16
    %2 = vector.broadcast %cst_3 : bf16 to vector<1x8x1x128xbf16>
    %c0_4 = arith.constant 0 : index
    %c0_5 = arith.constant 0 : index
    %c0_6 = arith.constant 0 : index
    %c0_7 = arith.constant 0 : index
    %3 = vector.load %arg9[%c0_4, %c0_5, %c0_6, %c0_7] : memref<1x10x16x128xbf16, #tpu.memory_space<vmem>>, vector<1x1x16x128xbf16>
    tpu.vector_store %arg9[%c0_4, %c0_5, %c0_6, %c0_7], %1 {strides = array<i32>} : memref<1x10x16x128xbf16, #tpu.memory_space<vmem>>, vector<1x1x16x128xbf16>,
    %c0_8 = arith.constant 0 : index
    %c9 = arith.constant 9 : index
    %c0_9 = arith.constant 0 : index
    %c0_10 = arith.constant 0 : index
    %4 = vector.load %arg9[%c0_8, %c9, %c0_9, %c0_10] : memref<1x10x16x128xbf16, #tpu.memory_space<vmem>>, vector<1x1x16x128xbf16>
    tpu.vector_store %arg9[%c0_8, %c9, %c0_9, %c0_10], %1 {strides = array<i32>} : memref<1x10x16x128xbf16, #tpu.memory_space<vmem>>, vector<1x1x16x128xbf16>,
    %c0_11 = arith.constant 0 : index
    %c1 = arith.constant 1 : index
    %c0_12 = arith.constant 0 : index
    %c0_13 = arith.constant 0 : index
    %5 = vector.load %arg9[%c0_11, %c1, %c0_12, %c0_13] : memref<1x10x16x128xbf16, #tpu.memory_space<vmem>>, vector<1x8x1x128xbf16>
    tpu.vector_store %arg9[%c0_11, %c1, %c0_12, %c0_13], %2 {strides = array<i32>} : memref<1x10x16x128xbf16, #tpu.memory_space<vmem>>, vector<1x8x1x128xbf16>,
    %c0_14 = arith.constant 0 : index
    %c1_15 = arith.constant 1 : index
    %c9_16 = arith.constant 9 : index
    %c0_17 = arith.constant 0 : index
    %6 = vector.load %arg9[%c0_14, %c1_15, %c9_16, %c0_17] : memref<1x10x16x128xbf16, #tpu.memory_space<vmem>>, vector<1x8x1x128xbf16>
    tpu.vector_store %arg9[%c0_14, %c1_15, %c9_16, %c0_17], %2 {strides = array<i32>} : memref<1x10x16x128xbf16, #tpu.memory_space<vmem>>, vector<1x8x1x128xbf16>,
    %7 = vector.shape_cast %0 : vector<1x16x16x128xf32> to vector<128x2x128xf32>
    %8 = vector.extract_strided_slice %7 {offsets = [0, 0, 0], sizes = [128, 1, 128], strides = [1, 1, 1]} : vector<128x2x128xf32> to vector<128x1x128xf32>
    %9 = vector.shape_cast %8 : vector<128x1x128xf32> to vector<128x128xf32>
    %10 = vector.extract_strided_slice %7 {offsets = [0, 1, 0], sizes = [128, 1, 128], strides = [1, 1, 1]} : vector<128x2x128xf32> to vector<128x1x128xf32>
    %11 = vector.shape_cast %10 : vector<128x1x128xf32> to vector<128x128xf32>
    %12 = arith.addf %9, %11 : vector<128x128xf32>
    %13 = vector.shape_cast %12 : vector<128x128xf32> to vector<1x8x2x8x128xf32>
    %14 = vector.extract_strided_slice %13 {offsets = [0, 0, 0, 0, 0], sizes = [1, 8, 1, 8, 128], strides = [1, 1, 1, 1, 1]} : vector<1x8x2x8x128xf32> to vector<1x8x1x8x128xf32>
    %15 = vector.shape_cast %14 : vector<1x8x1x8x128xf32> to vector<1x8x8x128xf32>
    %16 = vector.extract_strided_slice %13 {offsets = [0, 0, 1, 0, 0], sizes = [1, 8, 1, 8, 128], strides = [1, 1, 1, 1, 1]} : vector<1x8x2x8x128xf32> to vector<1x8x1x8x128xf32>
    %17 = vector.shape_cast %16 : vector<1x8x1x8x128xf32> to vector<1x8x8x128xf32>
    %18 = arith.addf %15, %17 : vector<1x8x8x128xf32>
    %cst_18 = arith.constant 2.500000e-01 : f32
    %19 = vector.broadcast %cst_18 : f32 to vector<1x8x8x128xf32>
    %20 = arith.mulf %18, %19 : vector<1x8x8x128xf32>
    %21 = arith.truncf %20 : vector<1x8x8x128xf32> to vector<1x8x8x128xbf16>
    %c0_19 = arith.constant 0 : index
    %c1_20 = arith.constant 1 : index
    %c1_21 = arith.constant 1 : index
    %c0_22 = arith.constant 0 : index
    %22 = vector.load %arg9[%c0_19, %c1_20, %c1_21, %c0_22] : memref<1x10x16x128xbf16, #tpu.memory_space<vmem>>, vector<1x8x8x128xbf16>
    tpu.vector_store %arg9[%c0_19, %c1_20, %c1_21, %c0_22], %21 {strides = array<i32>} : memref<1x10x16x128xbf16, #tpu.memory_space<vmem>>, vector<1x8x8x128xbf16>,
    %c0_23 = arith.constant 0 : index
    %c0_24 = arith.constant 0 : index
    %c0_25 = arith.constant 0 : index
    %c0_26 = arith.constant 0 : index
    %23 = vector.load %arg9[%c0_23, %c0_24, %c0_25, %c0_26] : memref<1x10x16x128xbf16, #tpu.memory_space<vmem>>, vector<1x8x8x128xbf16>
    %24 = vector.shape_cast %23 : vector<1x8x8x128xbf16> to vector<64x128xbf16>
    %c0_27 = arith.constant 0 : index
    %c0_28 = arith.constant 0 : index
    %25 = vector.load %arg6[%c0_27, %c0_28] : memref<1152x128xbf16, #tpu.memory_space<vmem>>, vector<128x128xbf16>
    %cst_29 = arith.constant dense<0.000000e+00> : vector<64x128xf32>
    %26 = tpu.matmul %24, %25, %cst_29 {dimension_numbers = #tpu.dot_dimension_numbers<[1], [0], [0], [1], [0, 0, 1, 1], [], []>} : vector<64x128xbf16>, vector<128x128xbf16>, vector<64x128xf32> -> vector<64x128xf32>
    %c0_30 = arith.constant 0 : index
    %c0_31 = arith.constant 0 : index
    %c1_32 = arith.constant 1 : index
    %c0_33 = arith.constant 0 : index
    %27 = vector.load %arg9[%c0_30, %c0_31, %c1_32, %c0_33] : memref<1x10x16x128xbf16, #tpu.memory_space<vmem>>, vector<1x8x8x128xbf16>
    %28 = vector.shape_cast %27 : vector<1x8x8x128xbf16> to vector<64x128xbf16>
    %c128 = arith.constant 128 : index
    %c0_34 = arith.constant 0 : index
    %29 = vector.load %arg6[%c128, %c0_34] : memref<1152x128xbf16, #tpu.memory_space<vmem>>, vector<128x128xbf16>
    %cst_35 = arith.constant dense<0.000000e+00> : vector<64x128xf32>
    %30 = tpu.matmul %28, %29, %cst_35 {dimension_numbers = #tpu.dot_dimension_numbers<[1], [0], [0], [1], [0, 0, 1, 1], [], []>} : vector<64x128xbf16>, vector<128x128xbf16>, vector<64x128xf32> -> vector<64x128xf32>
    %31 = arith.addf %26, %30 : vector<64x128xf32>
    %c0_36 = arith.constant 0 : index
    %c0_37 = arith.constant 0 : index
    %c2 = arith.constant 2 : index
    %c0_38 = arith.constant 0 : index
    %32 = vector.load %arg9[%c0_36, %c0_37, %c2, %c0_38] : memref<1x10x16x128xbf16, #tpu.memory_space<vmem>>, vector<1x8x8x128xbf16>
    %33 = vector.shape_cast %32 : vector<1x8x8x128xbf16> to vector<64x128xbf16>
    %c256 = arith.constant 256 : index
    %c0_39 = arith.constant 0 : index
    %34 = vector.load %arg6[%c256, %c0_39] : memref<1152x128xbf16, #tpu.memory_space<vmem>>, vector<128x128xbf16>
    %cst_40 = arith.constant dense<0.000000e+00> : vector<64x128xf32>
    %35 = tpu.matmul %33, %34, %cst_40 {dimension_numbers = #tpu.dot_dimension_numbers<[1], [0], [0], [1], [0, 0, 1, 1], [], []>} : vector<64x128xbf16>, vector<128x128xbf16>, vector<64x128xf32> -> vector<64x128xf32>
    %36 = arith.addf %31, %35 : vector<64x128xf32>
    %c0_41 = arith.constant 0 : index
    %c1_42 = arith.constant 1 : index
    %c0_43 = arith.constant 0 : index
    %c0_44 = arith.constant 0 : index
    %37 = vector.load %arg9[%c0_41, %c1_42, %c0_43, %c0_44] : memref<1x10x16x128xbf16, #tpu.memory_space<vmem>>, vector<1x8x8x128xbf16>
    %38 = vector.shape_cast %37 : vector<1x8x8x128xbf16> to vector<64x128xbf16>
    %c384 = arith.constant 384 : index
    %c0_45 = arith.constant 0 : index
    %39 = vector.load %arg6[%c384, %c0_45] : memref<1152x128xbf16, #tpu.memory_space<vmem>>, vector<128x128xbf16>
    %cst_46 = arith.constant dense<0.000000e+00> : vector<64x128xf32>
    %40 = tpu.matmul %38, %39, %cst_46 {dimension_numbers = #tpu.dot_dimension_numbers<[1], [0], [0], [1], [0, 0, 1, 1], [], []>} : vector<64x128xbf16>, vector<128x128xbf16>, vector<64x128xf32> -> vector<64x128xf32>
    %41 = arith.addf %36, %40 : vector<64x128xf32>
    %c0_47 = arith.constant 0 : index
    %c1_48 = arith.constant 1 : index
    %c1_49 = arith.constant 1 : index
    %c0_50 = arith.constant 0 : index
    %42 = vector.load %arg9[%c0_47, %c1_48, %c1_49, %c0_50] : memref<1x10x16x128xbf16, #tpu.memory_space<vmem>>, vector<1x8x8x128xbf16>
    %43 = vector.shape_cast %42 : vector<1x8x8x128xbf16> to vector<64x128xbf16>
    %c512 = arith.constant 512 : index
    %c0_51 = arith.constant 0 : index
    %44 = vector.load %arg6[%c512, %c0_51] : memref<1152x128xbf16, #tpu.memory_space<vmem>>, vector<128x128xbf16>
    %cst_52 = arith.constant dense<0.000000e+00> : vector<64x128xf32>
    %45 = tpu.matmul %43, %44, %cst_52 {dimension_numbers = #tpu.dot_dimension_numbers<[1], [0], [0], [1], [0, 0, 1, 1], [], []>} : vector<64x128xbf16>, vector<128x128xbf16>, vector<64x128xf32> -> vector<64x128xf32>
    %46 = arith.addf %41, %45 : vector<64x128xf32>
    %c0_53 = arith.constant 0 : index
    %c1_54 = arith.constant 1 : index
    %c2_55 = arith.constant 2 : index
    %c0_56 = arith.constant 0 : index
    %47 = vector.load %arg9[%c0_53, %c1_54, %c2_55, %c0_56] : memref<1x10x16x128xbf16, #tpu.memory_space<vmem>>, vector<1x8x8x128xbf16>
    %48 = vector.shape_cast %47 : vector<1x8x8x128xbf16> to vector<64x128xbf16>
    %c640 = arith.constant 640 : index
    %c0_57 = arith.constant 0 : index
    %49 = vector.load %arg6[%c640, %c0_57] : memref<1152x128xbf16, #tpu.memory_space<vmem>>, vector<128x128xbf16>
    %cst_58 = arith.constant dense<0.000000e+00> : vector<64x128xf32>
    %50 = tpu.matmul %48, %49, %cst_58 {dimension_numbers = #tpu.dot_dimension_numbers<[1], [0], [0], [1], [0, 0, 1, 1], [], []>} : vector<64x128xbf16>, vector<128x128xbf16>, vector<64x128xf32> -> vector<64x128xf32>
    %51 = arith.addf %46, %50 : vector<64x128xf32>
    %c0_59 = arith.constant 0 : index
    %c2_60 = arith.constant 2 : index
    %c0_61 = arith.constant 0 : index
    %c0_62 = arith.constant 0 : index
    %52 = vector.load %arg9[%c0_59, %c2_60, %c0_61, %c0_62] : memref<1x10x16x128xbf16, #tpu.memory_space<vmem>>, vector<1x8x8x128xbf16>
    %53 = vector.shape_cast %52 : vector<1x8x8x128xbf16> to vector<64x128xbf16>
    %c768 = arith.constant 768 : index
    %c0_63 = arith.constant 0 : index
    %54 = vector.load %arg6[%c768, %c0_63] : memref<1152x128xbf16, #tpu.memory_space<vmem>>, vector<128x128xbf16>
    %cst_64 = arith.constant dense<0.000000e+00> : vector<64x128xf32>
    %55 = tpu.matmul %53, %54, %cst_64 {dimension_numbers = #tpu.dot_dimension_numbers<[1], [0], [0], [1], [0, 0, 1, 1], [], []>} : vector<64x128xbf16>, vector<128x128xbf16>, vector<64x128xf32> -> vector<64x128xf32>
    %56 = arith.addf %51, %55 : vector<64x128xf32>
    %c0_65 = arith.constant 0 : index
    %c2_66 = arith.constant 2 : index
    %c1_67 = arith.constant 1 : index
    %c0_68 = arith.constant 0 : index
    %57 = vector.load %arg9[%c0_65, %c2_66, %c1_67, %c0_68] : memref<1x10x16x128xbf16, #tpu.memory_space<vmem>>, vector<1x8x8x128xbf16>
    %58 = vector.shape_cast %57 : vector<1x8x8x128xbf16> to vector<64x128xbf16>
    %c896 = arith.constant 896 : index
    %c0_69 = arith.constant 0 : index
    %59 = vector.load %arg6[%c896, %c0_69] : memref<1152x128xbf16, #tpu.memory_space<vmem>>, vector<128x128xbf16>
    %cst_70 = arith.constant dense<0.000000e+00> : vector<64x128xf32>
    %60 = tpu.matmul %58, %59, %cst_70 {dimension_numbers = #tpu.dot_dimension_numbers<[1], [0], [0], [1], [0, 0, 1, 1], [], []>} : vector<64x128xbf16>, vector<128x128xbf16>, vector<64x128xf32> -> vector<64x128xf32>
    %61 = arith.addf %56, %60 : vector<64x128xf32>
    %c0_71 = arith.constant 0 : index
    %c2_72 = arith.constant 2 : index
    %c2_73 = arith.constant 2 : index
    %c0_74 = arith.constant 0 : index
    %62 = vector.load %arg9[%c0_71, %c2_72, %c2_73, %c0_74] : memref<1x10x16x128xbf16, #tpu.memory_space<vmem>>, vector<1x8x8x128xbf16>
    %63 = vector.shape_cast %62 : vector<1x8x8x128xbf16> to vector<64x128xbf16>
    %c1024 = arith.constant 1024 : index
    %c0_75 = arith.constant 0 : index
    %64 = vector.load %arg6[%c1024, %c0_75] : memref<1152x128xbf16, #tpu.memory_space<vmem>>, vector<128x128xbf16>
    %cst_76 = arith.constant dense<0.000000e+00> : vector<64x128xf32>
    %65 = tpu.matmul %63, %64, %cst_76 {dimension_numbers = #tpu.dot_dimension_numbers<[1], [0], [0], [1], [0, 0, 1, 1], [], []>} : vector<64x128xbf16>, vector<128x128xbf16>, vector<64x128xf32> -> vector<64x128xf32>
    %66 = arith.addf %61, %65 : vector<64x128xf32>
    %c0_77 = arith.constant 0 : index
    %c0_78 = arith.constant 0 : index
    %67 = vector.load %arg7[%c0_77, %c0_78] : memref<1x128xf32, #tpu.memory_space<vmem>>, vector<1x128xf32>
    %68 = vector.broadcast %67 : vector<1x128xf32> to vector<64x128xf32>
    %69 = arith.addf %66, %68 : vector<64x128xf32>
    %70 = vector.shape_cast %69 : vector<64x128xf32> to vector<1x8x8x128xf32>
    %c0_79 = arith.constant 0 : index
    %c0_80 = arith.constant 0 : index
    %c0_81 = arith.constant 0 : index
    %c0_82 = arith.constant 0 : index
    %71 = vector.load %arg8[%c0_79, %c0_80, %c0_81, %c0_82] : memref<1x8x8x128xf32, #tpu.memory_space<vmem>>, vector<1x8x8x128xf32>
    tpu.vector_store %arg8[%c0_79, %c0_80, %c0_81, %c0_82], %70 {strides = array<i32>} : memref<1x8x8x128xf32, #tpu.memory_space<vmem>>, vector<1x8x8x128xf32>,
    %cst_83 = arith.constant 0.000000e+00 : f32
    %72 = vector.broadcast %cst_83 : f32 to vector<1x16x16x128xf32>
    %73 = arith.maximumf %0, %72 : vector<1x16x16x128xf32>
    %74 = vector.shape_cast %73 : vector<1x16x16x128xf32> to vector<128x2x128xf32>
    %75 = vector.extract_strided_slice %74 {offsets = [0, 0, 0], sizes = [128, 1, 128], strides = [1, 1, 1]} : vector<128x2x128xf32> to vector<128x1x128xf32>
    %76 = vector.shape_cast %75 : vector<128x1x128xf32> to vector<128x128xf32>
    %77 = vector.extract_strided_slice %74 {offsets = [0, 1, 0], sizes = [128, 1, 128], strides = [1, 1, 1]} : vector<128x2x128xf32> to vector<128x1x128xf32>
    %78 = vector.shape_cast %77 : vector<128x1x128xf32> to vector<128x128xf32>
    %79 = arith.addf %76, %78 : vector<128x128xf32>
    %80 = vector.shape_cast %79 : vector<128x128xf32> to vector<1x8x2x8x128xf32>
    %81 = vector.extract_strided_slice %80 {offsets = [0, 0, 0, 0, 0], sizes = [1, 8, 1, 8, 128], strides = [1, 1, 1, 1, 1]} : vector<1x8x2x8x128xf32> to vector<1x8x1x8x128xf32>
    %82 = vector.shape_cast %81 : vector<1x8x1x8x128xf32> to vector<1x8x8x128xf32>
    %83 = vector.extract_strided_slice %80 {offsets = [0, 0, 1, 0, 0], sizes = [1, 8, 1, 8, 128], strides = [1, 1, 1, 1, 1]} : vector<1x8x2x8x128xf32> to vector<1x8x1x8x128xf32>
    %84 = vector.shape_cast %83 : vector<1x8x1x8x128xf32> to vector<1x8x8x128xf32>
    %85 = arith.addf %82, %84 : vector<1x8x8x128xf32>
    %cst_84 = arith.constant 2.500000e-01 : f32
    %86 = vector.broadcast %cst_84 : f32 to vector<1x8x8x128xf32>
    %87 = arith.mulf %85, %86 : vector<1x8x8x128xf32>
    %88 = arith.truncf %87 : vector<1x8x8x128xf32> to vector<1x8x8x128xbf16>
    %c0_85 = arith.constant 0 : index
    %c1_86 = arith.constant 1 : index
    %c1_87 = arith.constant 1 : index
    %c0_88 = arith.constant 0 : index
    %89 = vector.load %arg9[%c0_85, %c1_86, %c1_87, %c0_88] : memref<1x10x16x128xbf16, #tpu.memory_space<vmem>>, vector<1x8x8x128xbf16>
    tpu.vector_store %arg9[%c0_85, %c1_86, %c1_87, %c0_88], %88 {strides = array<i32>} : memref<1x10x16x128xbf16, #tpu.memory_space<vmem>>, vector<1x8x8x128xbf16>,
    %c0_89 = arith.constant 0 : index
    %c0_90 = arith.constant 0 : index
    %c0_91 = arith.constant 0 : index
    %c0_92 = arith.constant 0 : index
    %90 = vector.load %arg9[%c0_89, %c0_90, %c0_91, %c0_92] : memref<1x10x16x128xbf16, #tpu.memory_space<vmem>>, vector<1x8x8x128xbf16>
    %91 = vector.shape_cast %90 : vector<1x8x8x128xbf16> to vector<64x128xbf16>
    %c0_93 = arith.constant 0 : index
    %c0_94 = arith.constant 0 : index
    %92 = vector.load %arg2[%c0_93, %c0_94] : memref<1152x128xbf16, #tpu.memory_space<vmem>>, vector<128x128xbf16>
    %cst_95 = arith.constant dense<0.000000e+00> : vector<64x128xf32>
    %93 = tpu.matmul %91, %92, %cst_95 {dimension_numbers = #tpu.dot_dimension_numbers<[1], [0], [0], [1], [0, 0, 1, 1], [], []>} : vector<64x128xbf16>, vector<128x128xbf16>, vector<64x128xf32> -> vector<64x128xf32>
    %c0_96 = arith.constant 0 : index
    %c0_97 = arith.constant 0 : index
    %c1_98 = arith.constant 1 : index
    %c0_99 = arith.constant 0 : index
    %94 = vector.load %arg9[%c0_96, %c0_97, %c1_98, %c0_99] : memref<1x10x16x128xbf16, #tpu.memory_space<vmem>>, vector<1x8x8x128xbf16>
    %95 = vector.shape_cast %94 : vector<1x8x8x128xbf16> to vector<64x128xbf16>
    %c128_100 = arith.constant 128 : index
    %c0_101 = arith.constant 0 : index
    %96 = vector.load %arg2[%c128_100, %c0_101] : memref<1152x128xbf16, #tpu.memory_space<vmem>>, vector<128x128xbf16>
    %cst_102 = arith.constant dense<0.000000e+00> : vector<64x128xf32>
    %97 = tpu.matmul %95, %96, %cst_102 {dimension_numbers = #tpu.dot_dimension_numbers<[1], [0], [0], [1], [0, 0, 1, 1], [], []>} : vector<64x128xbf16>, vector<128x128xbf16>, vector<64x128xf32> -> vector<64x128xf32>
    %98 = arith.addf %93, %97 : vector<64x128xf32>
    %c0_103 = arith.constant 0 : index
    %c0_104 = arith.constant 0 : index
    %c2_105 = arith.constant 2 : index
    %c0_106 = arith.constant 0 : index
    %99 = vector.load %arg9[%c0_103, %c0_104, %c2_105, %c0_106] : memref<1x10x16x128xbf16, #tpu.memory_space<vmem>>, vector<1x8x8x128xbf16>
    %100 = vector.shape_cast %99 : vector<1x8x8x128xbf16> to vector<64x128xbf16>
    %c256_107 = arith.constant 256 : index
    %c0_108 = arith.constant 0 : index
    %101 = vector.load %arg2[%c256_107, %c0_108] : memref<1152x128xbf16, #tpu.memory_space<vmem>>, vector<128x128xbf16>
    %cst_109 = arith.constant dense<0.000000e+00> : vector<64x128xf32>
    %102 = tpu.matmul %100, %101, %cst_109 {dimension_numbers = #tpu.dot_dimension_numbers<[1], [0], [0], [1], [0, 0, 1, 1], [], []>} : vector<64x128xbf16>, vector<128x128xbf16>, vector<64x128xf32> -> vector<64x128xf32>
    %103 = arith.addf %98, %102 : vector<64x128xf32>
    %c0_110 = arith.constant 0 : index
    %c1_111 = arith.constant 1 : index
    %c0_112 = arith.constant 0 : index
    %c0_113 = arith.constant 0 : index
    %104 = vector.load %arg9[%c0_110, %c1_111, %c0_112, %c0_113] : memref<1x10x16x128xbf16, #tpu.memory_space<vmem>>, vector<1x8x8x128xbf16>
    %105 = vector.shape_cast %104 : vector<1x8x8x128xbf16> to vector<64x128xbf16>
    %c384_114 = arith.constant 384 : index
    %c0_115 = arith.constant 0 : index
    %106 = vector.load %arg2[%c384_114, %c0_115] : memref<1152x128xbf16, #tpu.memory_space<vmem>>, vector<128x128xbf16>
    %cst_116 = arith.constant dense<0.000000e+00> : vector<64x128xf32>
    %107 = tpu.matmul %105, %106, %cst_116 {dimension_numbers = #tpu.dot_dimension_numbers<[1], [0], [0], [1], [0, 0, 1, 1], [], []>} : vector<64x128xbf16>, vector<128x128xbf16>, vector<64x128xf32> -> vector<64x128xf32>
    %108 = arith.addf %103, %107 : vector<64x128xf32>
    %c0_117 = arith.constant 0 : index
    %c1_118 = arith.constant 1 : index
    %c1_119 = arith.constant 1 : index
    %c0_120 = arith.constant 0 : index
    %109 = vector.load %arg9[%c0_117, %c1_118, %c1_119, %c0_120] : memref<1x10x16x128xbf16, #tpu.memory_space<vmem>>, vector<1x8x8x128xbf16>
    %110 = vector.shape_cast %109 : vector<1x8x8x128xbf16> to vector<64x128xbf16>
    %c512_121 = arith.constant 512 : index
    %c0_122 = arith.constant 0 : index
    %111 = vector.load %arg2[%c512_121, %c0_122] : memref<1152x128xbf16, #tpu.memory_space<vmem>>, vector<128x128xbf16>
    %cst_123 = arith.constant dense<0.000000e+00> : vector<64x128xf32>
    %112 = tpu.matmul %110, %111, %cst_123 {dimension_numbers = #tpu.dot_dimension_numbers<[1], [0], [0], [1], [0, 0, 1, 1], [], []>} : vector<64x128xbf16>, vector<128x128xbf16>, vector<64x128xf32> -> vector<64x128xf32>
    %113 = arith.addf %108, %112 : vector<64x128xf32>
    %c0_124 = arith.constant 0 : index
    %c1_125 = arith.constant 1 : index
    %c2_126 = arith.constant 2 : index
    %c0_127 = arith.constant 0 : index
    %114 = vector.load %arg9[%c0_124, %c1_125, %c2_126, %c0_127] : memref<1x10x16x128xbf16, #tpu.memory_space<vmem>>, vector<1x8x8x128xbf16>
    %115 = vector.shape_cast %114 : vector<1x8x8x128xbf16> to vector<64x128xbf16>
    %c640_128 = arith.constant 640 : index
    %c0_129 = arith.constant 0 : index
    %116 = vector.load %arg2[%c640_128, %c0_129] : memref<1152x128xbf16, #tpu.memory_space<vmem>>, vector<128x128xbf16>
    %cst_130 = arith.constant dense<0.000000e+00> : vector<64x128xf32>
    %117 = tpu.matmul %115, %116, %cst_130 {dimension_numbers = #tpu.dot_dimension_numbers<[1], [0], [0], [1], [0, 0, 1, 1], [], []>} : vector<64x128xbf16>, vector<128x128xbf16>, vector<64x128xf32> -> vector<64x128xf32>
    %118 = arith.addf %113, %117 : vector<64x128xf32>
    %c0_131 = arith.constant 0 : index
    %c2_132 = arith.constant 2 : index
    %c0_133 = arith.constant 0 : index
    %c0_134 = arith.constant 0 : index
    %119 = vector.load %arg9[%c0_131, %c2_132, %c0_133, %c0_134] : memref<1x10x16x128xbf16, #tpu.memory_space<vmem>>, vector<1x8x8x128xbf16>
    %120 = vector.shape_cast %119 : vector<1x8x8x128xbf16> to vector<64x128xbf16>
    %c768_135 = arith.constant 768 : index
    %c0_136 = arith.constant 0 : index
    %121 = vector.load %arg2[%c768_135, %c0_136] : memref<1152x128xbf16, #tpu.memory_space<vmem>>, vector<128x128xbf16>
    %cst_137 = arith.constant dense<0.000000e+00> : vector<64x128xf32>
    %122 = tpu.matmul %120, %121, %cst_137 {dimension_numbers = #tpu.dot_dimension_numbers<[1], [0], [0], [1], [0, 0, 1, 1], [], []>} : vector<64x128xbf16>, vector<128x128xbf16>, vector<64x128xf32> -> vector<64x128xf32>
    %123 = arith.addf %118, %122 : vector<64x128xf32>
    %c0_138 = arith.constant 0 : index
    %c2_139 = arith.constant 2 : index
    %c1_140 = arith.constant 1 : index
    %c0_141 = arith.constant 0 : index
    %124 = vector.load %arg9[%c0_138, %c2_139, %c1_140, %c0_141] : memref<1x10x16x128xbf16, #tpu.memory_space<vmem>>, vector<1x8x8x128xbf16>
    %125 = vector.shape_cast %124 : vector<1x8x8x128xbf16> to vector<64x128xbf16>
    %c896_142 = arith.constant 896 : index
    %c0_143 = arith.constant 0 : index
    %126 = vector.load %arg2[%c896_142, %c0_143] : memref<1152x128xbf16, #tpu.memory_space<vmem>>, vector<128x128xbf16>
    %cst_144 = arith.constant dense<0.000000e+00> : vector<64x128xf32>
    %127 = tpu.matmul %125, %126, %cst_144 {dimension_numbers = #tpu.dot_dimension_numbers<[1], [0], [0], [1], [0, 0, 1, 1], [], []>} : vector<64x128xbf16>, vector<128x128xbf16>, vector<64x128xf32> -> vector<64x128xf32>
    %128 = arith.addf %123, %127 : vector<64x128xf32>
    %c0_145 = arith.constant 0 : index
    %c2_146 = arith.constant 2 : index
    %c2_147 = arith.constant 2 : index
    %c0_148 = arith.constant 0 : index
    %129 = vector.load %arg9[%c0_145, %c2_146, %c2_147, %c0_148] : memref<1x10x16x128xbf16, #tpu.memory_space<vmem>>, vector<1x8x8x128xbf16>
    %130 = vector.shape_cast %129 : vector<1x8x8x128xbf16> to vector<64x128xbf16>
    %c1024_149 = arith.constant 1024 : index
    %c0_150 = arith.constant 0 : index
    %131 = vector.load %arg2[%c1024_149, %c0_150] : memref<1152x128xbf16, #tpu.memory_space<vmem>>, vector<128x128xbf16>
    %cst_151 = arith.constant dense<0.000000e+00> : vector<64x128xf32>
    %132 = tpu.matmul %130, %131, %cst_151 {dimension_numbers = #tpu.dot_dimension_numbers<[1], [0], [0], [1], [0, 0, 1, 1], [], []>} : vector<64x128xbf16>, vector<128x128xbf16>, vector<64x128xf32> -> vector<64x128xf32>
    %133 = arith.addf %128, %132 : vector<64x128xf32>
    %c0_152 = arith.constant 0 : index
    %c0_153 = arith.constant 0 : index
    %134 = vector.load %arg3[%c0_152, %c0_153] : memref<1x128xf32, #tpu.memory_space<vmem>>, vector<1x128xf32>
    %135 = vector.broadcast %134 : vector<1x128xf32> to vector<64x128xf32>
    %136 = arith.addf %133, %135 : vector<64x128xf32>
    %cst_154 = arith.constant 0.000000e+00 : f32
    %137 = vector.broadcast %cst_154 : f32 to vector<64x128xf32>
    %138 = arith.maximumf %136, %137 : vector<64x128xf32>
    %139 = arith.truncf %138 : vector<64x128xf32> to vector<64x128xbf16>
    %c0_155 = arith.constant 0 : index
    %c0_156 = arith.constant 0 : index
    %140 = vector.load %arg4[%c0_155, %c0_156] : memref<128x128xbf16, #tpu.memory_space<vmem>>, vector<128x128xbf16>
    %cst_157 = arith.constant dense<0.000000e+00> : vector<64x128xf32>
    %141 = tpu.matmul %139, %140, %cst_157 {dimension_numbers = #tpu.dot_dimension_numbers<[1], [0], [0], [1], [0, 0, 1, 1], [], []>} : vector<64x128xbf16>, vector<128x128xbf16>, vector<64x128xf32> -> vector<64x128xf32>
    %c0_158 = arith.constant 0 : index
    %c0_159 = arith.constant 0 : index
    %142 = vector.load %arg5[%c0_158, %c0_159] : memref<1x128xf32, #tpu.memory_space<vmem>>, vector<1x128xf32>
    %143 = vector.broadcast %142 : vector<1x128xf32> to vector<64x128xf32>
    %144 = arith.addf %141, %143 : vector<64x128xf32>
    %c0_160 = arith.constant 0 : index
    %c0_161 = arith.constant 0 : index
    %c0_162 = arith.constant 0 : index
    %c0_163 = arith.constant 0 : index
    %145 = vector.load %arg8[%c0_160, %c0_161, %c0_162, %c0_163] : memref<1x8x8x128xf32, #tpu.memory_space<vmem>>, vector<1x8x8x128xf32>
    %146 = vector.shape_cast %144 : vector<64x128xf32> to vector<1x8x8x128xf32>
    %147 = arith.addf %145, %146 : vector<1x8x8x128xf32>
    %c0_164 = arith.constant 0 : index
    %c0_165 = arith.constant 0 : index
    %c0_166 = arith.constant 0 : index
    %c0_167 = arith.constant 0 : index
    %148 = vector.load %arg8[%c0_164, %c0_165, %c0_166, %c0_167] : memref<1x8x8x128xf32, #tpu.memory_space<vmem>>, vector<1x8x8x128xf32>
    tpu.vector_store %arg8[%c0_164, %c0_165, %c0_166, %c0_167], %147 {strides = array<i32>} : memref<1x8x8x128xf32, #tpu.memory_space<vmem>>, vector<1x8x8x128xf32>,
    return
  }
  func.func @transform_0(%arg0: i32) -> (i32, i32, i32, i32) {
    %c0_i32 = arith.constant 0 : i32
    %c0_i32_0 = arith.constant 0 : i32
    %c0_i32_1 = arith.constant 0 : i32
    %c0_i32_2 = arith.constant 0 : i32
    return %arg0, %c0_i32, %c0_i32_0, %c0_i32_1 : i32, i32, i32, i32
  }
  func.func @transform_1(%arg0: i32) -> (i32, i32) {
    %c0_i32 = arith.constant 0 : i32
    %c0_i32_0 = arith.constant 0 : i32
    %c0_i32_1 = arith.constant 0 : i32
    return %c0_i32, %c0_i32_0 : i32, i32
  }
  func.func @transform_2(%arg0: i32) -> (i32, i32) {
    %c0_i32 = arith.constant 0 : i32
    %c0_i32_0 = arith.constant 0 : i32
    %c0_i32_1 = arith.constant 0 : i32
    return %c0_i32, %c0_i32_0 : i32, i32
  }
  func.func @transform_3(%arg0: i32) -> (i32, i32) {
    %c0_i32 = arith.constant 0 : i32
    %c0_i32_0 = arith.constant 0 : i32
    %c0_i32_1 = arith.constant 0 : i32
    return %c0_i32, %c0_i32_0 : i32, i32
  }
  func.func @transform_4(%arg0: i32) -> (i32, i32) {
    %c0_i32 = arith.constant 0 : i32
    %c0_i32_0 = arith.constant 0 : i32
    %c0_i32_1 = arith.constant 0 : i32
    return %c0_i32, %c0_i32_0 : i32, i32
  }
  func.func @transform_5(%arg0: i32) -> (i32, i32) {
    %c0_i32 = arith.constant 0 : i32
    %c0_i32_0 = arith.constant 0 : i32
    %c0_i32_1 = arith.constant 0 : i32
    return %c0_i32, %c0_i32_0 : i32, i32
  }
  func.func @transform_6(%arg0: i32) -> (i32, i32) {
    %c0_i32 = arith.constant 0 : i32
    %c0_i32_0 = arith.constant 0 : i32
    %c0_i32_1 = arith.constant 0 : i32
    return %c0_i32, %c0_i32_0 : i32, i32
  }
  func.func @transform_7(%arg0: i32) -> (i32, i32, i32, i32) {
    %c0_i32 = arith.constant 0 : i32
    %c0_i32_0 = arith.constant 0 : i32
    %c0_i32_1 = arith.constant 0 : i32
    %c0_i32_2 = arith.constant 0 : i32
    return %arg0, %c0_i32, %c0_i32_0, %c0_i32_1 : i32, i32, i32, i32
  }
}

</mosaic_0001>

<llo_original>
// kernel: tpu_custom_call.1
$region0: #{tpu_custom_call.1}
  #allocation0 [shape = 'u32[]', space=smem, size = 0x4, offset = 0x4, fixed_abs, tag = 'smem constant byte address 0x4 - core index']
  #allocation1 [shape = 'u32[72,128]{1,0:T(1,128)}', space=vmem, size = 0x9000, scoped, tag = 'internal scratch']
  #allocation2 [shape = 'bf16[1,10,16,128]{3,2,1,0:T(8,128)(2,1)}', space=vmem, size = 0xa000, scoped, tag = 'scratch operand']
  %s0 = inlined_call_operand.hbm [shape: f32[2,16,16,128], index: 0, kind: input, shape index: {}]
  %s1 = inlined_call_operand.hbm [shape: bf16[1152,128], index: 1, kind: input, shape index: {}]
  %s2 = inlined_call_operand.vmem [shape: f32[1,128], index: 2, kind: input, shape index: {}]
  %s3 = inlined_call_operand.hbm [shape: bf16[128,128], index: 3, kind: input, shape index: {}]
  %s4 = inlined_call_operand.vmem [shape: f32[1,128], index: 4, kind: input, shape index: {}]
  %s5 = inlined_call_operand.hbm [shape: bf16[1152,128], index: 5, kind: input, shape index: {}]
  %s6 = inlined_call_operand.vmem [shape: f32[1,128], index: 6, kind: input, shape index: {}]
  %s7 = inlined_call_operand.hbm [shape: f32[2,8,8,128], index: 7, kind: output, shape index: {}]
  %s8 = sld [smem:[#allocation0]]
  $region77: #{tpu_custom_call.1} parent=0
    _
  %s10 = ssub.s32 1, %s8
  %s11 = scalar_select 0, %s10, %s8
  $region1: #{tpu_custom_call.1} parent=0
    #allocation3 [shape = 'u8[262144]{0}', space=vmem, size = 0x40000, scoped, tag = 'input window, operand 0']
    #allocation4 [shape = 's32[2]{0}', space=sflag, size = 0x8, scoped, tag = 'scoped memory for tpu_custom_call.1']
    #allocation5 [shape = 's32[2]{0}', space=sflag, size = 0x8, scoped, tag = 'scoped memory for tpu_custom_call.1']
    #allocation6 [shape = 'u8[294912]{0}', space=vmem, size = 0x48000, scoped, tag = 'input window, operand 1, single buffered']
    #allocation7 [shape = 's32[1]{0}', space=sflag, size = 0x4, scoped, tag = 'scoped memory for tpu_custom_call.1']
    #allocation8 [shape = 'u8[32768]{0}', space=vmem, size = 0x8000, scoped, tag = 'input window, operand 3, single buffered']
    #allocation9 [shape = 'u8[294912]{0}', space=vmem, size = 0x48000, scoped, tag = 'input window, operand 5, single buffered']
    #allocation10 [shape = 's32[1]{0}', space=sflag, size = 0x4, scoped, tag = 'scoped memory for tpu_custom_call.1']
    #allocation11 [shape = 'u8[65536]{0}', space=vmem, size = 0x10000, scoped, tag = 'output window, operand 0']
    %12 = vsyncpa [#allocation4], 0
    %s13 = scalar_lea.sflag [#allocation4], 1
    %14 = vsyncpa %s13, 0
    %15 = vsyncpa [#allocation7], 0
    %16 = vsyncpa [#allocation10], 0
    %17 = vsyncpa [#allocation5], 0
    %s18 = scalar_lea.sflag [#allocation5], 1
    %19 = vsyncpa %s18, 0
    loop: start=0, step=1, limit=4
    $region2: #{tpu_custom_call.1} parent=1 // loop_pre_header
      _
    $region3: #{tpu_custom_call.1} parent=1 // loop_header
      %s21 = sphi 0, %s25
      %p22 = scmp.ge.s32.totalorder %s21, 4
      %s31 = sphi 0, %s33
      %s34 = sphi 0, %s31
      %s35 = sphi 0, %s34
      %s51 = sphi 0, %s35
      %s55 = sphi 0, %s55
      %s57 = sphi 0, %s55
      %s58 = sphi 0, %s57
      %s72 = sphi 0, %s58
      %s76 = sphi 0, %s76
      %s78 = sphi 0, %s76
      %s79 = sphi 0, %s78
      %s93 = sphi 0, %s79
      %s97 = sphi 0, %s97
      %s99 = sphi 0, %s97
      %s100 = sphi 0, %s99
      %s114 = sphi 0, %s100
      %s118 = sphi 0, %s118
      %s120 = sphi 0, %s118
      %s121 = sphi 0, %s120
      %s135 = sphi 0, %s121
      %s139 = sphi 0, %s139
      %s141 = sphi 0, %s139
      %s142 = sphi 0, %s141
      %s156 = sphi 0, %s142
      %s160 = sphi 0, %s160
      %s162 = sphi 0, %s160
      %s163 = sphi 0, %s162
      %s177 = sphi 0, %s163
      %s183 = sphi 0, %s185
      %s186 = sphi 0, %s183
      %s187 = sphi 0, %s186
      %s203 = sphi 0, %s187
    $region4: #{tpu_custom_call.1} parent=1 // loop_header_branch
      %24 = sbr.rel (%p22) target = $region8
    $region5: #{tpu_custom_call.1} parent=1 // loop_body
      %s26 = ssub.s32 %s21, 1
      %s27 = ssub.s32 %s21, 2
      %s28 = sadd.s32 %s21, 1
      %s29 = ssub.s32 %s21, %s28
      %p30 = scmp.eq.s32.totalorder %s29, 0
      %s32 = sadd.s32 %s31, 1
      %s33 = scalar_select %p30, %s31, %s32
      %p36 = pneg %p30
      %p37 = scmp.eq.s32.totalorder %s21, 1
      %p38 = por %p36, %p37
      %p39 = scmp.ne.s32.totalorder %s31, %s34
      %p40 = scmp.eq.s32.totalorder %s21, 0
      %p41 = por %p39, %p40
      %p42 = scmp.ne.s32.totalorder %s31, %s34
      %p43 = scmp.eq.s32.totalorder %s26, 1
      %p44 = por %p42, %p43
      %p45 = scmp.ne.s32.totalorder %s34, %s35
      %p46 = scmp.eq.s32.totalorder %s26, 0
      %p47 = por %p45, %p46
      %p48 = scmp.ne.s32.totalorder %s34, %s35
      %p49 = scmp.eq.s32.totalorder %s27, 1
      %p50 = por %p48, %p49
      %p52 = scmp.ne.s32.totalorder %s35, %s51
      %p53 = scmp.eq.s32.totalorder %s27, 0
      %p54 = por %p52, %p53
      %s56 = sadd.s32 %s55, 1
      %p59 = scmp.eq.s32.totalorder %s21, 1
      %p60 = scmp.ne.s32.totalorder %s55, %s57
      %p61 = scmp.eq.s32.totalorder %s21, 0
      %p62 = por %p60, %p61
      %p63 = scmp.ne.s32.totalorder %s55, %s57
      %p64 = scmp.eq.s32.totalorder %s26, 1
      %p65 = por %p63, %p64
      %p66 = scmp.ne.s32.totalorder %s57, %s58
      %p67 = scmp.eq.s32.totalorder %s26, 0
      %p68 = por %p66, %p67
      %p69 = scmp.ne.s32.totalorder %s57, %s58
      %p70 = scmp.eq.s32.totalorder %s27, 1
      %p71 = por %p69, %p70
      %p73 = scmp.ne.s32.totalorder %s58, %s72
      %p74 = scmp.eq.s32.totalorder %s27, 0
      %p75 = por %p73, %p74
      %s77 = sadd.s32 %s76, 1
      %p80 = scmp.eq.s32.totalorder %s21, 1
      %p81 = scmp.ne.s32.totalorder %s76, %s78
      %p82 = scmp.eq.s32.totalorder %s21, 0
      %p83 = por %p81, %p82
      %p84 = scmp.ne.s32.totalorder %s76, %s78
      %p85 = scmp.eq.s32.totalorder %s26, 1
      %p86 = por %p84, %p85
      %p87 = scmp.ne.s32.totalorder %s78, %s79
      %p88 = scmp.eq.s32.totalorder %s26, 0
      %p89 = por %p87, %p88
      %p90 = scmp.ne.s32.totalorder %s78, %s79
      %p91 = scmp.eq.s32.totalorder %s27, 1
      %p92 = por %p90, %p91
      %p94 = scmp.ne.s32.totalorder %s79, %s93
      %p95 = scmp.eq.s32.totalorder %s27, 0
      %p96 = por %p94, %p95
      %s98 = sadd.s32 %s97, 1
      %p101 = scmp.eq.s32.totalorder %s21, 1
      %p102 = scmp.ne.s32.totalorder %s97, %s99
      %p103 = scmp.eq.s32.totalorder %s21, 0
      %p104 = por %p102, %p103
      %p105 = scmp.ne.s32.totalorder %s97, %s99
      %p106 = scmp.eq.s32.totalorder %s26, 1
      %p107 = por %p105, %p106
      %p108 = scmp.ne.s32.totalorder %s99, %s100
      %p109 = scmp.eq.s32.totalorder %s26, 0
      %p110 = por %p108, %p109
      %p111 = scmp.ne.s32.totalorder %s99, %s100
      %p112 = scmp.eq.s32.totalorder %s27, 1
      %p113 = por %p111, %p112
      %p115 = scmp.ne.s32.totalorder %s100, %s114
      %p116 = scmp.eq.s32.totalorder %s27, 0
      %p117 = por %p115, %p116
      %s119 = sadd.s32 %s118, 1
      %p122 = scmp.eq.s32.totalorder %s21, 1
      %p123 = scmp.ne.s32.totalorder %s118, %s120
      %p124 = scmp.eq.s32.totalorder %s21, 0
      %p125 = por %p123, %p124
      %p126 = scmp.ne.s32.totalorder %s118, %s120
      %p127 = scmp.eq.s32.totalorder %s26, 1
      %p128 = por %p126, %p127
      %p129 = scmp.ne.s32.totalorder %s120, %s121
      %p130 = scmp.eq.s32.totalorder %s26, 0
      %p131 = por %p129, %p130
      %p132 = scmp.ne.s32.totalorder %s120, %s121
      %p133 = scmp.eq.s32.totalorder %s27, 1
      %p134 = por %p132, %p133
      %p136 = scmp.ne.s32.totalorder %s121, %s135
      %p137 = scmp.eq.s32.totalorder %s27, 0
      %p138 = por %p136, %p137
      %s140 = sadd.s32 %s139, 1
      %p143 = scmp.eq.s32.totalorder %s21, 1
      %p144 = scmp.ne.s32.totalorder %s139, %s141
      %p145 = scmp.eq.s32.totalorder %s21, 0
      %p146 = por %p144, %p145
      %p147 = scmp.ne.s32.totalorder %s139, %s141
      %p148 = scmp.eq.s32.totalorder %s26, 1
      %p149 = por %p147, %p148
      %p150 = scmp.ne.s32.totalorder %s141, %s142
      %p151 = scmp.eq.s32.totalorder %s26, 0
      %p152 = por %p150, %p151
      %p153 = scmp.ne.s32.totalorder %s141, %s142
      %p154 = scmp.eq.s32.totalorder %s27, 1
      %p155 = por %p153, %p154
      %p157 = scmp.ne.s32.totalorder %s142, %s156
      %p158 = scmp.eq.s32.totalorder %s27, 0
      %p159 = por %p157, %p158
      %s161 = sadd.s32 %s160, 1
      %p164 = scmp.eq.s32.totalorder %s21, 1
      %p165 = scmp.ne.s32.totalorder %s160, %s162
      %p166 = scmp.eq.s32.totalorder %s21, 0
      %p167 = por %p165, %p166
      %p168 = scmp.ne.s32.totalorder %s160, %s162
      %p169 = scmp.eq.s32.totalorder %s26, 1
      %p170 = por %p168, %p169
      %p171 = scmp.ne.s32.totalorder %s162, %s163
      %p172 = scmp.eq.s32.totalorder %s26, 0
      %p173 = por %p171, %p172
      %p174 = scmp.ne.s32.totalorder %s162, %s163
      %p175 = scmp.eq.s32.totalorder %s27, 1
      %p176 = por %p174, %p175
      %p178 = scmp.ne.s32.totalorder %s163, %s177
      %p179 = scmp.eq.s32.totalorder %s27, 0
      %p180 = por %p178, %p179
      %s181 = ssub.s32 %s21, %s28
      %p182 = scmp.eq.s32.totalorder %s181, 0
      %s184 = sadd.s32 %s183, 1
      %s185 = scalar_select %p182, %s183, %s184
      %p188 = pneg %p182
      %p189 = scmp.eq.s32.totalorder %s21, 1
      %p190 = por %p188, %p189
      %p191 = scmp.ne.s32.totalorder %s183, %s186
      %p192 = scmp.eq.s32.totalorder %s21, 0
      %p193 = por %p191, %p192
      %p194 = scmp.ne.s32.totalorder %s183, %s186
      %p195 = scmp.eq.s32.totalorder %s26, 1
      %p196 = por %p194, %p195
      %p197 = scmp.ne.s32.totalorder %s186, %s187
      %p198 = scmp.eq.s32.totalorder %s26, 0
      %p199 = por %p197, %p198
      %p200 = scmp.ne.s32.totalorder %s186, %s187
      %p201 = scmp.eq.s32.totalorder %s27, 1
      %p202 = por %p200, %p201
      %p204 = scmp.ne.s32.totalorder %s187, %s203
      %p205 = scmp.eq.s32.totalorder %s27, 0
      %p206 = por %p204, %p205
      %p207 = scmp.le.s32.totalorder 1, %s21
      %p208 = scmp.lt.s32.totalorder %s21, 3
      %p209 = pnand %p207, %p208
      %p210 = pneg %p209
      // Predicated region
      $region9: #{tpu_custom_call.1} parent=5 // pred_check
        _
      $region10: #{tpu_custom_call.1} parent=5 // pred_check_branch
        %212 = sbr.rel (%p209) target = $region12
      $region11: #{tpu_custom_call.1} parent=5 // pred_region
        %s213 = ssub.s32 %s21, 1
        // Predicated region
        $region13: #{tpu_custom_call.1} parent=11 // pred_check
          %p214 = pneg %p68
        $region14: #{tpu_custom_call.1} parent=11 // pred_check_branch
          %216 = sbr.rel (%p214) target = $region16
        $region15: #{tpu_custom_call.1} parent=11 // pred_region
          %218 = vsyncadd [#allocation7], 0
          %s219 = sshll.u32 %s1, 4
          %s220 = int_to_ptr.hbm [resolvable:$true] %s219
          %s221 = sshll.u32 [#allocation6], 4
          %s222 = int_to_ptr.vmem [resolvable:$true] %s221
          %227 = dma.hbm_to_vmem [thread:$0]  %s220, 9216, %s222, [#allocation7], 64, 64, 4
        $region16: #{tpu_custom_call.1} parent=11 // pred_fallthru
          _
        // Predicated region
        $region17: #{tpu_custom_call.1} parent=11 // pred_check
          %p228 = pneg %p89
        $region18: #{tpu_custom_call.1} parent=11 // pred_check_branch
          %230 = sbr.rel (%p228) target = $region20
        $region19: #{tpu_custom_call.1} parent=11 // pred_region
          _
        $region20: #{tpu_custom_call.1} parent=11 // pred_fallthru
          _
        // Predicated region
        $region21: #{tpu_custom_call.1} parent=11 // pred_check
          %p231 = pneg %p110
        $region22: #{tpu_custom_call.1} parent=11 // pred_check_branch
          %233 = sbr.rel (%p231) target = $region24
        $region23: #{tpu_custom_call.1} parent=11 // pred_region
          %235 = vsyncadd [#allocation7], 0
          %s236 = sshll.u32 %s3, 4
          %s237 = int_to_ptr.hbm [resolvable:$true] %s236
          %s238 = sshll.u32 [#allocation8], 4
          %s239 = int_to_ptr.vmem [resolvable:$true] %s238
          %244 = dma.hbm_to_vmem [thread:$0]  %s237, 1024, %s239, [#allocation7], 64, 64, 4
        $region24: #{tpu_custom_call.1} parent=11 // pred_fallthru
          _
        // Predicated region
        $region25: #{tpu_custom_call.1} parent=11 // pred_check
          %p245 = pneg %p131
        $region26: #{tpu_custom_call.1} parent=11 // pred_check_branch
          %247 = sbr.rel (%p245) target = $region28
        $region27: #{tpu_custom_call.1} parent=11 // pred_region
          _
        $region28: #{tpu_custom_call.1} parent=11 // pred_fallthru
          _
        // Predicated region
        $region29: #{tpu_custom_call.1} parent=11 // pred_check
          %p248 = pneg %p152
        $region30: #{tpu_custom_call.1} parent=11 // pred_check_branch
          %250 = sbr.rel (%p248) target = $region32
        $region31: #{tpu_custom_call.1} parent=11 // pred_region
          %252 = vsyncadd [#allocation10], 0
          %s253 = sshll.u32 %s5, 4
          %s254 = int_to_ptr.hbm [resolvable:$true] %s253
          %s255 = sshll.u32 [#allocation9], 4
          %s256 = int_to_ptr.vmem [resolvable:$true] %s255
          %261 = dma.hbm_to_vmem [thread:$0]  %s254, 9216, %s256, [#allocation10], 64, 64, 4
        $region32: #{tpu_custom_call.1} parent=11 // pred_fallthru
          _
        // Predicated region
        $region33: #{tpu_custom_call.1} parent=11 // pred_check
          %p262 = pneg %p173
        $region34: #{tpu_custom_call.1} parent=11 // pred_check_branch
          %264 = sbr.rel (%p262) target = $region36
        $region35: #{tpu_custom_call.1} parent=11 // pred_region
          _
        $region36: #{tpu_custom_call.1} parent=11 // pred_fallthru
          _
      $region12: #{tpu_custom_call.1} parent=5 // pred_fallthru
        _
      %p265 = scmp.lt.s32.totalorder %s21, 2
      // Predicated region
      $region37: #{tpu_custom_call.1} parent=5 // pred_check
        %p266 = pneg %p265
      $region38: #{tpu_custom_call.1} parent=5 // pred_check_branch
        %268 = sbr.rel (%p266) target = $region40
      $region39: #{tpu_custom_call.1} parent=5 // pred_region
        // Predicated region
        $region41: #{tpu_custom_call.1} parent=39 // pred_check
          %p269 = pneg %p41
        $region42: #{tpu_custom_call.1} parent=39 // pred_check_branch
          %271 = sbr.rel (%p269) target = $region44
        $region43: #{tpu_custom_call.1} parent=39 // pred_region
          %s272 = sand.u32 %s31, 1
          %s273 = scalar_lea.sflag [#allocation4], %s272
          %s274 = sand.u32 %s31, 1
          %s275 = smul.addr %s274, 256
          %s276 = scalar_lea.vmem [#allocation3], %s275
          %278 = vsyncadd %s273, 0
          %s279 = smul.addr %s21, 32
          %s280 = smul.addr %s279, 8
          %s281 = scalar_lea.hbm %s0, %s280
          %s282 = sshll.u32 %s281, 4
          %s283 = int_to_ptr.hbm [resolvable:$true] %s282
          %s284 = sshll.u32 %s276, 4
          %s285 = int_to_ptr.vmem [resolvable:$true] %s284
          %290 = dma.hbm_to_vmem [thread:$0]  %s283, 4096, %s285, %s273, 128, 128, 8
        $region44: #{tpu_custom_call.1} parent=39 // pred_fallthru
          _
      $region40: #{tpu_custom_call.1} parent=5 // pred_fallthru
        _
      %p291 = scmp.le.s32.totalorder 1, %s21
      %p292 = scmp.lt.s32.totalorder %s21, 3
      %p293 = pnand %p291, %p292
      %p294 = pneg %p293
      // Predicated region
      $region45: #{tpu_custom_call.1} parent=5 // pred_check
        _
      $region46: #{tpu_custom_call.1} parent=5 // pred_check_branch
        %296 = sbr.rel (%p293) target = $region48
      $region47: #{tpu_custom_call.1} parent=5 // pred_region
        %s297 = ssub.s32 %s21, 1
        %s298 = sand.u32 %s34, 1
        %s299 = scalar_lea.sflag [#allocation4], %s298
        %s300 = sand.u32 %s34, 1
        %s301 = smul.addr %s300, 256
        %s302 = scalar_lea.vmem [#allocation3], %s301
        // Predicated region
        $region49: #{tpu_custom_call.1} parent=47 // pred_check
          %p303 = pneg %p47
        $region50: #{tpu_custom_call.1} parent=47 // pred_check_branch
          %305 = sbr.rel (%p303) target = $region52
        $region51: #{tpu_custom_call.1} parent=47 // pred_region
          %307 = dma.done %s299, 4096
        $region52: #{tpu_custom_call.1} parent=47 // pred_fallthru
          _
        // Predicated region
        $region53: #{tpu_custom_call.1} parent=47 // pred_check
          %p308 = pneg %p68
        $region54: #{tpu_custom_call.1} parent=47 // pred_check_branch
          %310 = sbr.rel (%p308) target = $region56
        $region55: #{tpu_custom_call.1} parent=47 // pred_region
          %312 = dma.done [#allocation7], 9216
        $region56: #{tpu_custom_call.1} parent=47 // pred_fallthru
          _
        // Predicated region
        $region57: #{tpu_custom_call.1} parent=47 // pred_check
          %p313 = pneg %p110
        $region58: #{tpu_custom_call.1} parent=47 // pred_check_branch
          %315 = sbr.rel (%p313) target = $region60
        $region59: #{tpu_custom_call.1} parent=47 // pred_region
          %317 = dma.done [#allocation7], 1024
        $region60: #{tpu_custom_call.1} parent=47 // pred_fallthru
          _
        // Predicated region
        $region61: #{tpu_custom_call.1} parent=47 // pred_check
          %p318 = pneg %p152
        $region62: #{tpu_custom_call.1} parent=47 // pred_check_branch
          %320 = sbr.rel (%p318) target = $region64
        $region63: #{tpu_custom_call.1} parent=47 // pred_region
          %322 = dma.done [#allocation10], 9216
        $region64: #{tpu_custom_call.1} parent=47 // pred_fallthru
          _
        %s323 = sand.u32 %s34, 1
        %s324 = scalar_lea.sflag [#allocation4], %s323
        %s325 = sand.u32 %s34, 1
        %s326 = smul.addr %s325, 256
        %s327 = scalar_lea.vmem [#allocation3], %s326
        %p328 = pneg %p47
        %p329 = pneg %p44
        %p330 = pneg %p68
        %p331 = pneg %p65
        %p332 = pneg %p89
        %p333 = pneg %p86
        %p334 = pneg %p110
        %p335 = pneg %p107
        %p336 = pneg %p131
        %p337 = pneg %p128
        %p338 = pneg %p152
        %p339 = pneg %p149
        %p340 = pneg %p173
        %p341 = pneg %p170
        %p342 = pneg %p199
        %p343 = pneg %p196
        %s344 = sand.u32 %s186, 1
        %s345 = scalar_lea.sflag [#allocation5], %s344
        %s346 = sand.u32 %s186, 1
        %s347 = smul.addr %s346, 64
        %s348 = scalar_lea.vmem [#allocation11], %s347
        %v350 = vld [vmem:[%s302] sm:$0xff]
        %v351 = vld [vmem:[%s302 + $0x8] sm:$0xff]
        %v352 = vld [vmem:[%s302 + $0x10] sm:$0xff]
        %v353 = vld [vmem:[%s302 + $0x18] sm:$0xff]
        %v354 = vld [vmem:[%s302 + $0x20] sm:$0xff]
        %v355 = vld [vmem:[%s302 + $0x28] sm:$0xff]
        %v356 = vld [vmem:[%s302 + $0x30] sm:$0xff]
        %v357 = vld [vmem:[%s302 + $0x38] sm:$0xff]
        %v358 = vld [vmem:[%s302 + $0x40] sm:$0xff]
        %v359 = vld [vmem:[%s302 + $0x48] sm:$0xff]
        %v360 = vld [vmem:[%s302 + $0x50] sm:$0xff]
        %v361 = vld [vmem:[%s302 + $0x58] sm:$0xff]
        %v362 = vld [vmem:[%s302 + $0x60] sm:$0xff]
        %v363 = vld [vmem:[%s302 + $0x68] sm:$0xff]
        %v364 = vld [vmem:[%s302 + $0x70] sm:$0xff]
        %v365 = vld [vmem:[%s302 + $0x78] sm:$0xff]
        %v366 = vld [vmem:[%s302 + $0x80] sm:$0xff]
        %v367 = vld [vmem:[%s302 + $0x88] sm:$0xff]
        %v368 = vld [vmem:[%s302 + $0x90] sm:$0xff]
        %v369 = vld [vmem:[%s302 + $0x98] sm:$0xff]
        %v370 = vld [vmem:[%s302 + $0xa0] sm:$0xff]
        %v371 = vld [vmem:[%s302 + $0xa8] sm:$0xff]
        %v372 = vld [vmem:[%s302 + $0xb0] sm:$0xff]
        %v373 = vld [vmem:[%s302 + $0xb8] sm:$0xff]
        %v374 = vld [vmem:[%s302 + $0xc0] sm:$0xff]
        %v375 = vld [vmem:[%s302 + $0xc8] sm:$0xff]
        %v376 = vld [vmem:[%s302 + $0xd0] sm:$0xff]
        %v377 = vld [vmem:[%s302 + $0xd8] sm:$0xff]
        %v378 = vld [vmem:[%s302 + $0xe0] sm:$0xff]
        %v379 = vld [vmem:[%s302 + $0xe8] sm:$0xff]
        %v380 = vld [vmem:[%s302 + $0xf0] sm:$0xff]
        %v381 = vld [vmem:[%s302 + $0xf8] sm:$0xff]
        %382 = vst [vmem:[#allocation2] sm:$0xf] 0
        %383 = vst [vmem:[#allocation2 + $0x4] sm:$0xf] 0
        %s384 = scalar_lea.vmem [#allocation2], 72
        %385 = vst [vmem:[%s384] sm:$0xf] 0
        %386 = vst [vmem:[%s384 + $0x4] sm:$0xf] 0
        %s387 = scalar_lea.vmem [#allocation2], 8
        %vm388 = vcmask 1040384
        %vm389 = vsmask.f32 256
        %vm390 = vmand %vm388, %vm389
        %v391 = vld [vmem:[%s387] sm:$0x1]
        %v392 = vsel %vm390, 0, %v391
        %393 = vst [vmem:[%s387] sm:$0x1] %v392
        %v394 = vld [vmem:[%s387 + $0x8] sm:$0x1]
        %v395 = vsel %vm390, 0, %v394
        %396 = vst [vmem:[%s387 + $0x8] sm:$0x1] %v395
        %v397 = vld [vmem:[%s387 + $0x10] sm:$0x1]
        %v398 = vsel %vm390, 0, %v397
        %399 = vst [vmem:[%s387 + $0x10] sm:$0x1] %v398
        %v400 = vld [vmem:[%s387 + $0x18] sm:$0x1]
        %v401 = vsel %vm390, 0, %v400
        %402 = vst [vmem:[%s387 + $0x18] sm:$0x1] %v401
        %v403 = vld [vmem:[%s387 + $0x20] sm:$0x1]
        %v404 = vsel %vm390, 0, %v403
        %405 = vst [vmem:[%s387 + $0x20] sm:$0x1] %v404
        %v406 = vld [vmem:[%s387 + $0x28] sm:$0x1]
        %v407 = vsel %vm390, 0, %v406
        %408 = vst [vmem:[%s387 + $0x28] sm:$0x1] %v407
        %v409 = vld [vmem:[%s387 + $0x30] sm:$0x1]
        %v410 = vsel %vm390, 0, %v409
        %411 = vst [vmem:[%s387 + $0x30] sm:$0x1] %v410
        %v412 = vld [vmem:[%s387 + $0x38] sm:$0x1]
        %v413 = vsel %vm390, 0, %v412
        %414 = vst [vmem:[%s387 + $0x38] sm:$0x1] %v413
        %vm415 = vsmask.f32 7938
        %vm416 = vmand %vm388, %vm415
        %v417 = vld [vmem:[%s387 + $0x4] sm:$0x1]
        %v418 = vsel %vm416, 0, %v417
        %419 = vst [vmem:[%s387 + $0x4] sm:$0x1] %v418
        %v420 = vld [vmem:[%s387 + $0xc] sm:$0x1]
        %v421 = vsel %vm416, 0, %v420
        %422 = vst [vmem:[%s387 + $0xc] sm:$0x1] %v421
        %v423 = vld [vmem:[%s387 + $0x14] sm:$0x1]
        %v424 = vsel %vm416, 0, %v423
        %425 = vst [vmem:[%s387 + $0x14] sm:$0x1] %v424
        %v426 = vld [vmem:[%s387 + $0x1c] sm:$0x1]
        %v427 = vsel %vm416, 0, %v426
        %428 = vst [vmem:[%s387 + $0x1c] sm:$0x1] %v427
        %v429 = vld [vmem:[%s387 + $0x24] sm:$0x1]
        %v430 = vsel %vm416, 0, %v429
        %431 = vst [vmem:[%s387 + $0x24] sm:$0x1] %v430
        %v432 = vld [vmem:[%s387 + $0x2c] sm:$0x1]
        %v433 = vsel %vm416, 0, %v432
        %434 = vst [vmem:[%s387 + $0x2c] sm:$0x1] %v433
        %v435 = vld [vmem:[%s387 + $0x34] sm:$0x1]
        %v436 = vsel %vm416, 0, %v435
        %437 = vst [vmem:[%s387 + $0x34] sm:$0x1] %v436
        %v438 = vld [vmem:[%s387 + $0x3c] sm:$0x1]
        %v439 = vsel %vm416, 0, %v438
        %440 = vst [vmem:[%s387 + $0x3c] sm:$0x1] %v439
        %v473 = vrot.slane %v350, 2
        %v474 = vrot.slane %v350, 4
        %v475 = vrot.slane %v350, 6
        %v476 = vrot.slane %v351, 2
        %v477 = vrot.slane %v351, 4
        %v478 = vrot.slane %v351, 6
        %v479 = vrot.slane %v352, 2
        %v480 = vrot.slane %v352, 4
        %v481 = vrot.slane %v352, 6
        %v482 = vrot.slane %v353, 2
        %v483 = vrot.slane %v353, 4
        %v484 = vrot.slane %v353, 6
        %v485 = vrot.slane %v354, 2
        %v486 = vrot.slane %v354, 4
        %v487 = vrot.slane %v354, 6
        %v488 = vrot.slane %v355, 2
        %v489 = vrot.slane %v355, 4
        %v490 = vrot.slane %v355, 6
        %v491 = vrot.slane %v356, 2
        %v492 = vrot.slane %v356, 4
        %v493 = vrot.slane %v356, 6
        %v494 = vrot.slane %v357, 2
        %v495 = vrot.slane %v357, 4
        %v496 = vrot.slane %v357, 6
        %v497 = vrot.slane %v358, 2
        %v498 = vrot.slane %v358, 4
        %v499 = vrot.slane %v358, 6
        %v500 = vrot.slane %v359, 2
        %v501 = vrot.slane %v359, 4
        %v502 = vrot.slane %v359, 6
        %v503 = vrot.slane %v360, 2
        %v504 = vrot.slane %v360, 4
        %v505 = vrot.slane %v360, 6
        %v506 = vrot.slane %v361, 2
        %v507 = vrot.slane %v361, 4
        %v508 = vrot.slane %v361, 6
        %v509 = vrot.slane %v362, 2
        %v510 = vrot.slane %v362, 4
        %v511 = vrot.slane %v362, 6
        %v512 = vrot.slane %v363, 2
        %v513 = vrot.slane %v363, 4
        %v514 = vrot.slane %v363, 6
        %v515 = vrot.slane %v364, 2
        %v516 = vrot.slane %v364, 4
        %v517 = vrot.slane %v364, 6
        %v518 = vrot.slane %v365, 2
        %v519 = vrot.slane %v365, 4
        %v520 = vrot.slane %v365, 6
        %v521 = vrot.slane %v366, 2
        %v522 = vrot.slane %v366, 4
        %v523 = vrot.slane %v366, 6
        %v524 = vrot.slane %v367, 2
        %v525 = vrot.slane %v367, 4
        %v526 = vrot.slane %v367, 6
        %v527 = vrot.slane %v368, 2
        %v528 = vrot.slane %v368, 4
        %v529 = vrot.slane %v368, 6
        %v530 = vrot.slane %v369, 2
        %v531 = vrot.slane %v369, 4
        %v532 = vrot.slane %v369, 6
        %v533 = vrot.slane %v370, 2
        %v534 = vrot.slane %v370, 4
        %v535 = vrot.slane %v370, 6
        %v536 = vrot.slane %v371, 2
        %v537 = vrot.slane %v371, 4
        %v538 = vrot.slane %v371, 6
        %v539 = vrot.slane %v372, 2
        %v540 = vrot.slane %v372, 4
        %v541 = vrot.slane %v372, 6
        %v542 = vrot.slane %v373, 2
        %v543 = vrot.slane %v373, 4
        %v544 = vrot.slane %v373, 6
        %v545 = vrot.slane %v374, 2
        %v546 = vrot.slane %v374, 4
        %v547 = vrot.slane %v374, 6
        %v548 = vrot.slane %v375, 2
        %v549 = vrot.slane %v375, 4
        %v550 = vrot.slane %v375, 6
        %v551 = vrot.slane %v376, 2
        %v552 = vrot.slane %v376, 4
        %v553 = vrot.slane %v376, 6
        %v554 = vrot.slane %v377, 2
        %v555 = vrot.slane %v377, 4
        %v556 = vrot.slane %v377, 6
        %v557 = vrot.slane %v378, 2
        %v558 = vrot.slane %v378, 4
        %v559 = vrot.slane %v378, 6
        %v560 = vrot.slane %v379, 2
        %v561 = vrot.slane %v379, 4
        %v562 = vrot.slane %v379, 6
        %v563 = vrot.slane %v380, 2
        %v564 = vrot.slane %v380, 4
        %v565 = vrot.slane %v380, 6
        %v566 = vrot.slane %v381, 2
        %v567 = vrot.slane %v381, 4
        %v568 = vrot.slane %v381, 6
        %v665 = vrot.slane %v350, 7
        %v666 = vrot.slane %v665, 2
        %v667 = vrot.slane %v473, 7
        %v668 = vrot.slane %v667, 2
        %v669 = vrot.slane %v474, 7
        %v670 = vrot.slane %v669, 2
        %v671 = vrot.slane %v475, 7
        %v672 = vrot.slane %v671, 2
        %v673 = vrot.slane %v351, 7
        %v674 = vrot.slane %v673, 2
        %v675 = vrot.slane %v476, 7
        %v676 = vrot.slane %v675, 2
        %v677 = vrot.slane %v477, 7
        %v678 = vrot.slane %v677, 2
        %v679 = vrot.slane %v478, 7
        %v680 = vrot.slane %v679, 2
        %v681 = vrot.slane %v352, 7
        %v682 = vrot.slane %v681, 2
        %v683 = vrot.slane %v479, 7
        %v684 = vrot.slane %v683, 2
        %v685 = vrot.slane %v480, 7
        %v686 = vrot.slane %v685, 2
        %v687 = vrot.slane %v481, 7
        %v688 = vrot.slane %v687, 2
        %v689 = vrot.slane %v353, 7
        %v690 = vrot.slane %v689, 2
        %v691 = vrot.slane %v482, 7
        %v692 = vrot.slane %v691, 2
        %v693 = vrot.slane %v483, 7
        %v694 = vrot.slane %v693, 2
        %v695 = vrot.slane %v484, 7
        %v696 = vrot.slane %v695, 2
        %v697 = vrot.slane %v354, 7
        %v698 = vrot.slane %v697, 2
        %v699 = vrot.slane %v485, 7
        %v700 = vrot.slane %v699, 2
        %v701 = vrot.slane %v486, 7
        %v702 = vrot.slane %v701, 2
        %v703 = vrot.slane %v487, 7
        %v704 = vrot.slane %v703, 2
        %v705 = vrot.slane %v355, 7
        %v706 = vrot.slane %v705, 2
        %v707 = vrot.slane %v488, 7
        %v708 = vrot.slane %v707, 2
        %v709 = vrot.slane %v489, 7
        %v710 = vrot.slane %v709, 2
        %v711 = vrot.slane %v490, 7
        %v712 = vrot.slane %v711, 2
        %v713 = vrot.slane %v356, 7
        %v714 = vrot.slane %v713, 2
        %v715 = vrot.slane %v491, 7
        %v716 = vrot.slane %v715, 2
        %v717 = vrot.slane %v492, 7
        %v718 = vrot.slane %v717, 2
        %v719 = vrot.slane %v493, 7
        %v720 = vrot.slane %v719, 2
        %v721 = vrot.slane %v357, 7
        %v722 = vrot.slane %v721, 2
        %v723 = vrot.slane %v494, 7
        %v724 = vrot.slane %v723, 2
        %v725 = vrot.slane %v495, 7
        %v726 = vrot.slane %v725, 2
        %v727 = vrot.slane %v496, 7
        %v728 = vrot.slane %v727, 2
        %v729 = vrot.slane %v358, 7
        %v730 = vrot.slane %v729, 2
        %v731 = vrot.slane %v497, 7
        %v732 = vrot.slane %v731, 2
        %v733 = vrot.slane %v498, 7
        %v734 = vrot.slane %v733, 2
        %v735 = vrot.slane %v499, 7
        %v736 = vrot.slane %v735, 2
        %v737 = vrot.slane %v359, 7
        %v738 = vrot.slane %v737, 2
        %v739 = vrot.slane %v500, 7
        %v740 = vrot.slane %v739, 2
        %v741 = vrot.slane %v501, 7
        %v742 = vrot.slane %v741, 2
        %v743 = vrot.slane %v502, 7
        %v744 = vrot.slane %v743, 2
        %v745 = vrot.slane %v360, 7
        %v746 = vrot.slane %v745, 2
        %v747 = vrot.slane %v503, 7
        %v748 = vrot.slane %v747, 2
        %v749 = vrot.slane %v504, 7
        %v750 = vrot.slane %v749, 2
        %v751 = vrot.slane %v505, 7
        %v752 = vrot.slane %v751, 2
        %v753 = vrot.slane %v361, 7
        %v754 = vrot.slane %v753, 2
        %v755 = vrot.slane %v506, 7
        %v756 = vrot.slane %v755, 2
        %v757 = vrot.slane %v507, 7
        %v758 = vrot.slane %v757, 2
        %v759 = vrot.slane %v508, 7
        %v760 = vrot.slane %v759, 2
        %v761 = vrot.slane %v362, 7
        %v762 = vrot.slane %v761, 2
        %v763 = vrot.slane %v509, 7
        %v764 = vrot.slane %v763, 2
        %v765 = vrot.slane %v510, 7
        %v766 = vrot.slane %v765, 2
        %v767 = vrot.slane %v511, 7
        %v768 = vrot.slane %v767, 2
        %v769 = vrot.slane %v363, 7
        %v770 = vrot.slane %v769, 2
        %v771 = vrot.slane %v512, 7
        %v772 = vrot.slane %v771, 2
        %v773 = vrot.slane %v513, 7
        %v774 = vrot.slane %v773, 2
        %v775 = vrot.slane %v514, 7
        %v776 = vrot.slane %v775, 2
        %v777 = vrot.slane %v364, 7
        %v778 = vrot.slane %v777, 2
        %v779 = vrot.slane %v515, 7
        %v780 = vrot.slane %v779, 2
        %v781 = vrot.slane %v516, 7
        %v782 = vrot.slane %v781, 2
        %v783 = vrot.slane %v517, 7
        %v784 = vrot.slane %v783, 2
        %v785 = vrot.slane %v365, 7
        %v786 = vrot.slane %v785, 2
        %v787 = vrot.slane %v518, 7
        %v788 = vrot.slane %v787, 2
        %v789 = vrot.slane %v519, 7
        %v790 = vrot.slane %v789, 2
        %v791 = vrot.slane %v520, 7
        %v792 = vrot.slane %v791, 2
        %v793 = vrot.slane %v366, 7
        %v794 = vrot.slane %v793, 2
        %v795 = vrot.slane %v521, 7
        %v796 = vrot.slane %v795, 2
        %v797 = vrot.slane %v522, 7
        %v798 = vrot.slane %v797, 2
        %v799 = vrot.slane %v523, 7
        %v800 = vrot.slane %v799, 2
        %v801 = vrot.slane %v367, 7
        %v802 = vrot.slane %v801, 2
        %v803 = vrot.slane %v524, 7
        %v804 = vrot.slane %v803, 2
        %v805 = vrot.slane %v525, 7
        %v806 = vrot.slane %v805, 2
        %v807 = vrot.slane %v526, 7
        %v808 = vrot.slane %v807, 2
        %v809 = vrot.slane %v368, 7
        %v810 = vrot.slane %v809, 2
        %v811 = vrot.slane %v527, 7
        %v812 = vrot.slane %v811, 2
        %v813 = vrot.slane %v528, 7
        %v814 = vrot.slane %v813, 2
        %v815 = vrot.slane %v529, 7
        %v816 = vrot.slane %v815, 2
        %v817 = vrot.slane %v369, 7
        %v818 = vrot.slane %v817, 2
        %v819 = vrot.slane %v530, 7
        %v820 = vrot.slane %v819, 2
        %v821 = vrot.slane %v531, 7
        %v822 = vrot.slane %v821, 2
        %v823 = vrot.slane %v532, 7
        %v824 = vrot.slane %v823, 2
        %v825 = vrot.slane %v370, 7
        %v826 = vrot.slane %v825, 2
        %v827 = vrot.slane %v533, 7
        %v828 = vrot.slane %v827, 2
        %v829 = vrot.slane %v534, 7
        %v830 = vrot.slane %v829, 2
        %v831 = vrot.slane %v535, 7
        %v832 = vrot.slane %v831, 2
        %v833 = vrot.slane %v371, 7
        %v834 = vrot.slane %v833, 2
        %v835 = vrot.slane %v536, 7
        %v836 = vrot.slane %v835, 2
        %v837 = vrot.slane %v537, 7
        %v838 = vrot.slane %v837, 2
        %v839 = vrot.slane %v538, 7
        %v840 = vrot.slane %v839, 2
        %v841 = vrot.slane %v372, 7
        %v842 = vrot.slane %v841, 2
        %v843 = vrot.slane %v539, 7
        %v844 = vrot.slane %v843, 2
        %v845 = vrot.slane %v540, 7
        %v846 = vrot.slane %v845, 2
        %v847 = vrot.slane %v541, 7
        %v848 = vrot.slane %v847, 2
        %v849 = vrot.slane %v373, 7
        %v850 = vrot.slane %v849, 2
        %v851 = vrot.slane %v542, 7
        %v852 = vrot.slane %v851, 2
        %v853 = vrot.slane %v543, 7
        %v854 = vrot.slane %v853, 2
        %v855 = vrot.slane %v544, 7
        %v856 = vrot.slane %v855, 2
        %v857 = vrot.slane %v374, 7
        %v858 = vrot.slane %v857, 2
        %v859 = vrot.slane %v545, 7
        %v860 = vrot.slane %v859, 2
        %v861 = vrot.slane %v546, 7
        %v862 = vrot.slane %v861, 2
        %v863 = vrot.slane %v547, 7
        %v864 = vrot.slane %v863, 2
        %v865 = vrot.slane %v375, 7
        %v866 = vrot.slane %v865, 2
        %v867 = vrot.slane %v548, 7
        %v868 = vrot.slane %v867, 2
        %v869 = vrot.slane %v549, 7
        %v870 = vrot.slane %v869, 2
        %v871 = vrot.slane %v550, 7
        %v872 = vrot.slane %v871, 2
        %v873 = vrot.slane %v376, 7
        %v874 = vrot.slane %v873, 2
        %v875 = vrot.slane %v551, 7
        %v876 = vrot.slane %v875, 2
        %v877 = vrot.slane %v552, 7
        %v878 = vrot.slane %v877, 2
        %v879 = vrot.slane %v553, 7
        %v880 = vrot.slane %v879, 2
        %v881 = vrot.slane %v377, 7
        %v882 = vrot.slane %v881, 2
        %v883 = vrot.slane %v554, 7
        %v884 = vrot.slane %v883, 2
        %v885 = vrot.slane %v555, 7
        %v886 = vrot.slane %v885, 2
        %v887 = vrot.slane %v556, 7
        %v888 = vrot.slane %v887, 2
        %v889 = vrot.slane %v378, 7
        %v890 = vrot.slane %v889, 2
        %v891 = vrot.slane %v557, 7
        %v892 = vrot.slane %v891, 2
        %v893 = vrot.slane %v558, 7
        %v894 = vrot.slane %v893, 2
        %v895 = vrot.slane %v559, 7
        %v896 = vrot.slane %v895, 2
        %v897 = vrot.slane %v379, 7
        %v898 = vrot.slane %v897, 2
        %v899 = vrot.slane %v560, 7
        %v900 = vrot.slane %v899, 2
        %v901 = vrot.slane %v561, 7
        %v902 = vrot.slane %v901, 2
        %v903 = vrot.slane %v562, 7
        %v904 = vrot.slane %v903, 2
        %v905 = vrot.slane %v380, 7
        %v906 = vrot.slane %v905, 2
        %v907 = vrot.slane %v563, 7
        %v908 = vrot.slane %v907, 2
        %v909 = vrot.slane %v564, 7
        %v910 = vrot.slane %v909, 2
        %v911 = vrot.slane %v565, 7
        %v912 = vrot.slane %v911, 2
        %v913 = vrot.slane %v381, 7
        %v914 = vrot.slane %v913, 2
        %v915 = vrot.slane %v566, 7
        %v916 = vrot.slane %v915, 2
        %v917 = vrot.slane %v567, 7
        %v918 = vrot.slane %v917, 2
        %v919 = vrot.slane %v568, 7
        %v920 = vrot.slane %v919, 2
        %v1049 = vadd.f32 %v350, %v666
        %v1050 = vadd.f32 %v473, %v668
        %v1051 = vadd.f32 %v474, %v670
        %v1052 = vadd.f32 %v475, %v672
        %v1053 = vadd.f32 %v351, %v674
        %v1054 = vadd.f32 %v476, %v676
        %v1055 = vadd.f32 %v477, %v678
        %v1056 = vadd.f32 %v478, %v680
        %v1057 = vadd.f32 %v352, %v682
        %v1058 = vadd.f32 %v479, %v684
        %v1059 = vadd.f32 %v480, %v686
        %v1060 = vadd.f32 %v481, %v688
        %v1061 = vadd.f32 %v353, %v690
        %v1062 = vadd.f32 %v482, %v692
        %v1063 = vadd.f32 %v483, %v694
        %v1064 = vadd.f32 %v484, %v696
        %v1065 = vadd.f32 %v354, %v698
        %v1066 = vadd.f32 %v485, %v700
        %v1067 = vadd.f32 %v486, %v702
        %v1068 = vadd.f32 %v487, %v704
        %v1069 = vadd.f32 %v355, %v706
        %v1070 = vadd.f32 %v488, %v708
        %v1071 = vadd.f32 %v489, %v710
        %v1072 = vadd.f32 %v490, %v712
        %v1073 = vadd.f32 %v356, %v714
        %v1074 = vadd.f32 %v491, %v716
        %v1075 = vadd.f32 %v492, %v718
        %v1076 = vadd.f32 %v493, %v720
        %v1077 = vadd.f32 %v357, %v722
        %v1078 = vadd.f32 %v494, %v724
        %v1079 = vadd.f32 %v495, %v726
        %v1080 = vadd.f32 %v496, %v728
        %v1081 = vadd.f32 %v358, %v730
        %v1082 = vadd.f32 %v497, %v732
        %v1083 = vadd.f32 %v498, %v734
        %v1084 = vadd.f32 %v499, %v736
        %v1085 = vadd.f32 %v359, %v738
        %v1086 = vadd.f32 %v500, %v740
        %v1087 = vadd.f32 %v501, %v742
        %v1088 = vadd.f32 %v502, %v744
        %v1089 = vadd.f32 %v360, %v746
        %v1090 = vadd.f32 %v503, %v748
        %v1091 = vadd.f32 %v504, %v750
        %v1092 = vadd.f32 %v505, %v752
        %v1093 = vadd.f32 %v361, %v754
        %v1094 = vadd.f32 %v506, %v756
        %v1095 = vadd.f32 %v507, %v758
        %v1096 = vadd.f32 %v508, %v760
        %v1097 = vadd.f32 %v362, %v762
        %v1098 = vadd.f32 %v509, %v764
        %v1099 = vadd.f32 %v510, %v766
        %v1100 = vadd.f32 %v511, %v768
        %v1101 = vadd.f32 %v363, %v770
        %v1102 = vadd.f32 %v512, %v772
        %v1103 = vadd.f32 %v513, %v774
        %v1104 = vadd.f32 %v514, %v776
        %v1105 = vadd.f32 %v364, %v778
        %v1106 = vadd.f32 %v515, %v780
        %v1107 = vadd.f32 %v516, %v782
        %v1108 = vadd.f32 %v517, %v784
        %v1109 = vadd.f32 %v365, %v786
        %v1110 = vadd.f32 %v518, %v788
        %v1111 = vadd.f32 %v519, %v790
        %v1112 = vadd.f32 %v520, %v792
        %v1113 = vadd.f32 %v366, %v794
        %v1114 = vadd.f32 %v521, %v796
        %v1115 = vadd.f32 %v522, %v798
        %v1116 = vadd.f32 %v523, %v800
        %v1117 = vadd.f32 %v367, %v802
        %v1118 = vadd.f32 %v524, %v804
        %v1119 = vadd.f32 %v525, %v806
        %v1120 = vadd.f32 %v526, %v808
        %v1121 = vadd.f32 %v368, %v810
        %v1122 = vadd.f32 %v527, %v812
        %v1123 = vadd.f32 %v528, %v814
        %v1124 = vadd.f32 %v529, %v816
        %v1125 = vadd.f32 %v369, %v818
        %v1126 = vadd.f32 %v530, %v820
        %v1127 = vadd.f32 %v531, %v822
        %v1128 = vadd.f32 %v532, %v824
        %v1129 = vadd.f32 %v370, %v826
        %v1130 = vadd.f32 %v533, %v828
        %v1131 = vadd.f32 %v534, %v830
        %v1132 = vadd.f32 %v535, %v832
        %v1133 = vadd.f32 %v371, %v834
        %v1134 = vadd.f32 %v536, %v836
        %v1135 = vadd.f32 %v537, %v838
        %v1136 = vadd.f32 %v538, %v840
        %v1137 = vadd.f32 %v372, %v842
        %v1138 = vadd.f32 %v539, %v844
        %v1139 = vadd.f32 %v540, %v846
        %v1140 = vadd.f32 %v541, %v848
        %v1141 = vadd.f32 %v373, %v850
        %v1142 = vadd.f32 %v542, %v852
        %v1143 = vadd.f32 %v543, %v854
        %v1144 = vadd.f32 %v544, %v856
        %v1145 = vadd.f32 %v374, %v858
        %v1146 = vadd.f32 %v545, %v860
        %v1147 = vadd.f32 %v546, %v862
        %v1148 = vadd.f32 %v547, %v864
        %v1149 = vadd.f32 %v375, %v866
        %v1150 = vadd.f32 %v548, %v868
        %v1151 = vadd.f32 %v549, %v870
        %v1152 = vadd.f32 %v550, %v872
        %v1153 = vadd.f32 %v376, %v874
        %v1154 = vadd.f32 %v551, %v876
        %v1155 = vadd.f32 %v552, %v878
        %v1156 = vadd.f32 %v553, %v880
        %v1157 = vadd.f32 %v377, %v882
        %v1158 = vadd.f32 %v554, %v884
        %v1159 = vadd.f32 %v555, %v886
        %v1160 = vadd.f32 %v556, %v888
        %v1161 = vadd.f32 %v378, %v890
        %v1162 = vadd.f32 %v557, %v892
        %v1163 = vadd.f32 %v558, %v894
        %v1164 = vadd.f32 %v559, %v896
        %v1165 = vadd.f32 %v379, %v898
        %v1166 = vadd.f32 %v560, %v900
        %v1167 = vadd.f32 %v561, %v902
        %v1168 = vadd.f32 %v562, %v904
        %v1169 = vadd.f32 %v380, %v906
        %v1170 = vadd.f32 %v563, %v908
        %v1171 = vadd.f32 %v564, %v910
        %v1172 = vadd.f32 %v565, %v912
        %v1173 = vadd.f32 %v381, %v914
        %v1174 = vadd.f32 %v566, %v916
        %v1175 = vadd.f32 %v567, %v918
        %v1176 = vadd.f32 %v568, %v920
        %v1177 = vadd.f32 %v1049, %v1057
        %v1178 = vadd.f32 %v1050, %v1058
        %v1179 = vadd.f32 %v1051, %v1059
        %v1180 = vadd.f32 %v1052, %v1060
        %v1181 = vadd.f32 %v1053, %v1061
        %v1182 = vadd.f32 %v1054, %v1062
        %v1183 = vadd.f32 %v1055, %v1063
        %v1184 = vadd.f32 %v1056, %v1064
        %v1185 = vadd.f32 %v1065, %v1073
        %v1186 = vadd.f32 %v1066, %v1074
        %v1187 = vadd.f32 %v1067, %v1075
        %v1188 = vadd.f32 %v1068, %v1076
        %v1189 = vadd.f32 %v1069, %v1077
        %v1190 = vadd.f32 %v1070, %v1078
        %v1191 = vadd.f32 %v1071, %v1079
        %v1192 = vadd.f32 %v1072, %v1080
        %v1193 = vadd.f32 %v1081, %v1089
        %v1194 = vadd.f32 %v1082, %v1090
        %v1195 = vadd.f32 %v1083, %v1091
        %v1196 = vadd.f32 %v1084, %v1092
        %v1197 = vadd.f32 %v1085, %v1093
        %v1198 = vadd.f32 %v1086, %v1094
        %v1199 = vadd.f32 %v1087, %v1095
        %v1200 = vadd.f32 %v1088, %v1096
        %v1201 = vadd.f32 %v1097, %v1105
        %v1202 = vadd.f32 %v1098, %v1106
        %v1203 = vadd.f32 %v1099, %v1107
        %v1204 = vadd.f32 %v1100, %v1108
        %v1205 = vadd.f32 %v1101, %v1109
        %v1206 = vadd.f32 %v1102, %v1110
        %v1207 = vadd.f32 %v1103, %v1111
        %v1208 = vadd.f32 %v1104, %v1112
        %v1209 = vadd.f32 %v1113, %v1121
        %v1210 = vadd.f32 %v1114, %v1122
        %v1211 = vadd.f32 %v1115, %v1123
        %v1212 = vadd.f32 %v1116, %v1124
        %v1213 = vadd.f32 %v1117, %v1125
        %v1214 = vadd.f32 %v1118, %v1126
        %v1215 = vadd.f32 %v1119, %v1127
        %v1216 = vadd.f32 %v1120, %v1128
        %v1217 = vadd.f32 %v1129, %v1137
        %v1218 = vadd.f32 %v1130, %v1138
        %v1219 = vadd.f32 %v1131, %v1139
        %v1220 = vadd.f32 %v1132, %v1140
        %v1221 = vadd.f32 %v1133, %v1141
        %v1222 = vadd.f32 %v1134, %v1142
        %v1223 = vadd.f32 %v1135, %v1143
        %v1224 = vadd.f32 %v1136, %v1144
        %v1225 = vadd.f32 %v1145, %v1153
        %v1226 = vadd.f32 %v1146, %v1154
        %v1227 = vadd.f32 %v1147, %v1155
        %v1228 = vadd.f32 %v1148, %v1156
        %v1229 = vadd.f32 %v1149, %v1157
        %v1230 = vadd.f32 %v1150, %v1158
        %v1231 = vadd.f32 %v1151, %v1159
        %v1232 = vadd.f32 %v1152, %v1160
        %v1233 = vadd.f32 %v1161, %v1169
        %v1234 = vadd.f32 %v1162, %v1170
        %v1235 = vadd.f32 %v1163, %v1171
        %v1236 = vadd.f32 %v1164, %v1172
        %v1237 = vadd.f32 %v1165, %v1173
        %v1238 = vadd.f32 %v1166, %v1174
        %v1239 = vadd.f32 %v1167, %v1175
        %v1240 = vadd.f32 %v1168, %v1176
        %v1241 = vmul.f32 %v1177, 0.25
        %v1242 = vmul.f32 %v1178, 0.25
        %v1243 = vmul.f32 %v1179, 0.25
        %v1244 = vmul.f32 %v1180, 0.25
        %v1245 = vmul.f32 %v1181, 0.25
        %v1246 = vmul.f32 %v1182, 0.25
        %v1247 = vmul.f32 %v1183, 0.25
        %v1248 = vmul.f32 %v1184, 0.25
        %v1249 = vmul.f32 %v1185, 0.25
        %v1250 = vmul.f32 %v1186, 0.25
        %v1251 = vmul.f32 %v1187, 0.25
        %v1252 = vmul.f32 %v1188, 0.25
        %v1253 = vmul.f32 %v1189, 0.25
        %v1254 = vmul.f32 %v1190, 0.25
        %v1255 = vmul.f32 %v1191, 0.25
        %v1256 = vmul.f32 %v1192, 0.25
        %v1257 = vmul.f32 %v1193, 0.25
        %v1258 = vmul.f32 %v1194, 0.25
        %v1259 = vmul.f32 %v1195, 0.25
        %v1260 = vmul.f32 %v1196, 0.25
        %v1261 = vmul.f32 %v1197, 0.25
        %v1262 = vmul.f32 %v1198, 0.25
        %v1263 = vmul.f32 %v1199, 0.25
        %v1264 = vmul.f32 %v1200, 0.25
        %v1265 = vmul.f32 %v1201, 0.25
        %v1266 = vmul.f32 %v1202, 0.25
        %v1267 = vmul.f32 %v1203, 0.25
        %v1268 = vmul.f32 %v1204, 0.25
        %v1269 = vmul.f32 %v1205, 0.25
        %v1270 = vmul.f32 %v1206, 0.25
        %v1271 = vmul.f32 %v1207, 0.25
        %v1272 = vmul.f32 %v1208, 0.25
        %v1273 = vmul.f32 %v1209, 0.25
        %v1274 = vmul.f32 %v1210, 0.25
        %v1275 = vmul.f32 %v1211, 0.25
        %v1276 = vmul.f32 %v1212, 0.25
        %v1277 = vmul.f32 %v1213, 0.25
        %v1278 = vmul.f32 %v1214, 0.25
        %v1279 = vmul.f32 %v1215, 0.25
        %v1280 = vmul.f32 %v1216, 0.25
        %v1281 = vmul.f32 %v1217, 0.25
        %v1282 = vmul.f32 %v1218, 0.25
        %v1283 = vmul.f32 %v1219, 0.25
        %v1284 = vmul.f32 %v1220, 0.25
        %v1285 = vmul.f32 %v1221, 0.25
        %v1286 = vmul.f32 %v1222, 0.25
        %v1287 = vmul.f32 %v1223, 0.25
        %v1288 = vmul.f32 %v1224, 0.25
        %v1289 = vmul.f32 %v1225, 0.25
        %v1290 = vmul.f32 %v1226, 0.25
        %v1291 = vmul.f32 %v1227, 0.25
        %v1292 = vmul.f32 %v1228, 0.25
        %v1293 = vmul.f32 %v1229, 0.25
        %v1294 = vmul.f32 %v1230, 0.25
        %v1295 = vmul.f32 %v1231, 0.25
        %v1296 = vmul.f32 %v1232, 0.25
        %v1297 = vmul.f32 %v1233, 0.25
        %v1298 = vmul.f32 %v1234, 0.25
        %v1299 = vmul.f32 %v1235, 0.25
        %v1300 = vmul.f32 %v1236, 0.25
        %v1301 = vmul.f32 %v1237, 0.25
        %v1302 = vmul.f32 %v1238, 0.25
        %v1303 = vmul.f32 %v1239, 0.25
        %v1304 = vmul.f32 %v1240, 0.25
        %v1305 = vpack.c.bf16 %v1241, %v1241
        %v1306 = vpack.c.bf16 %v1242, %v1242
        %v1307 = vpack.c.bf16 %v1243, %v1243
        %v1308 = vpack.c.bf16 %v1244, %v1244
        %v1309 = vpack.c.bf16 %v1245, %v1245
        %v1310 = vpack.c.bf16 %v1246, %v1246
        %v1311 = vpack.c.bf16 %v1247, %v1247
        %v1312 = vpack.c.bf16 %v1248, %v1248
        %v1313 = vpack.c.bf16 %v1249, %v1249
        %v1314 = vpack.c.bf16 %v1250, %v1250
        %v1315 = vpack.c.bf16 %v1251, %v1251
        %v1316 = vpack.c.bf16 %v1252, %v1252
        %v1317 = vpack.c.bf16 %v1253, %v1253
        %v1318 = vpack.c.bf16 %v1254, %v1254
        %v1319 = vpack.c.bf16 %v1255, %v1255
        %v1320 = vpack.c.bf16 %v1256, %v1256
        %v1321 = vpack.c.bf16 %v1257, %v1257
        %v1322 = vpack.c.bf16 %v1258, %v1258
        %v1323 = vpack.c.bf16 %v1259, %v1259
        %v1324 = vpack.c.bf16 %v1260, %v1260
        %v1325 = vpack.c.bf16 %v1261, %v1261
        %v1326 = vpack.c.bf16 %v1262, %v1262
        %v1327 = vpack.c.bf16 %v1263, %v1263
        %v1328 = vpack.c.bf16 %v1264, %v1264
        %v1329 = vpack.c.bf16 %v1265, %v1265
        %v1330 = vpack.c.bf16 %v1266, %v1266
        %v1331 = vpack.c.bf16 %v1267, %v1267
        %v1332 = vpack.c.bf16 %v1268, %v1268
        %v1333 = vpack.c.bf16 %v1269, %v1269
        %v1334 = vpack.c.bf16 %v1270, %v1270
        %v1335 = vpack.c.bf16 %v1271, %v1271
        %v1336 = vpack.c.bf16 %v1272, %v1272
        %v1337 = vpack.c.bf16 %v1273, %v1273
        %v1338 = vpack.c.bf16 %v1274, %v1274
        %v1339 = vpack.c.bf16 %v1275, %v1275
        %v1340 = vpack.c.bf16 %v1276, %v1276
        %v1341 = vpack.c.bf16 %v1277, %v1277
        %v1342 = vpack.c.bf16 %v1278, %v1278
        %v1343 = vpack.c.bf16 %v1279, %v1279
        %v1344 = vpack.c.bf16 %v1280, %v1280
        %v1345 = vpack.c.bf16 %v1281, %v1281
        %v1346 = vpack.c.bf16 %v1282, %v1282
        %v1347 = vpack.c.bf16 %v1283, %v1283
        %v1348 = vpack.c.bf16 %v1284, %v1284
        %v1349 = vpack.c.bf16 %v1285, %v1285
        %v1350 = vpack.c.bf16 %v1286, %v1286
        %v1351 = vpack.c.bf16 %v1287, %v1287
        %v1352 = vpack.c.bf16 %v1288, %v1288
        %v1353 = vpack.c.bf16 %v1289, %v1289
        %v1354 = vpack.c.bf16 %v1290, %v1290
        %v1355 = vpack.c.bf16 %v1291, %v1291
        %v1356 = vpack.c.bf16 %v1292, %v1292
        %v1357 = vpack.c.bf16 %v1293, %v1293
        %v1358 = vpack.c.bf16 %v1294, %v1294
        %v1359 = vpack.c.bf16 %v1295, %v1295
        %v1360 = vpack.c.bf16 %v1296, %v1296
        %v1361 = vpack.c.bf16 %v1297, %v1297
        %v1362 = vpack.c.bf16 %v1298, %v1298
        %v1363 = vpack.c.bf16 %v1299, %v1299
        %v1364 = vpack.c.bf16 %v1300, %v1300
        %v1365 = vpack.c.bf16 %v1301, %v1301
        %v1366 = vpack.c.bf16 %v1302, %v1302
        %v1367 = vpack.c.bf16 %v1303, %v1303
        %v1368 = vpack.c.bf16 %v1304, %v1304
        %v1433 = vunpack.c.l.b16 %v1305
        %v1434 = vunpack.c.l.b16 %v1306
        %v1435 = vunpack.c.l.b16 %v1307
        %v1436 = vunpack.c.l.b16 %v1308
        %v1437 = vunpack.c.l.b16 %v1309
        %v1438 = vunpack.c.l.b16 %v1310
        %v1439 = vunpack.c.l.b16 %v1311
        %v1440 = vunpack.c.l.b16 %v1312
        %v1441 = vunpack.c.l.b16 %v1313
        %v1442 = vunpack.c.l.b16 %v1314
        %v1443 = vunpack.c.l.b16 %v1315
        %v1444 = vunpack.c.l.b16 %v1316
        %v1445 = vunpack.c.l.b16 %v1317
        %v1446 = vunpack.c.l.b16 %v1318
        %v1447 = vunpack.c.l.b16 %v1319
        %v1448 = vunpack.c.l.b16 %v1320
        %v1449 = vunpack.c.l.b16 %v1321
        %v1450 = vunpack.c.l.b16 %v1322
        %v1451 = vunpack.c.l.b16 %v1323
        %v1452 = vunpack.c.l.b16 %v1324
        %v1453 = vunpack.c.l.b16 %v1325
        %v1454 = vunpack.c.l.b16 %v1326
        %v1455 = vunpack.c.l.b16 %v1327
        %v1456 = vunpack.c.l.b16 %v1328
        %v1457 = vunpack.c.l.b16 %v1329
        %v1458 = vunpack.c.l.b16 %v1330
        %v1459 = vunpack.c.l.b16 %v1331
        %v1460 = vunpack.c.l.b16 %v1332
        %v1461 = vunpack.c.l.b16 %v1333
        %v1462 = vunpack.c.l.b16 %v1334
        %v1463 = vunpack.c.l.b16 %v1335
        %v1464 = vunpack.c.l.b16 %v1336
        %v1465 = vunpack.c.l.b16 %v1337
        %v1466 = vunpack.c.l.b16 %v1338
        %v1467 = vunpack.c.l.b16 %v1339
        %v1468 = vunpack.c.l.b16 %v1340
        %v1469 = vunpack.c.l.b16 %v1341
        %v1470 = vunpack.c.l.b16 %v1342
        %v1471 = vunpack.c.l.b16 %v1343
        %v1472 = vunpack.c.l.b16 %v1344
        %v1473 = vunpack.c.l.b16 %v1345
        %v1474 = vunpack.c.l.b16 %v1346
        %v1475 = vunpack.c.l.b16 %v1347
        %v1476 = vunpack.c.l.b16 %v1348
        %v1477 = vunpack.c.l.b16 %v1349
        %v1478 = vunpack.c.l.b16 %v1350
        %v1479 = vunpack.c.l.b16 %v1351
        %v1480 = vunpack.c.l.b16 %v1352
        %v1481 = vunpack.c.l.b16 %v1353
        %v1482 = vunpack.c.l.b16 %v1354
        %v1483 = vunpack.c.l.b16 %v1355
        %v1484 = vunpack.c.l.b16 %v1356
        %v1485 = vunpack.c.l.b16 %v1357
        %v1486 = vunpack.c.l.b16 %v1358
        %v1487 = vunpack.c.l.b16 %v1359
        %v1488 = vunpack.c.l.b16 %v1360
        %v1489 = vunpack.c.l.b16 %v1361
        %v1490 = vunpack.c.l.b16 %v1362
        %v1491 = vunpack.c.l.b16 %v1363
        %v1492 = vunpack.c.l.b16 %v1364
        %v1493 = vunpack.c.l.b16 %v1365
        %v1494 = vunpack.c.l.b16 %v1366
        %v1495 = vunpack.c.l.b16 %v1367
        %v1496 = vunpack.c.l.b16 %v1368
        %v1497 = vrot.slane %v1433, 7
        %v1498 = vrot.slane %v1434, 6
        %vm1499 = vcmask 1042434
        %v1500 = vsel %vm1499, %v1498, %v1497
        %v1501 = vrot.slane %v1435, 5
        %vm1502 = vcmask 1043459
        %v1503 = vsel %vm1502, %v1501, %v1500
        %v1504 = vrot.slane %v1436, 4
        %vm1505 = vcmask 1044484
        %v1506 = vsel %vm1505, %v1504, %v1503
        %v1507 = vrot.slane %v1437, 3
        %vm1508 = vcmask 1045509
        %v1509 = vsel %vm1508, %v1507, %v1506
        %v1510 = vrot.slane %v1438, 2
        %vm1511 = vcmask 1046534
        %v1512 = vsel %vm1511, %v1510, %v1509
        %v1513 = vrot.slane %v1439, 1
        %vm1514 = vcmask 1047559
        %v1515 = vsel %vm1514, %v1513, %v1512
        %v1516 = vrot.slane %v1441, 7
        %v1517 = vrot.slane %v1442, 6
        %v1518 = vsel %vm1499, %v1517, %v1516
        %v1519 = vrot.slane %v1443, 5
        %v1520 = vsel %vm1502, %v1519, %v1518
        %v1521 = vrot.slane %v1444, 4
        %v1522 = vsel %vm1505, %v1521, %v1520
        %v1523 = vrot.slane %v1445, 3
        %v1524 = vsel %vm1508, %v1523, %v1522
        %v1525 = vrot.slane %v1446, 2
        %v1526 = vsel %vm1511, %v1525, %v1524
        %v1527 = vrot.slane %v1447, 1
        %v1528 = vsel %vm1514, %v1527, %v1526
        %v1529 = vrot.slane %v1449, 7
        %v1530 = vrot.slane %v1450, 6
        %v1531 = vsel %vm1499, %v1530, %v1529
        %v1532 = vrot.slane %v1451, 5
        %v1533 = vsel %vm1502, %v1532, %v1531
        %v1534 = vrot.slane %v1452, 4
        %v1535 = vsel %vm1505, %v1534, %v1533
        %v1536 = vrot.slane %v1453, 3
        %v1537 = vsel %vm1508, %v1536, %v1535
        %v1538 = vrot.slane %v1454, 2
        %v1539 = vsel %vm1511, %v1538, %v1537
        %v1540 = vrot.slane %v1455, 1
        %v1541 = vsel %vm1514, %v1540, %v1539
        %v1542 = vrot.slane %v1457, 7
        %v1543 = vrot.slane %v1458, 6
        %v1544 = vsel %vm1499, %v1543, %v1542
        %v1545 = vrot.slane %v1459, 5
        %v1546 = vsel %vm1502, %v1545, %v1544
        %v1547 = vrot.slane %v1460, 4
        %v1548 = vsel %vm1505, %v1547, %v1546
        %v1549 = vrot.slane %v1461, 3
        %v1550 = vsel %vm1508, %v1549, %v1548
        %v1551 = vrot.slane %v1462, 2
        %v1552 = vsel %vm1511, %v1551, %v1550
        %v1553 = vrot.slane %v1463, 1
        %v1554 = vsel %vm1514, %v1553, %v1552
        %v1555 = vrot.slane %v1465, 7
        %v1556 = vrot.slane %v1466, 6
        %v1557 = vsel %vm1499, %v1556, %v1555
        %v1558 = vrot.slane %v1467, 5
        %v1559 = vsel %vm1502, %v1558, %v1557
        %v1560 = vrot.slane %v1468, 4
        %v1561 = vsel %vm1505, %v1560, %v1559
        %v1562 = vrot.slane %v1469, 3
        %v1563 = vsel %vm1508, %v1562, %v1561
        %v1564 = vrot.slane %v1470, 2
        %v1565 = vsel %vm1511, %v1564, %v1563
        %v1566 = vrot.slane %v1471, 1
        %v1567 = vsel %vm1514, %v1566, %v1565
        %v1568 = vrot.slane %v1473, 7
        %v1569 = vrot.slane %v1474, 6
        %v1570 = vsel %vm1499, %v1569, %v1568
        %v1571 = vrot.slane %v1475, 5
        %v1572 = vsel %vm1502, %v1571, %v1570
        %v1573 = vrot.slane %v1476, 4
        %v1574 = vsel %vm1505, %v1573, %v1572
        %v1575 = vrot.slane %v1477, 3
        %v1576 = vsel %vm1508, %v1575, %v1574
        %v1577 = vrot.slane %v1478, 2
        %v1578 = vsel %vm1511, %v1577, %v1576
        %v1579 = vrot.slane %v1479, 1
        %v1580 = vsel %vm1514, %v1579, %v1578
        %v1581 = vrot.slane %v1481, 7
        %v1582 = vrot.slane %v1482, 6
        %v1583 = vsel %vm1499, %v1582, %v1581
        %v1584 = vrot.slane %v1483, 5
        %v1585 = vsel %vm1502, %v1584, %v1583
        %v1586 = vrot.slane %v1484, 4
        %v1587 = vsel %vm1505, %v1586, %v1585
        %v1588 = vrot.slane %v1485, 3
        %v1589 = vsel %vm1508, %v1588, %v1587
        %v1590 = vrot.slane %v1486, 2
        %v1591 = vsel %vm1511, %v1590, %v1589
        %v1592 = vrot.slane %v1487, 1
        %v1593 = vsel %vm1514, %v1592, %v1591
        %v1594 = vrot.slane %v1489, 7
        %v1595 = vrot.slane %v1490, 6
        %v1596 = vsel %vm1499, %v1595, %v1594
        %v1597 = vrot.slane %v1491, 5
        %v1598 = vsel %vm1502, %v1597, %v1596
        %v1599 = vrot.slane %v1492, 4
        %v1600 = vsel %vm1505, %v1599, %v1598
        %v1601 = vrot.slane %v1493, 3
        %v1602 = vsel %vm1508, %v1601, %v1600
        %v1603 = vrot.slane %v1494, 2
        %v1604 = vsel %vm1511, %v1603, %v1602
        %v1605 = vrot.slane %v1495, 1
        %v1606 = vsel %vm1514, %v1605, %v1604
        %v1607 = vpack.c.b16 %v1515, %v1515
        %v1608 = vpack.c.b16 %v1440, %v1440
        %v1609 = vpack.c.b16 %v1528, %v1528
        %v1610 = vpack.c.b16 %v1448, %v1448
        %v1611 = vpack.c.b16 %v1541, %v1541
        %v1612 = vpack.c.b16 %v1456, %v1456
        %v1613 = vpack.c.b16 %v1554, %v1554
        %v1614 = vpack.c.b16 %v1464, %v1464
        %v1615 = vpack.c.b16 %v1567, %v1567
        %v1616 = vpack.c.b16 %v1472, %v1472
        %v1617 = vpack.c.b16 %v1580, %v1580
        %v1618 = vpack.c.b16 %v1480, %v1480
        %v1619 = vpack.c.b16 %v1593, %v1593
        %v1620 = vpack.c.b16 %v1488, %v1488
        %v1621 = vpack.c.b16 %v1606, %v1606
        %v1622 = vpack.c.b16 %v1496, %v1496
        %vm1639 = vcmask 1043456
        %vm1640 = vmand %vm1639, %vm415
        %v1641 = vld [vmem:[%s387] sm:$0xf]
        %v1642 = vsel %vm1640, %v1607, %v1641
        %1643 = vst [vmem:[%s387] sm:$0xf] %v1642
        %v1644 = vld [vmem:[%s387 + $0x4] sm:$0x1]
        %v1645 = vsel %vm390, %v1608, %v1644
        %1646 = vst [vmem:[%s387 + $0x4] sm:$0x1] %v1645
        %v1647 = vld [vmem:[%s387 + $0x8] sm:$0xf]
        %v1648 = vsel %vm1640, %v1609, %v1647
        %1649 = vst [vmem:[%s387 + $0x8] sm:$0xf] %v1648
        %v1650 = vld [vmem:[%s387 + $0xc] sm:$0x1]
        %v1651 = vsel %vm390, %v1610, %v1650
        %1652 = vst [vmem:[%s387 + $0xc] sm:$0x1] %v1651
        %v1653 = vld [vmem:[%s387 + $0x10] sm:$0xf]
        %v1654 = vsel %vm1640, %v1611, %v1653
        %1655 = vst [vmem:[%s387 + $0x10] sm:$0xf] %v1654
        %v1656 = vld [vmem:[%s387 + $0x14] sm:$0x1]
        %v1657 = vsel %vm390, %v1612, %v1656
        %1658 = vst [vmem:[%s387 + $0x14] sm:$0x1] %v1657
        %v1659 = vld [vmem:[%s387 + $0x18] sm:$0xf]
        %v1660 = vsel %vm1640, %v1613, %v1659
        %1661 = vst [vmem:[%s387 + $0x18] sm:$0xf] %v1660
        %v1662 = vld [vmem:[%s387 + $0x1c] sm:$0x1]
        %v1663 = vsel %vm390, %v1614, %v1662
        %1664 = vst [vmem:[%s387 + $0x1c] sm:$0x1] %v1663
        %v1665 = vld [vmem:[%s387 + $0x20] sm:$0xf]
        %v1666 = vsel %vm1640, %v1615, %v1665
        %1667 = vst [vmem:[%s387 + $0x20] sm:$0xf] %v1666
        %v1668 = vld [vmem:[%s387 + $0x24] sm:$0x1]
        %v1669 = vsel %vm390, %v1616, %v1668
        %1670 = vst [vmem:[%s387 + $0x24] sm:$0x1] %v1669
        %v1671 = vld [vmem:[%s387 + $0x28] sm:$0xf]
        %v1672 = vsel %vm1640, %v1617, %v1671
        %1673 = vst [vmem:[%s387 + $0x28] sm:$0xf] %v1672
        %v1674 = vld [vmem:[%s387 + $0x2c] sm:$0x1]
        %v1675 = vsel %vm390, %v1618, %v1674
        %1676 = vst [vmem:[%s387 + $0x2c] sm:$0x1] %v1675
        %v1677 = vld [vmem:[%s387 + $0x30] sm:$0xf]
        %v1678 = vsel %vm1640, %v1619, %v1677
        %1679 = vst [vmem:[%s387 + $0x30] sm:$0xf] %v1678
        %v1680 = vld [vmem:[%s387 + $0x34] sm:$0x1]
        %v1681 = vsel %vm390, %v1620, %v1680
        %1682 = vst [vmem:[%s387 + $0x34] sm:$0x1] %v1681
        %v1683 = vld [vmem:[%s387 + $0x38] sm:$0xf]
        %v1684 = vsel %vm1640, %v1621, %v1683
        %1685 = vst [vmem:[%s387 + $0x38] sm:$0xf] %v1684
        %v1686 = vld [vmem:[%s387 + $0x3c] sm:$0x1]
        %v1687 = vsel %vm390, %v1622, %v1686
        %1688 = vst [vmem:[%s387 + $0x3c] sm:$0x1] %v1687
        %v1689 = vld [vmem:[#allocation2] sm:$0xf]
        %v1690 = vld [vmem:[#allocation2 + $0x8] sm:$0xf]
        %v1691 = vld [vmem:[#allocation2 + $0x10] sm:$0xf]
        %v1692 = vld [vmem:[#allocation2 + $0x18] sm:$0xf]
        %v1693 = vld [vmem:[#allocation2 + $0x20] sm:$0xf]
        %v1694 = vld [vmem:[#allocation2 + $0x28] sm:$0xf]
        %v1695 = vld [vmem:[#allocation2 + $0x30] sm:$0xf]
        %v1696 = vld [vmem:[#allocation2 + $0x38] sm:$0xf]
        %v1697 = vld [vmem:[#allocation9] sm:$0xf]
        %v1698 = vld [vmem:[#allocation9 + $0x4] sm:$0xf]
        %v1699 = vld [vmem:[#allocation9 + $0x8] sm:$0xf]
        %v1700 = vld [vmem:[#allocation9 + $0xc] sm:$0xf]
        %v1701 = vld [vmem:[#allocation9 + $0x10] sm:$0xf]
        %v1702 = vld [vmem:[#allocation9 + $0x14] sm:$0xf]
        %v1703 = vld [vmem:[#allocation9 + $0x18] sm:$0xf]
        %v1704 = vld [vmem:[#allocation9 + $0x1c] sm:$0xf]
        %v1705 = vld [vmem:[#allocation9 + $0x20] sm:$0xf]
        %v1706 = vld [vmem:[#allocation9 + $0x24] sm:$0xf]
        %v1707 = vld [vmem:[#allocation9 + $0x28] sm:$0xf]
        %v1708 = vld [vmem:[#allocation9 + $0x2c] sm:$0xf]
        %v1709 = vld [vmem:[#allocation9 + $0x30] sm:$0xf]
        %v1710 = vld [vmem:[#allocation9 + $0x34] sm:$0xf]
        %v1711 = vld [vmem:[#allocation9 + $0x38] sm:$0xf]
        %v1712 = vld [vmem:[#allocation9 + $0x3c] sm:$0xf]
        %v1713 = vld [vmem:[#allocation2 + $0x4] sm:$0x1]
        %v1714 = vld [vmem:[#allocation2 + $0xc] sm:$0x1]
        %v1715 = vld [vmem:[#allocation2 + $0x14] sm:$0x1]
        %v1716 = vld [vmem:[#allocation2 + $0x1c] sm:$0x1]
        %v1717 = vld [vmem:[#allocation2 + $0x24] sm:$0x1]
        %v1718 = vld [vmem:[#allocation2 + $0x2c] sm:$0x1]
        %v1719 = vld [vmem:[#allocation2 + $0x34] sm:$0x1]
        %v1720 = vld [vmem:[#allocation2 + $0x3c] sm:$0x1]
        %vm1721 = vsmask.f32 3328
        %vm1722 = vsmask.f32 7440
        %vm1723 = vmor %vm1721, %vm1722
        %v1725 = vshrl.u32 %v1689, 16
        %v1727 = vrot.slane %v1725, 4
        %v1728 = vshll.u32 %v1689, 16
        %v1730 = vrot.slane %v1728, 5
        %v1731 = vor.u32 %v1727, %v1730
        %v1732 = vrot.slane %v1731, 4
        %v1734 = vshll.u32 %v1713, 16
        %v1736 = vrot.slane %v1734, 5
        %v1737 = vsel %vm1723, %v1732, %v1736
        %v1739 = vshrl.u32 %v1690, 16
        %v1741 = vrot.slane %v1739, 4
        %v1742 = vshll.u32 %v1690, 16
        %v1744 = vrot.slane %v1742, 5
        %v1745 = vor.u32 %v1741, %v1744
        %v1746 = vrot.slane %v1745, 4
        %v1748 = vshll.u32 %v1714, 16
        %v1750 = vrot.slane %v1748, 5
        %v1751 = vsel %vm1723, %v1746, %v1750
        %v1753 = vshrl.u32 %v1691, 16
        %v1755 = vrot.slane %v1753, 4
        %v1756 = vshll.u32 %v1691, 16
        %v1758 = vrot.slane %v1756, 5
        %v1759 = vor.u32 %v1755, %v1758
        %v1760 = vrot.slane %v1759, 4
        %v1762 = vshll.u32 %v1715, 16
        %v1764 = vrot.slane %v1762, 5
        %v1765 = vsel %vm1723, %v1760, %v1764
        %v1767 = vshrl.u32 %v1692, 16
        %v1769 = vrot.slane %v1767, 4
        %v1770 = vshll.u32 %v1692, 16
        %v1772 = vrot.slane %v1770, 5
        %v1773 = vor.u32 %v1769, %v1772
        %v1774 = vrot.slane %v1773, 4
        %v1776 = vshll.u32 %v1716, 16
        %v1778 = vrot.slane %v1776, 5
        %v1779 = vsel %vm1723, %v1774, %v1778
        %v1781 = vshrl.u32 %v1693, 16
        %v1783 = vrot.slane %v1781, 4
        %v1784 = vshll.u32 %v1693, 16
        %v1786 = vrot.slane %v1784, 5
        %v1787 = vor.u32 %v1783, %v1786
        %v1788 = vrot.slane %v1787, 4
        %v1790 = vshll.u32 %v1717, 16
        %v1792 = vrot.slane %v1790, 5
        %v1793 = vsel %vm1723, %v1788, %v1792
        %v1795 = vshrl.u32 %v1694, 16
        %v1797 = vrot.slane %v1795, 4
        %v1798 = vshll.u32 %v1694, 16
        %v1800 = vrot.slane %v1798, 5
        %v1801 = vor.u32 %v1797, %v1800
        %v1802 = vrot.slane %v1801, 4
        %v1804 = vshll.u32 %v1718, 16
        %v1806 = vrot.slane %v1804, 5
        %v1807 = vsel %vm1723, %v1802, %v1806
        %v1809 = vshrl.u32 %v1695, 16
        %v1811 = vrot.slane %v1809, 4
        %v1812 = vshll.u32 %v1695, 16
        %v1814 = vrot.slane %v1812, 5
        %v1815 = vor.u32 %v1811, %v1814
        %v1816 = vrot.slane %v1815, 4
        %v1818 = vshll.u32 %v1719, 16
        %v1820 = vrot.slane %v1818, 5
        %v1821 = vsel %vm1723, %v1816, %v1820
        %v1823 = vshrl.u32 %v1696, 16
        %v1825 = vrot.slane %v1823, 4
        %v1826 = vshll.u32 %v1696, 16
        %v1828 = vrot.slane %v1826, 5
        %v1829 = vor.u32 %v1825, %v1828
        %v1830 = vrot.slane %v1829, 4
        %v1832 = vshll.u32 %v1720, 16
        %v1834 = vrot.slane %v1832, 5
        %v1835 = vsel %vm1723, %v1830, %v1834
        %v1836 = vld [vmem:[#allocation9 + $0x40] sm:$0xf]
        %v1837 = vld [vmem:[#allocation9 + $0x44] sm:$0xf]
        %v1838 = vld [vmem:[#allocation9 + $0x48] sm:$0xf]
        %v1839 = vld [vmem:[#allocation9 + $0x4c] sm:$0xf]
        %v1840 = vld [vmem:[#allocation9 + $0x50] sm:$0xf]
        %v1841 = vld [vmem:[#allocation9 + $0x54] sm:$0xf]
        %v1842 = vld [vmem:[#allocation9 + $0x58] sm:$0xf]
        %v1843 = vld [vmem:[#allocation9 + $0x5c] sm:$0xf]
        %v1844 = vld [vmem:[#allocation9 + $0x60] sm:$0xf]
        %v1845 = vld [vmem:[#allocation9 + $0x64] sm:$0xf]
        %v1846 = vld [vmem:[#allocation9 + $0x68] sm:$0xf]
        %v1847 = vld [vmem:[#allocation9 + $0x6c] sm:$0xf]
        %v1848 = vld [vmem:[#allocation9 + $0x70] sm:$0xf]
        %v1849 = vld [vmem:[#allocation9 + $0x74] sm:$0xf]
        %v1850 = vld [vmem:[#allocation9 + $0x78] sm:$0xf]
        %v1851 = vld [vmem:[#allocation9 + $0x7c] sm:$0xf]
        %v1852 = vunpack.c.l.b16 %v1737
        %v1853 = vunpack.c.l.b16 %v1751
        %v1854 = vunpack.c.l.b16 %v1765
        %v1855 = vunpack.c.l.b16 %v1779
        %v1856 = vunpack.c.l.b16 %v1793
        %v1857 = vunpack.c.l.b16 %v1807
        %v1858 = vunpack.c.l.b16 %v1821
        %v1859 = vunpack.c.l.b16 %v1835
        %v1860 = vpack.c.b16 %v1853, %v1852
        %v1861 = vpack.c.b16 %v1855, %v1854
        %v1862 = vpack.c.b16 %v1857, %v1856
        %v1863 = vpack.c.b16 %v1859, %v1858
        %v1884 = vunpack.c.l.b16 %v1836
        %v1885 = vunpack.c.l.b16 %v1837
        %v1886 = vunpack.c.l.b16 %v1838
        %v1887 = vunpack.c.l.b16 %v1839
        %v1888 = vunpack.c.l.b16 %v1840
        %v1889 = vunpack.c.l.b16 %v1841
        %v1890 = vunpack.c.l.b16 %v1842
        %v1891 = vunpack.c.l.b16 %v1843
        %v1892 = vunpack.c.l.b16 %v1844
        %v1893 = vunpack.c.l.b16 %v1845
        %v1894 = vunpack.c.l.b16 %v1846
        %v1895 = vunpack.c.l.b16 %v1847
        %v1896 = vunpack.c.l.b16 %v1848
        %v1897 = vunpack.c.l.b16 %v1849
        %v1898 = vunpack.c.l.b16 %v1850
        %v1899 = vunpack.c.l.b16 %v1851
        %v1900 = vpack.c.b16 %v1885, %v1884
        %v1901 = vpack.c.b16 %v1887, %v1886
        %v1902 = vpack.c.b16 %v1889, %v1888
        %v1903 = vpack.c.b16 %v1891, %v1890
        %v1904 = vpack.c.b16 %v1893, %v1892
        %v1905 = vpack.c.b16 %v1895, %v1894
        %v1906 = vpack.c.b16 %v1897, %v1896
        %v1907 = vpack.c.b16 %v1899, %v1898
        %1916 = vmatpush.bf16.msra.mxu0 %v1907
        %1917 = vmatpush.bf16.msra.mxu0 %v1906
        %1918 = vmatpush.bf16.msra.mxu0 %v1905
        %1919 = vmatpush.bf16.msra.mxu0 %v1904
        %1920 = vmatpush.bf16.msra.mxu0 %v1903
        %1921 = vmatpush.bf16.msra.mxu0 %v1902
        %1922 = vmatpush.bf16.msra.mxu0 %v1901
        %1923 = vmatpush.bf16.msra.mxu0 %v1900
        %1924 = vmatmul.bf16.gmra.mxu0 %v1860
        %v1925 = vpop.f32.mrf.mxu0
        %v1926 = vadd.f32 0.0, %v1925
        %v1927 = vpop.f32.mrf.mxu0
        %v1928 = vadd.f32 0.0, %v1927
        %1929 = vmatmul.bf16.gmra.mxu0 %v1861
        %v1930 = vpop.f32.mrf.mxu0
        %v1931 = vadd.f32 0.0, %v1930
        %v1932 = vpop.f32.mrf.mxu0
        %v1933 = vadd.f32 0.0, %v1932
        %1934 = vmatmul.bf16.gmra.mxu0 %v1862
        %v1935 = vpop.f32.mrf.mxu0
        %v1936 = vadd.f32 0.0, %v1935
        %v1937 = vpop.f32.mrf.mxu0
        %v1938 = vadd.f32 0.0, %v1937
        %1939 = vmatmul.bf16.gmra.mxu0 %v1863
        %v1940 = vpop.f32.mrf.mxu0
        %v1941 = vadd.f32 0.0, %v1940
        %v1942 = vpop.f32.mrf.mxu0
        %v1943 = vadd.f32 0.0, %v1942
        %1944 = vdwg.mxu0
        %v1953 = vunpack.c.l.b16 %v1689
        %v1954 = vunpack.c.l.b16 %v1690
        %v1955 = vunpack.c.l.b16 %v1691
        %v1956 = vunpack.c.l.b16 %v1692
        %v1957 = vunpack.c.l.b16 %v1693
        %v1958 = vunpack.c.l.b16 %v1694
        %v1959 = vunpack.c.l.b16 %v1695
        %v1960 = vunpack.c.l.b16 %v1696
        %v1961 = vpack.c.b16 %v1954, %v1953
        %v1962 = vpack.c.b16 %v1956, %v1955
        %v1963 = vpack.c.b16 %v1958, %v1957
        %v1964 = vpack.c.b16 %v1960, %v1959
        %v1985 = vunpack.c.l.b16 %v1697
        %v1986 = vunpack.c.l.b16 %v1698
        %v1987 = vunpack.c.l.b16 %v1699
        %v1988 = vunpack.c.l.b16 %v1700
        %v1989 = vunpack.c.l.b16 %v1701
        %v1990 = vunpack.c.l.b16 %v1702
        %v1991 = vunpack.c.l.b16 %v1703
        %v1992 = vunpack.c.l.b16 %v1704
        %v1993 = vunpack.c.l.b16 %v1705
        %v1994 = vunpack.c.l.b16 %v1706
        %v1995 = vunpack.c.l.b16 %v1707
        %v1996 = vunpack.c.l.b16 %v1708
        %v1997 = vunpack.c.l.b16 %v1709
        %v1998 = vunpack.c.l.b16 %v1710
        %v1999 = vunpack.c.l.b16 %v1711
        %v2000 = vunpack.c.l.b16 %v1712
        %v2001 = vpack.c.b16 %v1986, %v1985
        %v2002 = vpack.c.b16 %v1988, %v1987
        %v2003 = vpack.c.b16 %v1990, %v1989
        %v2004 = vpack.c.b16 %v1992, %v1991
        %v2005 = vpack.c.b16 %v1994, %v1993
        %v2006 = vpack.c.b16 %v1996, %v1995
        %v2007 = vpack.c.b16 %v1998, %v1997
        %v2008 = vpack.c.b16 %v2000, %v1999
        %2017 = vmatpush.bf16.msra.mxu0 %v2008
        %2018 = vmatpush.bf16.msra.mxu0 %v2007
        %2019 = vmatpush.bf16.msra.mxu0 %v2006
        %2020 = vmatpush.bf16.msra.mxu0 %v2005
        %2021 = vmatpush.bf16.msra.mxu0 %v2004
        %2022 = vmatpush.bf16.msra.mxu0 %v2003
        %2023 = vmatpush.bf16.msra.mxu0 %v2002
        %2024 = vmatpush.bf16.msra.mxu0 %v2001
        %2025 = vmatmul.bf16.gmra.mxu0 %v1961
        %v2026 = vpop.f32.mrf.mxu0
        %v2027 = vadd.f32 %v1926, %v2026
        %v2028 = vpop.f32.mrf.mxu0
        %v2029 = vadd.f32 %v1928, %v2028
        %2030 = vmatmul.bf16.gmra.mxu0 %v1962
        %v2031 = vpop.f32.mrf.mxu0
        %v2032 = vadd.f32 %v1931, %v2031
        %v2033 = vpop.f32.mrf.mxu0
        %v2034 = vadd.f32 %v1933, %v2033
        %2035 = vmatmul.bf16.gmra.mxu0 %v1963
        %v2036 = vpop.f32.mrf.mxu0
        %v2037 = vadd.f32 %v1936, %v2036
        %v2038 = vpop.f32.mrf.mxu0
        %v2039 = vadd.f32 %v1938, %v2038
        %2040 = vmatmul.bf16.gmra.mxu0 %v1964
        %v2041 = vpop.f32.mrf.mxu0
        %v2042 = vadd.f32 %v1941, %v2041
        %v2043 = vpop.f32.mrf.mxu0
        %v2044 = vadd.f32 %v1943, %v2043
        %2045 = vdwg.mxu0
        %v2046 = vld [vmem:[#allocation2] sm:$0xe]
        %v2047 = vld [vmem:[#allocation2 + $0x8] sm:$0xe]
        %v2048 = vld [vmem:[#allocation2 + $0x10] sm:$0xe]
        %v2049 = vld [vmem:[#allocation2 + $0x18] sm:$0xe]
        %v2050 = vld [vmem:[#allocation2 + $0x20] sm:$0xe]
        %v2051 = vld [vmem:[#allocation2 + $0x28] sm:$0xe]
        %v2052 = vld [vmem:[#allocation2 + $0x30] sm:$0xe]
        %v2053 = vld [vmem:[#allocation2 + $0x38] sm:$0xe]
        %vm2070 = vcmask 1042432
        %vm2071 = vcmask 1046532
        %vm2072 = vmor %vm2070, %vm2071
        %v2073 = vrot.slane %v2046, 5
        %v2074 = vrot.slane %v2073, 4
        %v2075 = vrot.slane %v1713, 5
        %v2076 = vsel %vm2072, %v2074, %v2075
        %v2077 = vrot.slane %v2047, 5
        %v2078 = vrot.slane %v2077, 4
        %v2079 = vrot.slane %v1714, 5
        %v2080 = vsel %vm2072, %v2078, %v2079
        %v2081 = vrot.slane %v2048, 5
        %v2082 = vrot.slane %v2081, 4
        %v2083 = vrot.slane %v1715, 5
        %v2084 = vsel %vm2072, %v2082, %v2083
        %v2085 = vrot.slane %v2049, 5
        %v2086 = vrot.slane %v2085, 4
        %v2087 = vrot.slane %v1716, 5
        %v2088 = vsel %vm2072, %v2086, %v2087
        %v2089 = vrot.slane %v2050, 5
        %v2090 = vrot.slane %v2089, 4
        %v2091 = vrot.slane %v1717, 5
        %v2092 = vsel %vm2072, %v2090, %v2091
        %v2093 = vrot.slane %v2051, 5
        %v2094 = vrot.slane %v2093, 4
        %v2095 = vrot.slane %v1718, 5
        %v2096 = vsel %vm2072, %v2094, %v2095
        %v2097 = vrot.slane %v2052, 5
        %v2098 = vrot.slane %v2097, 4
        %v2099 = vrot.slane %v1719, 5
        %v2100 = vsel %vm2072, %v2098, %v2099
        %v2101 = vrot.slane %v2053, 5
        %v2102 = vrot.slane %v2101, 4
        %v2103 = vrot.slane %v1720, 5
        %v2104 = vsel %vm2072, %v2102, %v2103
        %v2105 = vld [vmem:[#allocation9 + $0x80] sm:$0xf]
        %v2106 = vld [vmem:[#allocation9 + $0x84] sm:$0xf]
        %v2107 = vld [vmem:[#allocation9 + $0x88] sm:$0xf]
        %v2108 = vld [vmem:[#allocation9 + $0x8c] sm:$0xf]
        %v2109 = vld [vmem:[#allocation9 + $0x90] sm:$0xf]
        %v2110 = vld [vmem:[#allocation9 + $0x94] sm:$0xf]
        %v2111 = vld [vmem:[#allocation9 + $0x98] sm:$0xf]
        %v2112 = vld [vmem:[#allocation9 + $0x9c] sm:$0xf]
        %v2113 = vld [vmem:[#allocation9 + $0xa0] sm:$0xf]
        %v2114 = vld [vmem:[#allocation9 + $0xa4] sm:$0xf]
        %v2115 = vld [vmem:[#allocation9 + $0xa8] sm:$0xf]
        %v2116 = vld [vmem:[#allocation9 + $0xac] sm:$0xf]
        %v2117 = vld [vmem:[#allocation9 + $0xb0] sm:$0xf]
        %v2118 = vld [vmem:[#allocation9 + $0xb4] sm:$0xf]
        %v2119 = vld [vmem:[#allocation9 + $0xb8] sm:$0xf]
        %v2120 = vld [vmem:[#allocation9 + $0xbc] sm:$0xf]
        %v2121 = vunpack.c.l.b16 %v2076
        %v2122 = vunpack.c.l.b16 %v2080
        %v2123 = vunpack.c.l.b16 %v2084
        %v2124 = vunpack.c.l.b16 %v2088
        %v2125 = vunpack.c.l.b16 %v2092
        %v2126 = vunpack.c.l.b16 %v2096
        %v2127 = vunpack.c.l.b16 %v2100
        %v2128 = vunpack.c.l.b16 %v2104
        %v2129 = vpack.c.b16 %v2122, %v2121
        %v2130 = vpack.c.b16 %v2124, %v2123
        %v2131 = vpack.c.b16 %v2126, %v2125
        %v2132 = vpack.c.b16 %v2128, %v2127
        %v2153 = vunpack.c.l.b16 %v2105
        %v2154 = vunpack.c.l.b16 %v2106
        %v2155 = vunpack.c.l.b16 %v2107
        %v2156 = vunpack.c.l.b16 %v2108
        %v2157 = vunpack.c.l.b16 %v2109
        %v2158 = vunpack.c.l.b16 %v2110
        %v2159 = vunpack.c.l.b16 %v2111
        %v2160 = vunpack.c.l.b16 %v2112
        %v2161 = vunpack.c.l.b16 %v2113
        %v2162 = vunpack.c.l.b16 %v2114
        %v2163 = vunpack.c.l.b16 %v2115
        %v2164 = vunpack.c.l.b16 %v2116
        %v2165 = vunpack.c.l.b16 %v2117
        %v2166 = vunpack.c.l.b16 %v2118
        %v2167 = vunpack.c.l.b16 %v2119
        %v2168 = vunpack.c.l.b16 %v2120
        %v2169 = vpack.c.b16 %v2154, %v2153
        %v2170 = vpack.c.b16 %v2156, %v2155
        %v2171 = vpack.c.b16 %v2158, %v2157
        %v2172 = vpack.c.b16 %v2160, %v2159
        %v2173 = vpack.c.b16 %v2162, %v2161
        %v2174 = vpack.c.b16 %v2164, %v2163
        %v2175 = vpack.c.b16 %v2166, %v2165
        %v2176 = vpack.c.b16 %v2168, %v2167
        %2185 = vmatpush.bf16.msra.mxu0 %v2176
        %2186 = vmatpush.bf16.msra.mxu0 %v2175
        %2187 = vmatpush.bf16.msra.mxu0 %v2174
        %2188 = vmatpush.bf16.msra.mxu0 %v2173
        %2189 = vmatpush.bf16.msra.mxu0 %v2172
        %2190 = vmatpush.bf16.msra.mxu0 %v2171
        %2191 = vmatpush.bf16.msra.mxu0 %v2170
        %2192 = vmatpush.bf16.msra.mxu0 %v2169
        %2193 = vmatmul.bf16.gmra.mxu0 %v2129
        %v2194 = vpop.f32.mrf.mxu0
        %v2195 = vadd.f32 0.0, %v2194
        %v2196 = vpop.f32.mrf.mxu0
        %v2197 = vadd.f32 0.0, %v2196
        %2198 = vmatmul.bf16.gmra.mxu0 %v2130
        %v2199 = vpop.f32.mrf.mxu0
        %v2200 = vadd.f32 0.0, %v2199
        %v2201 = vpop.f32.mrf.mxu0
        %v2202 = vadd.f32 0.0, %v2201
        %2203 = vmatmul.bf16.gmra.mxu0 %v2131
        %v2204 = vpop.f32.mrf.mxu0
        %v2205 = vadd.f32 0.0, %v2204
        %v2206 = vpop.f32.mrf.mxu0
        %v2207 = vadd.f32 0.0, %v2206
        %2208 = vmatmul.bf16.gmra.mxu0 %v2132
        %v2209 = vpop.f32.mrf.mxu0
        %v2210 = vadd.f32 0.0, %v2209
        %v2211 = vpop.f32.mrf.mxu0
        %v2212 = vadd.f32 0.0, %v2211
        %2213 = vdwg.mxu0
        %v2214 = vadd.f32 %v2027, %v2195
        %v2215 = vadd.f32 %v2029, %v2197
        %v2216 = vadd.f32 %v2032, %v2200
        %v2217 = vadd.f32 %v2034, %v2202
        %v2218 = vadd.f32 %v2037, %v2205
        %v2219 = vadd.f32 %v2039, %v2207
        %v2220 = vadd.f32 %v2042, %v2210
        %v2221 = vadd.f32 %v2044, %v2212
        %v2222 = vld [vmem:[%s387] sm:$0xf]
        %v2223 = vld [vmem:[%s387 + $0x8] sm:$0xf]
        %v2224 = vld [vmem:[%s387 + $0x10] sm:$0xf]
        %v2225 = vld [vmem:[%s387 + $0x18] sm:$0xf]
        %v2226 = vld [vmem:[%s387 + $0x20] sm:$0xf]
        %v2227 = vld [vmem:[%s387 + $0x28] sm:$0xf]
        %v2228 = vld [vmem:[%s387 + $0x30] sm:$0xf]
        %v2229 = vld [vmem:[%s387 + $0x38] sm:$0xf]
        %v2230 = vld [vmem:[#allocation9 + $0xc0] sm:$0xf]
        %v2231 = vld [vmem:[#allocation9 + $0xc4] sm:$0xf]
        %v2232 = vld [vmem:[#allocation9 + $0xc8] sm:$0xf]
        %v2233 = vld [vmem:[#allocation9 + $0xcc] sm:$0xf]
        %v2234 = vld [vmem:[#allocation9 + $0xd0] sm:$0xf]
        %v2235 = vld [vmem:[#allocation9 + $0xd4] sm:$0xf]
        %v2236 = vld [vmem:[#allocation9 + $0xd8] sm:$0xf]
        %v2237 = vld [vmem:[#allocation9 + $0xdc] sm:$0xf]
        %v2238 = vld [vmem:[#allocation9 + $0xe0] sm:$0xf]
        %v2239 = vld [vmem:[#allocation9 + $0xe4] sm:$0xf]
        %v2240 = vld [vmem:[#allocation9 + $0xe8] sm:$0xf]
        %v2241 = vld [vmem:[#allocation9 + $0xec] sm:$0xf]
        %v2242 = vld [vmem:[#allocation9 + $0xf0] sm:$0xf]
        %v2243 = vld [vmem:[#allocation9 + $0xf4] sm:$0xf]
        %v2244 = vld [vmem:[#allocation9 + $0xf8] sm:$0xf]
        %v2245 = vld [vmem:[#allocation9 + $0xfc] sm:$0xf]
        %v2254 = vunpack.c.l.b16 %v2222
        %v2255 = vunpack.c.l.b16 %v2223
        %v2256 = vunpack.c.l.b16 %v2224
        %v2257 = vunpack.c.l.b16 %v2225
        %v2258 = vunpack.c.l.b16 %v2226
        %v2259 = vunpack.c.l.b16 %v2227
        %v2260 = vunpack.c.l.b16 %v2228
        %v2261 = vunpack.c.l.b16 %v2229
        %v2262 = vpack.c.b16 %v2255, %v2254
        %v2263 = vpack.c.b16 %v2257, %v2256
        %v2264 = vpack.c.b16 %v2259, %v2258
        %v2265 = vpack.c.b16 %v2261, %v2260
        %v2286 = vunpack.c.l.b16 %v2230
        %v2287 = vunpack.c.l.b16 %v2231
        %v2288 = vunpack.c.l.b16 %v2232
        %v2289 = vunpack.c.l.b16 %v2233
        %v2290 = vunpack.c.l.b16 %v2234
        %v2291 = vunpack.c.l.b16 %v2235
        %v2292 = vunpack.c.l.b16 %v2236
        %v2293 = vunpack.c.l.b16 %v2237
        %v2294 = vunpack.c.l.b16 %v2238
        %v2295 = vunpack.c.l.b16 %v2239
        %v2296 = vunpack.c.l.b16 %v2240
        %v2297 = vunpack.c.l.b16 %v2241
        %v2298 = vunpack.c.l.b16 %v2242
        %v2299 = vunpack.c.l.b16 %v2243
        %v2300 = vunpack.c.l.b16 %v2244
        %v2301 = vunpack.c.l.b16 %v2245
        %v2302 = vpack.c.b16 %v2287, %v2286
        %v2303 = vpack.c.b16 %v2289, %v2288
        %v2304 = vpack.c.b16 %v2291, %v2290
        %v2305 = vpack.c.b16 %v2293, %v2292
        %v2306 = vpack.c.b16 %v2295, %v2294
        %v2307 = vpack.c.b16 %v2297, %v2296
        %v2308 = vpack.c.b16 %v2299, %v2298
        %v2309 = vpack.c.b16 %v2301, %v2300
        %2318 = vmatpush.bf16.msra.mxu0 %v2309
        %2319 = vmatpush.bf16.msra.mxu0 %v2308
        %2320 = vmatpush.bf16.msra.mxu0 %v2307
        %2321 = vmatpush.bf16.msra.mxu0 %v2306
        %2322 = vmatpush.bf16.msra.mxu0 %v2305
        %2323 = vmatpush.bf16.msra.mxu0 %v2304
        %2324 = vmatpush.bf16.msra.mxu0 %v2303
        %2325 = vmatpush.bf16.msra.mxu0 %v2302
        %2326 = vmatmul.bf16.gmra.mxu0 %v2262
        %v2327 = vpop.f32.mrf.mxu0
        %v2328 = vadd.f32 0.0, %v2327
        %v2329 = vpop.f32.mrf.mxu0
        %v2330 = vadd.f32 0.0, %v2329
        %2331 = vmatmul.bf16.gmra.mxu0 %v2263
        %v2332 = vpop.f32.mrf.mxu0
        %v2333 = vadd.f32 0.0, %v2332
        %v2334 = vpop.f32.mrf.mxu0
        %v2335 = vadd.f32 0.0, %v2334
        %2336 = vmatmul.bf16.gmra.mxu0 %v2264
        %v2337 = vpop.f32.mrf.mxu0
        %v2338 = vadd.f32 0.0, %v2337
        %v2339 = vpop.f32.mrf.mxu0
        %v2340 = vadd.f32 0.0, %v2339
        %2341 = vmatmul.bf16.gmra.mxu0 %v2265
        %v2342 = vpop.f32.mrf.mxu0
        %v2343 = vadd.f32 0.0, %v2342
        %v2344 = vpop.f32.mrf.mxu0
        %v2345 = vadd.f32 0.0, %v2344
        %2346 = vdwg.mxu0
        %v2347 = vadd.f32 %v2214, %v2328
        %v2348 = vadd.f32 %v2215, %v2330
        %v2349 = vadd.f32 %v2216, %v2333
        %v2350 = vadd.f32 %v2217, %v2335
        %v2351 = vadd.f32 %v2218, %v2338
        %v2352 = vadd.f32 %v2219, %v2340
        %v2353 = vadd.f32 %v2220, %v2343
        %v2354 = vadd.f32 %v2221, %v2345
        %v2355 = vld [vmem:[%s387] sm:$0xf]
        %v2356 = vld [vmem:[%s387 + $0x4] sm:$0x1]
        %v2357 = vld [vmem:[%s387 + $0x8] sm:$0xf]
        %v2358 = vld [vmem:[%s387 + $0xc] sm:$0x1]
        %v2359 = vld [vmem:[%s387 + $0x10] sm:$0xf]
        %v2360 = vld [vmem:[%s387 + $0x14] sm:$0x1]
        %v2361 = vld [vmem:[%s387 + $0x18] sm:$0xf]
        %v2362 = vld [vmem:[%s387 + $0x1c] sm:$0x1]
        %v2363 = vld [vmem:[%s387 + $0x20] sm:$0xf]
        %v2364 = vld [vmem:[%s387 + $0x24] sm:$0x1]
        %v2365 = vld [vmem:[%s387 + $0x28] sm:$0xf]
        %v2366 = vld [vmem:[%s387 + $0x2c] sm:$0x1]
        %v2367 = vld [vmem:[%s387 + $0x30] sm:$0xf]
        %v2368 = vld [vmem:[%s387 + $0x34] sm:$0x1]
        %v2369 = vld [vmem:[%s387 + $0x38] sm:$0xf]
        %v2370 = vld [vmem:[%s387 + $0x3c] sm:$0x1]
        %v2372 = vshrl.u32 %v2355, 16
        %v2374 = vrot.slane %v2372, 4
        %v2375 = vshll.u32 %v2355, 16
        %v2377 = vrot.slane %v2375, 5
        %v2378 = vor.u32 %v2374, %v2377
        %v2379 = vrot.slane %v2378, 4
        %v2381 = vshll.u32 %v2356, 16
        %v2383 = vrot.slane %v2381, 5
        %v2384 = vsel %vm1723, %v2379, %v2383
        %v2386 = vshrl.u32 %v2357, 16
        %v2388 = vrot.slane %v2386, 4
        %v2389 = vshll.u32 %v2357, 16
        %v2391 = vrot.slane %v2389, 5
        %v2392 = vor.u32 %v2388, %v2391
        %v2393 = vrot.slane %v2392, 4
        %v2395 = vshll.u32 %v2358, 16
        %v2397 = vrot.slane %v2395, 5
        %v2398 = vsel %vm1723, %v2393, %v2397
        %v2400 = vshrl.u32 %v2359, 16
        %v2402 = vrot.slane %v2400, 4
        %v2403 = vshll.u32 %v2359, 16
        %v2405 = vrot.slane %v2403, 5
        %v2406 = vor.u32 %v2402, %v2405
        %v2407 = vrot.slane %v2406, 4
        %v2409 = vshll.u32 %v2360, 16
        %v2411 = vrot.slane %v2409, 5
        %v2412 = vsel %vm1723, %v2407, %v2411
        %v2414 = vshrl.u32 %v2361, 16
        %v2416 = vrot.slane %v2414, 4
        %v2417 = vshll.u32 %v2361, 16
        %v2419 = vrot.slane %v2417, 5
        %v2420 = vor.u32 %v2416, %v2419
        %v2421 = vrot.slane %v2420, 4
        %v2423 = vshll.u32 %v2362, 16
        %v2425 = vrot.slane %v2423, 5
        %v2426 = vsel %vm1723, %v2421, %v2425
        %v2428 = vshrl.u32 %v2363, 16
        %v2430 = vrot.slane %v2428, 4
        %v2431 = vshll.u32 %v2363, 16
        %v2433 = vrot.slane %v2431, 5
        %v2434 = vor.u32 %v2430, %v2433
        %v2435 = vrot.slane %v2434, 4
        %v2437 = vshll.u32 %v2364, 16
        %v2439 = vrot.slane %v2437, 5
        %v2440 = vsel %vm1723, %v2435, %v2439
        %v2442 = vshrl.u32 %v2365, 16
        %v2444 = vrot.slane %v2442, 4
        %v2445 = vshll.u32 %v2365, 16
        %v2447 = vrot.slane %v2445, 5
        %v2448 = vor.u32 %v2444, %v2447
        %v2449 = vrot.slane %v2448, 4
        %v2451 = vshll.u32 %v2366, 16
        %v2453 = vrot.slane %v2451, 5
        %v2454 = vsel %vm1723, %v2449, %v2453
        %v2456 = vshrl.u32 %v2367, 16
        %v2458 = vrot.slane %v2456, 4
        %v2459 = vshll.u32 %v2367, 16
        %v2461 = vrot.slane %v2459, 5
        %v2462 = vor.u32 %v2458, %v2461
        %v2463 = vrot.slane %v2462, 4
        %v2465 = vshll.u32 %v2368, 16
        %v2467 = vrot.slane %v2465, 5
        %v2468 = vsel %vm1723, %v2463, %v2467
        %v2470 = vshrl.u32 %v2369, 16
        %v2472 = vrot.slane %v2470, 4
        %v2473 = vshll.u32 %v2369, 16
        %v2475 = vrot.slane %v2473, 5
        %v2476 = vor.u32 %v2472, %v2475
        %v2477 = vrot.slane %v2476, 4
        %v2479 = vshll.u32 %v2370, 16
        %v2481 = vrot.slane %v2479, 5
        %v2482 = vsel %vm1723, %v2477, %v2481
        %v2483 = vld [vmem:[#allocation9 + $0x100] sm:$0xf]
        %v2484 = vld [vmem:[#allocation9 + $0x104] sm:$0xf]
        %v2485 = vld [vmem:[#allocation9 + $0x108] sm:$0xf]
        %v2486 = vld [vmem:[#allocation9 + $0x10c] sm:$0xf]
        %v2487 = vld [vmem:[#allocation9 + $0x110] sm:$0xf]
        %v2488 = vld [vmem:[#allocation9 + $0x114] sm:$0xf]
        %v2489 = vld [vmem:[#allocation9 + $0x118] sm:$0xf]
        %v2490 = vld [vmem:[#allocation9 + $0x11c] sm:$0xf]
        %v2491 = vld [vmem:[#allocation9 + $0x120] sm:$0xf]
        %v2492 = vld [vmem:[#allocation9 + $0x124] sm:$0xf]
        %v2493 = vld [vmem:[#allocation9 + $0x128] sm:$0xf]
        %v2494 = vld [vmem:[#allocation9 + $0x12c] sm:$0xf]
        %v2495 = vld [vmem:[#allocation9 + $0x130] sm:$0xf]
        %v2496 = vld [vmem:[#allocation9 + $0x134] sm:$0xf]
        %v2497 = vld [vmem:[#allocation9 + $0x138] sm:$0xf]
        %v2498 = vld [vmem:[#allocation9 + $0x13c] sm:$0xf]
        %v2499 = vunpack.c.l.b16 %v2384
        %v2500 = vunpack.c.l.b16 %v2398
        %v2501 = vunpack.c.l.b16 %v2412
        %v2502 = vunpack.c.l.b16 %v2426
        %v2503 = vunpack.c.l.b16 %v2440
        %v2504 = vunpack.c.l.b16 %v2454
        %v2505 = vunpack.c.l.b16 %v2468
        %v2506 = vunpack.c.l.b16 %v2482
        %v2507 = vpack.c.b16 %v2500, %v2499
        %v2508 = vpack.c.b16 %v2502, %v2501
        %v2509 = vpack.c.b16 %v2504, %v2503
        %v2510 = vpack.c.b16 %v2506, %v2505
        %v2531 = vunpack.c.l.b16 %v2483
        %v2532 = vunpack.c.l.b16 %v2484
        %v2533 = vunpack.c.l.b16 %v2485
        %v2534 = vunpack.c.l.b16 %v2486
        %v2535 = vunpack.c.l.b16 %v2487
        %v2536 = vunpack.c.l.b16 %v2488
        %v2537 = vunpack.c.l.b16 %v2489
        %v2538 = vunpack.c.l.b16 %v2490
        %v2539 = vunpack.c.l.b16 %v2491
        %v2540 = vunpack.c.l.b16 %v2492
        %v2541 = vunpack.c.l.b16 %v2493
        %v2542 = vunpack.c.l.b16 %v2494
        %v2543 = vunpack.c.l.b16 %v2495
        %v2544 = vunpack.c.l.b16 %v2496
        %v2545 = vunpack.c.l.b16 %v2497
        %v2546 = vunpack.c.l.b16 %v2498
        %v2547 = vpack.c.b16 %v2532, %v2531
        %v2548 = vpack.c.b16 %v2534, %v2533
        %v2549 = vpack.c.b16 %v2536, %v2535
        %v2550 = vpack.c.b16 %v2538, %v2537
        %v2551 = vpack.c.b16 %v2540, %v2539
        %v2552 = vpack.c.b16 %v2542, %v2541
        %v2553 = vpack.c.b16 %v2544, %v2543
        %v2554 = vpack.c.b16 %v2546, %v2545
        %2563 = vmatpush.bf16.msra.mxu0 %v2554
        %2564 = vmatpush.bf16.msra.mxu0 %v2553
        %2565 = vmatpush.bf16.msra.mxu0 %v2552
        %2566 = vmatpush.bf16.msra.mxu0 %v2551
        %2567 = vmatpush.bf16.msra.mxu0 %v2550
        %2568 = vmatpush.bf16.msra.mxu0 %v2549
        %2569 = vmatpush.bf16.msra.mxu0 %v2548
        %2570 = vmatpush.bf16.msra.mxu0 %v2547
        %2571 = vmatmul.bf16.gmra.mxu0 %v2507
        %v2572 = vpop.f32.mrf.mxu0
        %v2573 = vadd.f32 0.0, %v2572
        %v2574 = vpop.f32.mrf.mxu0
        %v2575 = vadd.f32 0.0, %v2574
        %2576 = vmatmul.bf16.gmra.mxu0 %v2508
        %v2577 = vpop.f32.mrf.mxu0
        %v2578 = vadd.f32 0.0, %v2577
        %v2579 = vpop.f32.mrf.mxu0
        %v2580 = vadd.f32 0.0, %v2579
        %2581 = vmatmul.bf16.gmra.mxu0 %v2509
        %v2582 = vpop.f32.mrf.mxu0
        %v2583 = vadd.f32 0.0, %v2582
        %v2584 = vpop.f32.mrf.mxu0
        %v2585 = vadd.f32 0.0, %v2584
        %2586 = vmatmul.bf16.gmra.mxu0 %v2510
        %v2587 = vpop.f32.mrf.mxu0
        %v2588 = vadd.f32 0.0, %v2587
        %v2589 = vpop.f32.mrf.mxu0
        %v2590 = vadd.f32 0.0, %v2589
        %2591 = vdwg.mxu0
        %v2592 = vadd.f32 %v2347, %v2573
        %v2593 = vadd.f32 %v2348, %v2575
        %v2594 = vadd.f32 %v2349, %v2578
        %v2595 = vadd.f32 %v2350, %v2580
        %v2596 = vadd.f32 %v2351, %v2583
        %v2597 = vadd.f32 %v2352, %v2585
        %v2598 = vadd.f32 %v2353, %v2588
        %v2599 = vadd.f32 %v2354, %v2590
        %v2600 = vld [vmem:[%s387] sm:$0xe]
        %v2601 = vld [vmem:[%s387 + $0x8] sm:$0xe]
        %v2602 = vld [vmem:[%s387 + $0x10] sm:$0xe]
        %v2603 = vld [vmem:[%s387 + $0x18] sm:$0xe]
        %v2604 = vld [vmem:[%s387 + $0x20] sm:$0xe]
        %v2605 = vld [vmem:[%s387 + $0x28] sm:$0xe]
        %v2606 = vld [vmem:[%s387 + $0x30] sm:$0xe]
        %v2607 = vld [vmem:[%s387 + $0x38] sm:$0xe]
        %v2624 = vrot.slane %v2600, 5
        %v2625 = vrot.slane %v2624, 4
        %v2626 = vrot.slane %v2356, 5
        %v2627 = vsel %vm2072, %v2625, %v2626
        %v2628 = vrot.slane %v2601, 5
        %v2629 = vrot.slane %v2628, 4
        %v2630 = vrot.slane %v2358, 5
        %v2631 = vsel %vm2072, %v2629, %v2630
        %v2632 = vrot.slane %v2602, 5
        %v2633 = vrot.slane %v2632, 4
        %v2634 = vrot.slane %v2360, 5
        %v2635 = vsel %vm2072, %v2633, %v2634
        %v2636 = vrot.slane %v2603, 5
        %v2637 = vrot.slane %v2636, 4
        %v2638 = vrot.slane %v2362, 5
        %v2639 = vsel %vm2072, %v2637, %v2638
        %v2640 = vrot.slane %v2604, 5
        %v2641 = vrot.slane %v2640, 4
        %v2642 = vrot.slane %v2364, 5
        %v2643 = vsel %vm2072, %v2641, %v2642
        %v2644 = vrot.slane %v2605, 5
        %v2645 = vrot.slane %v2644, 4
        %v2646 = vrot.slane %v2366, 5
        %v2647 = vsel %vm2072, %v2645, %v2646
        %v2648 = vrot.slane %v2606, 5
        %v2649 = vrot.slane %v2648, 4
        %v2650 = vrot.slane %v2368, 5
        %v2651 = vsel %vm2072, %v2649, %v2650
        %v2652 = vrot.slane %v2607, 5
        %v2653 = vrot.slane %v2652, 4
        %v2654 = vrot.slane %v2370, 5
        %v2655 = vsel %vm2072, %v2653, %v2654
        %v2656 = vld [vmem:[#allocation9 + $0x140] sm:$0xf]
        %v2657 = vld [vmem:[#allocation9 + $0x144] sm:$0xf]
        %v2658 = vld [vmem:[#allocation9 + $0x148] sm:$0xf]
        %v2659 = vld [vmem:[#allocation9 + $0x14c] sm:$0xf]
        %v2660 = vld [vmem:[#allocation9 + $0x150] sm:$0xf]
        %v2661 = vld [vmem:[#allocation9 + $0x154] sm:$0xf]
        %v2662 = vld [vmem:[#allocation9 + $0x158] sm:$0xf]
        %v2663 = vld [vmem:[#allocation9 + $0x15c] sm:$0xf]
        %v2664 = vld [vmem:[#allocation9 + $0x160] sm:$0xf]
        %v2665 = vld [vmem:[#allocation9 + $0x164] sm:$0xf]
        %v2666 = vld [vmem:[#allocation9 + $0x168] sm:$0xf]
        %v2667 = vld [vmem:[#allocation9 + $0x16c] sm:$0xf]
        %v2668 = vld [vmem:[#allocation9 + $0x170] sm:$0xf]
        %v2669 = vld [vmem:[#allocation9 + $0x174] sm:$0xf]
        %v2670 = vld [vmem:[#allocation9 + $0x178] sm:$0xf]
        %v2671 = vld [vmem:[#allocation9 + $0x17c] sm:$0xf]
        %v2672 = vunpack.c.l.b16 %v2627
        %v2673 = vunpack.c.l.b16 %v2631
        %v2674 = vunpack.c.l.b16 %v2635
        %v2675 = vunpack.c.l.b16 %v2639
        %v2676 = vunpack.c.l.b16 %v2643
        %v2677 = vunpack.c.l.b16 %v2647
        %v2678 = vunpack.c.l.b16 %v2651
        %v2679 = vunpack.c.l.b16 %v2655
        %v2680 = vpack.c.b16 %v2673, %v2672
        %v2681 = vpack.c.b16 %v2675, %v2674
        %v2682 = vpack.c.b16 %v2677, %v2676
        %v2683 = vpack.c.b16 %v2679, %v2678
        %v2704 = vunpack.c.l.b16 %v2656
        %v2705 = vunpack.c.l.b16 %v2657
        %v2706 = vunpack.c.l.b16 %v2658
        %v2707 = vunpack.c.l.b16 %v2659
        %v2708 = vunpack.c.l.b16 %v2660
        %v2709 = vunpack.c.l.b16 %v2661
        %v2710 = vunpack.c.l.b16 %v2662
        %v2711 = vunpack.c.l.b16 %v2663
        %v2712 = vunpack.c.l.b16 %v2664
        %v2713 = vunpack.c.l.b16 %v2665
        %v2714 = vunpack.c.l.b16 %v2666
        %v2715 = vunpack.c.l.b16 %v2667
        %v2716 = vunpack.c.l.b16 %v2668
        %v2717 = vunpack.c.l.b16 %v2669
        %v2718 = vunpack.c.l.b16 %v2670
        %v2719 = vunpack.c.l.b16 %v2671
        %v2720 = vpack.c.b16 %v2705, %v2704
        %v2721 = vpack.c.b16 %v2707, %v2706
        %v2722 = vpack.c.b16 %v2709, %v2708
        %v2723 = vpack.c.b16 %v2711, %v2710
        %v2724 = vpack.c.b16 %v2713, %v2712
        %v2725 = vpack.c.b16 %v2715, %v2714
        %v2726 = vpack.c.b16 %v2717, %v2716
        %v2727 = vpack.c.b16 %v2719, %v2718
        %2736 = vmatpush.bf16.msra.mxu0 %v2727
        %2737 = vmatpush.bf16.msra.mxu0 %v2726
        %2738 = vmatpush.bf16.msra.mxu0 %v2725
        %2739 = vmatpush.bf16.msra.mxu0 %v2724
        %2740 = vmatpush.bf16.msra.mxu0 %v2723
        %2741 = vmatpush.bf16.msra.mxu0 %v2722
        %2742 = vmatpush.bf16.msra.mxu0 %v2721
        %2743 = vmatpush.bf16.msra.mxu0 %v2720
        %2744 = vmatmul.bf16.gmra.mxu0 %v2680
        %v2745 = vpop.f32.mrf.mxu0
        %v2746 = vadd.f32 0.0, %v2745
        %v2747 = vpop.f32.mrf.mxu0
        %v2748 = vadd.f32 0.0, %v2747
        %2749 = vmatmul.bf16.gmra.mxu0 %v2681
        %v2750 = vpop.f32.mrf.mxu0
        %v2751 = vadd.f32 0.0, %v2750
        %v2752 = vpop.f32.mrf.mxu0
        %v2753 = vadd.f32 0.0, %v2752
        %2754 = vmatmul.bf16.gmra.mxu0 %v2682
        %v2755 = vpop.f32.mrf.mxu0
        %v2756 = vadd.f32 0.0, %v2755
        %v2757 = vpop.f32.mrf.mxu0
        %v2758 = vadd.f32 0.0, %v2757
        %2759 = vmatmul.bf16.gmra.mxu0 %v2683
        %v2760 = vpop.f32.mrf.mxu0
        %v2761 = vadd.f32 0.0, %v2760
        %v2762 = vpop.f32.mrf.mxu0
        %v2763 = vadd.f32 0.0, %v2762
        %2764 = vdwg.mxu0
        %v2765 = vadd.f32 %v2592, %v2746
        %v2766 = vadd.f32 %v2593, %v2748
        %v2767 = vadd.f32 %v2594, %v2751
        %v2768 = vadd.f32 %v2595, %v2753
        %v2769 = vadd.f32 %v2596, %v2756
        %v2770 = vadd.f32 %v2597, %v2758
        %v2771 = vadd.f32 %v2598, %v2761
        %v2772 = vadd.f32 %v2599, %v2763
        %s2773 = scalar_lea.vmem [#allocation2], 16
        %v2774 = vld [vmem:[%s2773] sm:$0xf]
        %v2775 = vld [vmem:[%s2773 + $0x8] sm:$0xf]
        %v2776 = vld [vmem:[%s2773 + $0x10] sm:$0xf]
        %v2777 = vld [vmem:[%s2773 + $0x18] sm:$0xf]
        %v2778 = vld [vmem:[%s2773 + $0x20] sm:$0xf]
        %v2779 = vld [vmem:[%s2773 + $0x28] sm:$0xf]
        %v2780 = vld [vmem:[%s2773 + $0x30] sm:$0xf]
        %v2781 = vld [vmem:[%s2773 + $0x38] sm:$0xf]
        %v2782 = vld [vmem:[#allocation9 + $0x180] sm:$0xf]
        %v2783 = vld [vmem:[#allocation9 + $0x184] sm:$0xf]
        %v2784 = vld [vmem:[#allocation9 + $0x188] sm:$0xf]
        %v2785 = vld [vmem:[#allocation9 + $0x18c] sm:$0xf]
        %v2786 = vld [vmem:[#allocation9 + $0x190] sm:$0xf]
        %v2787 = vld [vmem:[#allocation9 + $0x194] sm:$0xf]
        %v2788 = vld [vmem:[#allocation9 + $0x198] sm:$0xf]
        %v2789 = vld [vmem:[#allocation9 + $0x19c] sm:$0xf]
        %v2790 = vld [vmem:[#allocation9 + $0x1a0] sm:$0xf]
        %v2791 = vld [vmem:[#allocation9 + $0x1a4] sm:$0xf]
        %v2792 = vld [vmem:[#allocation9 + $0x1a8] sm:$0xf]
        %v2793 = vld [vmem:[#allocation9 + $0x1ac] sm:$0xf]
        %v2794 = vld [vmem:[#allocation9 + $0x1b0] sm:$0xf]
        %v2795 = vld [vmem:[#allocation9 + $0x1b4] sm:$0xf]
        %v2796 = vld [vmem:[#allocation9 + $0x1b8] sm:$0xf]
        %v2797 = vld [vmem:[#allocation9 + $0x1bc] sm:$0xf]
        %v2806 = vunpack.c.l.b16 %v2774
        %v2807 = vunpack.c.l.b16 %v2775
        %v2808 = vunpack.c.l.b16 %v2776
        %v2809 = vunpack.c.l.b16 %v2777
        %v2810 = vunpack.c.l.b16 %v2778
        %v2811 = vunpack.c.l.b16 %v2779
        %v2812 = vunpack.c.l.b16 %v2780
        %v2813 = vunpack.c.l.b16 %v2781
        %v2814 = vpack.c.b16 %v2807, %v2806
        %v2815 = vpack.c.b16 %v2809, %v2808
        %v2816 = vpack.c.b16 %v2811, %v2810
        %v2817 = vpack.c.b16 %v2813, %v2812
        %v2838 = vunpack.c.l.b16 %v2782
        %v2839 = vunpack.c.l.b16 %v2783
        %v2840 = vunpack.c.l.b16 %v2784
        %v2841 = vunpack.c.l.b16 %v2785
        %v2842 = vunpack.c.l.b16 %v2786
        %v2843 = vunpack.c.l.b16 %v2787
        %v2844 = vunpack.c.l.b16 %v2788
        %v2845 = vunpack.c.l.b16 %v2789
        %v2846 = vunpack.c.l.b16 %v2790
        %v2847 = vunpack.c.l.b16 %v2791
        %v2848 = vunpack.c.l.b16 %v2792
        %v2849 = vunpack.c.l.b16 %v2793
        %v2850 = vunpack.c.l.b16 %v2794
        %v2851 = vunpack.c.l.b16 %v2795
        %v2852 = vunpack.c.l.b16 %v2796
        %v2853 = vunpack.c.l.b16 %v2797
        %v2854 = vpack.c.b16 %v2839, %v2838
        %v2855 = vpack.c.b16 %v2841, %v2840
        %v2856 = vpack.c.b16 %v2843, %v2842
        %v2857 = vpack.c.b16 %v2845, %v2844
        %v2858 = vpack.c.b16 %v2847, %v2846
        %v2859 = vpack.c.b16 %v2849, %v2848
        %v2860 = vpack.c.b16 %v2851, %v2850
        %v2861 = vpack.c.b16 %v2853, %v2852
        %2870 = vmatpush.bf16.msra.mxu0 %v2861
        %2871 = vmatpush.bf16.msra.mxu0 %v2860
        %2872 = vmatpush.bf16.msra.mxu0 %v2859
        %2873 = vmatpush.bf16.msra.mxu0 %v2858
        %2874 = vmatpush.bf16.msra.mxu0 %v2857
        %2875 = vmatpush.bf16.msra.mxu0 %v2856
        %2876 = vmatpush.bf16.msra.mxu0 %v2855
        %2877 = vmatpush.bf16.msra.mxu0 %v2854
        %2878 = vmatmul.bf16.gmra.mxu0 %v2814
        %v2879 = vpop.f32.mrf.mxu0
        %v2880 = vadd.f32 0.0, %v2879
        %v2881 = vpop.f32.mrf.mxu0
        %v2882 = vadd.f32 0.0, %v2881
        %2883 = vmatmul.bf16.gmra.mxu0 %v2815
        %v2884 = vpop.f32.mrf.mxu0
        %v2885 = vadd.f32 0.0, %v2884
        %v2886 = vpop.f32.mrf.mxu0
        %v2887 = vadd.f32 0.0, %v2886
        %2888 = vmatmul.bf16.gmra.mxu0 %v2816
        %v2889 = vpop.f32.mrf.mxu0
        %v2890 = vadd.f32 0.0, %v2889
        %v2891 = vpop.f32.mrf.mxu0
        %v2892 = vadd.f32 0.0, %v2891
        %2893 = vmatmul.bf16.gmra.mxu0 %v2817
        %v2894 = vpop.f32.mrf.mxu0
        %v2895 = vadd.f32 0.0, %v2894
        %v2896 = vpop.f32.mrf.mxu0
        %v2897 = vadd.f32 0.0, %v2896
        %2898 = vdwg.mxu0
        %v2899 = vadd.f32 %v2765, %v2880
        %v2900 = vadd.f32 %v2766, %v2882
        %v2901 = vadd.f32 %v2767, %v2885
        %v2902 = vadd.f32 %v2768, %v2887
        %v2903 = vadd.f32 %v2769, %v2890
        %v2904 = vadd.f32 %v2770, %v2892
        %v2905 = vadd.f32 %v2771, %v2895
        %v2906 = vadd.f32 %v2772, %v2897
        %v2907 = vld [vmem:[%s2773] sm:$0xf]
        %v2908 = vld [vmem:[%s2773 + $0x4] sm:$0x1]
        %v2909 = vld [vmem:[%s2773 + $0x8] sm:$0xf]
        %v2910 = vld [vmem:[%s2773 + $0xc] sm:$0x1]
        %v2911 = vld [vmem:[%s2773 + $0x10] sm:$0xf]
        %v2912 = vld [vmem:[%s2773 + $0x14] sm:$0x1]
        %v2913 = vld [vmem:[%s2773 + $0x18] sm:$0xf]
        %v2914 = vld [vmem:[%s2773 + $0x1c] sm:$0x1]
        %v2915 = vld [vmem:[%s2773 + $0x20] sm:$0xf]
        %v2916 = vld [vmem:[%s2773 + $0x24] sm:$0x1]
        %v2917 = vld [vmem:[%s2773 + $0x28] sm:$0xf]
        %v2918 = vld [vmem:[%s2773 + $0x2c] sm:$0x1]
        %v2919 = vld [vmem:[%s2773 + $0x30] sm:$0xf]
        %v2920 = vld [vmem:[%s2773 + $0x34] sm:$0x1]
        %v2921 = vld [vmem:[%s2773 + $0x38] sm:$0xf]
        %v2922 = vld [vmem:[%s2773 + $0x3c] sm:$0x1]
        %v2924 = vshrl.u32 %v2907, 16
        %v2926 = vrot.slane %v2924, 4
        %v2927 = vshll.u32 %v2907, 16
        %v2929 = vrot.slane %v2927, 5
        %v2930 = vor.u32 %v2926, %v2929
        %v2931 = vrot.slane %v2930, 4
        %v2933 = vshll.u32 %v2908, 16
        %v2935 = vrot.slane %v2933, 5
        %v2936 = vsel %vm1723, %v2931, %v2935
        %v2938 = vshrl.u32 %v2909, 16
        %v2940 = vrot.slane %v2938, 4
        %v2941 = vshll.u32 %v2909, 16
        %v2943 = vrot.slane %v2941, 5
        %v2944 = vor.u32 %v2940, %v2943
        %v2945 = vrot.slane %v2944, 4
        %v2947 = vshll.u32 %v2910, 16
        %v2949 = vrot.slane %v2947, 5
        %v2950 = vsel %vm1723, %v2945, %v2949
        %v2952 = vshrl.u32 %v2911, 16
        %v2954 = vrot.slane %v2952, 4
        %v2955 = vshll.u32 %v2911, 16
        %v2957 = vrot.slane %v2955, 5
        %v2958 = vor.u32 %v2954, %v2957
        %v2959 = vrot.slane %v2958, 4
        %v2961 = vshll.u32 %v2912, 16
        %v2963 = vrot.slane %v2961, 5
        %v2964 = vsel %vm1723, %v2959, %v2963
        %v2966 = vshrl.u32 %v2913, 16
        %v2968 = vrot.slane %v2966, 4
        %v2969 = vshll.u32 %v2913, 16
        %v2971 = vrot.slane %v2969, 5
        %v2972 = vor.u32 %v2968, %v2971
        %v2973 = vrot.slane %v2972, 4
        %v2975 = vshll.u32 %v2914, 16
        %v2977 = vrot.slane %v2975, 5
        %v2978 = vsel %vm1723, %v2973, %v2977
        %v2980 = vshrl.u32 %v2915, 16
        %v2982 = vrot.slane %v2980, 4
        %v2983 = vshll.u32 %v2915, 16
        %v2985 = vrot.slane %v2983, 5
        %v2986 = vor.u32 %v2982, %v2985
        %v2987 = vrot.slane %v2986, 4
        %v2989 = vshll.u32 %v2916, 16
        %v2991 = vrot.slane %v2989, 5
        %v2992 = vsel %vm1723, %v2987, %v2991
        %v2994 = vshrl.u32 %v2917, 16
        %v2996 = vrot.slane %v2994, 4
        %v2997 = vshll.u32 %v2917, 16
        %v2999 = vrot.slane %v2997, 5
        %v3000 = vor.u32 %v2996, %v2999
        %v3001 = vrot.slane %v3000, 4
        %v3003 = vshll.u32 %v2918, 16
        %v3005 = vrot.slane %v3003, 5
        %v3006 = vsel %vm1723, %v3001, %v3005
        %v3008 = vshrl.u32 %v2919, 16
        %v3010 = vrot.slane %v3008, 4
        %v3011 = vshll.u32 %v2919, 16
        %v3013 = vrot.slane %v3011, 5
        %v3014 = vor.u32 %v3010, %v3013
        %v3015 = vrot.slane %v3014, 4
        %v3017 = vshll.u32 %v2920, 16
        %v3019 = vrot.slane %v3017, 5
        %v3020 = vsel %vm1723, %v3015, %v3019
        %v3022 = vshrl.u32 %v2921, 16
        %v3024 = vrot.slane %v3022, 4
        %v3025 = vshll.u32 %v2921, 16
        %v3027 = vrot.slane %v3025, 5
        %v3028 = vor.u32 %v3024, %v3027
        %v3029 = vrot.slane %v3028, 4
        %v3031 = vshll.u32 %v2922, 16
        %v3033 = vrot.slane %v3031, 5
        %v3034 = vsel %vm1723, %v3029, %v3033
        %v3035 = vld [vmem:[#allocation9 + $0x1c0] sm:$0xf]
        %v3036 = vld [vmem:[#allocation9 + $0x1c4] sm:$0xf]
        %v3037 = vld [vmem:[#allocation9 + $0x1c8] sm:$0xf]
        %v3038 = vld [vmem:[#allocation9 + $0x1cc] sm:$0xf]
        %v3039 = vld [vmem:[#allocation9 + $0x1d0] sm:$0xf]
        %v3040 = vld [vmem:[#allocation9 + $0x1d4] sm:$0xf]
        %v3041 = vld [vmem:[#allocation9 + $0x1d8] sm:$0xf]
        %v3042 = vld [vmem:[#allocation9 + $0x1dc] sm:$0xf]
        %v3043 = vld [vmem:[#allocation9 + $0x1e0] sm:$0xf]
        %v3044 = vld [vmem:[#allocation9 + $0x1e4] sm:$0xf]
        %v3045 = vld [vmem:[#allocation9 + $0x1e8] sm:$0xf]
        %v3046 = vld [vmem:[#allocation9 + $0x1ec] sm:$0xf]
        %v3047 = vld [vmem:[#allocation9 + $0x1f0] sm:$0xf]
        %v3048 = vld [vmem:[#allocation9 + $0x1f4] sm:$0xf]
        %v3049 = vld [vmem:[#allocation9 + $0x1f8] sm:$0xf]
        %v3050 = vld [vmem:[#allocation9 + $0x1fc] sm:$0xf]
        %v3051 = vunpack.c.l.b16 %v2936
        %v3052 = vunpack.c.l.b16 %v2950
        %v3053 = vunpack.c.l.b16 %v2964
        %v3054 = vunpack.c.l.b16 %v2978
        %v3055 = vunpack.c.l.b16 %v2992
        %v3056 = vunpack.c.l.b16 %v3006
        %v3057 = vunpack.c.l.b16 %v3020
        %v3058 = vunpack.c.l.b16 %v3034
        %v3059 = vpack.c.b16 %v3052, %v3051
        %v3060 = vpack.c.b16 %v3054, %v3053
        %v3061 = vpack.c.b16 %v3056, %v3055
        %v3062 = vpack.c.b16 %v3058, %v3057
        %v3083 = vunpack.c.l.b16 %v3035
        %v3084 = vunpack.c.l.b16 %v3036
        %v3085 = vunpack.c.l.b16 %v3037
        %v3086 = vunpack.c.l.b16 %v3038
        %v3087 = vunpack.c.l.b16 %v3039
        %v3088 = vunpack.c.l.b16 %v3040
        %v3089 = vunpack.c.l.b16 %v3041
        %v3090 = vunpack.c.l.b16 %v3042
        %v3091 = vunpack.c.l.b16 %v3043
        %v3092 = vunpack.c.l.b16 %v3044
        %v3093 = vunpack.c.l.b16 %v3045
        %v3094 = vunpack.c.l.b16 %v3046
        %v3095 = vunpack.c.l.b16 %v3047
        %v3096 = vunpack.c.l.b16 %v3048
        %v3097 = vunpack.c.l.b16 %v3049
        %v3098 = vunpack.c.l.b16 %v3050
        %v3099 = vpack.c.b16 %v3084, %v3083
        %v3100 = vpack.c.b16 %v3086, %v3085
        %v3101 = vpack.c.b16 %v3088, %v3087
        %v3102 = vpack.c.b16 %v3090, %v3089
        %v3103 = vpack.c.b16 %v3092, %v3091
        %v3104 = vpack.c.b16 %v3094, %v3093
        %v3105 = vpack.c.b16 %v3096, %v3095
        %v3106 = vpack.c.b16 %v3098, %v3097
        %3115 = vmatpush.bf16.msra.mxu0 %v3106
        %3116 = vmatpush.bf16.msra.mxu0 %v3105
        %3117 = vmatpush.bf16.msra.mxu0 %v3104
        %3118 = vmatpush.bf16.msra.mxu0 %v3103
        %3119 = vmatpush.bf16.msra.mxu0 %v3102
        %3120 = vmatpush.bf16.msra.mxu0 %v3101
        %3121 = vmatpush.bf16.msra.mxu0 %v3100
        %3122 = vmatpush.bf16.msra.mxu0 %v3099
        %3123 = vmatmul.bf16.gmra.mxu0 %v3059
        %v3124 = vpop.f32.mrf.mxu0
        %v3125 = vadd.f32 0.0, %v3124
        %v3126 = vpop.f32.mrf.mxu0
        %v3127 = vadd.f32 0.0, %v3126
        %3128 = vmatmul.bf16.gmra.mxu0 %v3060
        %v3129 = vpop.f32.mrf.mxu0
        %v3130 = vadd.f32 0.0, %v3129
        %v3131 = vpop.f32.mrf.mxu0
        %v3132 = vadd.f32 0.0, %v3131
        %3133 = vmatmul.bf16.gmra.mxu0 %v3061
        %v3134 = vpop.f32.mrf.mxu0
        %v3135 = vadd.f32 0.0, %v3134
        %v3136 = vpop.f32.mrf.mxu0
        %v3137 = vadd.f32 0.0, %v3136
        %3138 = vmatmul.bf16.gmra.mxu0 %v3062
        %v3139 = vpop.f32.mrf.mxu0
        %v3140 = vadd.f32 0.0, %v3139
        %v3141 = vpop.f32.mrf.mxu0
        %v3142 = vadd.f32 0.0, %v3141
        %3143 = vdwg.mxu0
        %v3144 = vadd.f32 %v2899, %v3125
        %v3145 = vadd.f32 %v2900, %v3127
        %v3146 = vadd.f32 %v2901, %v3130
        %v3147 = vadd.f32 %v2902, %v3132
        %v3148 = vadd.f32 %v2903, %v3135
        %v3149 = vadd.f32 %v2904, %v3137
        %v3150 = vadd.f32 %v2905, %v3140
        %v3151 = vadd.f32 %v2906, %v3142
        %v3152 = vld [vmem:[%s2773] sm:$0xe]
        %v3153 = vld [vmem:[%s2773 + $0x8] sm:$0xe]
        %v3154 = vld [vmem:[%s2773 + $0x10] sm:$0xe]
        %v3155 = vld [vmem:[%s2773 + $0x18] sm:$0xe]
        %v3156 = vld [vmem:[%s2773 + $0x20] sm:$0xe]
        %v3157 = vld [vmem:[%s2773 + $0x28] sm:$0xe]
        %v3158 = vld [vmem:[%s2773 + $0x30] sm:$0xe]
        %v3159 = vld [vmem:[%s2773 + $0x38] sm:$0xe]
        %v3176 = vrot.slane %v3152, 5
        %v3177 = vrot.slane %v3176, 4
        %v3178 = vrot.slane %v2908, 5
        %v3179 = vsel %vm2072, %v3177, %v3178
        %v3180 = vrot.slane %v3153, 5
        %v3181 = vrot.slane %v3180, 4
        %v3182 = vrot.slane %v2910, 5
        %v3183 = vsel %vm2072, %v3181, %v3182
        %v3184 = vrot.slane %v3154, 5
        %v3185 = vrot.slane %v3184, 4
        %v3186 = vrot.slane %v2912, 5
        %v3187 = vsel %vm2072, %v3185, %v3186
        %v3188 = vrot.slane %v3155, 5
        %v3189 = vrot.slane %v3188, 4
        %v3190 = vrot.slane %v2914, 5
        %v3191 = vsel %vm2072, %v3189, %v3190
        %v3192 = vrot.slane %v3156, 5
        %v3193 = vrot.slane %v3192, 4
        %v3194 = vrot.slane %v2916, 5
        %v3195 = vsel %vm2072, %v3193, %v3194
        %v3196 = vrot.slane %v3157, 5
        %v3197 = vrot.slane %v3196, 4
        %v3198 = vrot.slane %v2918, 5
        %v3199 = vsel %vm2072, %v3197, %v3198
        %v3200 = vrot.slane %v3158, 5
        %v3201 = vrot.slane %v3200, 4
        %v3202 = vrot.slane %v2920, 5
        %v3203 = vsel %vm2072, %v3201, %v3202
        %v3204 = vrot.slane %v3159, 5
        %v3205 = vrot.slane %v3204, 4
        %v3206 = vrot.slane %v2922, 5
        %v3207 = vsel %vm2072, %v3205, %v3206
        %v3208 = vld [vmem:[#allocation9 + $0x200] sm:$0xf]
        %v3209 = vld [vmem:[#allocation9 + $0x204] sm:$0xf]
        %v3210 = vld [vmem:[#allocation9 + $0x208] sm:$0xf]
        %v3211 = vld [vmem:[#allocation9 + $0x20c] sm:$0xf]
        %v3212 = vld [vmem:[#allocation9 + $0x210] sm:$0xf]
        %v3213 = vld [vmem:[#allocation9 + $0x214] sm:$0xf]
        %v3214 = vld [vmem:[#allocation9 + $0x218] sm:$0xf]
        %v3215 = vld [vmem:[#allocation9 + $0x21c] sm:$0xf]
        %v3216 = vld [vmem:[#allocation9 + $0x220] sm:$0xf]
        %v3217 = vld [vmem:[#allocation9 + $0x224] sm:$0xf]
        %v3218 = vld [vmem:[#allocation9 + $0x228] sm:$0xf]
        %v3219 = vld [vmem:[#allocation9 + $0x22c] sm:$0xf]
        %v3220 = vld [vmem:[#allocation9 + $0x230] sm:$0xf]
        %v3221 = vld [vmem:[#allocation9 + $0x234] sm:$0xf]
        %v3222 = vld [vmem:[#allocation9 + $0x238] sm:$0xf]
        %v3223 = vld [vmem:[#allocation9 + $0x23c] sm:$0xf]
        %v3224 = vunpack.c.l.b16 %v3179
        %v3225 = vunpack.c.l.b16 %v3183
        %v3226 = vunpack.c.l.b16 %v3187
        %v3227 = vunpack.c.l.b16 %v3191
        %v3228 = vunpack.c.l.b16 %v3195
        %v3229 = vunpack.c.l.b16 %v3199
        %v3230 = vunpack.c.l.b16 %v3203
        %v3231 = vunpack.c.l.b16 %v3207
        %v3232 = vpack.c.b16 %v3225, %v3224
        %v3233 = vpack.c.b16 %v3227, %v3226
        %v3234 = vpack.c.b16 %v3229, %v3228
        %v3235 = vpack.c.b16 %v3231, %v3230
        %v3256 = vunpack.c.l.b16 %v3208
        %v3257 = vunpack.c.l.b16 %v3209
        %v3258 = vunpack.c.l.b16 %v3210
        %v3259 = vunpack.c.l.b16 %v3211
        %v3260 = vunpack.c.l.b16 %v3212
        %v3261 = vunpack.c.l.b16 %v3213
        %v3262 = vunpack.c.l.b16 %v3214
        %v3263 = vunpack.c.l.b16 %v3215
        %v3264 = vunpack.c.l.b16 %v3216
        %v3265 = vunpack.c.l.b16 %v3217
        %v3266 = vunpack.c.l.b16 %v3218
        %v3267 = vunpack.c.l.b16 %v3219
        %v3268 = vunpack.c.l.b16 %v3220
        %v3269 = vunpack.c.l.b16 %v3221
        %v3270 = vunpack.c.l.b16 %v3222
        %v3271 = vunpack.c.l.b16 %v3223
        %v3272 = vpack.c.b16 %v3257, %v3256
        %v3273 = vpack.c.b16 %v3259, %v3258
        %v3274 = vpack.c.b16 %v3261, %v3260
        %v3275 = vpack.c.b16 %v3263, %v3262
        %v3276 = vpack.c.b16 %v3265, %v3264
        %v3277 = vpack.c.b16 %v3267, %v3266
        %v3278 = vpack.c.b16 %v3269, %v3268
        %v3279 = vpack.c.b16 %v3271, %v3270
        %3288 = vmatpush.bf16.msra.mxu0 %v3279
        %3289 = vmatpush.bf16.msra.mxu0 %v3278
        %3290 = vmatpush.bf16.msra.mxu0 %v3277
        %3291 = vmatpush.bf16.msra.mxu0 %v3276
        %3292 = vmatpush.bf16.msra.mxu0 %v3275
        %3293 = vmatpush.bf16.msra.mxu0 %v3274
        %3294 = vmatpush.bf16.msra.mxu0 %v3273
        %3295 = vmatpush.bf16.msra.mxu0 %v3272
        %3296 = vmatmul.bf16.gmra.mxu0 %v3232
        %v3297 = vpop.f32.mrf.mxu0
        %v3298 = vadd.f32 0.0, %v3297
        %v3299 = vpop.f32.mrf.mxu0
        %v3300 = vadd.f32 0.0, %v3299
        %3301 = vmatmul.bf16.gmra.mxu0 %v3233
        %v3302 = vpop.f32.mrf.mxu0
        %v3303 = vadd.f32 0.0, %v3302
        %v3304 = vpop.f32.mrf.mxu0
        %v3305 = vadd.f32 0.0, %v3304
        %3306 = vmatmul.bf16.gmra.mxu0 %v3234
        %v3307 = vpop.f32.mrf.mxu0
        %v3308 = vadd.f32 0.0, %v3307
        %v3309 = vpop.f32.mrf.mxu0
        %v3310 = vadd.f32 0.0, %v3309
        %3311 = vmatmul.bf16.gmra.mxu0 %v3235
        %v3312 = vpop.f32.mrf.mxu0
        %v3313 = vadd.f32 0.0, %v3312
        %v3314 = vpop.f32.mrf.mxu0
        %v3315 = vadd.f32 0.0, %v3314
        %3316 = vdwg.mxu0
        %v3317 = vadd.f32 %v3144, %v3298
        %v3318 = vadd.f32 %v3145, %v3300
        %v3319 = vadd.f32 %v3146, %v3303
        %v3320 = vadd.f32 %v3147, %v3305
        %v3321 = vadd.f32 %v3148, %v3308
        %v3322 = vadd.f32 %v3149, %v3310
        %v3323 = vadd.f32 %v3150, %v3313
        %v3324 = vadd.f32 %v3151, %v3315
        %v3325 = vld [vmem:[%s6] sm:$0x1]
        %v3327 = vperm.slane %v3325, 0
        %v3329 = vadd.f32 %v3317, %v3327
        %v3330 = vadd.f32 %v3318, %v3327
        %v3331 = vadd.f32 %v3319, %v3327
        %v3332 = vadd.f32 %v3320, %v3327
        %v3333 = vadd.f32 %v3321, %v3327
        %v3334 = vadd.f32 %v3322, %v3327
        %v3335 = vadd.f32 %v3323, %v3327
        %v3336 = vadd.f32 %v3324, %v3327
        %3337 = vst [vmem:[%s348] sm:$0xff] %v3329
        %3338 = vst [vmem:[%s348 + $0x8] sm:$0xff] %v3330
        %3339 = vst [vmem:[%s348 + $0x10] sm:$0xff] %v3331
        %3340 = vst [vmem:[%s348 + $0x18] sm:$0xff] %v3332
        %3341 = vst [vmem:[%s348 + $0x20] sm:$0xff] %v3333
        %3342 = vst [vmem:[%s348 + $0x28] sm:$0xff] %v3334
        %3343 = vst [vmem:[%s348 + $0x30] sm:$0xff] %v3335
        %3344 = vst [vmem:[%s348 + $0x38] sm:$0xff] %v3336
        %v3345 = vmax.f32 %v350, 0.0
        %v3346 = vmax.f32 %v351, 0.0
        %v3347 = vmax.f32 %v352, 0.0
        %v3348 = vmax.f32 %v353, 0.0
        %v3349 = vmax.f32 %v354, 0.0
        %v3350 = vmax.f32 %v355, 0.0
        %v3351 = vmax.f32 %v356, 0.0
        %v3352 = vmax.f32 %v357, 0.0
        %v3353 = vmax.f32 %v358, 0.0
        %v3354 = vmax.f32 %v359, 0.0
        %v3355 = vmax.f32 %v360, 0.0
        %v3356 = vmax.f32 %v361, 0.0
        %v3357 = vmax.f32 %v362, 0.0
        %v3358 = vmax.f32 %v363, 0.0
        %v3359 = vmax.f32 %v364, 0.0
        %v3360 = vmax.f32 %v365, 0.0
        %v3361 = vmax.f32 %v366, 0.0
        %v3362 = vmax.f32 %v367, 0.0
        %v3363 = vmax.f32 %v368, 0.0
        %v3364 = vmax.f32 %v369, 0.0
        %v3365 = vmax.f32 %v370, 0.0
        %v3366 = vmax.f32 %v371, 0.0
        %v3367 = vmax.f32 %v372, 0.0
        %v3368 = vmax.f32 %v373, 0.0
        %v3369 = vmax.f32 %v374, 0.0
        %v3370 = vmax.f32 %v375, 0.0
        %v3371 = vmax.f32 %v376, 0.0
        %v3372 = vmax.f32 %v377, 0.0
        %v3373 = vmax.f32 %v378, 0.0
        %v3374 = vmax.f32 %v379, 0.0
        %v3375 = vmax.f32 %v380, 0.0
        %v3376 = vmax.f32 %v381, 0.0
        %v3409 = vrot.slane %v3345, 2
        %v3410 = vrot.slane %v3345, 4
        %v3411 = vrot.slane %v3345, 6
        %v3412 = vrot.slane %v3346, 2
        %v3413 = vrot.slane %v3346, 4
        %v3414 = vrot.slane %v3346, 6
        %v3415 = vrot.slane %v3347, 2
        %v3416 = vrot.slane %v3347, 4
        %v3417 = vrot.slane %v3347, 6
        %v3418 = vrot.slane %v3348, 2
        %v3419 = vrot.slane %v3348, 4
        %v3420 = vrot.slane %v3348, 6
        %v3421 = vrot.slane %v3349, 2
        %v3422 = vrot.slane %v3349, 4
        %v3423 = vrot.slane %v3349, 6
        %v3424 = vrot.slane %v3350, 2
        %v3425 = vrot.slane %v3350, 4
        %v3426 = vrot.slane %v3350, 6
        %v3427 = vrot.slane %v3351, 2
        %v3428 = vrot.slane %v3351, 4
        %v3429 = vrot.slane %v3351, 6
        %v3430 = vrot.slane %v3352, 2
        %v3431 = vrot.slane %v3352, 4
        %v3432 = vrot.slane %v3352, 6
        %v3433 = vrot.slane %v3353, 2
        %v3434 = vrot.slane %v3353, 4
        %v3435 = vrot.slane %v3353, 6
        %v3436 = vrot.slane %v3354, 2
        %v3437 = vrot.slane %v3354, 4
        %v3438 = vrot.slane %v3354, 6
        %v3439 = vrot.slane %v3355, 2
        %v3440 = vrot.slane %v3355, 4
        %v3441 = vrot.slane %v3355, 6
        %v3442 = vrot.slane %v3356, 2
        %v3443 = vrot.slane %v3356, 4
        %v3444 = vrot.slane %v3356, 6
        %v3445 = vrot.slane %v3357, 2
        %v3446 = vrot.slane %v3357, 4
        %v3447 = vrot.slane %v3357, 6
        %v3448 = vrot.slane %v3358, 2
        %v3449 = vrot.slane %v3358, 4
        %v3450 = vrot.slane %v3358, 6
        %v3451 = vrot.slane %v3359, 2
        %v3452 = vrot.slane %v3359, 4
        %v3453 = vrot.slane %v3359, 6
        %v3454 = vrot.slane %v3360, 2
        %v3455 = vrot.slane %v3360, 4
        %v3456 = vrot.slane %v3360, 6
        %v3457 = vrot.slane %v3361, 2
        %v3458 = vrot.slane %v3361, 4
        %v3459 = vrot.slane %v3361, 6
        %v3460 = vrot.slane %v3362, 2
        %v3461 = vrot.slane %v3362, 4
        %v3462 = vrot.slane %v3362, 6
        %v3463 = vrot.slane %v3363, 2
        %v3464 = vrot.slane %v3363, 4
        %v3465 = vrot.slane %v3363, 6
        %v3466 = vrot.slane %v3364, 2
        %v3467 = vrot.slane %v3364, 4
        %v3468 = vrot.slane %v3364, 6
        %v3469 = vrot.slane %v3365, 2
        %v3470 = vrot.slane %v3365, 4
        %v3471 = vrot.slane %v3365, 6
        %v3472 = vrot.slane %v3366, 2
        %v3473 = vrot.slane %v3366, 4
        %v3474 = vrot.slane %v3366, 6
        %v3475 = vrot.slane %v3367, 2
        %v3476 = vrot.slane %v3367, 4
        %v3477 = vrot.slane %v3367, 6
        %v3478 = vrot.slane %v3368, 2
        %v3479 = vrot.slane %v3368, 4
        %v3480 = vrot.slane %v3368, 6
        %v3481 = vrot.slane %v3369, 2
        %v3482 = vrot.slane %v3369, 4
        %v3483 = vrot.slane %v3369, 6
        %v3484 = vrot.slane %v3370, 2
        %v3485 = vrot.slane %v3370, 4
        %v3486 = vrot.slane %v3370, 6
        %v3487 = vrot.slane %v3371, 2
        %v3488 = vrot.slane %v3371, 4
        %v3489 = vrot.slane %v3371, 6
        %v3490 = vrot.slane %v3372, 2
        %v3491 = vrot.slane %v3372, 4
        %v3492 = vrot.slane %v3372, 6
        %v3493 = vrot.slane %v3373, 2
        %v3494 = vrot.slane %v3373, 4
        %v3495 = vrot.slane %v3373, 6
        %v3496 = vrot.slane %v3374, 2
        %v3497 = vrot.slane %v3374, 4
        %v3498 = vrot.slane %v3374, 6
        %v3499 = vrot.slane %v3375, 2
        %v3500 = vrot.slane %v3375, 4
        %v3501 = vrot.slane %v3375, 6
        %v3502 = vrot.slane %v3376, 2
        %v3503 = vrot.slane %v3376, 4
        %v3504 = vrot.slane %v3376, 6
        %v3601 = vrot.slane %v3345, 7
        %v3602 = vrot.slane %v3601, 2
        %v3603 = vrot.slane %v3409, 7
        %v3604 = vrot.slane %v3603, 2
        %v3605 = vrot.slane %v3410, 7
        %v3606 = vrot.slane %v3605, 2
        %v3607 = vrot.slane %v3411, 7
        %v3608 = vrot.slane %v3607, 2
        %v3609 = vrot.slane %v3346, 7
        %v3610 = vrot.slane %v3609, 2
        %v3611 = vrot.slane %v3412, 7
        %v3612 = vrot.slane %v3611, 2
        %v3613 = vrot.slane %v3413, 7
        %v3614 = vrot.slane %v3613, 2
        %v3615 = vrot.slane %v3414, 7
        %v3616 = vrot.slane %v3615, 2
        %v3617 = vrot.slane %v3347, 7
        %v3618 = vrot.slane %v3617, 2
        %v3619 = vrot.slane %v3415, 7
        %v3620 = vrot.slane %v3619, 2
        %v3621 = vrot.slane %v3416, 7
        %v3622 = vrot.slane %v3621, 2
        %v3623 = vrot.slane %v3417, 7
        %v3624 = vrot.slane %v3623, 2
        %v3625 = vrot.slane %v3348, 7
        %v3626 = vrot.slane %v3625, 2
        %v3627 = vrot.slane %v3418, 7
        %v3628 = vrot.slane %v3627, 2
        %v3629 = vrot.slane %v3419, 7
        %v3630 = vrot.slane %v3629, 2
        %v3631 = vrot.slane %v3420, 7
        %v3632 = vrot.slane %v3631, 2
        %v3633 = vrot.slane %v3349, 7
        %v3634 = vrot.slane %v3633, 2
        %v3635 = vrot.slane %v3421, 7
        %v3636 = vrot.slane %v3635, 2
        %v3637 = vrot.slane %v3422, 7
        %v3638 = vrot.slane %v3637, 2
        %v3639 = vrot.slane %v3423, 7
        %v3640 = vrot.slane %v3639, 2
        %v3641 = vrot.slane %v3350, 7
        %v3642 = vrot.slane %v3641, 2
        %v3643 = vrot.slane %v3424, 7
        %v3644 = vrot.slane %v3643, 2
        %v3645 = vrot.slane %v3425, 7
        %v3646 = vrot.slane %v3645, 2
        %v3647 = vrot.slane %v3426, 7
        %v3648 = vrot.slane %v3647, 2
        %v3649 = vrot.slane %v3351, 7
        %v3650 = vrot.slane %v3649, 2
        %v3651 = vrot.slane %v3427, 7
        %v3652 = vrot.slane %v3651, 2
        %v3653 = vrot.slane %v3428, 7
        %v3654 = vrot.slane %v3653, 2
        %v3655 = vrot.slane %v3429, 7
        %v3656 = vrot.slane %v3655, 2
        %v3657 = vrot.slane %v3352, 7
        %v3658 = vrot.slane %v3657, 2
        %v3659 = vrot.slane %v3430, 7
        %v3660 = vrot.slane %v3659, 2
        %v3661 = vrot.slane %v3431, 7
        %v3662 = vrot.slane %v3661, 2
        %v3663 = vrot.slane %v3432, 7
        %v3664 = vrot.slane %v3663, 2
        %v3665 = vrot.slane %v3353, 7
        %v3666 = vrot.slane %v3665, 2
        %v3667 = vrot.slane %v3433, 7
        %v3668 = vrot.slane %v3667, 2
        %v3669 = vrot.slane %v3434, 7
        %v3670 = vrot.slane %v3669, 2
        %v3671 = vrot.slane %v3435, 7
        %v3672 = vrot.slane %v3671, 2
        %v3673 = vrot.slane %v3354, 7
        %v3674 = vrot.slane %v3673, 2
        %v3675 = vrot.slane %v3436, 7
        %v3676 = vrot.slane %v3675, 2
        %v3677 = vrot.slane %v3437, 7
        %v3678 = vrot.slane %v3677, 2
        %v3679 = vrot.slane %v3438, 7
        %v3680 = vrot.slane %v3679, 2
        %v3681 = vrot.slane %v3355, 7
        %v3682 = vrot.slane %v3681, 2
        %v3683 = vrot.slane %v3439, 7
        %v3684 = vrot.slane %v3683, 2
        %v3685 = vrot.slane %v3440, 7
        %v3686 = vrot.slane %v3685, 2
        %v3687 = vrot.slane %v3441, 7
        %v3688 = vrot.slane %v3687, 2
        %v3689 = vrot.slane %v3356, 7
        %v3690 = vrot.slane %v3689, 2
        %v3691 = vrot.slane %v3442, 7
        %v3692 = vrot.slane %v3691, 2
        %v3693 = vrot.slane %v3443, 7
        %v3694 = vrot.slane %v3693, 2
        %v3695 = vrot.slane %v3444, 7
        %v3696 = vrot.slane %v3695, 2
        %v3697 = vrot.slane %v3357, 7
        %v3698 = vrot.slane %v3697, 2
        %v3699 = vrot.slane %v3445, 7
        %v3700 = vrot.slane %v3699, 2
        %v3701 = vrot.slane %v3446, 7
        %v3702 = vrot.slane %v3701, 2
        %v3703 = vrot.slane %v3447, 7
        %v3704 = vrot.slane %v3703, 2
        %v3705 = vrot.slane %v3358, 7
        %v3706 = vrot.slane %v3705, 2
        %v3707 = vrot.slane %v3448, 7
        %v3708 = vrot.slane %v3707, 2
        %v3709 = vrot.slane %v3449, 7
        %v3710 = vrot.slane %v3709, 2
        %v3711 = vrot.slane %v3450, 7
        %v3712 = vrot.slane %v3711, 2
        %v3713 = vrot.slane %v3359, 7
        %v3714 = vrot.slane %v3713, 2
        %v3715 = vrot.slane %v3451, 7
        %v3716 = vrot.slane %v3715, 2
        %v3717 = vrot.slane %v3452, 7
        %v3718 = vrot.slane %v3717, 2
        %v3719 = vrot.slane %v3453, 7
        %v3720 = vrot.slane %v3719, 2
        %v3721 = vrot.slane %v3360, 7
        %v3722 = vrot.slane %v3721, 2
        %v3723 = vrot.slane %v3454, 7
        %v3724 = vrot.slane %v3723, 2
        %v3725 = vrot.slane %v3455, 7
        %v3726 = vrot.slane %v3725, 2
        %v3727 = vrot.slane %v3456, 7
        %v3728 = vrot.slane %v3727, 2
        %v3729 = vrot.slane %v3361, 7
        %v3730 = vrot.slane %v3729, 2
        %v3731 = vrot.slane %v3457, 7
        %v3732 = vrot.slane %v3731, 2
        %v3733 = vrot.slane %v3458, 7
        %v3734 = vrot.slane %v3733, 2
        %v3735 = vrot.slane %v3459, 7
        %v3736 = vrot.slane %v3735, 2
        %v3737 = vrot.slane %v3362, 7
        %v3738 = vrot.slane %v3737, 2
        %v3739 = vrot.slane %v3460, 7
        %v3740 = vrot.slane %v3739, 2
        %v3741 = vrot.slane %v3461, 7
        %v3742 = vrot.slane %v3741, 2
        %v3743 = vrot.slane %v3462, 7
        %v3744 = vrot.slane %v3743, 2
        %v3745 = vrot.slane %v3363, 7
        %v3746 = vrot.slane %v3745, 2
        %v3747 = vrot.slane %v3463, 7
        %v3748 = vrot.slane %v3747, 2
        %v3749 = vrot.slane %v3464, 7
        %v3750 = vrot.slane %v3749, 2
        %v3751 = vrot.slane %v3465, 7
        %v3752 = vrot.slane %v3751, 2
        %v3753 = vrot.slane %v3364, 7
        %v3754 = vrot.slane %v3753, 2
        %v3755 = vrot.slane %v3466, 7
        %v3756 = vrot.slane %v3755, 2
        %v3757 = vrot.slane %v3467, 7
        %v3758 = vrot.slane %v3757, 2
        %v3759 = vrot.slane %v3468, 7
        %v3760 = vrot.slane %v3759, 2
        %v3761 = vrot.slane %v3365, 7
        %v3762 = vrot.slane %v3761, 2
        %v3763 = vrot.slane %v3469, 7
        %v3764 = vrot.slane %v3763, 2
        %v3765 = vrot.slane %v3470, 7
        %v3766 = vrot.slane %v3765, 2
        %v3767 = vrot.slane %v3471, 7
        %v3768 = vrot.slane %v3767, 2
        %v3769 = vrot.slane %v3366, 7
        %v3770 = vrot.slane %v3769, 2
        %v3771 = vrot.slane %v3472, 7
        %v3772 = vrot.slane %v3771, 2
        %v3773 = vrot.slane %v3473, 7
        %v3774 = vrot.slane %v3773, 2
        %v3775 = vrot.slane %v3474, 7
        %v3776 = vrot.slane %v3775, 2
        %v3777 = vrot.slane %v3367, 7
        %v3778 = vrot.slane %v3777, 2
        %v3779 = vrot.slane %v3475, 7
        %v3780 = vrot.slane %v3779, 2
        %v3781 = vrot.slane %v3476, 7
        %v3782 = vrot.slane %v3781, 2
        %v3783 = vrot.slane %v3477, 7
        %v3784 = vrot.slane %v3783, 2
        %v3785 = vrot.slane %v3368, 7
        %v3786 = vrot.slane %v3785, 2
        %v3787 = vrot.slane %v3478, 7
        %v3788 = vrot.slane %v3787, 2
        %v3789 = vrot.slane %v3479, 7
        %v3790 = vrot.slane %v3789, 2
        %v3791 = vrot.slane %v3480, 7
        %v3792 = vrot.slane %v3791, 2
        %v3793 = vrot.slane %v3369, 7
        %v3794 = vrot.slane %v3793, 2
        %v3795 = vrot.slane %v3481, 7
        %v3796 = vrot.slane %v3795, 2
        %v3797 = vrot.slane %v3482, 7
        %v3798 = vrot.slane %v3797, 2
        %v3799 = vrot.slane %v3483, 7
        %v3800 = vrot.slane %v3799, 2
        %v3801 = vrot.slane %v3370, 7
        %v3802 = vrot.slane %v3801, 2
        %v3803 = vrot.slane %v3484, 7
        %v3804 = vrot.slane %v3803, 2
        %v3805 = vrot.slane %v3485, 7
        %v3806 = vrot.slane %v3805, 2
        %v3807 = vrot.slane %v3486, 7
        %v3808 = vrot.slane %v3807, 2
        %v3809 = vrot.slane %v3371, 7
        %v3810 = vrot.slane %v3809, 2
        %v3811 = vrot.slane %v3487, 7
        %v3812 = vrot.slane %v3811, 2
        %v3813 = vrot.slane %v3488, 7
        %v3814 = vrot.slane %v3813, 2
        %v3815 = vrot.slane %v3489, 7
        %v3816 = vrot.slane %v3815, 2
        %v3817 = vrot.slane %v3372, 7
        %v3818 = vrot.slane %v3817, 2
        %v3819 = vrot.slane %v3490, 7
        %v3820 = vrot.slane %v3819, 2
        %v3821 = vrot.slane %v3491, 7
        %v3822 = vrot.slane %v3821, 2
        %v3823 = vrot.slane %v3492, 7
        %v3824 = vrot.slane %v3823, 2
        %v3825 = vrot.slane %v3373, 7
        %v3826 = vrot.slane %v3825, 2
        %v3827 = vrot.slane %v3493, 7
        %v3828 = vrot.slane %v3827, 2
        %v3829 = vrot.slane %v3494, 7
        %v3830 = vrot.slane %v3829, 2
        %v3831 = vrot.slane %v3495, 7
        %v3832 = vrot.slane %v3831, 2
        %v3833 = vrot.slane %v3374, 7
        %v3834 = vrot.slane %v3833, 2
        %v3835 = vrot.slane %v3496, 7
        %v3836 = vrot.slane %v3835, 2
        %v3837 = vrot.slane %v3497, 7
        %v3838 = vrot.slane %v3837, 2
        %v3839 = vrot.slane %v3498, 7
        %v3840 = vrot.slane %v3839, 2
        %v3841 = vrot.slane %v3375, 7
        %v3842 = vrot.slane %v3841, 2
        %v3843 = vrot.slane %v3499, 7
        %v3844 = vrot.slane %v3843, 2
        %v3845 = vrot.slane %v3500, 7
        %v3846 = vrot.slane %v3845, 2
        %v3847 = vrot.slane %v3501, 7
        %v3848 = vrot.slane %v3847, 2
        %v3849 = vrot.slane %v3376, 7
        %v3850 = vrot.slane %v3849, 2
        %v3851 = vrot.slane %v3502, 7
        %v3852 = vrot.slane %v3851, 2
        %v3853 = vrot.slane %v3503, 7
        %v3854 = vrot.slane %v3853, 2
        %v3855 = vrot.slane %v3504, 7
        %v3856 = vrot.slane %v3855, 2
        %v3985 = vadd.f32 %v3345, %v3602
        %v3986 = vadd.f32 %v3409, %v3604
        %v3987 = vadd.f32 %v3410, %v3606
        %v3988 = vadd.f32 %v3411, %v3608
        %v3989 = vadd.f32 %v3346, %v3610
        %v3990 = vadd.f32 %v3412, %v3612
        %v3991 = vadd.f32 %v3413, %v3614
        %v3992 = vadd.f32 %v3414, %v3616
        %v3993 = vadd.f32 %v3347, %v3618
        %v3994 = vadd.f32 %v3415, %v3620
        %v3995 = vadd.f32 %v3416, %v3622
        %v3996 = vadd.f32 %v3417, %v3624
        %v3997 = vadd.f32 %v3348, %v3626
        %v3998 = vadd.f32 %v3418, %v3628
        %v3999 = vadd.f32 %v3419, %v3630
        %v4000 = vadd.f32 %v3420, %v3632
        %v4001 = vadd.f32 %v3349, %v3634
        %v4002 = vadd.f32 %v3421, %v3636
        %v4003 = vadd.f32 %v3422, %v3638
        %v4004 = vadd.f32 %v3423, %v3640
        %v4005 = vadd.f32 %v3350, %v3642
        %v4006 = vadd.f32 %v3424, %v3644
        %v4007 = vadd.f32 %v3425, %v3646
        %v4008 = vadd.f32 %v3426, %v3648
        %v4009 = vadd.f32 %v3351, %v3650
        %v4010 = vadd.f32 %v3427, %v3652
        %v4011 = vadd.f32 %v3428, %v3654
        %v4012 = vadd.f32 %v3429, %v3656
        %v4013 = vadd.f32 %v3352, %v3658
        %v4014 = vadd.f32 %v3430, %v3660
        %v4015 = vadd.f32 %v3431, %v3662
        %v4016 = vadd.f32 %v3432, %v3664
        %v4017 = vadd.f32 %v3353, %v3666
        %v4018 = vadd.f32 %v3433, %v3668
        %v4019 = vadd.f32 %v3434, %v3670
        %v4020 = vadd.f32 %v3435, %v3672
        %v4021 = vadd.f32 %v3354, %v3674
        %v4022 = vadd.f32 %v3436, %v3676
        %v4023 = vadd.f32 %v3437, %v3678
        %v4024 = vadd.f32 %v3438, %v3680
        %v4025 = vadd.f32 %v3355, %v3682
        %v4026 = vadd.f32 %v3439, %v3684
        %v4027 = vadd.f32 %v3440, %v3686
        %v4028 = vadd.f32 %v3441, %v3688
        %v4029 = vadd.f32 %v3356, %v3690
        %v4030 = vadd.f32 %v3442, %v3692
        %v4031 = vadd.f32 %v3443, %v3694
        %v4032 = vadd.f32 %v3444, %v3696
        %v4033 = vadd.f32 %v3357, %v3698
        %v4034 = vadd.f32 %v3445, %v3700
        %v4035 = vadd.f32 %v3446, %v3702
        %v4036 = vadd.f32 %v3447, %v3704
        %v4037 = vadd.f32 %v3358, %v3706
        %v4038 = vadd.f32 %v3448, %v3708
        %v4039 = vadd.f32 %v3449, %v3710
        %v4040 = vadd.f32 %v3450, %v3712
        %v4041 = vadd.f32 %v3359, %v3714
        %v4042 = vadd.f32 %v3451, %v3716
        %v4043 = vadd.f32 %v3452, %v3718
        %v4044 = vadd.f32 %v3453, %v3720
        %v4045 = vadd.f32 %v3360, %v3722
        %v4046 = vadd.f32 %v3454, %v3724
        %v4047 = vadd.f32 %v3455, %v3726
        %v4048 = vadd.f32 %v3456, %v3728
        %v4049 = vadd.f32 %v3361, %v3730
        %v4050 = vadd.f32 %v3457, %v3732
        %v4051 = vadd.f32 %v3458, %v3734
        %v4052 = vadd.f32 %v3459, %v3736
        %v4053 = vadd.f32 %v3362, %v3738
        %v4054 = vadd.f32 %v3460, %v3740
        %v4055 = vadd.f32 %v3461, %v3742
        %v4056 = vadd.f32 %v3462, %v3744
        %v4057 = vadd.f32 %v3363, %v3746
        %v4058 = vadd.f32 %v3463, %v3748
        %v4059 = vadd.f32 %v3464, %v3750
        %v4060 = vadd.f32 %v3465, %v3752
        %v4061 = vadd.f32 %v3364, %v3754
        %v4062 = vadd.f32 %v3466, %v3756
        %v4063 = vadd.f32 %v3467, %v3758
        %v4064 = vadd.f32 %v3468, %v3760
        %v4065 = vadd.f32 %v3365, %v3762
        %v4066 = vadd.f32 %v3469, %v3764
        %v4067 = vadd.f32 %v3470, %v3766
        %v4068 = vadd.f32 %v3471, %v3768
        %v4069 = vadd.f32 %v3366, %v3770
        %v4070 = vadd.f32 %v3472, %v3772
        %v4071 = vadd.f32 %v3473, %v3774
        %v4072 = vadd.f32 %v3474, %v3776
        %v4073 = vadd.f32 %v3367, %v3778
        %v4074 = vadd.f32 %v3475, %v3780
        %v4075 = vadd.f32 %v3476, %v3782
        %v4076 = vadd.f32 %v3477, %v3784
        %v4077 = vadd.f32 %v3368, %v3786
        %v4078 = vadd.f32 %v3478, %v3788
        %v4079 = vadd.f32 %v3479, %v3790
        %v4080 = vadd.f32 %v3480, %v3792
        %v4081 = vadd.f32 %v3369, %v3794
        %v4082 = vadd.f32 %v3481, %v3796
        %v4083 = vadd.f32 %v3482, %v3798
        %v4084 = vadd.f32 %v3483, %v3800
        %v4085 = vadd.f32 %v3370, %v3802
        %v4086 = vadd.f32 %v3484, %v3804
        %v4087 = vadd.f32 %v3485, %v3806
        %v4088 = vadd.f32 %v3486, %v3808
        %v4089 = vadd.f32 %v3371, %v3810
        %v4090 = vadd.f32 %v3487, %v3812
        %v4091 = vadd.f32 %v3488, %v3814
        %v4092 = vadd.f32 %v3489, %v3816
        %v4093 = vadd.f32 %v3372, %v3818
        %v4094 = vadd.f32 %v3490, %v3820
        %v4095 = vadd.f32 %v3491, %v3822
        %v4096 = vadd.f32 %v3492, %v3824
        %v4097 = vadd.f32 %v3373, %v3826
        %v4098 = vadd.f32 %v3493, %v3828
        %v4099 = vadd.f32 %v3494, %v3830
        %v4100 = vadd.f32 %v3495, %v3832
        %v4101 = vadd.f32 %v3374, %v3834
        %v4102 = vadd.f32 %v3496, %v3836
        %v4103 = vadd.f32 %v3497, %v3838
        %v4104 = vadd.f32 %v3498, %v3840
        %v4105 = vadd.f32 %v3375, %v3842
        %v4106 = vadd.f32 %v3499, %v3844
        %v4107 = vadd.f32 %v3500, %v3846
        %v4108 = vadd.f32 %v3501, %v3848
        %v4109 = vadd.f32 %v3376, %v3850
        %v4110 = vadd.f32 %v3502, %v3852
        %v4111 = vadd.f32 %v3503, %v3854
        %v4112 = vadd.f32 %v3504, %v3856
        %v4113 = vadd.f32 %v3985, %v3993
        %v4114 = vadd.f32 %v3986, %v3994
        %v4115 = vadd.f32 %v3987, %v3995
        %v4116 = vadd.f32 %v3988, %v3996
        %v4117 = vadd.f32 %v3989, %v3997
        %v4118 = vadd.f32 %v3990, %v3998
        %v4119 = vadd.f32 %v3991, %v3999
        %v4120 = vadd.f32 %v3992, %v4000
        %v4121 = vadd.f32 %v4001, %v4009
        %v4122 = vadd.f32 %v4002, %v4010
        %v4123 = vadd.f32 %v4003, %v4011
        %v4124 = vadd.f32 %v4004, %v4012
        %v4125 = vadd.f32 %v4005, %v4013
        %v4126 = vadd.f32 %v4006, %v4014
        %v4127 = vadd.f32 %v4007, %v4015
        %v4128 = vadd.f32 %v4008, %v4016
        %v4129 = vadd.f32 %v4017, %v4025
        %v4130 = vadd.f32 %v4018, %v4026
        %v4131 = vadd.f32 %v4019, %v4027
        %v4132 = vadd.f32 %v4020, %v4028
        %v4133 = vadd.f32 %v4021, %v4029
        %v4134 = vadd.f32 %v4022, %v4030
        %v4135 = vadd.f32 %v4023, %v4031
        %v4136 = vadd.f32 %v4024, %v4032
        %v4137 = vadd.f32 %v4033, %v4041
        %v4138 = vadd.f32 %v4034, %v4042
        %v4139 = vadd.f32 %v4035, %v4043
        %v4140 = vadd.f32 %v4036, %v4044
        %v4141 = vadd.f32 %v4037, %v4045
        %v4142 = vadd.f32 %v4038, %v4046
        %v4143 = vadd.f32 %v4039, %v4047
        %v4144 = vadd.f32 %v4040, %v4048
        %v4145 = vadd.f32 %v4049, %v4057
        %v4146 = vadd.f32 %v4050, %v4058
        %v4147 = vadd.f32 %v4051, %v4059
        %v4148 = vadd.f32 %v4052, %v4060
        %v4149 = vadd.f32 %v4053, %v4061
        %v4150 = vadd.f32 %v4054, %v4062
        %v4151 = vadd.f32 %v4055, %v4063
        %v4152 = vadd.f32 %v4056, %v4064
        %v4153 = vadd.f32 %v4065, %v4073
        %v4154 = vadd.f32 %v4066, %v4074
        %v4155 = vadd.f32 %v4067, %v4075
        %v4156 = vadd.f32 %v4068, %v4076
        %v4157 = vadd.f32 %v4069, %v4077
        %v4158 = vadd.f32 %v4070, %v4078
        %v4159 = vadd.f32 %v4071, %v4079
        %v4160 = vadd.f32 %v4072, %v4080
        %v4161 = vadd.f32 %v4081, %v4089
        %v4162 = vadd.f32 %v4082, %v4090
        %v4163 = vadd.f32 %v4083, %v4091
        %v4164 = vadd.f32 %v4084, %v4092
        %v4165 = vadd.f32 %v4085, %v4093
        %v4166 = vadd.f32 %v4086, %v4094
        %v4167 = vadd.f32 %v4087, %v4095
        %v4168 = vadd.f32 %v4088, %v4096
        %v4169 = vadd.f32 %v4097, %v4105
        %v4170 = vadd.f32 %v4098, %v4106
        %v4171 = vadd.f32 %v4099, %v4107
        %v4172 = vadd.f32 %v4100, %v4108
        %v4173 = vadd.f32 %v4101, %v4109
        %v4174 = vadd.f32 %v4102, %v4110
        %v4175 = vadd.f32 %v4103, %v4111
        %v4176 = vadd.f32 %v4104, %v4112
        %v4177 = vmul.f32 %v4113, 0.25
        %v4178 = vmul.f32 %v4114, 0.25
        %v4179 = vmul.f32 %v4115, 0.25
        %v4180 = vmul.f32 %v4116, 0.25
        %v4181 = vmul.f32 %v4117, 0.25
        %v4182 = vmul.f32 %v4118, 0.25
        %v4183 = vmul.f32 %v4119, 0.25
        %v4184 = vmul.f32 %v4120, 0.25
        %v4185 = vmul.f32 %v4121, 0.25
        %v4186 = vmul.f32 %v4122, 0.25
        %v4187 = vmul.f32 %v4123, 0.25
        %v4188 = vmul.f32 %v4124, 0.25
        %v4189 = vmul.f32 %v4125, 0.25
        %v4190 = vmul.f32 %v4126, 0.25
        %v4191 = vmul.f32 %v4127, 0.25
        %v4192 = vmul.f32 %v4128, 0.25
        %v4193 = vmul.f32 %v4129, 0.25
        %v4194 = vmul.f32 %v4130, 0.25
        %v4195 = vmul.f32 %v4131, 0.25
        %v4196 = vmul.f32 %v4132, 0.25
        %v4197 = vmul.f32 %v4133, 0.25
        %v4198 = vmul.f32 %v4134, 0.25
        %v4199 = vmul.f32 %v4135, 0.25
        %v4200 = vmul.f32 %v4136, 0.25
        %v4201 = vmul.f32 %v4137, 0.25
        %v4202 = vmul.f32 %v4138, 0.25
        %v4203 = vmul.f32 %v4139, 0.25
        %v4204 = vmul.f32 %v4140, 0.25
        %v4205 = vmul.f32 %v4141, 0.25
        %v4206 = vmul.f32 %v4142, 0.25
        %v4207 = vmul.f32 %v4143, 0.25
        %v4208 = vmul.f32 %v4144, 0.25
        %v4209 = vmul.f32 %v4145, 0.25
        %v4210 = vmul.f32 %v4146, 0.25
        %v4211 = vmul.f32 %v4147, 0.25
        %v4212 = vmul.f32 %v4148, 0.25
        %v4213 = vmul.f32 %v4149, 0.25
        %v4214 = vmul.f32 %v4150, 0.25
        %v4215 = vmul.f32 %v4151, 0.25
        %v4216 = vmul.f32 %v4152, 0.25
        %v4217 = vmul.f32 %v4153, 0.25
        %v4218 = vmul.f32 %v4154, 0.25
        %v4219 = vmul.f32 %v4155, 0.25
        %v4220 = vmul.f32 %v4156, 0.25
        %v4221 = vmul.f32 %v4157, 0.25
        %v4222 = vmul.f32 %v4158, 0.25
        %v4223 = vmul.f32 %v4159, 0.25
        %v4224 = vmul.f32 %v4160, 0.25
        %v4225 = vmul.f32 %v4161, 0.25
        %v4226 = vmul.f32 %v4162, 0.25
        %v4227 = vmul.f32 %v4163, 0.25
        %v4228 = vmul.f32 %v4164, 0.25
        %v4229 = vmul.f32 %v4165, 0.25
        %v4230 = vmul.f32 %v4166, 0.25
        %v4231 = vmul.f32 %v4167, 0.25
        %v4232 = vmul.f32 %v4168, 0.25
        %v4233 = vmul.f32 %v4169, 0.25
        %v4234 = vmul.f32 %v4170, 0.25
        %v4235 = vmul.f32 %v4171, 0.25
        %v4236 = vmul.f32 %v4172, 0.25
        %v4237 = vmul.f32 %v4173, 0.25
        %v4238 = vmul.f32 %v4174, 0.25
        %v4239 = vmul.f32 %v4175, 0.25
        %v4240 = vmul.f32 %v4176, 0.25
        %v4241 = vpack.c.bf16 %v4177, %v4177
        %v4242 = vpack.c.bf16 %v4178, %v4178
        %v4243 = vpack.c.bf16 %v4179, %v4179
        %v4244 = vpack.c.bf16 %v4180, %v4180
        %v4245 = vpack.c.bf16 %v4181, %v4181
        %v4246 = vpack.c.bf16 %v4182, %v4182
        %v4247 = vpack.c.bf16 %v4183, %v4183
        %v4248 = vpack.c.bf16 %v4184, %v4184
        %v4249 = vpack.c.bf16 %v4185, %v4185
        %v4250 = vpack.c.bf16 %v4186, %v4186
        %v4251 = vpack.c.bf16 %v4187, %v4187
        %v4252 = vpack.c.bf16 %v4188, %v4188
        %v4253 = vpack.c.bf16 %v4189, %v4189
        %v4254 = vpack.c.bf16 %v4190, %v4190
        %v4255 = vpack.c.bf16 %v4191, %v4191
        %v4256 = vpack.c.bf16 %v4192, %v4192
        %v4257 = vpack.c.bf16 %v4193, %v4193
        %v4258 = vpack.c.bf16 %v4194, %v4194
        %v4259 = vpack.c.bf16 %v4195, %v4195
        %v4260 = vpack.c.bf16 %v4196, %v4196
        %v4261 = vpack.c.bf16 %v4197, %v4197
        %v4262 = vpack.c.bf16 %v4198, %v4198
        %v4263 = vpack.c.bf16 %v4199, %v4199
        %v4264 = vpack.c.bf16 %v4200, %v4200
        %v4265 = vpack.c.bf16 %v4201, %v4201
        %v4266 = vpack.c.bf16 %v4202, %v4202
        %v4267 = vpack.c.bf16 %v4203, %v4203
        %v4268 = vpack.c.bf16 %v4204, %v4204
        %v4269 = vpack.c.bf16 %v4205, %v4205
        %v4270 = vpack.c.bf16 %v4206, %v4206
        %v4271 = vpack.c.bf16 %v4207, %v4207
        %v4272 = vpack.c.bf16 %v4208, %v4208
        %v4273 = vpack.c.bf16 %v4209, %v4209
        %v4274 = vpack.c.bf16 %v4210, %v4210
        %v4275 = vpack.c.bf16 %v4211, %v4211
        %v4276 = vpack.c.bf16 %v4212, %v4212
        %v4277 = vpack.c.bf16 %v4213, %v4213
        %v4278 = vpack.c.bf16 %v4214, %v4214
        %v4279 = vpack.c.bf16 %v4215, %v4215
        %v4280 = vpack.c.bf16 %v4216, %v4216
        %v4281 = vpack.c.bf16 %v4217, %v4217
        %v4282 = vpack.c.bf16 %v4218, %v4218
        %v4283 = vpack.c.bf16 %v4219, %v4219
        %v4284 = vpack.c.bf16 %v4220, %v4220
        %v4285 = vpack.c.bf16 %v4221, %v4221
        %v4286 = vpack.c.bf16 %v4222, %v4222
        %v4287 = vpack.c.bf16 %v4223, %v4223
        %v4288 = vpack.c.bf16 %v4224, %v4224
        %v4289 = vpack.c.bf16 %v4225, %v4225
        %v4290 = vpack.c.bf16 %v4226, %v4226
        %v4291 = vpack.c.bf16 %v4227, %v4227
        %v4292 = vpack.c.bf16 %v4228, %v4228
        %v4293 = vpack.c.bf16 %v4229, %v4229
        %v4294 = vpack.c.bf16 %v4230, %v4230
        %v4295 = vpack.c.bf16 %v4231, %v4231
        %v4296 = vpack.c.bf16 %v4232, %v4232
        %v4297 = vpack.c.bf16 %v4233, %v4233
        %v4298 = vpack.c.bf16 %v4234, %v4234
        %v4299 = vpack.c.bf16 %v4235, %v4235
        %v4300 = vpack.c.bf16 %v4236, %v4236
        %v4301 = vpack.c.bf16 %v4237, %v4237
        %v4302 = vpack.c.bf16 %v4238, %v4238
        %v4303 = vpack.c.bf16 %v4239, %v4239
        %v4304 = vpack.c.bf16 %v4240, %v4240
        %v4369 = vunpack.c.l.b16 %v4241
        %v4370 = vunpack.c.l.b16 %v4242
        %v4371 = vunpack.c.l.b16 %v4243
        %v4372 = vunpack.c.l.b16 %v4244
        %v4373 = vunpack.c.l.b16 %v4245
        %v4374 = vunpack.c.l.b16 %v4246
        %v4375 = vunpack.c.l.b16 %v4247
        %v4376 = vunpack.c.l.b16 %v4248
        %v4377 = vunpack.c.l.b16 %v4249
        %v4378 = vunpack.c.l.b16 %v4250
        %v4379 = vunpack.c.l.b16 %v4251
        %v4380 = vunpack.c.l.b16 %v4252
        %v4381 = vunpack.c.l.b16 %v4253
        %v4382 = vunpack.c.l.b16 %v4254
        %v4383 = vunpack.c.l.b16 %v4255
        %v4384 = vunpack.c.l.b16 %v4256
        %v4385 = vunpack.c.l.b16 %v4257
        %v4386 = vunpack.c.l.b16 %v4258
        %v4387 = vunpack.c.l.b16 %v4259
        %v4388 = vunpack.c.l.b16 %v4260
        %v4389 = vunpack.c.l.b16 %v4261
        %v4390 = vunpack.c.l.b16 %v4262
        %v4391 = vunpack.c.l.b16 %v4263
        %v4392 = vunpack.c.l.b16 %v4264
        %v4393 = vunpack.c.l.b16 %v4265
        %v4394 = vunpack.c.l.b16 %v4266
        %v4395 = vunpack.c.l.b16 %v4267
        %v4396 = vunpack.c.l.b16 %v4268
        %v4397 = vunpack.c.l.b16 %v4269
        %v4398 = vunpack.c.l.b16 %v4270
        %v4399 = vunpack.c.l.b16 %v4271
        %v4400 = vunpack.c.l.b16 %v4272
        %v4401 = vunpack.c.l.b16 %v4273
        %v4402 = vunpack.c.l.b16 %v4274
        %v4403 = vunpack.c.l.b16 %v4275
        %v4404 = vunpack.c.l.b16 %v4276
        %v4405 = vunpack.c.l.b16 %v4277
        %v4406 = vunpack.c.l.b16 %v4278
        %v4407 = vunpack.c.l.b16 %v4279
        %v4408 = vunpack.c.l.b16 %v4280
        %v4409 = vunpack.c.l.b16 %v4281
        %v4410 = vunpack.c.l.b16 %v4282
        %v4411 = vunpack.c.l.b16 %v4283
        %v4412 = vunpack.c.l.b16 %v4284
        %v4413 = vunpack.c.l.b16 %v4285
        %v4414 = vunpack.c.l.b16 %v4286
        %v4415 = vunpack.c.l.b16 %v4287
        %v4416 = vunpack.c.l.b16 %v4288
        %v4417 = vunpack.c.l.b16 %v4289
        %v4418 = vunpack.c.l.b16 %v4290
        %v4419 = vunpack.c.l.b16 %v4291
        %v4420 = vunpack.c.l.b16 %v4292
        %v4421 = vunpack.c.l.b16 %v4293
        %v4422 = vunpack.c.l.b16 %v4294
        %v4423 = vunpack.c.l.b16 %v4295
        %v4424 = vunpack.c.l.b16 %v4296
        %v4425 = vunpack.c.l.b16 %v4297
        %v4426 = vunpack.c.l.b16 %v4298
        %v4427 = vunpack.c.l.b16 %v4299
        %v4428 = vunpack.c.l.b16 %v4300
        %v4429 = vunpack.c.l.b16 %v4301
        %v4430 = vunpack.c.l.b16 %v4302
        %v4431 = vunpack.c.l.b16 %v4303
        %v4432 = vunpack.c.l.b16 %v4304
        %v4433 = vrot.slane %v4369, 7
        %v4434 = vrot.slane %v4370, 6
        %v4435 = vsel %vm1499, %v4434, %v4433
        %v4436 = vrot.slane %v4371, 5
        %v4437 = vsel %vm1502, %v4436, %v4435
        %v4438 = vrot.slane %v4372, 4
        %v4439 = vsel %vm1505, %v4438, %v4437
        %v4440 = vrot.slane %v4373, 3
        %v4441 = vsel %vm1508, %v4440, %v4439
        %v4442 = vrot.slane %v4374, 2
        %v4443 = vsel %vm1511, %v4442, %v4441
        %v4444 = vrot.slane %v4375, 1
        %v4445 = vsel %vm1514, %v4444, %v4443
        %v4446 = vrot.slane %v4377, 7
        %v4447 = vrot.slane %v4378, 6
        %v4448 = vsel %vm1499, %v4447, %v4446
        %v4449 = vrot.slane %v4379, 5
        %v4450 = vsel %vm1502, %v4449, %v4448
        %v4451 = vrot.slane %v4380, 4
        %v4452 = vsel %vm1505, %v4451, %v4450
        %v4453 = vrot.slane %v4381, 3
        %v4454 = vsel %vm1508, %v4453, %v4452
        %v4455 = vrot.slane %v4382, 2
        %v4456 = vsel %vm1511, %v4455, %v4454
        %v4457 = vrot.slane %v4383, 1
        %v4458 = vsel %vm1514, %v4457, %v4456
        %v4459 = vrot.slane %v4385, 7
        %v4460 = vrot.slane %v4386, 6
        %v4461 = vsel %vm1499, %v4460, %v4459
        %v4462 = vrot.slane %v4387, 5
        %v4463 = vsel %vm1502, %v4462, %v4461
        %v4464 = vrot.slane %v4388, 4
        %v4465 = vsel %vm1505, %v4464, %v4463
        %v4466 = vrot.slane %v4389, 3
        %v4467 = vsel %vm1508, %v4466, %v4465
        %v4468 = vrot.slane %v4390, 2
        %v4469 = vsel %vm1511, %v4468, %v4467
        %v4470 = vrot.slane %v4391, 1
        %v4471 = vsel %vm1514, %v4470, %v4469
        %v4472 = vrot.slane %v4393, 7
        %v4473 = vrot.slane %v4394, 6
        %v4474 = vsel %vm1499, %v4473, %v4472
        %v4475 = vrot.slane %v4395, 5
        %v4476 = vsel %vm1502, %v4475, %v4474
        %v4477 = vrot.slane %v4396, 4
        %v4478 = vsel %vm1505, %v4477, %v4476
        %v4479 = vrot.slane %v4397, 3
        %v4480 = vsel %vm1508, %v4479, %v4478
        %v4481 = vrot.slane %v4398, 2
        %v4482 = vsel %vm1511, %v4481, %v4480
        %v4483 = vrot.slane %v4399, 1
        %v4484 = vsel %vm1514, %v4483, %v4482
        %v4485 = vrot.slane %v4401, 7
        %v4486 = vrot.slane %v4402, 6
        %v4487 = vsel %vm1499, %v4486, %v4485
        %v4488 = vrot.slane %v4403, 5
        %v4489 = vsel %vm1502, %v4488, %v4487
        %v4490 = vrot.slane %v4404, 4
        %v4491 = vsel %vm1505, %v4490, %v4489
        %v4492 = vrot.slane %v4405, 3
        %v4493 = vsel %vm1508, %v4492, %v4491
        %v4494 = vrot.slane %v4406, 2
        %v4495 = vsel %vm1511, %v4494, %v4493
        %v4496 = vrot.slane %v4407, 1
        %v4497 = vsel %vm1514, %v4496, %v4495
        %v4498 = vrot.slane %v4409, 7
        %v4499 = vrot.slane %v4410, 6
        %v4500 = vsel %vm1499, %v4499, %v4498
        %v4501 = vrot.slane %v4411, 5
        %v4502 = vsel %vm1502, %v4501, %v4500
        %v4503 = vrot.slane %v4412, 4
        %v4504 = vsel %vm1505, %v4503, %v4502
        %v4505 = vrot.slane %v4413, 3
        %v4506 = vsel %vm1508, %v4505, %v4504
        %v4507 = vrot.slane %v4414, 2
        %v4508 = vsel %vm1511, %v4507, %v4506
        %v4509 = vrot.slane %v4415, 1
        %v4510 = vsel %vm1514, %v4509, %v4508
        %v4511 = vrot.slane %v4417, 7
        %v4512 = vrot.slane %v4418, 6
        %v4513 = vsel %vm1499, %v4512, %v4511
        %v4514 = vrot.slane %v4419, 5
        %v4515 = vsel %vm1502, %v4514, %v4513
        %v4516 = vrot.slane %v4420, 4
        %v4517 = vsel %vm1505, %v4516, %v4515
        %v4518 = vrot.slane %v4421, 3
        %v4519 = vsel %vm1508, %v4518, %v4517
        %v4520 = vrot.slane %v4422, 2
        %v4521 = vsel %vm1511, %v4520, %v4519
        %v4522 = vrot.slane %v4423, 1
        %v4523 = vsel %vm1514, %v4522, %v4521
        %v4524 = vrot.slane %v4425, 7
        %v4525 = vrot.slane %v4426, 6
        %v4526 = vsel %vm1499, %v4525, %v4524
        %v4527 = vrot.slane %v4427, 5
        %v4528 = vsel %vm1502, %v4527, %v4526
        %v4529 = vrot.slane %v4428, 4
        %v4530 = vsel %vm1505, %v4529, %v4528
        %v4531 = vrot.slane %v4429, 3
        %v4532 = vsel %vm1508, %v4531, %v4530
        %v4533 = vrot.slane %v4430, 2
        %v4534 = vsel %vm1511, %v4533, %v4532
        %v4535 = vrot.slane %v4431, 1
        %v4536 = vsel %vm1514, %v4535, %v4534
        %v4537 = vpack.c.b16 %v4445, %v4445
        %v4538 = vpack.c.b16 %v4376, %v4376
        %v4539 = vpack.c.b16 %v4458, %v4458
        %v4540 = vpack.c.b16 %v4384, %v4384
        %v4541 = vpack.c.b16 %v4471, %v4471
        %v4542 = vpack.c.b16 %v4392, %v4392
        %v4543 = vpack.c.b16 %v4484, %v4484
        %v4544 = vpack.c.b16 %v4400, %v4400
        %v4545 = vpack.c.b16 %v4497, %v4497
        %v4546 = vpack.c.b16 %v4408, %v4408
        %v4547 = vpack.c.b16 %v4510, %v4510
        %v4548 = vpack.c.b16 %v4416, %v4416
        %v4549 = vpack.c.b16 %v4523, %v4523
        %v4550 = vpack.c.b16 %v4424, %v4424
        %v4551 = vpack.c.b16 %v4536, %v4536
        %v4552 = vpack.c.b16 %v4432, %v4432
        %v4569 = vld [vmem:[%s387] sm:$0xf]
        %v4570 = vsel %vm1640, %v4537, %v4569
        %4571 = vst [vmem:[%s387] sm:$0xf] %v4570
        %v4572 = vld [vmem:[%s387 + $0x4] sm:$0x1]
        %v4573 = vsel %vm390, %v4538, %v4572
        %4574 = vst [vmem:[%s387 + $0x4] sm:$0x1] %v4573
        %v4575 = vld [vmem:[%s387 + $0x8] sm:$0xf]
        %v4576 = vsel %vm1640, %v4539, %v4575
        %4577 = vst [vmem:[%s387 + $0x8] sm:$0xf] %v4576
        %v4578 = vld [vmem:[%s387 + $0xc] sm:$0x1]
        %v4579 = vsel %vm390, %v4540, %v4578
        %4580 = vst [vmem:[%s387 + $0xc] sm:$0x1] %v4579
        %v4581 = vld [vmem:[%s387 + $0x10] sm:$0xf]
        %v4582 = vsel %vm1640, %v4541, %v4581
        %4583 = vst [vmem:[%s387 + $0x10] sm:$0xf] %v4582
        %v4584 = vld [vmem:[%s387 + $0x14] sm:$0x1]
        %v4585 = vsel %vm390, %v4542, %v4584
        %4586 = vst [vmem:[%s387 + $0x14] sm:$0x1] %v4585
        %v4587 = vld [vmem:[%s387 + $0x18] sm:$0xf]
        %v4588 = vsel %vm1640, %v4543, %v4587
        %4589 = vst [vmem:[%s387 + $0x18] sm:$0xf] %v4588
        %v4590 = vld [vmem:[%s387 + $0x1c] sm:$0x1]
        %v4591 = vsel %vm390, %v4544, %v4590
        %4592 = vst [vmem:[%s387 + $0x1c] sm:$0x1] %v4591
        %v4593 = vld [vmem:[%s387 + $0x20] sm:$0xf]
        %v4594 = vsel %vm1640, %v4545, %v4593
        %4595 = vst [vmem:[%s387 + $0x20] sm:$0xf] %v4594
        %v4596 = vld [vmem:[%s387 + $0x24] sm:$0x1]
        %v4597 = vsel %vm390, %v4546, %v4596
        %4598 = vst [vmem:[%s387 + $0x24] sm:$0x1] %v4597
        %v4599 = vld [vmem:[%s387 + $0x28] sm:$0xf]
        %v4600 = vsel %vm1640, %v4547, %v4599
        %4601 = vst [vmem:[%s387 + $0x28] sm:$0xf] %v4600
        %v4602 = vld [vmem:[%s387 + $0x2c] sm:$0x1]
        %v4603 = vsel %vm390, %v4548, %v4602
        %4604 = vst [vmem:[%s387 + $0x2c] sm:$0x1] %v4603
        %v4605 = vld [vmem:[%s387 + $0x30] sm:$0xf]
        %v4606 = vsel %vm1640, %v4549, %v4605
        %4607 = vst [vmem:[%s387 + $0x30] sm:$0xf] %v4606
        %v4608 = vld [vmem:[%s387 + $0x34] sm:$0x1]
        %v4609 = vsel %vm390, %v4550, %v4608
        %4610 = vst [vmem:[%s387 + $0x34] sm:$0x1] %v4609
        %v4611 = vld [vmem:[%s387 + $0x38] sm:$0xf]
        %v4612 = vsel %vm1640, %v4551, %v4611
        %4613 = vst [vmem:[%s387 + $0x38] sm:$0xf] %v4612
        %v4614 = vld [vmem:[%s387 + $0x3c] sm:$0x1]
        %v4615 = vsel %vm390, %v4552, %v4614
        %4616 = vst [vmem:[%s387 + $0x3c] sm:$0x1] %v4615
        %v4617 = vld [vmem:[#allocation2] sm:$0xf]
        %v4618 = vld [vmem:[#allocation2 + $0x8] sm:$0xf]
        %v4619 = vld [vmem:[#allocation2 + $0x10] sm:$0xf]
        %v4620 = vld [vmem:[#allocation2 + $0x18] sm:$0xf]
        %v4621 = vld [vmem:[#allocation2 + $0x20] sm:$0xf]
        %v4622 = vld [vmem:[#allocation2 + $0x28] sm:$0xf]
        %v4623 = vld [vmem:[#allocation2 + $0x30] sm:$0xf]
        %v4624 = vld [vmem:[#allocation2 + $0x38] sm:$0xf]
        %v4625 = vld [vmem:[#allocation6] sm:$0xf]
        %v4626 = vld [vmem:[#allocation6 + $0x4] sm:$0xf]
        %v4627 = vld [vmem:[#allocation6 + $0x8] sm:$0xf]
        %v4628 = vld [vmem:[#allocation6 + $0xc] sm:$0xf]
        %v4629 = vld [vmem:[#allocation6 + $0x10] sm:$0xf]
        %v4630 = vld [vmem:[#allocation6 + $0x14] sm:$0xf]
        %v4631 = vld [vmem:[#allocation6 + $0x18] sm:$0xf]
        %v4632 = vld [vmem:[#allocation6 + $0x1c] sm:$0xf]
        %v4633 = vld [vmem:[#allocation6 + $0x20] sm:$0xf]
        %v4634 = vld [vmem:[#allocation6 + $0x24] sm:$0xf]
        %v4635 = vld [vmem:[#allocation6 + $0x28] sm:$0xf]
        %v4636 = vld [vmem:[#allocation6 + $0x2c] sm:$0xf]
        %v4637 = vld [vmem:[#allocation6 + $0x30] sm:$0xf]
        %v4638 = vld [vmem:[#allocation6 + $0x34] sm:$0xf]
        %v4639 = vld [vmem:[#allocation6 + $0x38] sm:$0xf]
        %v4640 = vld [vmem:[#allocation6 + $0x3c] sm:$0xf]
        %v4641 = vld [vmem:[#allocation2 + $0x4] sm:$0x1]
        %v4642 = vld [vmem:[#allocation2 + $0xc] sm:$0x1]
        %v4643 = vld [vmem:[#allocation2 + $0x14] sm:$0x1]
        %v4644 = vld [vmem:[#allocation2 + $0x1c] sm:$0x1]
        %v4645 = vld [vmem:[#allocation2 + $0x24] sm:$0x1]
        %v4646 = vld [vmem:[#allocation2 + $0x2c] sm:$0x1]
        %v4647 = vld [vmem:[#allocation2 + $0x34] sm:$0x1]
        %v4648 = vld [vmem:[#allocation2 + $0x3c] sm:$0x1]
        %v4650 = vshrl.u32 %v4617, 16
        %v4652 = vrot.slane %v4650, 4
        %v4653 = vshll.u32 %v4617, 16
        %v4655 = vrot.slane %v4653, 5
        %v4656 = vor.u32 %v4652, %v4655
        %v4657 = vrot.slane %v4656, 4
        %v4659 = vshll.u32 %v4641, 16
        %v4661 = vrot.slane %v4659, 5
        %v4662 = vsel %vm1723, %v4657, %v4661
        %v4664 = vshrl.u32 %v4618, 16
        %v4666 = vrot.slane %v4664, 4
        %v4667 = vshll.u32 %v4618, 16
        %v4669 = vrot.slane %v4667, 5
        %v4670 = vor.u32 %v4666, %v4669
        %v4671 = vrot.slane %v4670, 4
        %v4673 = vshll.u32 %v4642, 16
        %v4675 = vrot.slane %v4673, 5
        %v4676 = vsel %vm1723, %v4671, %v4675
        %v4678 = vshrl.u32 %v4619, 16
        %v4680 = vrot.slane %v4678, 4
        %v4681 = vshll.u32 %v4619, 16
        %v4683 = vrot.slane %v4681, 5
        %v4684 = vor.u32 %v4680, %v4683
        %v4685 = vrot.slane %v4684, 4
        %v4687 = vshll.u32 %v4643, 16
        %v4689 = vrot.slane %v4687, 5
        %v4690 = vsel %vm1723, %v4685, %v4689
        %v4692 = vshrl.u32 %v4620, 16
        %v4694 = vrot.slane %v4692, 4
        %v4695 = vshll.u32 %v4620, 16
        %v4697 = vrot.slane %v4695, 5
        %v4698 = vor.u32 %v4694, %v4697
        %v4699 = vrot.slane %v4698, 4
        %v4701 = vshll.u32 %v4644, 16
        %v4703 = vrot.slane %v4701, 5
        %v4704 = vsel %vm1723, %v4699, %v4703
        %v4706 = vshrl.u32 %v4621, 16
        %v4708 = vrot.slane %v4706, 4
        %v4709 = vshll.u32 %v4621, 16
        %v4711 = vrot.slane %v4709, 5
        %v4712 = vor.u32 %v4708, %v4711
        %v4713 = vrot.slane %v4712, 4
        %v4715 = vshll.u32 %v4645, 16
        %v4717 = vrot.slane %v4715, 5
        %v4718 = vsel %vm1723, %v4713, %v4717
        %v4720 = vshrl.u32 %v4622, 16
        %v4722 = vrot.slane %v4720, 4
        %v4723 = vshll.u32 %v4622, 16
        %v4725 = vrot.slane %v4723, 5
        %v4726 = vor.u32 %v4722, %v4725
        %v4727 = vrot.slane %v4726, 4
        %v4729 = vshll.u32 %v4646, 16
        %v4731 = vrot.slane %v4729, 5
        %v4732 = vsel %vm1723, %v4727, %v4731
        %v4734 = vshrl.u32 %v4623, 16
        %v4736 = vrot.slane %v4734, 4
        %v4737 = vshll.u32 %v4623, 16
        %v4739 = vrot.slane %v4737, 5
        %v4740 = vor.u32 %v4736, %v4739
        %v4741 = vrot.slane %v4740, 4
        %v4743 = vshll.u32 %v4647, 16
        %v4745 = vrot.slane %v4743, 5
        %v4746 = vsel %vm1723, %v4741, %v4745
        %v4748 = vshrl.u32 %v4624, 16
        %v4750 = vrot.slane %v4748, 4
        %v4751 = vshll.u32 %v4624, 16
        %v4753 = vrot.slane %v4751, 5
        %v4754 = vor.u32 %v4750, %v4753
        %v4755 = vrot.slane %v4754, 4
        %v4757 = vshll.u32 %v4648, 16
        %v4759 = vrot.slane %v4757, 5
        %v4760 = vsel %vm1723, %v4755, %v4759
        %v4761 = vld [vmem:[#allocation6 + $0x40] sm:$0xf]
        %v4762 = vld [vmem:[#allocation6 + $0x44] sm:$0xf]
        %v4763 = vld [vmem:[#allocation6 + $0x48] sm:$0xf]
        %v4764 = vld [vmem:[#allocation6 + $0x4c] sm:$0xf]
        %v4765 = vld [vmem:[#allocation6 + $0x50] sm:$0xf]
        %v4766 = vld [vmem:[#allocation6 + $0x54] sm:$0xf]
        %v4767 = vld [vmem:[#allocation6 + $0x58] sm:$0xf]
        %v4768 = vld [vmem:[#allocation6 + $0x5c] sm:$0xf]
        %v4769 = vld [vmem:[#allocation6 + $0x60] sm:$0xf]
        %v4770 = vld [vmem:[#allocation6 + $0x64] sm:$0xf]
        %v4771 = vld [vmem:[#allocation6 + $0x68] sm:$0xf]
        %v4772 = vld [vmem:[#allocation6 + $0x6c] sm:$0xf]
        %v4773 = vld [vmem:[#allocation6 + $0x70] sm:$0xf]
        %v4774 = vld [vmem:[#allocation6 + $0x74] sm:$0xf]
        %v4775 = vld [vmem:[#allocation6 + $0x78] sm:$0xf]
        %v4776 = vld [vmem:[#allocation6 + $0x7c] sm:$0xf]
        %v4777 = vunpack.c.l.b16 %v4662
        %v4778 = vunpack.c.l.b16 %v4676
        %v4779 = vunpack.c.l.b16 %v4690
        %v4780 = vunpack.c.l.b16 %v4704
        %v4781 = vunpack.c.l.b16 %v4718
        %v4782 = vunpack.c.l.b16 %v4732
        %v4783 = vunpack.c.l.b16 %v4746
        %v4784 = vunpack.c.l.b16 %v4760
        %v4785 = vpack.c.b16 %v4778, %v4777
        %v4786 = vpack.c.b16 %v4780, %v4779
        %v4787 = vpack.c.b16 %v4782, %v4781
        %v4788 = vpack.c.b16 %v4784, %v4783
        %v4809 = vunpack.c.l.b16 %v4761
        %v4810 = vunpack.c.l.b16 %v4762
        %v4811 = vunpack.c.l.b16 %v4763
        %v4812 = vunpack.c.l.b16 %v4764
        %v4813 = vunpack.c.l.b16 %v4765
        %v4814 = vunpack.c.l.b16 %v4766
        %v4815 = vunpack.c.l.b16 %v4767
        %v4816 = vunpack.c.l.b16 %v4768
        %v4817 = vunpack.c.l.b16 %v4769
        %v4818 = vunpack.c.l.b16 %v4770
        %v4819 = vunpack.c.l.b16 %v4771
        %v4820 = vunpack.c.l.b16 %v4772
        %v4821 = vunpack.c.l.b16 %v4773
        %v4822 = vunpack.c.l.b16 %v4774
        %v4823 = vunpack.c.l.b16 %v4775
        %v4824 = vunpack.c.l.b16 %v4776
        %v4825 = vpack.c.b16 %v4810, %v4809
        %v4826 = vpack.c.b16 %v4812, %v4811
        %v4827 = vpack.c.b16 %v4814, %v4813
        %v4828 = vpack.c.b16 %v4816, %v4815
        %v4829 = vpack.c.b16 %v4818, %v4817
        %v4830 = vpack.c.b16 %v4820, %v4819
        %v4831 = vpack.c.b16 %v4822, %v4821
        %v4832 = vpack.c.b16 %v4824, %v4823
        %4841 = vmatpush.bf16.msra.mxu0 %v4832
        %4842 = vmatpush.bf16.msra.mxu0 %v4831
        %4843 = vmatpush.bf16.msra.mxu0 %v4830
        %4844 = vmatpush.bf16.msra.mxu0 %v4829
        %4845 = vmatpush.bf16.msra.mxu0 %v4828
        %4846 = vmatpush.bf16.msra.mxu0 %v4827
        %4847 = vmatpush.bf16.msra.mxu0 %v4826
        %4848 = vmatpush.bf16.msra.mxu0 %v4825
        %4849 = vmatmul.bf16.gmra.mxu0 %v4785
        %v4850 = vpop.f32.mrf.mxu0
        %v4851 = vadd.f32 0.0, %v4850
        %v4852 = vpop.f32.mrf.mxu0
        %v4853 = vadd.f32 0.0, %v4852
        %4854 = vmatmul.bf16.gmra.mxu0 %v4786
        %v4855 = vpop.f32.mrf.mxu0
        %v4856 = vadd.f32 0.0, %v4855
        %v4857 = vpop.f32.mrf.mxu0
        %v4858 = vadd.f32 0.0, %v4857
        %4859 = vmatmul.bf16.gmra.mxu0 %v4787
        %v4860 = vpop.f32.mrf.mxu0
        %v4861 = vadd.f32 0.0, %v4860
        %v4862 = vpop.f32.mrf.mxu0
        %v4863 = vadd.f32 0.0, %v4862
        %4864 = vmatmul.bf16.gmra.mxu0 %v4788
        %v4865 = vpop.f32.mrf.mxu0
        %v4866 = vadd.f32 0.0, %v4865
        %v4867 = vpop.f32.mrf.mxu0
        %v4868 = vadd.f32 0.0, %v4867
        %4869 = vdwg.mxu0
        %v4878 = vunpack.c.l.b16 %v4617
        %v4879 = vunpack.c.l.b16 %v4618
        %v4880 = vunpack.c.l.b16 %v4619
        %v4881 = vunpack.c.l.b16 %v4620
        %v4882 = vunpack.c.l.b16 %v4621
        %v4883 = vunpack.c.l.b16 %v4622
        %v4884 = vunpack.c.l.b16 %v4623
        %v4885 = vunpack.c.l.b16 %v4624
        %v4886 = vpack.c.b16 %v4879, %v4878
        %v4887 = vpack.c.b16 %v4881, %v4880
        %v4888 = vpack.c.b16 %v4883, %v4882
        %v4889 = vpack.c.b16 %v4885, %v4884
        %v4910 = vunpack.c.l.b16 %v4625
        %v4911 = vunpack.c.l.b16 %v4626
        %v4912 = vunpack.c.l.b16 %v4627
        %v4913 = vunpack.c.l.b16 %v4628
        %v4914 = vunpack.c.l.b16 %v4629
        %v4915 = vunpack.c.l.b16 %v4630
        %v4916 = vunpack.c.l.b16 %v4631
        %v4917 = vunpack.c.l.b16 %v4632
        %v4918 = vunpack.c.l.b16 %v4633
        %v4919 = vunpack.c.l.b16 %v4634
        %v4920 = vunpack.c.l.b16 %v4635
        %v4921 = vunpack.c.l.b16 %v4636
        %v4922 = vunpack.c.l.b16 %v4637
        %v4923 = vunpack.c.l.b16 %v4638
        %v4924 = vunpack.c.l.b16 %v4639
        %v4925 = vunpack.c.l.b16 %v4640
        %v4926 = vpack.c.b16 %v4911, %v4910
        %v4927 = vpack.c.b16 %v4913, %v4912
        %v4928 = vpack.c.b16 %v4915, %v4914
        %v4929 = vpack.c.b16 %v4917, %v4916
        %v4930 = vpack.c.b16 %v4919, %v4918
        %v4931 = vpack.c.b16 %v4921, %v4920
        %v4932 = vpack.c.b16 %v4923, %v4922
        %v4933 = vpack.c.b16 %v4925, %v4924
        %4942 = vmatpush.bf16.msra.mxu0 %v4933
        %4943 = vmatpush.bf16.msra.mxu0 %v4932
        %4944 = vmatpush.bf16.msra.mxu0 %v4931
        %4945 = vmatpush.bf16.msra.mxu0 %v4930
        %4946 = vmatpush.bf16.msra.mxu0 %v4929
        %4947 = vmatpush.bf16.msra.mxu0 %v4928
        %4948 = vmatpush.bf16.msra.mxu0 %v4927
        %4949 = vmatpush.bf16.msra.mxu0 %v4926
        %4950 = vmatmul.bf16.gmra.mxu0 %v4886
        %v4951 = vpop.f32.mrf.mxu0
        %v4952 = vadd.f32 %v4851, %v4951
        %v4953 = vpop.f32.mrf.mxu0
        %v4954 = vadd.f32 %v4853, %v4953
        %4955 = vmatmul.bf16.gmra.mxu0 %v4887
        %v4956 = vpop.f32.mrf.mxu0
        %v4957 = vadd.f32 %v4856, %v4956
        %v4958 = vpop.f32.mrf.mxu0
        %v4959 = vadd.f32 %v4858, %v4958
        %4960 = vmatmul.bf16.gmra.mxu0 %v4888
        %v4961 = vpop.f32.mrf.mxu0
        %v4962 = vadd.f32 %v4861, %v4961
        %v4963 = vpop.f32.mrf.mxu0
        %v4964 = vadd.f32 %v4863, %v4963
        %4965 = vmatmul.bf16.gmra.mxu0 %v4889
        %v4966 = vpop.f32.mrf.mxu0
        %v4967 = vadd.f32 %v4866, %v4966
        %v4968 = vpop.f32.mrf.mxu0
        %v4969 = vadd.f32 %v4868, %v4968
        %4970 = vdwg.mxu0
        %v4971 = vld [vmem:[#allocation2] sm:$0xe]
        %v4972 = vld [vmem:[#allocation2 + $0x8] sm:$0xe]
        %v4973 = vld [vmem:[#allocation2 + $0x10] sm:$0xe]
        %v4974 = vld [vmem:[#allocation2 + $0x18] sm:$0xe]
        %v4975 = vld [vmem:[#allocation2 + $0x20] sm:$0xe]
        %v4976 = vld [vmem:[#allocation2 + $0x28] sm:$0xe]
        %v4977 = vld [vmem:[#allocation2 + $0x30] sm:$0xe]
        %v4978 = vld [vmem:[#allocation2 + $0x38] sm:$0xe]
        %v4995 = vrot.slane %v4971, 5
        %v4996 = vrot.slane %v4995, 4
        %v4997 = vrot.slane %v4641, 5
        %v4998 = vsel %vm2072, %v4996, %v4997
        %v4999 = vrot.slane %v4972, 5
        %v5000 = vrot.slane %v4999, 4
        %v5001 = vrot.slane %v4642, 5
        %v5002 = vsel %vm2072, %v5000, %v5001
        %v5003 = vrot.slane %v4973, 5
        %v5004 = vrot.slane %v5003, 4
        %v5005 = vrot.slane %v4643, 5
        %v5006 = vsel %vm2072, %v5004, %v5005
        %v5007 = vrot.slane %v4974, 5
        %v5008 = vrot.slane %v5007, 4
        %v5009 = vrot.slane %v4644, 5
        %v5010 = vsel %vm2072, %v5008, %v5009
        %v5011 = vrot.slane %v4975, 5
        %v5012 = vrot.slane %v5011, 4
        %v5013 = vrot.slane %v4645, 5
        %v5014 = vsel %vm2072, %v5012, %v5013
        %v5015 = vrot.slane %v4976, 5
        %v5016 = vrot.slane %v5015, 4
        %v5017 = vrot.slane %v4646, 5
        %v5018 = vsel %vm2072, %v5016, %v5017
        %v5019 = vrot.slane %v4977, 5
        %v5020 = vrot.slane %v5019, 4
        %v5021 = vrot.slane %v4647, 5
        %v5022 = vsel %vm2072, %v5020, %v5021
        %v5023 = vrot.slane %v4978, 5
        %v5024 = vrot.slane %v5023, 4
        %v5025 = vrot.slane %v4648, 5
        %v5026 = vsel %vm2072, %v5024, %v5025
        %v5027 = vld [vmem:[#allocation6 + $0x80] sm:$0xf]
        %v5028 = vld [vmem:[#allocation6 + $0x84] sm:$0xf]
        %v5029 = vld [vmem:[#allocation6 + $0x88] sm:$0xf]
        %v5030 = vld [vmem:[#allocation6 + $0x8c] sm:$0xf]
        %v5031 = vld [vmem:[#allocation6 + $0x90] sm:$0xf]
        %v5032 = vld [vmem:[#allocation6 + $0x94] sm:$0xf]
        %v5033 = vld [vmem:[#allocation6 + $0x98] sm:$0xf]
        %v5034 = vld [vmem:[#allocation6 + $0x9c] sm:$0xf]
        %v5035 = vld [vmem:[#allocation6 + $0xa0] sm:$0xf]
        %v5036 = vld [vmem:[#allocation6 + $0xa4] sm:$0xf]
        %v5037 = vld [vmem:[#allocation6 + $0xa8] sm:$0xf]
        %v5038 = vld [vmem:[#allocation6 + $0xac] sm:$0xf]
        %v5039 = vld [vmem:[#allocation6 + $0xb0] sm:$0xf]
        %v5040 = vld [vmem:[#allocation6 + $0xb4] sm:$0xf]
        %v5041 = vld [vmem:[#allocation6 + $0xb8] sm:$0xf]
        %v5042 = vld [vmem:[#allocation6 + $0xbc] sm:$0xf]
        %v5043 = vunpack.c.l.b16 %v4998
        %v5044 = vunpack.c.l.b16 %v5002
        %v5045 = vunpack.c.l.b16 %v5006
        %v5046 = vunpack.c.l.b16 %v5010
        %v5047 = vunpack.c.l.b16 %v5014
        %v5048 = vunpack.c.l.b16 %v5018
        %v5049 = vunpack.c.l.b16 %v5022
        %v5050 = vunpack.c.l.b16 %v5026
        %v5051 = vpack.c.b16 %v5044, %v5043
        %v5052 = vpack.c.b16 %v5046, %v5045
        %v5053 = vpack.c.b16 %v5048, %v5047
        %v5054 = vpack.c.b16 %v5050, %v5049
        %v5075 = vunpack.c.l.b16 %v5027
        %v5076 = vunpack.c.l.b16 %v5028
        %v5077 = vunpack.c.l.b16 %v5029
        %v5078 = vunpack.c.l.b16 %v5030
        %v5079 = vunpack.c.l.b16 %v5031
        %v5080 = vunpack.c.l.b16 %v5032
        %v5081 = vunpack.c.l.b16 %v5033
        %v5082 = vunpack.c.l.b16 %v5034
        %v5083 = vunpack.c.l.b16 %v5035
        %v5084 = vunpack.c.l.b16 %v5036
        %v5085 = vunpack.c.l.b16 %v5037
        %v5086 = vunpack.c.l.b16 %v5038
        %v5087 = vunpack.c.l.b16 %v5039
        %v5088 = vunpack.c.l.b16 %v5040
        %v5089 = vunpack.c.l.b16 %v5041
        %v5090 = vunpack.c.l.b16 %v5042
        %v5091 = vpack.c.b16 %v5076, %v5075
        %v5092 = vpack.c.b16 %v5078, %v5077
        %v5093 = vpack.c.b16 %v5080, %v5079
        %v5094 = vpack.c.b16 %v5082, %v5081
        %v5095 = vpack.c.b16 %v5084, %v5083
        %v5096 = vpack.c.b16 %v5086, %v5085
        %v5097 = vpack.c.b16 %v5088, %v5087
        %v5098 = vpack.c.b16 %v5090, %v5089
        %5107 = vmatpush.bf16.msra.mxu0 %v5098
        %5108 = vmatpush.bf16.msra.mxu0 %v5097
        %5109 = vmatpush.bf16.msra.mxu0 %v5096
        %5110 = vmatpush.bf16.msra.mxu0 %v5095
        %5111 = vmatpush.bf16.msra.mxu0 %v5094
        %5112 = vmatpush.bf16.msra.mxu0 %v5093
        %5113 = vmatpush.bf16.msra.mxu0 %v5092
        %5114 = vmatpush.bf16.msra.mxu0 %v5091
        %5115 = vmatmul.bf16.gmra.mxu0 %v5051
        %v5116 = vpop.f32.mrf.mxu0
        %v5117 = vadd.f32 0.0, %v5116
        %v5118 = vpop.f32.mrf.mxu0
        %v5119 = vadd.f32 0.0, %v5118
        %5120 = vmatmul.bf16.gmra.mxu0 %v5052
        %v5121 = vpop.f32.mrf.mxu0
        %v5122 = vadd.f32 0.0, %v5121
        %v5123 = vpop.f32.mrf.mxu0
        %v5124 = vadd.f32 0.0, %v5123
        %5125 = vmatmul.bf16.gmra.mxu0 %v5053
        %v5126 = vpop.f32.mrf.mxu0
        %v5127 = vadd.f32 0.0, %v5126
        %v5128 = vpop.f32.mrf.mxu0
        %v5129 = vadd.f32 0.0, %v5128
        %5130 = vmatmul.bf16.gmra.mxu0 %v5054
        %v5131 = vpop.f32.mrf.mxu0
        %v5132 = vadd.f32 0.0, %v5131
        %v5133 = vpop.f32.mrf.mxu0
        %v5134 = vadd.f32 0.0, %v5133
        %5135 = vdwg.mxu0
        %v5136 = vadd.f32 %v4952, %v5117
        %v5137 = vadd.f32 %v4954, %v5119
        %v5138 = vadd.f32 %v4957, %v5122
        %v5139 = vadd.f32 %v4959, %v5124
        %v5140 = vadd.f32 %v4962, %v5127
        %v5141 = vadd.f32 %v4964, %v5129
        %v5142 = vadd.f32 %v4967, %v5132
        %v5143 = vadd.f32 %v4969, %v5134
        %v5144 = vld [vmem:[%s387] sm:$0xf]
        %v5145 = vld [vmem:[%s387 + $0x8] sm:$0xf]
        %v5146 = vld [vmem:[%s387 + $0x10] sm:$0xf]
        %v5147 = vld [vmem:[%s387 + $0x18] sm:$0xf]
        %v5148 = vld [vmem:[%s387 + $0x20] sm:$0xf]
        %v5149 = vld [vmem:[%s387 + $0x28] sm:$0xf]
        %v5150 = vld [vmem:[%s387 + $0x30] sm:$0xf]
        %v5151 = vld [vmem:[%s387 + $0x38] sm:$0xf]
        %v5152 = vld [vmem:[#allocation6 + $0xc0] sm:$0xf]
        %v5153 = vld [vmem:[#allocation6 + $0xc4] sm:$0xf]
        %v5154 = vld [vmem:[#allocation6 + $0xc8] sm:$0xf]
        %v5155 = vld [vmem:[#allocation6 + $0xcc] sm:$0xf]
        %v5156 = vld [vmem:[#allocation6 + $0xd0] sm:$0xf]
        %v5157 = vld [vmem:[#allocation6 + $0xd4] sm:$0xf]
        %v5158 = vld [vmem:[#allocation6 + $0xd8] sm:$0xf]
        %v5159 = vld [vmem:[#allocation6 + $0xdc] sm:$0xf]
        %v5160 = vld [vmem:[#allocation6 + $0xe0] sm:$0xf]
        %v5161 = vld [vmem:[#allocation6 + $0xe4] sm:$0xf]
        %v5162 = vld [vmem:[#allocation6 + $0xe8] sm:$0xf]
        %v5163 = vld [vmem:[#allocation6 + $0xec] sm:$0xf]
        %v5164 = vld [vmem:[#allocation6 + $0xf0] sm:$0xf]
        %v5165 = vld [vmem:[#allocation6 + $0xf4] sm:$0xf]
        %v5166 = vld [vmem:[#allocation6 + $0xf8] sm:$0xf]
        %v5167 = vld [vmem:[#allocation6 + $0xfc] sm:$0xf]
        %v5176 = vunpack.c.l.b16 %v5144
        %v5177 = vunpack.c.l.b16 %v5145
        %v5178 = vunpack.c.l.b16 %v5146
        %v5179 = vunpack.c.l.b16 %v5147
        %v5180 = vunpack.c.l.b16 %v5148
        %v5181 = vunpack.c.l.b16 %v5149
        %v5182 = vunpack.c.l.b16 %v5150
        %v5183 = vunpack.c.l.b16 %v5151
        %v5184 = vpack.c.b16 %v5177, %v5176
        %v5185 = vpack.c.b16 %v5179, %v5178
        %v5186 = vpack.c.b16 %v5181, %v5180
        %v5187 = vpack.c.b16 %v5183, %v5182
        %v5208 = vunpack.c.l.b16 %v5152
        %v5209 = vunpack.c.l.b16 %v5153
        %v5210 = vunpack.c.l.b16 %v5154
        %v5211 = vunpack.c.l.b16 %v5155
        %v5212 = vunpack.c.l.b16 %v5156
        %v5213 = vunpack.c.l.b16 %v5157
        %v5214 = vunpack.c.l.b16 %v5158
        %v5215 = vunpack.c.l.b16 %v5159
        %v5216 = vunpack.c.l.b16 %v5160
        %v5217 = vunpack.c.l.b16 %v5161
        %v5218 = vunpack.c.l.b16 %v5162
        %v5219 = vunpack.c.l.b16 %v5163
        %v5220 = vunpack.c.l.b16 %v5164
        %v5221 = vunpack.c.l.b16 %v5165
        %v5222 = vunpack.c.l.b16 %v5166
        %v5223 = vunpack.c.l.b16 %v5167
        %v5224 = vpack.c.b16 %v5209, %v5208
        %v5225 = vpack.c.b16 %v5211, %v5210
        %v5226 = vpack.c.b16 %v5213, %v5212
        %v5227 = vpack.c.b16 %v5215, %v5214
        %v5228 = vpack.c.b16 %v5217, %v5216
        %v5229 = vpack.c.b16 %v5219, %v5218
        %v5230 = vpack.c.b16 %v5221, %v5220
        %v5231 = vpack.c.b16 %v5223, %v5222
        %5240 = vmatpush.bf16.msra.mxu0 %v5231
        %5241 = vmatpush.bf16.msra.mxu0 %v5230
        %5242 = vmatpush.bf16.msra.mxu0 %v5229
        %5243 = vmatpush.bf16.msra.mxu0 %v5228
        %5244 = vmatpush.bf16.msra.mxu0 %v5227
        %5245 = vmatpush.bf16.msra.mxu0 %v5226
        %5246 = vmatpush.bf16.msra.mxu0 %v5225
        %5247 = vmatpush.bf16.msra.mxu0 %v5224
        %5248 = vmatmul.bf16.gmra.mxu0 %v5184
        %v5249 = vpop.f32.mrf.mxu0
        %v5250 = vadd.f32 0.0, %v5249
        %v5251 = vpop.f32.mrf.mxu0
        %v5252 = vadd.f32 0.0, %v5251
        %5253 = vmatmul.bf16.gmra.mxu0 %v5185
        %v5254 = vpop.f32.mrf.mxu0
        %v5255 = vadd.f32 0.0, %v5254
        %v5256 = vpop.f32.mrf.mxu0
        %v5257 = vadd.f32 0.0, %v5256
        %5258 = vmatmul.bf16.gmra.mxu0 %v5186
        %v5259 = vpop.f32.mrf.mxu0
        %v5260 = vadd.f32 0.0, %v5259
        %v5261 = vpop.f32.mrf.mxu0
        %v5262 = vadd.f32 0.0, %v5261
        %5263 = vmatmul.bf16.gmra.mxu0 %v5187
        %v5264 = vpop.f32.mrf.mxu0
        %v5265 = vadd.f32 0.0, %v5264
        %v5266 = vpop.f32.mrf.mxu0
        %v5267 = vadd.f32 0.0, %v5266
        %5268 = vdwg.mxu0
        %v5269 = vadd.f32 %v5136, %v5250
        %v5270 = vadd.f32 %v5137, %v5252
        %v5271 = vadd.f32 %v5138, %v5255
        %v5272 = vadd.f32 %v5139, %v5257
        %v5273 = vadd.f32 %v5140, %v5260
        %v5274 = vadd.f32 %v5141, %v5262
        %v5275 = vadd.f32 %v5142, %v5265
        %v5276 = vadd.f32 %v5143, %v5267
        %v5277 = vld [vmem:[%s387] sm:$0xf]
        %v5278 = vld [vmem:[%s387 + $0x4] sm:$0x1]
        %v5279 = vld [vmem:[%s387 + $0x8] sm:$0xf]
        %v5280 = vld [vmem:[%s387 + $0xc] sm:$0x1]
        %v5281 = vld [vmem:[%s387 + $0x10] sm:$0xf]
        %v5282 = vld [vmem:[%s387 + $0x14] sm:$0x1]
        %v5283 = vld [vmem:[%s387 + $0x18] sm:$0xf]
        %v5284 = vld [vmem:[%s387 + $0x1c] sm:$0x1]
        %v5285 = vld [vmem:[%s387 + $0x20] sm:$0xf]
        %v5286 = vld [vmem:[%s387 + $0x24] sm:$0x1]
        %v5287 = vld [vmem:[%s387 + $0x28] sm:$0xf]
        %v5288 = vld [vmem:[%s387 + $0x2c] sm:$0x1]
        %v5289 = vld [vmem:[%s387 + $0x30] sm:$0xf]
        %v5290 = vld [vmem:[%s387 + $0x34] sm:$0x1]
        %v5291 = vld [vmem:[%s387 + $0x38] sm:$0xf]
        %v5292 = vld [vmem:[%s387 + $0x3c] sm:$0x1]
        %v5294 = vshrl.u32 %v5277, 16
        %v5296 = vrot.slane %v5294, 4
        %v5297 = vshll.u32 %v5277, 16
        %v5299 = vrot.slane %v5297, 5
        %v5300 = vor.u32 %v5296, %v5299
        %v5301 = vrot.slane %v5300, 4
        %v5303 = vshll.u32 %v5278, 16
        %v5305 = vrot.slane %v5303, 5
        %v5306 = vsel %vm1723, %v5301, %v5305
        %v5308 = vshrl.u32 %v5279, 16
        %v5310 = vrot.slane %v5308, 4
        %v5311 = vshll.u32 %v5279, 16
        %v5313 = vrot.slane %v5311, 5
        %v5314 = vor.u32 %v5310, %v5313
        %v5315 = vrot.slane %v5314, 4
        %v5317 = vshll.u32 %v5280, 16
        %v5319 = vrot.slane %v5317, 5
        %v5320 = vsel %vm1723, %v5315, %v5319
        %v5322 = vshrl.u32 %v5281, 16
        %v5324 = vrot.slane %v5322, 4
        %v5325 = vshll.u32 %v5281, 16
        %v5327 = vrot.slane %v5325, 5
        %v5328 = vor.u32 %v5324, %v5327
        %v5329 = vrot.slane %v5328, 4
        %v5331 = vshll.u32 %v5282, 16
        %v5333 = vrot.slane %v5331, 5
        %v5334 = vsel %vm1723, %v5329, %v5333
        %v5336 = vshrl.u32 %v5283, 16
        %v5338 = vrot.slane %v5336, 4
        %v5339 = vshll.u32 %v5283, 16
        %v5341 = vrot.slane %v5339, 5
        %v5342 = vor.u32 %v5338, %v5341
        %v5343 = vrot.slane %v5342, 4
        %v5345 = vshll.u32 %v5284, 16
        %v5347 = vrot.slane %v5345, 5
        %v5348 = vsel %vm1723, %v5343, %v5347
        %v5350 = vshrl.u32 %v5285, 16
        %v5352 = vrot.slane %v5350, 4
        %v5353 = vshll.u32 %v5285, 16
        %v5355 = vrot.slane %v5353, 5
        %v5356 = vor.u32 %v5352, %v5355
        %v5357 = vrot.slane %v5356, 4
        %v5359 = vshll.u32 %v5286, 16
        %v5361 = vrot.slane %v5359, 5
        %v5362 = vsel %vm1723, %v5357, %v5361
        %v5364 = vshrl.u32 %v5287, 16
        %v5366 = vrot.slane %v5364, 4
        %v5367 = vshll.u32 %v5287, 16
        %v5369 = vrot.slane %v5367, 5
        %v5370 = vor.u32 %v5366, %v5369
        %v5371 = vrot.slane %v5370, 4
        %v5373 = vshll.u32 %v5288, 16
        %v5375 = vrot.slane %v5373, 5
        %v5376 = vsel %vm1723, %v5371, %v5375
        %v5378 = vshrl.u32 %v5289, 16
        %v5380 = vrot.slane %v5378, 4
        %v5381 = vshll.u32 %v5289, 16
        %v5383 = vrot.slane %v5381, 5
        %v5384 = vor.u32 %v5380, %v5383
        %v5385 = vrot.slane %v5384, 4
        %v5387 = vshll.u32 %v5290, 16
        %v5389 = vrot.slane %v5387, 5
        %v5390 = vsel %vm1723, %v5385, %v5389
        %v5392 = vshrl.u32 %v5291, 16
        %v5394 = vrot.slane %v5392, 4
        %v5395 = vshll.u32 %v5291, 16
        %v5397 = vrot.slane %v5395, 5
        %v5398 = vor.u32 %v5394, %v5397
        %v5399 = vrot.slane %v5398, 4
        %v5401 = vshll.u32 %v5292, 16
        %v5403 = vrot.slane %v5401, 5
        %v5404 = vsel %vm1723, %v5399, %v5403
        %v5405 = vld [vmem:[#allocation6 + $0x100] sm:$0xf]
        %v5406 = vld [vmem:[#allocation6 + $0x104] sm:$0xf]
        %v5407 = vld [vmem:[#allocation6 + $0x108] sm:$0xf]
        %v5408 = vld [vmem:[#allocation6 + $0x10c] sm:$0xf]
        %v5409 = vld [vmem:[#allocation6 + $0x110] sm:$0xf]
        %v5410 = vld [vmem:[#allocation6 + $0x114] sm:$0xf]
        %v5411 = vld [vmem:[#allocation6 + $0x118] sm:$0xf]
        %v5412 = vld [vmem:[#allocation6 + $0x11c] sm:$0xf]
        %v5413 = vld [vmem:[#allocation6 + $0x120] sm:$0xf]
        %v5414 = vld [vmem:[#allocation6 + $0x124] sm:$0xf]
        %v5415 = vld [vmem:[#allocation6 + $0x128] sm:$0xf]
        %v5416 = vld [vmem:[#allocation6 + $0x12c] sm:$0xf]
        %v5417 = vld [vmem:[#allocation6 + $0x130] sm:$0xf]
        %v5418 = vld [vmem:[#allocation6 + $0x134] sm:$0xf]
        %v5419 = vld [vmem:[#allocation6 + $0x138] sm:$0xf]
        %v5420 = vld [vmem:[#allocation6 + $0x13c] sm:$0xf]
        %v5421 = vunpack.c.l.b16 %v5306
        %v5422 = vunpack.c.l.b16 %v5320
        %v5423 = vunpack.c.l.b16 %v5334
        %v5424 = vunpack.c.l.b16 %v5348
        %v5425 = vunpack.c.l.b16 %v5362
        %v5426 = vunpack.c.l.b16 %v5376
        %v5427 = vunpack.c.l.b16 %v5390
        %v5428 = vunpack.c.l.b16 %v5404
        %v5429 = vpack.c.b16 %v5422, %v5421
        %v5430 = vpack.c.b16 %v5424, %v5423
        %v5431 = vpack.c.b16 %v5426, %v5425
        %v5432 = vpack.c.b16 %v5428, %v5427
        %v5453 = vunpack.c.l.b16 %v5405
        %v5454 = vunpack.c.l.b16 %v5406
        %v5455 = vunpack.c.l.b16 %v5407
        %v5456 = vunpack.c.l.b16 %v5408
        %v5457 = vunpack.c.l.b16 %v5409
        %v5458 = vunpack.c.l.b16 %v5410
        %v5459 = vunpack.c.l.b16 %v5411
        %v5460 = vunpack.c.l.b16 %v5412
        %v5461 = vunpack.c.l.b16 %v5413
        %v5462 = vunpack.c.l.b16 %v5414
        %v5463 = vunpack.c.l.b16 %v5415
        %v5464 = vunpack.c.l.b16 %v5416
        %v5465 = vunpack.c.l.b16 %v5417
        %v5466 = vunpack.c.l.b16 %v5418
        %v5467 = vunpack.c.l.b16 %v5419
        %v5468 = vunpack.c.l.b16 %v5420
        %v5469 = vpack.c.b16 %v5454, %v5453
        %v5470 = vpack.c.b16 %v5456, %v5455
        %v5471 = vpack.c.b16 %v5458, %v5457
        %v5472 = vpack.c.b16 %v5460, %v5459
        %v5473 = vpack.c.b16 %v5462, %v5461
        %v5474 = vpack.c.b16 %v5464, %v5463
        %v5475 = vpack.c.b16 %v5466, %v5465
        %v5476 = vpack.c.b16 %v5468, %v5467
        %5485 = vmatpush.bf16.msra.mxu0 %v5476
        %5486 = vmatpush.bf16.msra.mxu0 %v5475
        %5487 = vmatpush.bf16.msra.mxu0 %v5474
        %5488 = vmatpush.bf16.msra.mxu0 %v5473
        %5489 = vmatpush.bf16.msra.mxu0 %v5472
        %5490 = vmatpush.bf16.msra.mxu0 %v5471
        %5491 = vmatpush.bf16.msra.mxu0 %v5470
        %5492 = vmatpush.bf16.msra.mxu0 %v5469
        %5493 = vmatmul.bf16.gmra.mxu0 %v5429
        %v5494 = vpop.f32.mrf.mxu0
        %v5495 = vadd.f32 0.0, %v5494
        %v5496 = vpop.f32.mrf.mxu0
        %v5497 = vadd.f32 0.0, %v5496
        %5498 = vmatmul.bf16.gmra.mxu0 %v5430
        %v5499 = vpop.f32.mrf.mxu0
        %v5500 = vadd.f32 0.0, %v5499
        %v5501 = vpop.f32.mrf.mxu0
        %v5502 = vadd.f32 0.0, %v5501
        %5503 = vmatmul.bf16.gmra.mxu0 %v5431
        %v5504 = vpop.f32.mrf.mxu0
        %v5505 = vadd.f32 0.0, %v5504
        %v5506 = vpop.f32.mrf.mxu0
        %v5507 = vadd.f32 0.0, %v5506
        %5508 = vmatmul.bf16.gmra.mxu0 %v5432
        %v5509 = vpop.f32.mrf.mxu0
        %v5510 = vadd.f32 0.0, %v5509
        %v5511 = vpop.f32.mrf.mxu0
        %v5512 = vadd.f32 0.0, %v5511
        %5513 = vdwg.mxu0
        %v5514 = vadd.f32 %v5269, %v5495
        %v5515 = vadd.f32 %v5270, %v5497
        %v5516 = vadd.f32 %v5271, %v5500
        %v5517 = vadd.f32 %v5272, %v5502
        %v5518 = vadd.f32 %v5273, %v5505
        %v5519 = vadd.f32 %v5274, %v5507
        %v5520 = vadd.f32 %v5275, %v5510
        %v5521 = vadd.f32 %v5276, %v5512
        %v5522 = vld [vmem:[%s387] sm:$0xe]
        %v5523 = vld [vmem:[%s387 + $0x8] sm:$0xe]
        %v5524 = vld [vmem:[%s387 + $0x10] sm:$0xe]
        %v5525 = vld [vmem:[%s387 + $0x18] sm:$0xe]
        %v5526 = vld [vmem:[%s387 + $0x20] sm:$0xe]
        %v5527 = vld [vmem:[%s387 + $0x28] sm:$0xe]
        %v5528 = vld [vmem:[%s387 + $0x30] sm:$0xe]
        %v5529 = vld [vmem:[%s387 + $0x38] sm:$0xe]
        %v5546 = vrot.slane %v5522, 5
        %v5547 = vrot.slane %v5546, 4
        %v5548 = vrot.slane %v5278, 5
        %v5549 = vsel %vm2072, %v5547, %v5548
        %v5550 = vrot.slane %v5523, 5
        %v5551 = vrot.slane %v5550, 4
        %v5552 = vrot.slane %v5280, 5
        %v5553 = vsel %vm2072, %v5551, %v5552
        %v5554 = vrot.slane %v5524, 5
        %v5555 = vrot.slane %v5554, 4
        %v5556 = vrot.slane %v5282, 5
        %v5557 = vsel %vm2072, %v5555, %v5556
        %v5558 = vrot.slane %v5525, 5
        %v5559 = vrot.slane %v5558, 4
        %v5560 = vrot.slane %v5284, 5
        %v5561 = vsel %vm2072, %v5559, %v5560
        %v5562 = vrot.slane %v5526, 5
        %v5563 = vrot.slane %v5562, 4
        %v5564 = vrot.slane %v5286, 5
        %v5565 = vsel %vm2072, %v5563, %v5564
        %v5566 = vrot.slane %v5527, 5
        %v5567 = vrot.slane %v5566, 4
        %v5568 = vrot.slane %v5288, 5
        %v5569 = vsel %vm2072, %v5567, %v5568
        %v5570 = vrot.slane %v5528, 5
        %v5571 = vrot.slane %v5570, 4
        %v5572 = vrot.slane %v5290, 5
        %v5573 = vsel %vm2072, %v5571, %v5572
        %v5574 = vrot.slane %v5529, 5
        %v5575 = vrot.slane %v5574, 4
        %v5576 = vrot.slane %v5292, 5
        %v5577 = vsel %vm2072, %v5575, %v5576
        %v5578 = vld [vmem:[#allocation6 + $0x140] sm:$0xf]
        %v5579 = vld [vmem:[#allocation6 + $0x144] sm:$0xf]
        %v5580 = vld [vmem:[#allocation6 + $0x148] sm:$0xf]
        %v5581 = vld [vmem:[#allocation6 + $0x14c] sm:$0xf]
        %v5582 = vld [vmem:[#allocation6 + $0x150] sm:$0xf]
        %v5583 = vld [vmem:[#allocation6 + $0x154] sm:$0xf]
        %v5584 = vld [vmem:[#allocation6 + $0x158] sm:$0xf]
        %v5585 = vld [vmem:[#allocation6 + $0x15c] sm:$0xf]
        %v5586 = vld [vmem:[#allocation6 + $0x160] sm:$0xf]
        %v5587 = vld [vmem:[#allocation6 + $0x164] sm:$0xf]
        %v5588 = vld [vmem:[#allocation6 + $0x168] sm:$0xf]
        %v5589 = vld [vmem:[#allocation6 + $0x16c] sm:$0xf]
        %v5590 = vld [vmem:[#allocation6 + $0x170] sm:$0xf]
        %v5591 = vld [vmem:[#allocation6 + $0x174] sm:$0xf]
        %v5592 = vld [vmem:[#allocation6 + $0x178] sm:$0xf]
        %v5593 = vld [vmem:[#allocation6 + $0x17c] sm:$0xf]
        %v5594 = vunpack.c.l.b16 %v5549
        %v5595 = vunpack.c.l.b16 %v5553
        %v5596 = vunpack.c.l.b16 %v5557
        %v5597 = vunpack.c.l.b16 %v5561
        %v5598 = vunpack.c.l.b16 %v5565
        %v5599 = vunpack.c.l.b16 %v5569
        %v5600 = vunpack.c.l.b16 %v5573
        %v5601 = vunpack.c.l.b16 %v5577
        %v5602 = vpack.c.b16 %v5595, %v5594
        %v5603 = vpack.c.b16 %v5597, %v5596
        %v5604 = vpack.c.b16 %v5599, %v5598
        %v5605 = vpack.c.b16 %v5601, %v5600
        %v5626 = vunpack.c.l.b16 %v5578
        %v5627 = vunpack.c.l.b16 %v5579
        %v5628 = vunpack.c.l.b16 %v5580
        %v5629 = vunpack.c.l.b16 %v5581
        %v5630 = vunpack.c.l.b16 %v5582
        %v5631 = vunpack.c.l.b16 %v5583
        %v5632 = vunpack.c.l.b16 %v5584
        %v5633 = vunpack.c.l.b16 %v5585
        %v5634 = vunpack.c.l.b16 %v5586
        %v5635 = vunpack.c.l.b16 %v5587
        %v5636 = vunpack.c.l.b16 %v5588
        %v5637 = vunpack.c.l.b16 %v5589
        %v5638 = vunpack.c.l.b16 %v5590
        %v5639 = vunpack.c.l.b16 %v5591
        %v5640 = vunpack.c.l.b16 %v5592
        %v5641 = vunpack.c.l.b16 %v5593
        %v5642 = vpack.c.b16 %v5627, %v5626
        %v5643 = vpack.c.b16 %v5629, %v5628
        %v5644 = vpack.c.b16 %v5631, %v5630
        %v5645 = vpack.c.b16 %v5633, %v5632
        %v5646 = vpack.c.b16 %v5635, %v5634
        %v5647 = vpack.c.b16 %v5637, %v5636
        %v5648 = vpack.c.b16 %v5639, %v5638
        %v5649 = vpack.c.b16 %v5641, %v5640
        %5658 = vmatpush.bf16.msra.mxu0 %v5649
        %5659 = vmatpush.bf16.msra.mxu0 %v5648
        %5660 = vmatpush.bf16.msra.mxu0 %v5647
        %5661 = vmatpush.bf16.msra.mxu0 %v5646
        %5662 = vmatpush.bf16.msra.mxu0 %v5645
        %5663 = vmatpush.bf16.msra.mxu0 %v5644
        %5664 = vmatpush.bf16.msra.mxu0 %v5643
        %5665 = vmatpush.bf16.msra.mxu0 %v5642
        %5666 = vmatmul.bf16.gmra.mxu0 %v5602
        %v5667 = vpop.f32.mrf.mxu0
        %v5668 = vadd.f32 0.0, %v5667
        %v5669 = vpop.f32.mrf.mxu0
        %v5670 = vadd.f32 0.0, %v5669
        %5671 = vmatmul.bf16.gmra.mxu0 %v5603
        %v5672 = vpop.f32.mrf.mxu0
        %v5673 = vadd.f32 0.0, %v5672
        %v5674 = vpop.f32.mrf.mxu0
        %v5675 = vadd.f32 0.0, %v5674
        %5676 = vmatmul.bf16.gmra.mxu0 %v5604
        %v5677 = vpop.f32.mrf.mxu0
        %v5678 = vadd.f32 0.0, %v5677
        %v5679 = vpop.f32.mrf.mxu0
        %v5680 = vadd.f32 0.0, %v5679
        %5681 = vmatmul.bf16.gmra.mxu0 %v5605
        %v5682 = vpop.f32.mrf.mxu0
        %v5683 = vadd.f32 0.0, %v5682
        %v5684 = vpop.f32.mrf.mxu0
        %v5685 = vadd.f32 0.0, %v5684
        %5686 = vdwg.mxu0
        %v5687 = vadd.f32 %v5514, %v5668
        %v5688 = vadd.f32 %v5515, %v5670
        %v5689 = vadd.f32 %v5516, %v5673
        %v5690 = vadd.f32 %v5517, %v5675
        %v5691 = vadd.f32 %v5518, %v5678
        %v5692 = vadd.f32 %v5519, %v5680
        %v5693 = vadd.f32 %v5520, %v5683
        %v5694 = vadd.f32 %v5521, %v5685
        %v5695 = vld [vmem:[%s2773] sm:$0xf]
        %v5696 = vld [vmem:[%s2773 + $0x8] sm:$0xf]
        %v5697 = vld [vmem:[%s2773 + $0x10] sm:$0xf]
        %v5698 = vld [vmem:[%s2773 + $0x18] sm:$0xf]
        %v5699 = vld [vmem:[%s2773 + $0x20] sm:$0xf]
        %v5700 = vld [vmem:[%s2773 + $0x28] sm:$0xf]
        %v5701 = vld [vmem:[%s2773 + $0x30] sm:$0xf]
        %v5702 = vld [vmem:[%s2773 + $0x38] sm:$0xf]
        %v5703 = vld [vmem:[#allocation6 + $0x180] sm:$0xf]
        %v5704 = vld [vmem:[#allocation6 + $0x184] sm:$0xf]
        %v5705 = vld [vmem:[#allocation6 + $0x188] sm:$0xf]
        %v5706 = vld [vmem:[#allocation6 + $0x18c] sm:$0xf]
        %v5707 = vld [vmem:[#allocation6 + $0x190] sm:$0xf]
        %v5708 = vld [vmem:[#allocation6 + $0x194] sm:$0xf]
        %v5709 = vld [vmem:[#allocation6 + $0x198] sm:$0xf]
        %v5710 = vld [vmem:[#allocation6 + $0x19c] sm:$0xf]
        %v5711 = vld [vmem:[#allocation6 + $0x1a0] sm:$0xf]
        %v5712 = vld [vmem:[#allocation6 + $0x1a4] sm:$0xf]
        %v5713 = vld [vmem:[#allocation6 + $0x1a8] sm:$0xf]
        %v5714 = vld [vmem:[#allocation6 + $0x1ac] sm:$0xf]
        %v5715 = vld [vmem:[#allocation6 + $0x1b0] sm:$0xf]
        %v5716 = vld [vmem:[#allocation6 + $0x1b4] sm:$0xf]
        %v5717 = vld [vmem:[#allocation6 + $0x1b8] sm:$0xf]
        %v5718 = vld [vmem:[#allocation6 + $0x1bc] sm:$0xf]
        %v5727 = vunpack.c.l.b16 %v5695
        %v5728 = vunpack.c.l.b16 %v5696
        %v5729 = vunpack.c.l.b16 %v5697
        %v5730 = vunpack.c.l.b16 %v5698
        %v5731 = vunpack.c.l.b16 %v5699
        %v5732 = vunpack.c.l.b16 %v5700
        %v5733 = vunpack.c.l.b16 %v5701
        %v5734 = vunpack.c.l.b16 %v5702
        %v5735 = vpack.c.b16 %v5728, %v5727
        %v5736 = vpack.c.b16 %v5730, %v5729
        %v5737 = vpack.c.b16 %v5732, %v5731
        %v5738 = vpack.c.b16 %v5734, %v5733
        %v5759 = vunpack.c.l.b16 %v5703
        %v5760 = vunpack.c.l.b16 %v5704
        %v5761 = vunpack.c.l.b16 %v5705
        %v5762 = vunpack.c.l.b16 %v5706
        %v5763 = vunpack.c.l.b16 %v5707
        %v5764 = vunpack.c.l.b16 %v5708
        %v5765 = vunpack.c.l.b16 %v5709
        %v5766 = vunpack.c.l.b16 %v5710
        %v5767 = vunpack.c.l.b16 %v5711
        %v5768 = vunpack.c.l.b16 %v5712
        %v5769 = vunpack.c.l.b16 %v5713
        %v5770 = vunpack.c.l.b16 %v5714
        %v5771 = vunpack.c.l.b16 %v5715
        %v5772 = vunpack.c.l.b16 %v5716
        %v5773 = vunpack.c.l.b16 %v5717
        %v5774 = vunpack.c.l.b16 %v5718
        %v5775 = vpack.c.b16 %v5760, %v5759
        %v5776 = vpack.c.b16 %v5762, %v5761
        %v5777 = vpack.c.b16 %v5764, %v5763
        %v5778 = vpack.c.b16 %v5766, %v5765
        %v5779 = vpack.c.b16 %v5768, %v5767
        %v5780 = vpack.c.b16 %v5770, %v5769
        %v5781 = vpack.c.b16 %v5772, %v5771
        %v5782 = vpack.c.b16 %v5774, %v5773
        %5791 = vmatpush.bf16.msra.mxu0 %v5782
        %5792 = vmatpush.bf16.msra.mxu0 %v5781
        %5793 = vmatpush.bf16.msra.mxu0 %v5780
        %5794 = vmatpush.bf16.msra.mxu0 %v5779
        %5795 = vmatpush.bf16.msra.mxu0 %v5778
        %5796 = vmatpush.bf16.msra.mxu0 %v5777
        %5797 = vmatpush.bf16.msra.mxu0 %v5776
        %5798 = vmatpush.bf16.msra.mxu0 %v5775
        %5799 = vmatmul.bf16.gmra.mxu0 %v5735
        %v5800 = vpop.f32.mrf.mxu0
        %v5801 = vadd.f32 0.0, %v5800
        %v5802 = vpop.f32.mrf.mxu0
        %v5803 = vadd.f32 0.0, %v5802
        %5804 = vmatmul.bf16.gmra.mxu0 %v5736
        %v5805 = vpop.f32.mrf.mxu0
        %v5806 = vadd.f32 0.0, %v5805
        %v5807 = vpop.f32.mrf.mxu0
        %v5808 = vadd.f32 0.0, %v5807
        %5809 = vmatmul.bf16.gmra.mxu0 %v5737
        %v5810 = vpop.f32.mrf.mxu0
        %v5811 = vadd.f32 0.0, %v5810
        %v5812 = vpop.f32.mrf.mxu0
        %v5813 = vadd.f32 0.0, %v5812
        %5814 = vmatmul.bf16.gmra.mxu0 %v5738
        %v5815 = vpop.f32.mrf.mxu0
        %v5816 = vadd.f32 0.0, %v5815
        %v5817 = vpop.f32.mrf.mxu0
        %v5818 = vadd.f32 0.0, %v5817
        %5819 = vdwg.mxu0
        %v5820 = vadd.f32 %v5687, %v5801
        %v5821 = vadd.f32 %v5688, %v5803
        %v5822 = vadd.f32 %v5689, %v5806
        %v5823 = vadd.f32 %v5690, %v5808
        %v5824 = vadd.f32 %v5691, %v5811
        %v5825 = vadd.f32 %v5692, %v5813
        %v5826 = vadd.f32 %v5693, %v5816
        %v5827 = vadd.f32 %v5694, %v5818
        %v5828 = vld [vmem:[%s2773] sm:$0xf]
        %v5829 = vld [vmem:[%s2773 + $0x4] sm:$0x1]
        %v5830 = vld [vmem:[%s2773 + $0x8] sm:$0xf]
        %v5831 = vld [vmem:[%s2773 + $0xc] sm:$0x1]
        %v5832 = vld [vmem:[%s2773 + $0x10] sm:$0xf]
        %v5833 = vld [vmem:[%s2773 + $0x14] sm:$0x1]
        %v5834 = vld [vmem:[%s2773 + $0x18] sm:$0xf]
        %v5835 = vld [vmem:[%s2773 + $0x1c] sm:$0x1]
        %v5836 = vld [vmem:[%s2773 + $0x20] sm:$0xf]
        %v5837 = vld [vmem:[%s2773 + $0x24] sm:$0x1]
        %v5838 = vld [vmem:[%s2773 + $0x28] sm:$0xf]
        %v5839 = vld [vmem:[%s2773 + $0x2c] sm:$0x1]
        %v5840 = vld [vmem:[%s2773 + $0x30] sm:$0xf]
        %v5841 = vld [vmem:[%s2773 + $0x34] sm:$0x1]
        %v5842 = vld [vmem:[%s2773 + $0x38] sm:$0xf]
        %v5843 = vld [vmem:[%s2773 + $0x3c] sm:$0x1]
        %v5845 = vshrl.u32 %v5828, 16
        %v5847 = vrot.slane %v5845, 4
        %v5848 = vshll.u32 %v5828, 16
        %v5850 = vrot.slane %v5848, 5
        %v5851 = vor.u32 %v5847, %v5850
        %v5852 = vrot.slane %v5851, 4
        %v5854 = vshll.u32 %v5829, 16
        %v5856 = vrot.slane %v5854, 5
        %v5857 = vsel %vm1723, %v5852, %v5856
        %v5859 = vshrl.u32 %v5830, 16
        %v5861 = vrot.slane %v5859, 4
        %v5862 = vshll.u32 %v5830, 16
        %v5864 = vrot.slane %v5862, 5
        %v5865 = vor.u32 %v5861, %v5864
        %v5866 = vrot.slane %v5865, 4
        %v5868 = vshll.u32 %v5831, 16
        %v5870 = vrot.slane %v5868, 5
        %v5871 = vsel %vm1723, %v5866, %v5870
        %v5873 = vshrl.u32 %v5832, 16
        %v5875 = vrot.slane %v5873, 4
        %v5876 = vshll.u32 %v5832, 16
        %v5878 = vrot.slane %v5876, 5
        %v5879 = vor.u32 %v5875, %v5878
        %v5880 = vrot.slane %v5879, 4
        %v5882 = vshll.u32 %v5833, 16
        %v5884 = vrot.slane %v5882, 5
        %v5885 = vsel %vm1723, %v5880, %v5884
        %v5887 = vshrl.u32 %v5834, 16
        %v5889 = vrot.slane %v5887, 4
        %v5890 = vshll.u32 %v5834, 16
        %v5892 = vrot.slane %v5890, 5
        %v5893 = vor.u32 %v5889, %v5892
        %v5894 = vrot.slane %v5893, 4
        %v5896 = vshll.u32 %v5835, 16
        %v5898 = vrot.slane %v5896, 5
        %v5899 = vsel %vm1723, %v5894, %v5898
        %v5901 = vshrl.u32 %v5836, 16
        %v5903 = vrot.slane %v5901, 4
        %v5904 = vshll.u32 %v5836, 16
        %v5906 = vrot.slane %v5904, 5
        %v5907 = vor.u32 %v5903, %v5906
        %v5908 = vrot.slane %v5907, 4
        %v5910 = vshll.u32 %v5837, 16
        %v5912 = vrot.slane %v5910, 5
        %v5913 = vsel %vm1723, %v5908, %v5912
        %v5915 = vshrl.u32 %v5838, 16
        %v5917 = vrot.slane %v5915, 4
        %v5918 = vshll.u32 %v5838, 16
        %v5920 = vrot.slane %v5918, 5
        %v5921 = vor.u32 %v5917, %v5920
        %v5922 = vrot.slane %v5921, 4
        %v5924 = vshll.u32 %v5839, 16
        %v5926 = vrot.slane %v5924, 5
        %v5927 = vsel %vm1723, %v5922, %v5926
        %v5929 = vshrl.u32 %v5840, 16
        %v5931 = vrot.slane %v5929, 4
        %v5932 = vshll.u32 %v5840, 16
        %v5934 = vrot.slane %v5932, 5
        %v5935 = vor.u32 %v5931, %v5934
        %v5936 = vrot.slane %v5935, 4
        %v5938 = vshll.u32 %v5841, 16
        %v5940 = vrot.slane %v5938, 5
        %v5941 = vsel %vm1723, %v5936, %v5940
        %v5943 = vshrl.u32 %v5842, 16
        %v5945 = vrot.slane %v5943, 4
        %v5946 = vshll.u32 %v5842, 16
        %v5948 = vrot.slane %v5946, 5
        %v5949 = vor.u32 %v5945, %v5948
        %v5950 = vrot.slane %v5949, 4
        %v5952 = vshll.u32 %v5843, 16
        %v5954 = vrot.slane %v5952, 5
        %v5955 = vsel %vm1723, %v5950, %v5954
        %v5956 = vld [vmem:[#allocation6 + $0x1c0] sm:$0xf]
        %v5957 = vld [vmem:[#allocation6 + $0x1c4] sm:$0xf]
        %v5958 = vld [vmem:[#allocation6 + $0x1c8] sm:$0xf]
        %v5959 = vld [vmem:[#allocation6 + $0x1cc] sm:$0xf]
        %v5960 = vld [vmem:[#allocation6 + $0x1d0] sm:$0xf]
        %v5961 = vld [vmem:[#allocation6 + $0x1d4] sm:$0xf]
        %v5962 = vld [vmem:[#allocation6 + $0x1d8] sm:$0xf]
        %v5963 = vld [vmem:[#allocation6 + $0x1dc] sm:$0xf]
        %v5964 = vld [vmem:[#allocation6 + $0x1e0] sm:$0xf]
        %v5965 = vld [vmem:[#allocation6 + $0x1e4] sm:$0xf]
        %v5966 = vld [vmem:[#allocation6 + $0x1e8] sm:$0xf]
        %v5967 = vld [vmem:[#allocation6 + $0x1ec] sm:$0xf]
        %v5968 = vld [vmem:[#allocation6 + $0x1f0] sm:$0xf]
        %v5969 = vld [vmem:[#allocation6 + $0x1f4] sm:$0xf]
        %v5970 = vld [vmem:[#allocation6 + $0x1f8] sm:$0xf]
        %v5971 = vld [vmem:[#allocation6 + $0x1fc] sm:$0xf]
        %v5972 = vunpack.c.l.b16 %v5857
        %v5973 = vunpack.c.l.b16 %v5871
        %v5974 = vunpack.c.l.b16 %v5885
        %v5975 = vunpack.c.l.b16 %v5899
        %v5976 = vunpack.c.l.b16 %v5913
        %v5977 = vunpack.c.l.b16 %v5927
        %v5978 = vunpack.c.l.b16 %v5941
        %v5979 = vunpack.c.l.b16 %v5955
        %v5980 = vpack.c.b16 %v5973, %v5972
        %v5981 = vpack.c.b16 %v5975, %v5974
        %v5982 = vpack.c.b16 %v5977, %v5976
        %v5983 = vpack.c.b16 %v5979, %v5978
        %v6004 = vunpack.c.l.b16 %v5956
        %v6005 = vunpack.c.l.b16 %v5957
        %v6006 = vunpack.c.l.b16 %v5958
        %v6007 = vunpack.c.l.b16 %v5959
        %v6008 = vunpack.c.l.b16 %v5960
        %v6009 = vunpack.c.l.b16 %v5961
        %v6010 = vunpack.c.l.b16 %v5962
        %v6011 = vunpack.c.l.b16 %v5963
        %v6012 = vunpack.c.l.b16 %v5964
        %v6013 = vunpack.c.l.b16 %v5965
        %v6014 = vunpack.c.l.b16 %v5966
        %v6015 = vunpack.c.l.b16 %v5967
        %v6016 = vunpack.c.l.b16 %v5968
        %v6017 = vunpack.c.l.b16 %v5969
        %v6018 = vunpack.c.l.b16 %v5970
        %v6019 = vunpack.c.l.b16 %v5971
        %v6020 = vpack.c.b16 %v6005, %v6004
        %v6021 = vpack.c.b16 %v6007, %v6006
        %v6022 = vpack.c.b16 %v6009, %v6008
        %v6023 = vpack.c.b16 %v6011, %v6010
        %v6024 = vpack.c.b16 %v6013, %v6012
        %v6025 = vpack.c.b16 %v6015, %v6014
        %v6026 = vpack.c.b16 %v6017, %v6016
        %v6027 = vpack.c.b16 %v6019, %v6018
        %6036 = vmatpush.bf16.msra.mxu0 %v6027
        %6037 = vmatpush.bf16.msra.mxu0 %v6026
        %6038 = vmatpush.bf16.msra.mxu0 %v6025
        %6039 = vmatpush.bf16.msra.mxu0 %v6024
        %6040 = vmatpush.bf16.msra.mxu0 %v6023
        %6041 = vmatpush.bf16.msra.mxu0 %v6022
        %6042 = vmatpush.bf16.msra.mxu0 %v6021
        %6043 = vmatpush.bf16.msra.mxu0 %v6020
        %6044 = vmatmul.bf16.gmra.mxu0 %v5980
        %v6045 = vpop.f32.mrf.mxu0
        %v6046 = vadd.f32 0.0, %v6045
        %v6047 = vpop.f32.mrf.mxu0
        %v6048 = vadd.f32 0.0, %v6047
        %6049 = vmatmul.bf16.gmra.mxu0 %v5981
        %v6050 = vpop.f32.mrf.mxu0
        %v6051 = vadd.f32 0.0, %v6050
        %v6052 = vpop.f32.mrf.mxu0
        %v6053 = vadd.f32 0.0, %v6052
        %6054 = vmatmul.bf16.gmra.mxu0 %v5982
        %v6055 = vpop.f32.mrf.mxu0
        %v6056 = vadd.f32 0.0, %v6055
        %v6057 = vpop.f32.mrf.mxu0
        %v6058 = vadd.f32 0.0, %v6057
        %6059 = vmatmul.bf16.gmra.mxu0 %v5983
        %v6060 = vpop.f32.mrf.mxu0
        %v6061 = vadd.f32 0.0, %v6060
        %v6062 = vpop.f32.mrf.mxu0
        %v6063 = vadd.f32 0.0, %v6062
        %6064 = vdwg.mxu0
        %v6065 = vadd.f32 %v5820, %v6046
        %v6066 = vadd.f32 %v5821, %v6048
        %v6067 = vadd.f32 %v5822, %v6051
        %v6068 = vadd.f32 %v5823, %v6053
        %v6069 = vadd.f32 %v5824, %v6056
        %v6070 = vadd.f32 %v5825, %v6058
        %v6071 = vadd.f32 %v5826, %v6061
        %v6072 = vadd.f32 %v5827, %v6063
        %v6073 = vld [vmem:[%s2773] sm:$0xe]
        %v6074 = vld [vmem:[%s2773 + $0x8] sm:$0xe]
        %v6075 = vld [vmem:[%s2773 + $0x10] sm:$0xe]
        %v6076 = vld [vmem:[%s2773 + $0x18] sm:$0xe]
        %v6077 = vld [vmem:[%s2773 + $0x20] sm:$0xe]
        %v6078 = vld [vmem:[%s2773 + $0x28] sm:$0xe]
        %v6079 = vld [vmem:[%s2773 + $0x30] sm:$0xe]
        %v6080 = vld [vmem:[%s2773 + $0x38] sm:$0xe]
        %v6097 = vrot.slane %v6073, 5
        %v6098 = vrot.slane %v6097, 4
        %v6099 = vrot.slane %v5829, 5
        %v6100 = vsel %vm2072, %v6098, %v6099
        %v6101 = vrot.slane %v6074, 5
        %v6102 = vrot.slane %v6101, 4
        %v6103 = vrot.slane %v5831, 5
        %v6104 = vsel %vm2072, %v6102, %v6103
        %v6105 = vrot.slane %v6075, 5
        %v6106 = vrot.slane %v6105, 4
        %v6107 = vrot.slane %v5833, 5
        %v6108 = vsel %vm2072, %v6106, %v6107
        %v6109 = vrot.slane %v6076, 5
        %v6110 = vrot.slane %v6109, 4
        %v6111 = vrot.slane %v5835, 5
        %v6112 = vsel %vm2072, %v6110, %v6111
        %v6113 = vrot.slane %v6077, 5
        %v6114 = vrot.slane %v6113, 4
        %v6115 = vrot.slane %v5837, 5
        %v6116 = vsel %vm2072, %v6114, %v6115
        %v6117 = vrot.slane %v6078, 5
        %v6118 = vrot.slane %v6117, 4
        %v6119 = vrot.slane %v5839, 5
        %v6120 = vsel %vm2072, %v6118, %v6119
        %v6121 = vrot.slane %v6079, 5
        %v6122 = vrot.slane %v6121, 4
        %v6123 = vrot.slane %v5841, 5
        %v6124 = vsel %vm2072, %v6122, %v6123
        %v6125 = vrot.slane %v6080, 5
        %v6126 = vrot.slane %v6125, 4
        %v6127 = vrot.slane %v5843, 5
        %v6128 = vsel %vm2072, %v6126, %v6127
        %v6129 = vld [vmem:[#allocation6 + $0x200] sm:$0xf]
        %v6130 = vld [vmem:[#allocation6 + $0x204] sm:$0xf]
        %v6131 = vld [vmem:[#allocation6 + $0x208] sm:$0xf]
        %v6132 = vld [vmem:[#allocation6 + $0x20c] sm:$0xf]
        %v6133 = vld [vmem:[#allocation6 + $0x210] sm:$0xf]
        %v6134 = vld [vmem:[#allocation6 + $0x214] sm:$0xf]
        %v6135 = vld [vmem:[#allocation6 + $0x218] sm:$0xf]
        %v6136 = vld [vmem:[#allocation6 + $0x21c] sm:$0xf]
        %v6137 = vld [vmem:[#allocation6 + $0x220] sm:$0xf]
        %v6138 = vld [vmem:[#allocation6 + $0x224] sm:$0xf]
        %v6139 = vld [vmem:[#allocation6 + $0x228] sm:$0xf]
        %v6140 = vld [vmem:[#allocation6 + $0x22c] sm:$0xf]
        %v6141 = vld [vmem:[#allocation6 + $0x230] sm:$0xf]
        %v6142 = vld [vmem:[#allocation6 + $0x234] sm:$0xf]
        %v6143 = vld [vmem:[#allocation6 + $0x238] sm:$0xf]
        %v6144 = vld [vmem:[#allocation6 + $0x23c] sm:$0xf]
        %v6145 = vunpack.c.l.b16 %v6100
        %v6146 = vunpack.c.l.b16 %v6104
        %v6147 = vunpack.c.l.b16 %v6108
        %v6148 = vunpack.c.l.b16 %v6112
        %v6149 = vunpack.c.l.b16 %v6116
        %v6150 = vunpack.c.l.b16 %v6120
        %v6151 = vunpack.c.l.b16 %v6124
        %v6152 = vunpack.c.l.b16 %v6128
        %v6153 = vpack.c.b16 %v6146, %v6145
        %v6154 = vpack.c.b16 %v6148, %v6147
        %v6155 = vpack.c.b16 %v6150, %v6149
        %v6156 = vpack.c.b16 %v6152, %v6151
        %v6177 = vunpack.c.l.b16 %v6129
        %v6178 = vunpack.c.l.b16 %v6130
        %v6179 = vunpack.c.l.b16 %v6131
        %v6180 = vunpack.c.l.b16 %v6132
        %v6181 = vunpack.c.l.b16 %v6133
        %v6182 = vunpack.c.l.b16 %v6134
        %v6183 = vunpack.c.l.b16 %v6135
        %v6184 = vunpack.c.l.b16 %v6136
        %v6185 = vunpack.c.l.b16 %v6137
        %v6186 = vunpack.c.l.b16 %v6138
        %v6187 = vunpack.c.l.b16 %v6139
        %v6188 = vunpack.c.l.b16 %v6140
        %v6189 = vunpack.c.l.b16 %v6141
        %v6190 = vunpack.c.l.b16 %v6142
        %v6191 = vunpack.c.l.b16 %v6143
        %v6192 = vunpack.c.l.b16 %v6144
        %v6193 = vpack.c.b16 %v6178, %v6177
        %v6194 = vpack.c.b16 %v6180, %v6179
        %v6195 = vpack.c.b16 %v6182, %v6181
        %v6196 = vpack.c.b16 %v6184, %v6183
        %v6197 = vpack.c.b16 %v6186, %v6185
        %v6198 = vpack.c.b16 %v6188, %v6187
        %v6199 = vpack.c.b16 %v6190, %v6189
        %v6200 = vpack.c.b16 %v6192, %v6191
        %6209 = vmatpush.bf16.msra.mxu0 %v6200
        %6210 = vmatpush.bf16.msra.mxu0 %v6199
        %6211 = vmatpush.bf16.msra.mxu0 %v6198
        %6212 = vmatpush.bf16.msra.mxu0 %v6197
        %6213 = vmatpush.bf16.msra.mxu0 %v6196
        %6214 = vmatpush.bf16.msra.mxu0 %v6195
        %6215 = vmatpush.bf16.msra.mxu0 %v6194
        %6216 = vmatpush.bf16.msra.mxu0 %v6193
        %6217 = vmatmul.bf16.gmra.mxu0 %v6153
        %v6218 = vpop.f32.mrf.mxu0
        %v6219 = vadd.f32 0.0, %v6218
        %v6220 = vpop.f32.mrf.mxu0
        %v6221 = vadd.f32 0.0, %v6220
        %6222 = vmatmul.bf16.gmra.mxu0 %v6154
        %v6223 = vpop.f32.mrf.mxu0
        %v6224 = vadd.f32 0.0, %v6223
        %v6225 = vpop.f32.mrf.mxu0
        %v6226 = vadd.f32 0.0, %v6225
        %6227 = vmatmul.bf16.gmra.mxu0 %v6155
        %v6228 = vpop.f32.mrf.mxu0
        %v6229 = vadd.f32 0.0, %v6228
        %v6230 = vpop.f32.mrf.mxu0
        %v6231 = vadd.f32 0.0, %v6230
        %6232 = vmatmul.bf16.gmra.mxu0 %v6156
        %v6233 = vpop.f32.mrf.mxu0
        %v6234 = vadd.f32 0.0, %v6233
        %v6235 = vpop.f32.mrf.mxu0
        %v6236 = vadd.f32 0.0, %v6235
        %6237 = vdwg.mxu0
        %v6238 = vadd.f32 %v6065, %v6219
        %v6239 = vadd.f32 %v6066, %v6221
        %v6240 = vadd.f32 %v6067, %v6224
        %v6241 = vadd.f32 %v6068, %v6226
        %v6242 = vadd.f32 %v6069, %v6229
        %v6243 = vadd.f32 %v6070, %v6231
        %v6244 = vadd.f32 %v6071, %v6234
        %v6245 = vadd.f32 %v6072, %v6236
        %v6246 = vld [vmem:[%s2] sm:$0x1]
        %v6248 = vperm.slane %v6246, 0
        %v6250 = vadd.f32 %v6238, %v6248
        %v6251 = vadd.f32 %v6239, %v6248
        %v6252 = vadd.f32 %v6240, %v6248
        %v6253 = vadd.f32 %v6241, %v6248
        %v6254 = vadd.f32 %v6242, %v6248
        %v6255 = vadd.f32 %v6243, %v6248
        %v6256 = vadd.f32 %v6244, %v6248
        %v6257 = vadd.f32 %v6245, %v6248
        %v6258 = vmax.f32 %v6250, 0.0
        %v6259 = vmax.f32 %v6251, 0.0
        %v6260 = vmax.f32 %v6252, 0.0
        %v6261 = vmax.f32 %v6253, 0.0
        %v6262 = vmax.f32 %v6254, 0.0
        %v6263 = vmax.f32 %v6255, 0.0
        %v6264 = vmax.f32 %v6256, 0.0
        %v6265 = vmax.f32 %v6257, 0.0
        %v6266 = vpack.c.bf16 %v6259, %v6258
        %v6267 = vpack.c.bf16 %v6261, %v6260
        %v6268 = vpack.c.bf16 %v6263, %v6262
        %v6269 = vpack.c.bf16 %v6265, %v6264
        %v6270 = vld [vmem:[#allocation8] sm:$0xf]
        %v6271 = vld [vmem:[#allocation8 + $0x4] sm:$0xf]
        %v6272 = vld [vmem:[#allocation8 + $0x8] sm:$0xf]
        %v6273 = vld [vmem:[#allocation8 + $0xc] sm:$0xf]
        %v6274 = vld [vmem:[#allocation8 + $0x10] sm:$0xf]
        %v6275 = vld [vmem:[#allocation8 + $0x14] sm:$0xf]
        %v6276 = vld [vmem:[#allocation8 + $0x18] sm:$0xf]
        %v6277 = vld [vmem:[#allocation8 + $0x1c] sm:$0xf]
        %v6278 = vld [vmem:[#allocation8 + $0x20] sm:$0xf]
        %v6279 = vld [vmem:[#allocation8 + $0x24] sm:$0xf]
        %v6280 = vld [vmem:[#allocation8 + $0x28] sm:$0xf]
        %v6281 = vld [vmem:[#allocation8 + $0x2c] sm:$0xf]
        %v6282 = vld [vmem:[#allocation8 + $0x30] sm:$0xf]
        %v6283 = vld [vmem:[#allocation8 + $0x34] sm:$0xf]
        %v6284 = vld [vmem:[#allocation8 + $0x38] sm:$0xf]
        %v6285 = vld [vmem:[#allocation8 + $0x3c] sm:$0xf]
        %v6286 = vld [vmem:[%s4] sm:$0x1]
        %v6288 = vperm.slane %v6286, 0
        %v6306 = vunpack.c.l.b16 %v6270
        %v6307 = vunpack.c.l.b16 %v6271
        %v6308 = vunpack.c.l.b16 %v6272
        %v6309 = vunpack.c.l.b16 %v6273
        %v6310 = vunpack.c.l.b16 %v6274
        %v6311 = vunpack.c.l.b16 %v6275
        %v6312 = vunpack.c.l.b16 %v6276
        %v6313 = vunpack.c.l.b16 %v6277
        %v6314 = vunpack.c.l.b16 %v6278
        %v6315 = vunpack.c.l.b16 %v6279
        %v6316 = vunpack.c.l.b16 %v6280
        %v6317 = vunpack.c.l.b16 %v6281
        %v6318 = vunpack.c.l.b16 %v6282
        %v6319 = vunpack.c.l.b16 %v6283
        %v6320 = vunpack.c.l.b16 %v6284
        %v6321 = vunpack.c.l.b16 %v6285
        %v6322 = vpack.c.b16 %v6307, %v6306
        %v6323 = vpack.c.b16 %v6309, %v6308
        %v6324 = vpack.c.b16 %v6311, %v6310
        %v6325 = vpack.c.b16 %v6313, %v6312
        %v6326 = vpack.c.b16 %v6315, %v6314
        %v6327 = vpack.c.b16 %v6317, %v6316
        %v6328 = vpack.c.b16 %v6319, %v6318
        %v6329 = vpack.c.b16 %v6321, %v6320
        %6338 = vmatpush.bf16.msra.mxu0 %v6329
        %6339 = vmatpush.bf16.msra.mxu0 %v6328
        %6340 = vmatpush.bf16.msra.mxu0 %v6327
        %6341 = vmatpush.bf16.msra.mxu0 %v6326
        %6342 = vmatpush.bf16.msra.mxu0 %v6325
        %6343 = vmatpush.bf16.msra.mxu0 %v6324
        %6344 = vmatpush.bf16.msra.mxu0 %v6323
        %6345 = vmatpush.bf16.msra.mxu0 %v6322
        %6346 = vmatmul.bf16.gmra.mxu0 %v6266
        %v6347 = vpop.f32.mrf.mxu0
        %v6348 = vadd.f32 %v6288, %v6347
        %v6349 = vpop.f32.mrf.mxu0
        %v6350 = vadd.f32 %v6288, %v6349
        %6351 = vmatmul.bf16.gmra.mxu0 %v6267
        %v6352 = vpop.f32.mrf.mxu0
        %v6353 = vadd.f32 %v6288, %v6352
        %v6354 = vpop.f32.mrf.mxu0
        %v6355 = vadd.f32 %v6288, %v6354
        %6356 = vmatmul.bf16.gmra.mxu0 %v6268
        %v6357 = vpop.f32.mrf.mxu0
        %v6358 = vadd.f32 %v6288, %v6357
        %v6359 = vpop.f32.mrf.mxu0
        %v6360 = vadd.f32 %v6288, %v6359
        %6361 = vmatmul.bf16.gmra.mxu0 %v6269
        %v6362 = vpop.f32.mrf.mxu0
        %v6363 = vadd.f32 %v6288, %v6362
        %v6364 = vpop.f32.mrf.mxu0
        %v6365 = vadd.f32 %v6288, %v6364
        %6366 = vdwg.mxu0
        %v6367 = vld [vmem:[%s348] sm:$0xff]
        %v6368 = vld [vmem:[%s348 + $0x8] sm:$0xff]
        %v6369 = vld [vmem:[%s348 + $0x10] sm:$0xff]
        %v6370 = vld [vmem:[%s348 + $0x18] sm:$0xff]
        %v6371 = vld [vmem:[%s348 + $0x20] sm:$0xff]
        %v6372 = vld [vmem:[%s348 + $0x28] sm:$0xff]
        %v6373 = vld [vmem:[%s348 + $0x30] sm:$0xff]
        %v6374 = vld [vmem:[%s348 + $0x38] sm:$0xff]
        %v6375 = vadd.f32 %v6367, %v6348
        %v6376 = vadd.f32 %v6368, %v6350
        %v6377 = vadd.f32 %v6369, %v6353
        %v6378 = vadd.f32 %v6370, %v6355
        %v6379 = vadd.f32 %v6371, %v6358
        %v6380 = vadd.f32 %v6372, %v6360
        %v6381 = vadd.f32 %v6373, %v6363
        %v6382 = vadd.f32 %v6374, %v6365
        %6383 = vst [vmem:[%s348] sm:$0xff] %v6375
        %6384 = vst [vmem:[%s348 + $0x8] sm:$0xff] %v6376
        %6385 = vst [vmem:[%s348 + $0x10] sm:$0xff] %v6377
        %6386 = vst [vmem:[%s348 + $0x18] sm:$0xff] %v6378
        %6387 = vst [vmem:[%s348 + $0x20] sm:$0xff] %v6379
        %6388 = vst [vmem:[%s348 + $0x28] sm:$0xff] %v6380
        %6389 = vst [vmem:[%s348 + $0x30] sm:$0xff] %v6381
        %6390 = vst [vmem:[%s348 + $0x38] sm:$0xff] %v6382
        %s6391 = sand.u32 %s186, 1
        %s6392 = scalar_lea.sflag [#allocation5], %s6391
        %s6393 = sand.u32 %s186, 1
        %s6394 = smul.addr %s6393, 64
        %s6395 = scalar_lea.vmem [#allocation11], %s6394
        // Predicated region
        $region65: #{tpu_custom_call.1} parent=47 // pred_check
          %p6396 = pneg %p196
        $region66: #{tpu_custom_call.1} parent=47 // pred_check_branch
          %6398 = sbr.rel (%p6396) target = $region68
        $region67: #{tpu_custom_call.1} parent=47 // pred_region
          %6400 = vsyncadd %s6392, 0
          %s6401 = smul.addr %s26, 8
          %s6402 = smul.addr %s6401, 8
          %s6403 = scalar_lea.hbm %s7, %s6402
          %s6404 = sshll.u32 %s6395, 4
          %s6405 = int_to_ptr.vmem [resolvable:$true] %s6404
          %s6406 = sshll.u32 %s6403, 4
          %s6407 = int_to_ptr.hbm [resolvable:$true] %s6406
          %6412 = dma.vmem_to_hbm [thread:$0]  %s6405, 1024, %s6407, %s6392, 128, 128, 8
        $region68: #{tpu_custom_call.1} parent=47 // pred_fallthru
          _
      $region48: #{tpu_custom_call.1} parent=5 // pred_fallthru
        _
      %p6413 = scmp.le.s32.totalorder 2, %s21
      // Predicated region
      $region69: #{tpu_custom_call.1} parent=5 // pred_check
        %p6414 = pneg %p6413
      $region70: #{tpu_custom_call.1} parent=5 // pred_check_branch
        %6416 = sbr.rel (%p6414) target = $region72
      $region71: #{tpu_custom_call.1} parent=5 // pred_region
        %s6417 = ssub.s32 %s21, 2
        // Predicated region
        $region73: #{tpu_custom_call.1} parent=71 // pred_check
          %p6418 = pneg %p202
        $region74: #{tpu_custom_call.1} parent=71 // pred_check_branch
          %6420 = sbr.rel (%p6418) target = $region76
        $region75: #{tpu_custom_call.1} parent=71 // pred_region
          %s6421 = sand.u32 %s187, 1
          %s6422 = scalar_lea.sflag [#allocation5], %s6421
          %s6423 = sand.u32 %s187, 1
          %s6424 = smul.addr %s6423, 64
          %s6425 = scalar_lea.vmem [#allocation11], %s6424
          %6427 = dma.done %s6422, 1024
        $region76: #{tpu_custom_call.1} parent=71 // pred_fallthru
          _
      $region72: #{tpu_custom_call.1} parent=5 // pred_fallthru
        _
    $region6: #{tpu_custom_call.1} parent=1 // loop_footer
      %s25 = sadd.s32 1, %s21
    $region7: #{tpu_custom_call.1} parent=1 // loop_footer_branch
      %20 = sbr.rel target = $region3
    $region8: #{tpu_custom_call.1} parent=1 // loop_exit
      _
    %6428 = vsyncpa [#allocation4], 1
    %s6429 = scalar_lea.sflag [#allocation4], 1
    %6430 = vsyncpa %s6429, 1
    %6431 = vsyncpa [#allocation7], 1
    %6432 = vsyncpa [#allocation10], 1
    %6433 = vsyncpa [#allocation5], 1
    %s6434 = scalar_lea.sflag [#allocation5], 1
    %6435 = vsyncpa %s6434, 1

// kernel: tpu_custom_call.1
$region0: #{tpu_custom_call.1}
  #allocation0 [shape = 'u32[]', space=smem, size = 0x4, offset = 0x4, fixed_abs, tag = 'smem constant byte address 0x4 - core index']
  #allocation1 [shape = 'u32[72,128]{1,0:T(1,128)}', space=vmem, size = 0x9000, scoped, tag = 'internal scratch']
  #allocation2 [shape = 'bf16[1,10,16,128]{3,2,1,0:T(8,128)(2,1)}', space=vmem, size = 0xa000, scoped, tag = 'scratch operand']
  %s0 = inlined_call_operand.hbm [shape: f32[2,16,16,128], index: 0, kind: input, shape index: {}]
  %s1 = inlined_call_operand.hbm [shape: bf16[1152,128], index: 1, kind: input, shape index: {}]
  %s2 = inlined_call_operand.vmem [shape: f32[1,128], index: 2, kind: input, shape index: {}]
  %s3 = inlined_call_operand.hbm [shape: bf16[128,128], index: 3, kind: input, shape index: {}]
  %s4 = inlined_call_operand.vmem [shape: f32[1,128], index: 4, kind: input, shape index: {}]
  %s5 = inlined_call_operand.hbm [shape: bf16[1152,128], index: 5, kind: input, shape index: {}]
  %s6 = inlined_call_operand.vmem [shape: f32[1,128], index: 6, kind: input, shape index: {}]
  %s7 = inlined_call_operand.hbm [shape: f32[2,8,8,128], index: 7, kind: output, shape index: {}]
  %s8 = sld [smem:[#allocation0]]
  $region77: #{tpu_custom_call.1} parent=0
    _
  %s10 = ssub.s32 1, %s8
  %s11 = scalar_select 0, %s10, %s8
  $region1: #{tpu_custom_call.1} parent=0
    #allocation3 [shape = 'u8[262144]{0}', space=vmem, size = 0x40000, scoped, tag = 'input window, operand 0']
    #allocation4 [shape = 's32[2]{0}', space=sflag, size = 0x8, scoped, tag = 'scoped memory for tpu_custom_call.1']
    #allocation5 [shape = 's32[2]{0}', space=sflag, size = 0x8, scoped, tag = 'scoped memory for tpu_custom_call.1']
    #allocation6 [shape = 'u8[294912]{0}', space=vmem, size = 0x48000, scoped, tag = 'input window, operand 1, single buffered']
    #allocation7 [shape = 's32[1]{0}', space=sflag, size = 0x4, scoped, tag = 'scoped memory for tpu_custom_call.1']
    #allocation8 [shape = 'u8[32768]{0}', space=vmem, size = 0x8000, scoped, tag = 'input window, operand 3, single buffered']
    #allocation9 [shape = 'u8[294912]{0}', space=vmem, size = 0x48000, scoped, tag = 'input window, operand 5, single buffered']
    #allocation10 [shape = 's32[1]{0}', space=sflag, size = 0x4, scoped, tag = 'scoped memory for tpu_custom_call.1']
    #allocation11 [shape = 'u8[65536]{0}', space=vmem, size = 0x10000, scoped, tag = 'output window, operand 0']
    %12 = vsyncpa [#allocation4], 0
    %s13 = scalar_lea.sflag [#allocation4], 1
    %14 = vsyncpa %s13, 0
    %15 = vsyncpa [#allocation7], 0
    %16 = vsyncpa [#allocation10], 0
    %17 = vsyncpa [#allocation5], 0
    %s18 = scalar_lea.sflag [#allocation5], 1
    %19 = vsyncpa %s18, 0
    loop: start=0, step=1, limit=4
    $region2: #{tpu_custom_call.1} parent=1 // loop_pre_header
      _
    $region3: #{tpu_custom_call.1} parent=1 // loop_header
      %s21 = sphi 0, %s25
      %p22 = scmp.ge.s32.totalorder %s21, 4
      %s31 = sphi 0, %s33
      %s34 = sphi 0, %s31
      %s35 = sphi 0, %s34
      %s51 = sphi 0, %s35
      %s55 = sphi 0, %s55
      %s57 = sphi 0, %s55
      %s58 = sphi 0, %s57
      %s72 = sphi 0, %s58
      %s76 = sphi 0, %s76
      %s78 = sphi 0, %s76
      %s79 = sphi 0, %s78
      %s93 = sphi 0, %s79
      %s97 = sphi 0, %s97
      %s99 = sphi 0, %s97
      %s100 = sphi 0, %s99
      %s114 = sphi 0, %s100
      %s118 = sphi 0, %s118
      %s120 = sphi 0, %s118
      %s121 = sphi 0, %s120
      %s135 = sphi 0, %s121
      %s139 = sphi 0, %s139
      %s141 = sphi 0, %s139
      %s142 = sphi 0, %s141
      %s156 = sphi 0, %s142
      %s160 = sphi 0, %s160
      %s162 = sphi 0, %s160
      %s163 = sphi 0, %s162
      %s177 = sphi 0, %s163
      %s183 = sphi 0, %s185
      %s186 = sphi 0, %s183
      %s187 = sphi 0, %s186
      %s203 = sphi 0, %s187
    $region4: #{tpu_custom_call.1} parent=1 // loop_header_branch
      %24 = sbr.rel (%p22) target = $region8
    $region5: #{tpu_custom_call.1} parent=1 // loop_body
      %s26 = ssub.s32 %s21, 1
      %s27 = ssub.s32 %s21, 2
      %s28 = sadd.s32 %s21, 1
      %s29 = ssub.s32 %s21, %s28
      %p30 = scmp.eq.s32.totalorder %s29, 0
      %s32 = sadd.s32 %s31, 1
      %s33 = scalar_select %p30, %s31, %s32
      %p36 = pneg %p30
      %p37 = scmp.eq.s32.totalorder %s21, 1
      %p38 = por %p36, %p37
      %p39 = scmp.ne.s32.totalorder %s31, %s34
      %p40 = scmp.eq.s32.totalorder %s21, 0
      %p41 = por %p39, %p40
      %p42 = scmp.ne.s32.totalorder %s31, %s34
      %p43 = scmp.eq.s32.totalorder %s26, 1
      %p44 = por %p42, %p43
      %p45 = scmp.ne.s32.totalorder %s34, %s35
      %p46 = scmp.eq.s32.totalorder %s26, 0
      %p47 = por %p45, %p46
      %p48 = scmp.ne.s32.totalorder %s34, %s35
      %p49 = scmp.eq.s32.totalorder %s27, 1
      %p50 = por %p48, %p49
      %p52 = scmp.ne.s32.totalorder %s35, %s51
      %p53 = scmp.eq.s32.totalorder %s27, 0
      %p54 = por %p52, %p53
      %s56 = sadd.s32 %s55, 1
      %p59 = scmp.eq.s32.totalorder %s21, 1
      %p60 = scmp.ne.s32.totalorder %s55, %s57
      %p61 = scmp.eq.s32.totalorder %s21, 0
      %p62 = por %p60, %p61
      %p63 = scmp.ne.s32.totalorder %s55, %s57
      %p64 = scmp.eq.s32.totalorder %s26, 1
      %p65 = por %p63, %p64
      %p66 = scmp.ne.s32.totalorder %s57, %s58
      %p67 = scmp.eq.s32.totalorder %s26, 0
      %p68 = por %p66, %p67
      %p69 = scmp.ne.s32.totalorder %s57, %s58
      %p70 = scmp.eq.s32.totalorder %s27, 1
      %p71 = por %p69, %p70
      %p73 = scmp.ne.s32.totalorder %s58, %s72
      %p74 = scmp.eq.s32.totalorder %s27, 0
      %p75 = por %p73, %p74
      %s77 = sadd.s32 %s76, 1
      %p80 = scmp.eq.s32.totalorder %s21, 1
      %p81 = scmp.ne.s32.totalorder %s76, %s78
      %p82 = scmp.eq.s32.totalorder %s21, 0
      %p83 = por %p81, %p82
      %p84 = scmp.ne.s32.totalorder %s76, %s78
      %p85 = scmp.eq.s32.totalorder %s26, 1
      %p86 = por %p84, %p85
      %p87 = scmp.ne.s32.totalorder %s78, %s79
      %p88 = scmp.eq.s32.totalorder %s26, 0
      %p89 = por %p87, %p88
      %p90 = scmp.ne.s32.totalorder %s78, %s79
      %p91 = scmp.eq.s32.totalorder %s27, 1
      %p92 = por %p90, %p91
      %p94 = scmp.ne.s32.totalorder %s79, %s93
      %p95 = scmp.eq.s32.totalorder %s27, 0
      %p96 = por %p94, %p95
      %s98 = sadd.s32 %s97, 1
      %p101 = scmp.eq.s32.totalorder %s21, 1
      %p102 = scmp.ne.s32.totalorder %s97, %s99
      %p103 = scmp.eq.s32.totalorder %s21, 0
      %p104 = por %p102, %p103
      %p105 = scmp.ne.s32.totalorder %s97, %s99
      %p106 = scmp.eq.s32.totalorder %s26, 1
      %p107 = por %p105, %p106
      %p108 = scmp.ne.s32.totalorder %s99, %s100
      %p109 = scmp.eq.s32.totalorder %s26, 0
      %p110 = por %p108, %p109
      %p111 = scmp.ne.s32.totalorder %s99, %s100
      %p112 = scmp.eq.s32.totalorder %s27, 1
      %p113 = por %p111, %p112
      %p115 = scmp.ne.s32.totalorder %s100, %s114
      %p116 = scmp.eq.s32.totalorder %s27, 0
      %p117 = por %p115, %p116
      %s119 = sadd.s32 %s118, 1
      %p122 = scmp.eq.s32.totalorder %s21, 1
      %p123 = scmp.ne.s32.totalorder %s118, %s120
      %p124 = scmp.eq.s32.totalorder %s21, 0
      %p125 = por %p123, %p124
      %p126 = scmp.ne.s32.totalorder %s118, %s120
      %p127 = scmp.eq.s32.totalorder %s26, 1
      %p128 = por %p126, %p127
      %p129 = scmp.ne.s32.totalorder %s120, %s121
      %p130 = scmp.eq.s32.totalorder %s26, 0
      %p131 = por %p129, %p130
      %p132 = scmp.ne.s32.totalorder %s120, %s121
      %p133 = scmp.eq.s32.totalorder %s27, 1
      %p134 = por %p132, %p133
      %p136 = scmp.ne.s32.totalorder %s121, %s135
      %p137 = scmp.eq.s32.totalorder %s27, 0
      %p138 = por %p136, %p137
      %s140 = sadd.s32 %s139, 1
      %p143 = scmp.eq.s32.totalorder %s21, 1
      %p144 = scmp.ne.s32.totalorder %s139, %s141
      %p145 = scmp.eq.s32.totalorder %s21, 0
      %p146 = por %p144, %p145
      %p147 = scmp.ne.s32.totalorder %s139, %s141
      %p148 = scmp.eq.s32.totalorder %s26, 1
      %p149 = por %p147, %p148
      %p150 = scmp.ne.s32.totalorder %s141, %s142
      %p151 = scmp.eq.s32.totalorder %s26, 0
      %p152 = por %p150, %p151
      %p153 = scmp.ne.s32.totalorder %s141, %s142
      %p154 = scmp.eq.s32.totalorder %s27, 1
      %p155 = por %p153, %p154
      %p157 = scmp.ne.s32.totalorder %s142, %s156
      %p158 = scmp.eq.s32.totalorder %s27, 0
      %p159 = por %p157, %p158
      %s161 = sadd.s32 %s160, 1
      %p164 = scmp.eq.s32.totalorder %s21, 1
      %p165 = scmp.ne.s32.totalorder %s160, %s162
      %p166 = scmp.eq.s32.totalorder %s21, 0
      %p167 = por %p165, %p166
      %p168 = scmp.ne.s32.totalorder %s160, %s162
      %p169 = scmp.eq.s32.totalorder %s26, 1
      %p170 = por %p168, %p169
      %p171 = scmp.ne.s32.totalorder %s162, %s163
      %p172 = scmp.eq.s32.totalorder %s26, 0
      %p173 = por %p171, %p172
      %p174 = scmp.ne.s32.totalorder %s162, %s163
      %p175 = scmp.eq.s32.totalorder %s27, 1
      %p176 = por %p174, %p175
      %p178 = scmp.ne.s32.totalorder %s163, %s177
      %p179 = scmp.eq.s32.totalorder %s27, 0
      %p180 = por %p178, %p179
      %s181 = ssub.s32 %s21, %s28
      %p182 = scmp.eq.s32.totalorder %s181, 0
      %s184 = sadd.s32 %s183, 1
      %s185 = scalar_select %p182, %s183, %s184
      %p188 = pneg %p182
      %p189 = scmp.eq.s32.totalorder %s21, 1
      %p190 = por %p188, %p189
      %p191 = scmp.ne.s32.totalorder %s183, %s186
      %p192 = scmp.eq.s32.totalorder %s21, 0
      %p193 = por %p191, %p192
      %p194 = scmp.ne.s32.totalorder %s183, %s186
      %p195 = scmp.eq.s32.totalorder %s26, 1
      %p196 = por %p194, %p195
      %p197 = scmp.ne.s32.totalorder %s186, %s187
      %p198 = scmp.eq.s32.totalorder %s26, 0
      %p199 = por %p197, %p198
      %p200 = scmp.ne.s32.totalorder %s186, %s187
      %p201 = scmp.eq.s32.totalorder %s27, 1
      %p202 = por %p200, %p201
      %p204 = scmp.ne.s32.totalorder %s187, %s203
      %p205 = scmp.eq.s32.totalorder %s27, 0
      %p206 = por %p204, %p205
      %p207 = scmp.le.s32.totalorder 1, %s21
      %p208 = scmp.lt.s32.totalorder %s21, 3
      %p209 = pnand %p207, %p208
      %p210 = pneg %p209
      // Predicated region
      $region9: #{tpu_custom_call.1} parent=5 // pred_check
        _
      $region10: #{tpu_custom_call.1} parent=5 // pred_check_branch
        %212 = sbr.rel (%p209) target = $region12
      $region11: #{tpu_custom_call.1} parent=5 // pred_region
        %s213 = ssub.s32 %s21, 1
        // Predicated region
        $region13: #{tpu_custom_call.1} parent=11 // pred_check
          %p214 = pneg %p68
        $region14: #{tpu_custom_call.1} parent=11 // pred_check_branch
          %216 = sbr.rel (%p214) target = $region16
        $region15: #{tpu_custom_call.1} parent=11 // pred_region
          %218 = vsyncadd [#allocation7], 0
          %s219 = sshll.u32 %s1, 4
          %s220 = int_to_ptr.hbm [resolvable:$true] %s219
          %s221 = sshll.u32 [#allocation6], 4
          %s222 = int_to_ptr.vmem [resolvable:$true] %s221
          %227 = dma.hbm_to_vmem [thread:$0]  %s220, 9216, %s222, [#allocation7], 64, 64, 4
        $region16: #{tpu_custom_call.1} parent=11 // pred_fallthru
          _
        // Predicated region
        $region17: #{tpu_custom_call.1} parent=11 // pred_check
          %p228 = pneg %p89
        $region18: #{tpu_custom_call.1} parent=11 // pred_check_branch
          %230 = sbr.rel (%p228) target = $region20
        $region19: #{tpu_custom_call.1} parent=11 // pred_region
          _
        $region20: #{tpu_custom_call.1} parent=11 // pred_fallthru
          _
        // Predicated region
        $region21: #{tpu_custom_call.1} parent=11 // pred_check
          %p231 = pneg %p110
        $region22: #{tpu_custom_call.1} parent=11 // pred_check_branch
          %233 = sbr.rel (%p231) target = $region24
        $region23: #{tpu_custom_call.1} parent=11 // pred_region
          %235 = vsyncadd [#allocation7], 0
          %s236 = sshll.u32 %s3, 4
          %s237 = int_to_ptr.hbm [resolvable:$true] %s236
          %s238 = sshll.u32 [#allocation8], 4
          %s239 = int_to_ptr.vmem [resolvable:$true] %s238
          %244 = dma.hbm_to_vmem [thread:$0]  %s237, 1024, %s239, [#allocation7], 64, 64, 4
        $region24: #{tpu_custom_call.1} parent=11 // pred_fallthru
          _
        // Predicated region
        $region25: #{tpu_custom_call.1} parent=11 // pred_check
          %p245 = pneg %p131
        $region26: #{tpu_custom_call.1} parent=11 // pred_check_branch
          %247 = sbr.rel (%p245) target = $region28
        $region27: #{tpu_custom_call.1} parent=11 // pred_region
          _
        $region28: #{tpu_custom_call.1} parent=11 // pred_fallthru
          _
        // Predicated region
        $region29: #{tpu_custom_call.1} parent=11 // pred_check
          %p248 = pneg %p152
        $region30: #{tpu_custom_call.1} parent=11 // pred_check_branch
          %250 = sbr.rel (%p248) target = $region32
        $region31: #{tpu_custom_call.1} parent=11 // pred_region
          %252 = vsyncadd [#allocation10], 0
          %s253 = sshll.u32 %s5, 4
          %s254 = int_to_ptr.hbm [resolvable:$true] %s253
          %s255 = sshll.u32 [#allocation9], 4
          %s256 = int_to_ptr.vmem [resolvable:$true] %s255
          %261 = dma.hbm_to_vmem [thread:$0]  %s254, 9216, %s256, [#allocation10], 64, 64, 4
        $region32: #{tpu_custom_call.1} parent=11 // pred_fallthru
          _
        // Predicated region
        $region33: #{tpu_custom_call.1} parent=11 // pred_check
          %p262 = pneg %p173
        $region34: #{tpu_custom_call.1} parent=11 // pred_check_branch
          %264 = sbr.rel (%p262) target = $region36
        $region35: #{tpu_custom_call.1} parent=11 // pred_region
          _
        $region36: #{tpu_custom_call.1} parent=11 // pred_fallthru
          _
      $region12: #{tpu_custom_call.1} parent=5 // pred_fallthru
        _
      %p265 = scmp.lt.s32.totalorder %s21, 2
      // Predicated region
      $region37: #{tpu_custom_call.1} parent=5 // pred_check
        %p266 = pneg %p265
      $region38: #{tpu_custom_call.1} parent=5 // pred_check_branch
        %268 = sbr.rel (%p266) target = $region40
      $region39: #{tpu_custom_call.1} parent=5 // pred_region
        // Predicated region
        $region41: #{tpu_custom_call.1} parent=39 // pred_check
          %p269 = pneg %p41
        $region42: #{tpu_custom_call.1} parent=39 // pred_check_branch
          %271 = sbr.rel (%p269) target = $region44
        $region43: #{tpu_custom_call.1} parent=39 // pred_region
          %s272 = sand.u32 %s31, 1
          %s273 = scalar_lea.sflag [#allocation4], %s272
          %s274 = sand.u32 %s31, 1
          %s275 = smul.addr %s274, 256
          %s276 = scalar_lea.vmem [#allocation3], %s275
          %278 = vsyncadd %s273, 0
          %s279 = smul.addr %s21, 32
          %s280 = smul.addr %s279, 8
          %s281 = scalar_lea.hbm %s0, %s280
          %s282 = sshll.u32 %s281, 4
          %s283 = int_to_ptr.hbm [resolvable:$true] %s282
          %s284 = sshll.u32 %s276, 4
          %s285 = int_to_ptr.vmem [resolvable:$true] %s284
          %290 = dma.hbm_to_vmem [thread:$0]  %s283, 4096, %s285, %s273, 128, 128, 8
        $region44: #{tpu_custom_call.1} parent=39 // pred_fallthru
          _
      $region40: #{tpu_custom_call.1} parent=5 // pred_fallthru
        _
      %p291 = scmp.le.s32.totalorder 1, %s21
      %p292 = scmp.lt.s32.totalorder %s21, 3
      %p293 = pnand %p291, %p292
      %p294 = pneg %p293
      // Predicated region
      $region45: #{tpu_custom_call.1} parent=5 // pred_check
        _
      $region46: #{tpu_custom_call.1} parent=5 // pred_check_branch
        %296 = sbr.rel (%p293) target = $region48
      $region47: #{tpu_custom_call.1} parent=5 // pred_region
        %s297 = ssub.s32 %s21, 1
        %s298 = sand.u32 %s34, 1
        %s299 = scalar_lea.sflag [#allocation4], %s298
        %s300 = sand.u32 %s34, 1
        %s301 = smul.addr %s300, 256
        %s302 = scalar_lea.vmem [#allocation3], %s301
        // Predicated region
        $region49: #{tpu_custom_call.1} parent=47 // pred_check
          %p303 = pneg %p47
        $region50: #{tpu_custom_call.1} parent=47 // pred_check_branch
          %305 = sbr.rel (%p303) target = $region52
        $region51: #{tpu_custom_call.1} parent=47 // pred_region
          %307 = dma.done %s299, 4096
        $region52: #{tpu_custom_call.1} parent=47 // pred_fallthru
          _
        // Predicated region
        $region53: #{tpu_custom_call.1} parent=47 // pred_check
          %p308 = pneg %p68
        $region54: #{tpu_custom_call.1} parent=47 // pred_check_branch
          %310 = sbr.rel (%p308) target = $region56
        $region55: #{tpu_custom_call.1} parent=47 // pred_region
          %312 = dma.done [#allocation7], 9216
        $region56: #{tpu_custom_call.1} parent=47 // pred_fallthru
          _
        // Predicated region
        $region57: #{tpu_custom_call.1} parent=47 // pred_check
          %p313 = pneg %p110
        $region58: #{tpu_custom_call.1} parent=47 // pred_check_branch
          %315 = sbr.rel (%p313) target = $region60
        $region59: #{tpu_custom_call.1} parent=47 // pred_region
          %317 = dma.done [#allocation7], 1024
        $region60: #{tpu_custom_call.1} parent=47 // pred_fallthru
          _
        // Predicated region
        $region61: #{tpu_custom_call.1} parent=47 // pred_check
          %p318 = pneg %p152
        $region62: #{tpu_custom_call.1} parent=47 // pred_check_branch
          %320 = sbr.rel (%p318) target = $region64
        $region63: #{tpu_custom_call.1} parent=47 // pred_region
          %322 = dma.done [#allocation10], 9216
        $region64: #{tpu_custom_call.1} parent=47 // pred_fallthru
          _
        %s323 = sand.u32 %s34, 1
        %s324 = scalar_lea.sflag [#allocation4], %s323
        %s325 = sand.u32 %s34, 1
        %s326 = smul.addr %s325, 256
        %s327 = scalar_lea.vmem [#allocation3], %s326
        %p328 = pneg %p47
        %p329 = pneg %p44
        %p330 = pneg %p68
        %p331 = pneg %p65
        %p332 = pneg %p89
        %p333 = pneg %p86
        %p334 = pneg %p110
        %p335 = pneg %p107
        %p336 = pneg %p131
        %p337 = pneg %p128
        %p338 = pneg %p152
        %p339 = pneg %p149
        %p340 = pneg %p173
        %p341 = pneg %p170
        %p342 = pneg %p199
        %p343 = pneg %p196
        %s344 = sand.u32 %s186, 1
        %s345 = scalar_lea.sflag [#allocation5], %s344
        %s346 = sand.u32 %s186, 1
        %s347 = smul.addr %s346, 64
        %s348 = scalar_lea.vmem [#allocation11], %s347
        %v350 = vld [vmem:[%s302] sm:$0xff]
        %v351 = vld [vmem:[%s302 + $0x8] sm:$0xff]
        %v352 = vld [vmem:[%s302 + $0x10] sm:$0xff]
        %v353 = vld [vmem:[%s302 + $0x18] sm:$0xff]
        %v354 = vld [vmem:[%s302 + $0x20] sm:$0xff]
        %v355 = vld [vmem:[%s302 + $0x28] sm:$0xff]
        %v356 = vld [vmem:[%s302 + $0x30] sm:$0xff]
        %v357 = vld [vmem:[%s302 + $0x38] sm:$0xff]
        %v358 = vld [vmem:[%s302 + $0x40] sm:$0xff]
        %v359 = vld [vmem:[%s302 + $0x48] sm:$0xff]
        %v360 = vld [vmem:[%s302 + $0x50] sm:$0xff]
        %v361 = vld [vmem:[%s302 + $0x58] sm:$0xff]
        %v362 = vld [vmem:[%s302 + $0x60] sm:$0xff]
        %v363 = vld [vmem:[%s302 + $0x68] sm:$0xff]
        %v364 = vld [vmem:[%s302 + $0x70] sm:$0xff]
        %v365 = vld [vmem:[%s302 + $0x78] sm:$0xff]
        %v366 = vld [vmem:[%s302 + $0x80] sm:$0xff]
        %v367 = vld [vmem:[%s302 + $0x88] sm:$0xff]
        %v368 = vld [vmem:[%s302 + $0x90] sm:$0xff]
        %v369 = vld [vmem:[%s302 + $0x98] sm:$0xff]
        %v370 = vld [vmem:[%s302 + $0xa0] sm:$0xff]
        %v371 = vld [vmem:[%s302 + $0xa8] sm:$0xff]
        %v372 = vld [vmem:[%s302 + $0xb0] sm:$0xff]
        %v373 = vld [vmem:[%s302 + $0xb8] sm:$0xff]
        %v374 = vld [vmem:[%s302 + $0xc0] sm:$0xff]
        %v375 = vld [vmem:[%s302 + $0xc8] sm:$0xff]
        %v376 = vld [vmem:[%s302 + $0xd0] sm:$0xff]
        %v377 = vld [vmem:[%s302 + $0xd8] sm:$0xff]
        %v378 = vld [vmem:[%s302 + $0xe0] sm:$0xff]
        %v379 = vld [vmem:[%s302 + $0xe8] sm:$0xff]
        %v380 = vld [vmem:[%s302 + $0xf0] sm:$0xff]
        %v381 = vld [vmem:[%s302 + $0xf8] sm:$0xff]
        %382 = vst [vmem:[#allocation2] sm:$0xf] 0
        %383 = vst [vmem:[#allocation2 + $0x4] sm:$0xf] 0
        %s384 = scalar_lea.vmem [#allocation2], 72
        %385 = vst [vmem:[%s384] sm:$0xf] 0
        %386 = vst [vmem:[%s384 + $0x4] sm:$0xf] 0
        %s387 = scalar_lea.vmem [#allocation2], 8
        %vm388 = vcmask 1040384
        %vm389 = vsmask.f32 256
        %vm390 = vmand %vm388, %vm389
        %v391 = vld [vmem:[%s387] sm:$0x1]
        %v392 = vsel %vm390, 0, %v391
        %393 = vst [vmem:[%s387] sm:$0x1] %v392
        %v394 = vld [vmem:[%s387 + $0x8] sm:$0x1]
        %v395 = vsel %vm390, 0, %v394
        %396 = vst [vmem:[%s387 + $0x8] sm:$0x1] %v395
        %v397 = vld [vmem:[%s387 + $0x10] sm:$0x1]
        %v398 = vsel %vm390, 0, %v397
        %399 = vst [vmem:[%s387 + $0x10] sm:$0x1] %v398
        %v400 = vld [vmem:[%s387 + $0x18] sm:$0x1]
        %v401 = vsel %vm390, 0, %v400
        %402 = vst [vmem:[%s387 + $0x18] sm:$0x1] %v401
        %v403 = vld [vmem:[%s387 + $0x20] sm:$0x1]
        %v404 = vsel %vm390, 0, %v403
        %405 = vst [vmem:[%s387 + $0x20] sm:$0x1] %v404
        %v406 = vld [vmem:[%s387 + $0x28] sm:$0x1]
        %v407 = vsel %vm390, 0, %v406
        %408 = vst [vmem:[%s387 + $0x28] sm:$0x1] %v407
        %v409 = vld [vmem:[%s387 + $0x30] sm:$0x1]
        %v410 = vsel %vm390, 0, %v409
        %411 = vst [vmem:[%s387 + $0x30] sm:$0x1] %v410
        %v412 = vld [vmem:[%s387 + $0x38] sm:$0x1]
        %v413 = vsel %vm390, 0, %v412
        %414 = vst [vmem:[%s387 + $0x38] sm:$0x1] %v413
        %vm415 = vsmask.f32 7938
        %vm416 = vmand %vm388, %vm415
        %v417 = vld [vmem:[%s387 + $0x4] sm:$0x1]
        %v418 = vsel %vm416, 0, %v417
        %419 = vst [vmem:[%s387 + $0x4] sm:$0x1] %v418
        %v420 = vld [vmem:[%s387 + $0xc] sm:$0x1]
        %v421 = vsel %vm416, 0, %v420
        %422 = vst [vmem:[%s387 + $0xc] sm:$0x1] %v421
        %v423 = vld [vmem:[%s387 + $0x14] sm:$0x1]
        %v424 = vsel %vm416, 0, %v423
        %425 = vst [vmem:[%s387 + $0x14] sm:$0x1] %v424
        %v426 = vld [vmem:[%s387 + $0x1c] sm:$0x1]
        %v427 = vsel %vm416, 0, %v426
        %428 = vst [vmem:[%s387 + $0x1c] sm:$0x1] %v427
        %v429 = vld [vmem:[%s387 + $0x24] sm:$0x1]
        %v430 = vsel %vm416, 0, %v429
        %431 = vst [vmem:[%s387 + $0x24] sm:$0x1] %v430
        %v432 = vld [vmem:[%s387 + $0x2c] sm:$0x1]
        %v433 = vsel %vm416, 0, %v432
        %434 = vst [vmem:[%s387 + $0x2c] sm:$0x1] %v433
        %v435 = vld [vmem:[%s387 + $0x34] sm:$0x1]
        %v436 = vsel %vm416, 0, %v435
        %437 = vst [vmem:[%s387 + $0x34] sm:$0x1] %v436
        %v438 = vld [vmem:[%s387 + $0x3c] sm:$0x1]
        %v439 = vsel %vm416, 0, %v438
        %440 = vst [vmem:[%s387 + $0x3c] sm:$0x1] %v439
        %v473 = vrot.slane %v350, 2
        %v474 = vrot.slane %v350, 4
        %v475 = vrot.slane %v350, 6
        %v476 = vrot.slane %v351, 2
        %v477 = vrot.slane %v351, 4
        %v478 = vrot.slane %v351, 6
        %v479 = vrot.slane %v352, 2
        %v480 = vrot.slane %v352, 4
        %v481 = vrot.slane %v352, 6
        %v482 = vrot.slane %v353, 2
        %v483 = vrot.slane %v353, 4
        %v484 = vrot.slane %v353, 6
        %v485 = vrot.slane %v354, 2
        %v486 = vrot.slane %v354, 4
        %v487 = vrot.slane %v354, 6
        %v488 = vrot.slane %v355, 2
        %v489 = vrot.slane %v355, 4
        %v490 = vrot.slane %v355, 6
        %v491 = vrot.slane %v356, 2
        %v492 = vrot.slane %v356, 4
        %v493 = vrot.slane %v356, 6
        %v494 = vrot.slane %v357, 2
        %v495 = vrot.slane %v357, 4
        %v496 = vrot.slane %v357, 6
        %v497 = vrot.slane %v358, 2
        %v498 = vrot.slane %v358, 4
        %v499 = vrot.slane %v358, 6
        %v500 = vrot.slane %v359, 2
        %v501 = vrot.slane %v359, 4
        %v502 = vrot.slane %v359, 6
        %v503 = vrot.slane %v360, 2
        %v504 = vrot.slane %v360, 4
        %v505 = vrot.slane %v360, 6
        %v506 = vrot.slane %v361, 2
        %v507 = vrot.slane %v361, 4
        %v508 = vrot.slane %v361, 6
        %v509 = vrot.slane %v362, 2
        %v510 = vrot.slane %v362, 4
        %v511 = vrot.slane %v362, 6
        %v512 = vrot.slane %v363, 2
        %v513 = vrot.slane %v363, 4
        %v514 = vrot.slane %v363, 6
        %v515 = vrot.slane %v364, 2
        %v516 = vrot.slane %v364, 4
        %v517 = vrot.slane %v364, 6
        %v518 = vrot.slane %v365, 2
        %v519 = vrot.slane %v365, 4
        %v520 = vrot.slane %v365, 6
        %v521 = vrot.slane %v366, 2
        %v522 = vrot.slane %v366, 4
        %v523 = vrot.slane %v366, 6
        %v524 = vrot.slane %v367, 2
        %v525 = vrot.slane %v367, 4
        %v526 = vrot.slane %v367, 6
        %v527 = vrot.slane %v368, 2
        %v528 = vrot.slane %v368, 4
        %v529 = vrot.slane %v368, 6
        %v530 = vrot.slane %v369, 2
        %v531 = vrot.slane %v369, 4
        %v532 = vrot.slane %v369, 6
        %v533 = vrot.slane %v370, 2
        %v534 = vrot.slane %v370, 4
        %v535 = vrot.slane %v370, 6
        %v536 = vrot.slane %v371, 2
        %v537 = vrot.slane %v371, 4
        %v538 = vrot.slane %v371, 6
        %v539 = vrot.slane %v372, 2
        %v540 = vrot.slane %v372, 4
        %v541 = vrot.slane %v372, 6
        %v542 = vrot.slane %v373, 2
        %v543 = vrot.slane %v373, 4
        %v544 = vrot.slane %v373, 6
        %v545 = vrot.slane %v374, 2
        %v546 = vrot.slane %v374, 4
        %v547 = vrot.slane %v374, 6
        %v548 = vrot.slane %v375, 2
        %v549 = vrot.slane %v375, 4
        %v550 = vrot.slane %v375, 6
        %v551 = vrot.slane %v376, 2
        %v552 = vrot.slane %v376, 4
        %v553 = vrot.slane %v376, 6
        %v554 = vrot.slane %v377, 2
        %v555 = vrot.slane %v377, 4
        %v556 = vrot.slane %v377, 6
        %v557 = vrot.slane %v378, 2
        %v558 = vrot.slane %v378, 4
        %v559 = vrot.slane %v378, 6
        %v560 = vrot.slane %v379, 2
        %v561 = vrot.slane %v379, 4
        %v562 = vrot.slane %v379, 6
        %v563 = vrot.slane %v380, 2
        %v564 = vrot.slane %v380, 4
        %v565 = vrot.slane %v380, 6
        %v566 = vrot.slane %v381, 2
        %v567 = vrot.slane %v381, 4
        %v568 = vrot.slane %v381, 6
        %v665 = vrot.slane %v350, 7
        %v666 = vrot.slane %v665, 2
        %v667 = vrot.slane %v473, 7
        %v668 = vrot.slane %v667, 2
        %v669 = vrot.slane %v474, 7
        %v670 = vrot.slane %v669, 2
        %v671 = vrot.slane %v475, 7
        %v672 = vrot.slane %v671, 2
        %v673 = vrot.slane %v351, 7
        %v674 = vrot.slane %v673, 2
        %v675 = vrot.slane %v476, 7
        %v676 = vrot.slane %v675, 2
        %v677 = vrot.slane %v477, 7
        %v678 = vrot.slane %v677, 2
        %v679 = vrot.slane %v478, 7
        %v680 = vrot.slane %v679, 2
        %v681 = vrot.slane %v352, 7
        %v682 = vrot.slane %v681, 2
        %v683 = vrot.slane %v479, 7
        %v684 = vrot.slane %v683, 2
        %v685 = vrot.slane %v480, 7
        %v686 = vrot.slane %v685, 2
        %v687 = vrot.slane %v481, 7
        %v688 = vrot.slane %v687, 2
        %v689 = vrot.slane %v353, 7
        %v690 = vrot.slane %v689, 2
        %v691 = vrot.slane %v482, 7
        %v692 = vrot.slane %v691, 2
        %v693 = vrot.slane %v483, 7
        %v694 = vrot.slane %v693, 2
        %v695 = vrot.slane %v484, 7
        %v696 = vrot.slane %v695, 2
        %v697 = vrot.slane %v354, 7
        %v698 = vrot.slane %v697, 2
        %v699 = vrot.slane %v485, 7
        %v700 = vrot.slane %v699, 2
        %v701 = vrot.slane %v486, 7
        %v702 = vrot.slane %v701, 2
        %v703 = vrot.slane %v487, 7
        %v704 = vrot.slane %v703, 2
        %v705 = vrot.slane %v355, 7
        %v706 = vrot.slane %v705, 2
        %v707 = vrot.slane %v488, 7
        %v708 = vrot.slane %v707, 2
        %v709 = vrot.slane %v489, 7
        %v710 = vrot.slane %v709, 2
        %v711 = vrot.slane %v490, 7
        %v712 = vrot.slane %v711, 2
        %v713 = vrot.slane %v356, 7
        %v714 = vrot.slane %v713, 2
        %v715 = vrot.slane %v491, 7
        %v716 = vrot.slane %v715, 2
        %v717 = vrot.slane %v492, 7
        %v718 = vrot.slane %v717, 2
        %v719 = vrot.slane %v493, 7
        %v720 = vrot.slane %v719, 2
        %v721 = vrot.slane %v357, 7
        %v722 = vrot.slane %v721, 2
        %v723 = vrot.slane %v494, 7
        %v724 = vrot.slane %v723, 2
        %v725 = vrot.slane %v495, 7
        %v726 = vrot.slane %v725, 2
        %v727 = vrot.slane %v496, 7
        %v728 = vrot.slane %v727, 2
        %v729 = vrot.slane %v358, 7
        %v730 = vrot.slane %v729, 2
        %v731 = vrot.slane %v497, 7
        %v732 = vrot.slane %v731, 2
        %v733 = vrot.slane %v498, 7
        %v734 = vrot.slane %v733, 2
        %v735 = vrot.slane %v499, 7
        %v736 = vrot.slane %v735, 2
        %v737 = vrot.slane %v359, 7
        %v738 = vrot.slane %v737, 2
        %v739 = vrot.slane %v500, 7
        %v740 = vrot.slane %v739, 2
        %v741 = vrot.slane %v501, 7
        %v742 = vrot.slane %v741, 2
        %v743 = vrot.slane %v502, 7
        %v744 = vrot.slane %v743, 2
        %v745 = vrot.slane %v360, 7
        %v746 = vrot.slane %v745, 2
        %v747 = vrot.slane %v503, 7
        %v748 = vrot.slane %v747, 2
        %v749 = vrot.slane %v504, 7
        %v750 = vrot.slane %v749, 2
        %v751 = vrot.slane %v505, 7
        %v752 = vrot.slane %v751, 2
        %v753 = vrot.slane %v361, 7
        %v754 = vrot.slane %v753, 2
        %v755 = vrot.slane %v506, 7
        %v756 = vrot.slane %v755, 2
        %v757 = vrot.slane %v507, 7
        %v758 = vrot.slane %v757, 2
        %v759 = vrot.slane %v508, 7
        %v760 = vrot.slane %v759, 2
        %v761 = vrot.slane %v362, 7
        %v762 = vrot.slane %v761, 2
        %v763 = vrot.slane %v509, 7
        %v764 = vrot.slane %v763, 2
        %v765 = vrot.slane %v510, 7
        %v766 = vrot.slane %v765, 2
        %v767 = vrot.slane %v511, 7
        %v768 = vrot.slane %v767, 2
        %v769 = vrot.slane %v363, 7
        %v770 = vrot.slane %v769, 2
        %v771 = vrot.slane %v512, 7
        %v772 = vrot.slane %v771, 2
        %v773 = vrot.slane %v513, 7
        %v774 = vrot.slane %v773, 2
        %v775 = vrot.slane %v514, 7
        %v776 = vrot.slane %v775, 2
        %v777 = vrot.slane %v364, 7
        %v778 = vrot.slane %v777, 2
        %v779 = vrot.slane %v515, 7
        %v780 = vrot.slane %v779, 2
        %v781 = vrot.slane %v516, 7
        %v782 = vrot.slane %v781, 2
        %v783 = vrot.slane %v517, 7
        %v784 = vrot.slane %v783, 2
        %v785 = vrot.slane %v365, 7
        %v786 = vrot.slane %v785, 2
        %v787 = vrot.slane %v518, 7
        %v788 = vrot.slane %v787, 2
        %v789 = vrot.slane %v519, 7
        %v790 = vrot.slane %v789, 2
        %v791 = vrot.slane %v520, 7
        %v792 = vrot.slane %v791, 2
        %v793 = vrot.slane %v366, 7
        %v794 = vrot.slane %v793, 2
        %v795 = vrot.slane %v521, 7
        %v796 = vrot.slane %v795, 2
        %v797 = vrot.slane %v522, 7
        %v798 = vrot.slane %v797, 2
        %v799 = vrot.slane %v523, 7
        %v800 = vrot.slane %v799, 2
        %v801 = vrot.slane %v367, 7
        %v802 = vrot.slane %v801, 2
        %v803 = vrot.slane %v524, 7
        %v804 = vrot.slane %v803, 2
        %v805 = vrot.slane %v525, 7
        %v806 = vrot.slane %v805, 2
        %v807 = vrot.slane %v526, 7
        %v808 = vrot.slane %v807, 2
        %v809 = vrot.slane %v368, 7
        %v810 = vrot.slane %v809, 2
        %v811 = vrot.slane %v527, 7
        %v812 = vrot.slane %v811, 2
        %v813 = vrot.slane %v528, 7
        %v814 = vrot.slane %v813, 2
        %v815 = vrot.slane %v529, 7
        %v816 = vrot.slane %v815, 2
        %v817 = vrot.slane %v369, 7
        %v818 = vrot.slane %v817, 2
        %v819 = vrot.slane %v530, 7
        %v820 = vrot.slane %v819, 2
        %v821 = vrot.slane %v531, 7
        %v822 = vrot.slane %v821, 2
        %v823 = vrot.slane %v532, 7
        %v824 = vrot.slane %v823, 2
        %v825 = vrot.slane %v370, 7
        %v826 = vrot.slane %v825, 2
        %v827 = vrot.slane %v533, 7
        %v828 = vrot.slane %v827, 2
        %v829 = vrot.slane %v534, 7
        %v830 = vrot.slane %v829, 2
        %v831 = vrot.slane %v535, 7
        %v832 = vrot.slane %v831, 2
        %v833 = vrot.slane %v371, 7
        %v834 = vrot.slane %v833, 2
        %v835 = vrot.slane %v536, 7
        %v836 = vrot.slane %v835, 2
        %v837 = vrot.slane %v537, 7
        %v838 = vrot.slane %v837, 2
        %v839 = vrot.slane %v538, 7
        %v840 = vrot.slane %v839, 2
        %v841 = vrot.slane %v372, 7
        %v842 = vrot.slane %v841, 2
        %v843 = vrot.slane %v539, 7
        %v844 = vrot.slane %v843, 2
        %v845 = vrot.slane %v540, 7
        %v846 = vrot.slane %v845, 2
        %v847 = vrot.slane %v541, 7
        %v848 = vrot.slane %v847, 2
        %v849 = vrot.slane %v373, 7
        %v850 = vrot.slane %v849, 2
        %v851 = vrot.slane %v542, 7
        %v852 = vrot.slane %v851, 2
        %v853 = vrot.slane %v543, 7
        %v854 = vrot.slane %v853, 2
        %v855 = vrot.slane %v544, 7
        %v856 = vrot.slane %v855, 2
        %v857 = vrot.slane %v374, 7
        %v858 = vrot.slane %v857, 2
        %v859 = vrot.slane %v545, 7
        %v860 = vrot.slane %v859, 2
        %v861 = vrot.slane %v546, 7
        %v862 = vrot.slane %v861, 2
        %v863 = vrot.slane %v547, 7
        %v864 = vrot.slane %v863, 2
        %v865 = vrot.slane %v375, 7
        %v866 = vrot.slane %v865, 2
        %v867 = vrot.slane %v548, 7
        %v868 = vrot.slane %v867, 2
        %v869 = vrot.slane %v549, 7
        %v870 = vrot.slane %v869, 2
        %v871 = vrot.slane %v550, 7
        %v872 = vrot.slane %v871, 2
        %v873 = vrot.slane %v376, 7
        %v874 = vrot.slane %v873, 2
        %v875 = vrot.slane %v551, 7
        %v876 = vrot.slane %v875, 2
        %v877 = vrot.slane %v552, 7
        %v878 = vrot.slane %v877, 2
        %v879 = vrot.slane %v553, 7
        %v880 = vrot.slane %v879, 2
        %v881 = vrot.slane %v377, 7
        %v882 = vrot.slane %v881, 2
        %v883 = vrot.slane %v554, 7
        %v884 = vrot.slane %v883, 2
        %v885 = vrot.slane %v555, 7
        %v886 = vrot.slane %v885, 2
        %v887 = vrot.slane %v556, 7
        %v888 = vrot.slane %v887, 2
        %v889 = vrot.slane %v378, 7
        %v890 = vrot.slane %v889, 2
        %v891 = vrot.slane %v557, 7
        %v892 = vrot.slane %v891, 2
        %v893 = vrot.slane %v558, 7
        %v894 = vrot.slane %v893, 2
        %v895 = vrot.slane %v559, 7
        %v896 = vrot.slane %v895, 2
        %v897 = vrot.slane %v379, 7
        %v898 = vrot.slane %v897, 2
        %v899 = vrot.slane %v560, 7
        %v900 = vrot.slane %v899, 2
        %v901 = vrot.slane %v561, 7
        %v902 = vrot.slane %v901, 2
        %v903 = vrot.slane %v562, 7
        %v904 = vrot.slane %v903, 2
        %v905 = vrot.slane %v380, 7
        %v906 = vrot.slane %v905, 2
        %v907 = vrot.slane %v563, 7
        %v908 = vrot.slane %v907, 2
        %v909 = vrot.slane %v564, 7
        %v910 = vrot.slane %v909, 2
        %v911 = vrot.slane %v565, 7
        %v912 = vrot.slane %v911, 2
        %v913 = vrot.slane %v381, 7
        %v914 = vrot.slane %v913, 2
        %v915 = vrot.slane %v566, 7
        %v916 = vrot.slane %v915, 2
        %v917 = vrot.slane %v567, 7
        %v918 = vrot.slane %v917, 2
        %v919 = vrot.slane %v568, 7
        %v920 = vrot.slane %v919, 2
        %v1049 = vadd.f32 %v350, %v666
        %v1050 = vadd.f32 %v473, %v668
        %v1051 = vadd.f32 %v474, %v670
        %v1052 = vadd.f32 %v475, %v672
        %v1053 = vadd.f32 %v351, %v674
        %v1054 = vadd.f32 %v476, %v676
        %v1055 = vadd.f32 %v477, %v678
        %v1056 = vadd.f32 %v478, %v680
        %v1057 = vadd.f32 %v352, %v682
        %v1058 = vadd.f32 %v479, %v684
        %v1059 = vadd.f32 %v480, %v686
        %v1060 = vadd.f32 %v481, %v688
        %v1061 = vadd.f32 %v353, %v690
        %v1062 = vadd.f32 %v482, %v692
        %v1063 = vadd.f32 %v483, %v694
        %v1064 = vadd.f32 %v484, %v696
        %v1065 = vadd.f32 %v354, %v698
        %v1066 = vadd.f32 %v485, %v700
        %v1067 = vadd.f32 %v486, %v702
        %v1068 = vadd.f32 %v487, %v704
        %v1069 = vadd.f32 %v355, %v706
        %v1070 = vadd.f32 %v488, %v708
        %v1071 = vadd.f32 %v489, %v710
        %v1072 = vadd.f32 %v490, %v712
        %v1073 = vadd.f32 %v356, %v714
        %v1074 = vadd.f32 %v491, %v716
        %v1075 = vadd.f32 %v492, %v718
        %v1076 = vadd.f32 %v493, %v720
        %v1077 = vadd.f32 %v357, %v722
        %v1078 = vadd.f32 %v494, %v724
        %v1079 = vadd.f32 %v495, %v726
        %v1080 = vadd.f32 %v496, %v728
        %v1081 = vadd.f32 %v358, %v730
        %v1082 = vadd.f32 %v497, %v732
        %v1083 = vadd.f32 %v498, %v734
        %v1084 = vadd.f32 %v499, %v736
        %v1085 = vadd.f32 %v359, %v738
        %v1086 = vadd.f32 %v500, %v740
        %v1087 = vadd.f32 %v501, %v742
        %v1088 = vadd.f32 %v502, %v744
        %v1089 = vadd.f32 %v360, %v746
        %v1090 = vadd.f32 %v503, %v748
        %v1091 = vadd.f32 %v504, %v750
        %v1092 = vadd.f32 %v505, %v752
        %v1093 = vadd.f32 %v361, %v754
        %v1094 = vadd.f32 %v506, %v756
        %v1095 = vadd.f32 %v507, %v758
        %v1096 = vadd.f32 %v508, %v760
        %v1097 = vadd.f32 %v362, %v762
        %v1098 = vadd.f32 %v509, %v764
        %v1099 = vadd.f32 %v510, %v766
        %v1100 = vadd.f32 %v511, %v768
        %v1101 = vadd.f32 %v363, %v770
        %v1102 = vadd.f32 %v512, %v772
        %v1103 = vadd.f32 %v513, %v774
        %v1104 = vadd.f32 %v514, %v776
        %v1105 = vadd.f32 %v364, %v778
        %v1106 = vadd.f32 %v515, %v780
        %v1107 = vadd.f32 %v516, %v782
        %v1108 = vadd.f32 %v517, %v784
        %v1109 = vadd.f32 %v365, %v786
        %v1110 = vadd.f32 %v518, %v788
        %v1111 = vadd.f32 %v519, %v790
        %v1112 = vadd.f32 %v520, %v792
        %v1113 = vadd.f32 %v366, %v794
        %v1114 = vadd.f32 %v521, %v796
        %v1115 = vadd.f32 %v522, %v798
        %v1116 = vadd.f32 %v523, %v800
        %v1117 = vadd.f32 %v367, %v802
        %v1118 = vadd.f32 %v524, %v804
        %v1119 = vadd.f32 %v525, %v806
        %v1120 = vadd.f32 %v526, %v808
        %v1121 = vadd.f32 %v368, %v810
        %v1122 = vadd.f32 %v527, %v812
        %v1123 = vadd.f32 %v528, %v814
        %v1124 = vadd.f32 %v529, %v816
        %v1125 = vadd.f32 %v369, %v818
        %v1126 = vadd.f32 %v530, %v820
        %v1127 = vadd.f32 %v531, %v822
        %v1128 = vadd.f32 %v532, %v824
        %v1129 = vadd.f32 %v370, %v826
        %v1130 = vadd.f32 %v533, %v828
        %v1131 = vadd.f32 %v534, %v830
        %v1132 = vadd.f32 %v535, %v832
        %v1133 = vadd.f32 %v371, %v834
        %v1134 = vadd.f32 %v536, %v836
        %v1135 = vadd.f32 %v537, %v838
        %v1136 = vadd.f32 %v538, %v840
        %v1137 = vadd.f32 %v372, %v842
        %v1138 = vadd.f32 %v539, %v844
        %v1139 = vadd.f32 %v540, %v846
        %v1140 = vadd.f32 %v541, %v848
        %v1141 = vadd.f32 %v373, %v850
        %v1142 = vadd.f32 %v542, %v852
        %v1143 = vadd.f32 %v543, %v854
        %v1144 = vadd.f32 %v544, %v856
        %v1145 = vadd.f32 %v374, %v858
        %v1146 = vadd.f32 %v545, %v860
        %v1147 = vadd.f32 %v546, %v862
        %v1148 = vadd.f32 %v547, %v864
        %v1149 = vadd.f32 %v375, %v866
        %v1150 = vadd.f32 %v548, %v868
        %v1151 = vadd.f32 %v549, %v870
        %v1152 = vadd.f32 %v550, %v872
        %v1153 = vadd.f32 %v376, %v874
        %v1154 = vadd.f32 %v551, %v876
        %v1155 = vadd.f32 %v552, %v878
        %v1156 = vadd.f32 %v553, %v880
        %v1157 = vadd.f32 %v377, %v882
        %v1158 = vadd.f32 %v554, %v884
        %v1159 = vadd.f32 %v555, %v886
        %v1160 = vadd.f32 %v556, %v888
        %v1161 = vadd.f32 %v378, %v890
        %v1162 = vadd.f32 %v557, %v892
        %v1163 = vadd.f32 %v558, %v894
        %v1164 = vadd.f32 %v559, %v896
        %v1165 = vadd.f32 %v379, %v898
        %v1166 = vadd.f32 %v560, %v900
        %v1167 = vadd.f32 %v561, %v902
        %v1168 = vadd.f32 %v562, %v904
        %v1169 = vadd.f32 %v380, %v906
        %v1170 = vadd.f32 %v563, %v908
        %v1171 = vadd.f32 %v564, %v910
        %v1172 = vadd.f32 %v565, %v912
        %v1173 = vadd.f32 %v381, %v914
        %v1174 = vadd.f32 %v566, %v916
        %v1175 = vadd.f32 %v567, %v918
        %v1176 = vadd.f32 %v568, %v920
        %v1177 = vadd.f32 %v1049, %v1057
        %v1178 = vadd.f32 %v1050, %v1058
        %v1179 = vadd.f32 %v1051, %v1059
        %v1180 = vadd.f32 %v1052, %v1060
        %v1181 = vadd.f32 %v1053, %v1061
        %v1182 = vadd.f32 %v1054, %v1062
        %v1183 = vadd.f32 %v1055, %v1063
        %v1184 = vadd.f32 %v1056, %v1064
        %v1185 = vadd.f32 %v1065, %v1073
        %v1186 = vadd.f32 %v1066, %v1074
        %v1187 = vadd.f32 %v1067, %v1075
        %v1188 = vadd.f32 %v1068, %v1076
        %v1189 = vadd.f32 %v1069, %v1077
        %v1190 = vadd.f32 %v1070, %v1078
        %v1191 = vadd.f32 %v1071, %v1079
        %v1192 = vadd.f32 %v1072, %v1080
        %v1193 = vadd.f32 %v1081, %v1089
        %v1194 = vadd.f32 %v1082, %v1090
        %v1195 = vadd.f32 %v1083, %v1091
        %v1196 = vadd.f32 %v1084, %v1092
        %v1197 = vadd.f32 %v1085, %v1093
        %v1198 = vadd.f32 %v1086, %v1094
        %v1199 = vadd.f32 %v1087, %v1095
        %v1200 = vadd.f32 %v1088, %v1096
        %v1201 = vadd.f32 %v1097, %v1105
        %v1202 = vadd.f32 %v1098, %v1106
        %v1203 = vadd.f32 %v1099, %v1107
        %v1204 = vadd.f32 %v1100, %v1108
        %v1205 = vadd.f32 %v1101, %v1109
        %v1206 = vadd.f32 %v1102, %v1110
        %v1207 = vadd.f32 %v1103, %v1111
        %v1208 = vadd.f32 %v1104, %v1112
        %v1209 = vadd.f32 %v1113, %v1121
        %v1210 = vadd.f32 %v1114, %v1122
        %v1211 = vadd.f32 %v1115, %v1123
        %v1212 = vadd.f32 %v1116, %v1124
        %v1213 = vadd.f32 %v1117, %v1125
        %v1214 = vadd.f32 %v1118, %v1126
        %v1215 = vadd.f32 %v1119, %v1127
        %v1216 = vadd.f32 %v1120, %v1128
        %v1217 = vadd.f32 %v1129, %v1137
        %v1218 = vadd.f32 %v1130, %v1138
        %v1219 = vadd.f32 %v1131, %v1139
        %v1220 = vadd.f32 %v1132, %v1140
        %v1221 = vadd.f32 %v1133, %v1141
        %v1222 = vadd.f32 %v1134, %v1142
        %v1223 = vadd.f32 %v1135, %v1143
        %v1224 = vadd.f32 %v1136, %v1144
        %v1225 = vadd.f32 %v1145, %v1153
        %v1226 = vadd.f32 %v1146, %v1154
        %v1227 = vadd.f32 %v1147, %v1155
        %v1228 = vadd.f32 %v1148, %v1156
        %v1229 = vadd.f32 %v1149, %v1157
        %v1230 = vadd.f32 %v1150, %v1158
        %v1231 = vadd.f32 %v1151, %v1159
        %v1232 = vadd.f32 %v1152, %v1160
        %v1233 = vadd.f32 %v1161, %v1169
        %v1234 = vadd.f32 %v1162, %v1170
        %v1235 = vadd.f32 %v1163, %v1171
        %v1236 = vadd.f32 %v1164, %v1172
        %v1237 = vadd.f32 %v1165, %v1173
        %v1238 = vadd.f32 %v1166, %v1174
        %v1239 = vadd.f32 %v1167, %v1175
        %v1240 = vadd.f32 %v1168, %v1176
        %v1241 = vmul.f32 %v1177, 0.25
        %v1242 = vmul.f32 %v1178, 0.25
        %v1243 = vmul.f32 %v1179, 0.25
        %v1244 = vmul.f32 %v1180, 0.25
        %v1245 = vmul.f32 %v1181, 0.25
        %v1246 = vmul.f32 %v1182, 0.25
        %v1247 = vmul.f32 %v1183, 0.25
        %v1248 = vmul.f32 %v1184, 0.25
        %v1249 = vmul.f32 %v1185, 0.25
        %v1250 = vmul.f32 %v1186, 0.25
        %v1251 = vmul.f32 %v1187, 0.25
        %v1252 = vmul.f32 %v1188, 0.25
        %v1253 = vmul.f32 %v1189, 0.25
        %v1254 = vmul.f32 %v1190, 0.25
        %v1255 = vmul.f32 %v1191, 0.25
        %v1256 = vmul.f32 %v1192, 0.25
        %v1257 = vmul.f32 %v1193, 0.25
        %v1258 = vmul.f32 %v1194, 0.25
        %v1259 = vmul.f32 %v1195, 0.25
        %v1260 = vmul.f32 %v1196, 0.25
        %v1261 = vmul.f32 %v1197, 0.25
        %v1262 = vmul.f32 %v1198, 0.25
        %v1263 = vmul.f32 %v1199, 0.25
        %v1264 = vmul.f32 %v1200, 0.25
        %v1265 = vmul.f32 %v1201, 0.25
        %v1266 = vmul.f32 %v1202, 0.25
        %v1267 = vmul.f32 %v1203, 0.25
        %v1268 = vmul.f32 %v1204, 0.25
        %v1269 = vmul.f32 %v1205, 0.25
        %v1270 = vmul.f32 %v1206, 0.25
        %v1271 = vmul.f32 %v1207, 0.25
        %v1272 = vmul.f32 %v1208, 0.25
        %v1273 = vmul.f32 %v1209, 0.25
        %v1274 = vmul.f32 %v1210, 0.25
        %v1275 = vmul.f32 %v1211, 0.25
        %v1276 = vmul.f32 %v1212, 0.25
        %v1277 = vmul.f32 %v1213, 0.25
        %v1278 = vmul.f32 %v1214, 0.25
        %v1279 = vmul.f32 %v1215, 0.25
        %v1280 = vmul.f32 %v1216, 0.25
        %v1281 = vmul.f32 %v1217, 0.25
        %v1282 = vmul.f32 %v1218, 0.25
        %v1283 = vmul.f32 %v1219, 0.25
        %v1284 = vmul.f32 %v1220, 0.25
        %v1285 = vmul.f32 %v1221, 0.25
        %v1286 = vmul.f32 %v1222, 0.25
        %v1287 = vmul.f32 %v1223, 0.25
        %v1288 = vmul.f32 %v1224, 0.25
        %v1289 = vmul.f32 %v1225, 0.25
        %v1290 = vmul.f32 %v1226, 0.25
        %v1291 = vmul.f32 %v1227, 0.25
        %v1292 = vmul.f32 %v1228, 0.25
        %v1293 = vmul.f32 %v1229, 0.25
        %v1294 = vmul.f32 %v1230, 0.25
        %v1295 = vmul.f32 %v1231, 0.25
        %v1296 = vmul.f32 %v1232, 0.25
        %v1297 = vmul.f32 %v1233, 0.25
        %v1298 = vmul.f32 %v1234, 0.25
        %v1299 = vmul.f32 %v1235, 0.25
        %v1300 = vmul.f32 %v1236, 0.25
        %v1301 = vmul.f32 %v1237, 0.25
        %v1302 = vmul.f32 %v1238, 0.25
        %v1303 = vmul.f32 %v1239, 0.25
        %v1304 = vmul.f32 %v1240, 0.25
        %v1305 = vpack.c.bf16 %v1241, %v1241
        %v1306 = vpack.c.bf16 %v1242, %v1242
        %v1307 = vpack.c.bf16 %v1243, %v1243
        %v1308 = vpack.c.bf16 %v1244, %v1244
        %v1309 = vpack.c.bf16 %v1245, %v1245
        %v1310 = vpack.c.bf16 %v1246, %v1246
        %v1311 = vpack.c.bf16 %v1247, %v1247
        %v1312 = vpack.c.bf16 %v1248, %v1248
        %v1313 = vpack.c.bf16 %v1249, %v1249
        %v1314 = vpack.c.bf16 %v1250, %v1250
        %v1315 = vpack.c.bf16 %v1251, %v1251
        %v1316 = vpack.c.bf16 %v1252, %v1252
        %v1317 = vpack.c.bf16 %v1253, %v1253
        %v1318 = vpack.c.bf16 %v1254, %v1254
        %v1319 = vpack.c.bf16 %v1255, %v1255
        %v1320 = vpack.c.bf16 %v1256, %v1256
        %v1321 = vpack.c.bf16 %v1257, %v1257
        %v1322 = vpack.c.bf16 %v1258, %v1258
        %v1323 = vpack.c.bf16 %v1259, %v1259
        %v1324 = vpack.c.bf16 %v1260, %v1260
        %v1325 = vpack.c.bf16 %v1261, %v1261
        %v1326 = vpack.c.bf16 %v1262, %v1262
        %v1327 = vpack.c.bf16 %v1263, %v1263
        %v1328 = vpack.c.bf16 %v1264, %v1264
        %v1329 = vpack.c.bf16 %v1265, %v1265
        %v1330 = vpack.c.bf16 %v1266, %v1266
        %v1331 = vpack.c.bf16 %v1267, %v1267
        %v1332 = vpack.c.bf16 %v1268, %v1268
        %v1333 = vpack.c.bf16 %v1269, %v1269
        %v1334 = vpack.c.bf16 %v1270, %v1270
        %v1335 = vpack.c.bf16 %v1271, %v1271
        %v1336 = vpack.c.bf16 %v1272, %v1272
        %v1337 = vpack.c.bf16 %v1273, %v1273
        %v1338 = vpack.c.bf16 %v1274, %v1274
        %v1339 = vpack.c.bf16 %v1275, %v1275
        %v1340 = vpack.c.bf16 %v1276, %v1276
        %v1341 = vpack.c.bf16 %v1277, %v1277
        %v1342 = vpack.c.bf16 %v1278, %v1278
        %v1343 = vpack.c.bf16 %v1279, %v1279
        %v1344 = vpack.c.bf16 %v1280, %v1280
        %v1345 = vpack.c.bf16 %v1281, %v1281
        %v1346 = vpack.c.bf16 %v1282, %v1282
        %v1347 = vpack.c.bf16 %v1283, %v1283
        %v1348 = vpack.c.bf16 %v1284, %v1284
        %v1349 = vpack.c.bf16 %v1285, %v1285
        %v1350 = vpack.c.bf16 %v1286, %v1286
        %v1351 = vpack.c.bf16 %v1287, %v1287
        %v1352 = vpack.c.bf16 %v1288, %v1288
        %v1353 = vpack.c.bf16 %v1289, %v1289
        %v1354 = vpack.c.bf16 %v1290, %v1290
        %v1355 = vpack.c.bf16 %v1291, %v1291
        %v1356 = vpack.c.bf16 %v1292, %v1292
        %v1357 = vpack.c.bf16 %v1293, %v1293
        %v1358 = vpack.c.bf16 %v1294, %v1294
        %v1359 = vpack.c.bf16 %v1295, %v1295
        %v1360 = vpack.c.bf16 %v1296, %v1296
        %v1361 = vpack.c.bf16 %v1297, %v1297
        %v1362 = vpack.c.bf16 %v1298, %v1298
        %v1363 = vpack.c.bf16 %v1299, %v1299
        %v1364 = vpack.c.bf16 %v1300, %v1300
        %v1365 = vpack.c.bf16 %v1301, %v1301
        %v1366 = vpack.c.bf16 %v1302, %v1302
        %v1367 = vpack.c.bf16 %v1303, %v1303
        %v1368 = vpack.c.bf16 %v1304, %v1304
        %v1433 = vunpack.c.l.b16 %v1305
        %v1434 = vunpack.c.l.b16 %v1306
        %v1435 = vunpack.c.l.b16 %v1307
        %v1436 = vunpack.c.l.b16 %v1308
        %v1437 = vunpack.c.l.b16 %v1309
        %v1438 = vunpack.c.l.b16 %v1310
        %v1439 = vunpack.c.l.b16 %v1311
        %v1440 = vunpack.c.l.b16 %v1312
        %v1441 = vunpack.c.l.b16 %v1313
        %v1442 = vunpack.c.l.b16 %v1314
        %v1443 = vunpack.c.l.b16 %v1315
        %v1444 = vunpack.c.l.b16 %v1316
        %v1445 = vunpack.c.l.b16 %v1317
        %v1446 = vunpack.c.l.b16 %v1318
        %v1447 = vunpack.c.l.b16 %v1319
        %v1448 = vunpack.c.l.b16 %v1320
        %v1449 = vunpack.c.l.b16 %v1321
        %v1450 = vunpack.c.l.b16 %v1322
        %v1451 = vunpack.c.l.b16 %v1323
        %v1452 = vunpack.c.l.b16 %v1324
        %v1453 = vunpack.c.l.b16 %v1325
        %v1454 = vunpack.c.l.b16 %v1326
        %v1455 = vunpack.c.l.b16 %v1327
        %v1456 = vunpack.c.l.b16 %v1328
        %v1457 = vunpack.c.l.b16 %v1329
        %v1458 = vunpack.c.l.b16 %v1330
        %v1459 = vunpack.c.l.b16 %v1331
        %v1460 = vunpack.c.l.b16 %v1332
        %v1461 = vunpack.c.l.b16 %v1333
        %v1462 = vunpack.c.l.b16 %v1334
        %v1463 = vunpack.c.l.b16 %v1335
        %v1464 = vunpack.c.l.b16 %v1336
        %v1465 = vunpack.c.l.b16 %v1337
        %v1466 = vunpack.c.l.b16 %v1338
        %v1467 = vunpack.c.l.b16 %v1339
        %v1468 = vunpack.c.l.b16 %v1340
        %v1469 = vunpack.c.l.b16 %v1341
        %v1470 = vunpack.c.l.b16 %v1342
        %v1471 = vunpack.c.l.b16 %v1343
        %v1472 = vunpack.c.l.b16 %v1344
        %v1473 = vunpack.c.l.b16 %v1345
        %v1474 = vunpack.c.l.b16 %v1346
        %v1475 = vunpack.c.l.b16 %v1347
        %v1476 = vunpack.c.l.b16 %v1348
        %v1477 = vunpack.c.l.b16 %v1349
        %v1478 = vunpack.c.l.b16 %v1350
        %v1479 = vunpack.c.l.b16 %v1351
        %v1480 = vunpack.c.l.b16 %v1352
        %v1481 = vunpack.c.l.b16 %v1353
        %v1482 = vunpack.c.l.b16 %v1354
        %v1483 = vunpack.c.l.b16 %v1355
        %v1484 = vunpack.c.l.b16 %v1356
        %v1485 = vunpack.c.l.b16 %v1357
        %v1486 = vunpack.c.l.b16 %v1358
        %v1487 = vunpack.c.l.b16 %v1359
        %v1488 = vunpack.c.l.b16 %v1360
        %v1489 = vunpack.c.l.b16 %v1361
        %v1490 = vunpack.c.l.b16 %v1362
        %v1491 = vunpack.c.l.b16 %v1363
        %v1492 = vunpack.c.l.b16 %v1364
        %v1493 = vunpack.c.l.b16 %v1365
        %v1494 = vunpack.c.l.b16 %v1366
        %v1495 = vunpack.c.l.b16 %v1367
        %v1496 = vunpack.c.l.b16 %v1368
        %v1497 = vrot.slane %v1433, 7
        %v1498 = vrot.slane %v1434, 6
        %vm1499 = vcmask 1042434
        %v1500 = vsel %vm1499, %v1498, %v1497
        %v1501 = vrot.slane %v1435, 5
        %vm1502 = vcmask 1043459
        %v1503 = vsel %vm1502, %v1501, %v1500
        %v1504 = vrot.slane %v1436, 4
        %vm1505 = vcmask 1044484
        %v1506 = vsel %vm1505, %v1504, %v1503
        %v1507 = vrot.slane %v1437, 3
        %vm1508 = vcmask 1045509
        %v1509 = vsel %vm1508, %v1507, %v1506
        %v1510 = vrot.slane %v1438, 2
        %vm1511 = vcmask 1046534
        %v1512 = vsel %vm1511, %v1510, %v1509
        %v1513 = vrot.slane %v1439, 1
        %vm1514 = vcmask 1047559
        %v1515 = vsel %vm1514, %v1513, %v1512
        %v1516 = vrot.slane %v1441, 7
        %v1517 = vrot.slane %v1442, 6
        %v1518 = vsel %vm1499, %v1517, %v1516
        %v1519 = vrot.slane %v1443, 5
        %v1520 = vsel %vm1502, %v1519, %v1518
        %v1521 = vrot.slane %v1444, 4
        %v1522 = vsel %vm1505, %v1521, %v1520
        %v1523 = vrot.slane %v1445, 3
        %v1524 = vsel %vm1508, %v1523, %v1522
        %v1525 = vrot.slane %v1446, 2
        %v1526 = vsel %vm1511, %v1525, %v1524
        %v1527 = vrot.slane %v1447, 1
        %v1528 = vsel %vm1514, %v1527, %v1526
        %v1529 = vrot.slane %v1449, 7
        %v1530 = vrot.slane %v1450, 6
        %v1531 = vsel %vm1499, %v1530, %v1529
        %v1532 = vrot.slane %v1451, 5
        %v1533 = vsel %vm1502, %v1532, %v1531
        %v1534 = vrot.slane %v1452, 4
        %v1535 = vsel %vm1505, %v1534, %v1533
        %v1536 = vrot.slane %v1453, 3
        %v1537 = vsel %vm1508, %v1536, %v1535
        %v1538 = vrot.slane %v1454, 2
        %v1539 = vsel %vm1511, %v1538, %v1537
        %v1540 = vrot.slane %v1455, 1
        %v1541 = vsel %vm1514, %v1540, %v1539
        %v1542 = vrot.slane %v1457, 7
        %v1543 = vrot.slane %v1458, 6
        %v1544 = vsel %vm1499, %v1543, %v1542
        %v1545 = vrot.slane %v1459, 5
        %v1546 = vsel %vm1502, %v1545, %v1544
        %v1547 = vrot.slane %v1460, 4
        %v1548 = vsel %vm1505, %v1547, %v1546
        %v1549 = vrot.slane %v1461, 3
        %v1550 = vsel %vm1508, %v1549, %v1548
        %v1551 = vrot.slane %v1462, 2
        %v1552 = vsel %vm1511, %v1551, %v1550
        %v1553 = vrot.slane %v1463, 1
        %v1554 = vsel %vm1514, %v1553, %v1552
        %v1555 = vrot.slane %v1465, 7
        %v1556 = vrot.slane %v1466, 6
        %v1557 = vsel %vm1499, %v1556, %v1555
        %v1558 = vrot.slane %v1467, 5
        %v1559 = vsel %vm1502, %v1558, %v1557
        %v1560 = vrot.slane %v1468, 4
        %v1561 = vsel %vm1505, %v1560, %v1559
        %v1562 = vrot.slane %v1469, 3
        %v1563 = vsel %vm1508, %v1562, %v1561
        %v1564 = vrot.slane %v1470, 2
        %v1565 = vsel %vm1511, %v1564, %v1563
        %v1566 = vrot.slane %v1471, 1
        %v1567 = vsel %vm1514, %v1566, %v1565
        %v1568 = vrot.slane %v1473, 7
        %v1569 = vrot.slane %v1474, 6
        %v1570 = vsel %vm1499, %v1569, %v1568
        %v1571 = vrot.slane %v1475, 5
        %v1572 = vsel %vm1502, %v1571, %v1570
        %v1573 = vrot.slane %v1476, 4
        %v1574 = vsel %vm1505, %v1573, %v1572
        %v1575 = vrot.slane %v1477, 3
        %v1576 = vsel %vm1508, %v1575, %v1574
        %v1577 = vrot.slane %v1478, 2
        %v1578 = vsel %vm1511, %v1577, %v1576
        %v1579 = vrot.slane %v1479, 1
        %v1580 = vsel %vm1514, %v1579, %v1578
        %v1581 = vrot.slane %v1481, 7
        %v1582 = vrot.slane %v1482, 6
        %v1583 = vsel %vm1499, %v1582, %v1581
        %v1584 = vrot.slane %v1483, 5
        %v1585 = vsel %vm1502, %v1584, %v1583
        %v1586 = vrot.slane %v1484, 4
        %v1587 = vsel %vm1505, %v1586, %v1585
        %v1588 = vrot.slane %v1485, 3
        %v1589 = vsel %vm1508, %v1588, %v1587
        %v1590 = vrot.slane %v1486, 2
        %v1591 = vsel %vm1511, %v1590, %v1589
        %v1592 = vrot.slane %v1487, 1
        %v1593 = vsel %vm1514, %v1592, %v1591
        %v1594 = vrot.slane %v1489, 7
        %v1595 = vrot.slane %v1490, 6
        %v1596 = vsel %vm1499, %v1595, %v1594
        %v1597 = vrot.slane %v1491, 5
        %v1598 = vsel %vm1502, %v1597, %v1596
        %v1599 = vrot.slane %v1492, 4
        %v1600 = vsel %vm1505, %v1599, %v1598
        %v1601 = vrot.slane %v1493, 3
        %v1602 = vsel %vm1508, %v1601, %v1600
        %v1603 = vrot.slane %v1494, 2
        %v1604 = vsel %vm1511, %v1603, %v1602
        %v1605 = vrot.slane %v1495, 1
        %v1606 = vsel %vm1514, %v1605, %v1604
        %v1607 = vpack.c.b16 %v1515, %v1515
        %v1608 = vpack.c.b16 %v1440, %v1440
        %v1609 = vpack.c.b16 %v1528, %v1528
        %v1610 = vpack.c.b16 %v1448, %v1448
        %v1611 = vpack.c.b16 %v1541, %v1541
        %v1612 = vpack.c.b16 %v1456, %v1456
        %v1613 = vpack.c.b16 %v1554, %v1554
        %v1614 = vpack.c.b16 %v1464, %v1464
        %v1615 = vpack.c.b16 %v1567, %v1567
        %v1616 = vpack.c.b16 %v1472, %v1472
        %v1617 = vpack.c.b16 %v1580, %v1580
        %v1618 = vpack.c.b16 %v1480, %v1480
        %v1619 = vpack.c.b16 %v1593, %v1593
        %v1620 = vpack.c.b16 %v1488, %v1488
        %v1621 = vpack.c.b16 %v1606, %v1606
        %v1622 = vpack.c.b16 %v1496, %v1496
        %vm1639 = vcmask 1043456
        %vm1640 = vmand %vm1639, %vm415
        %v1641 = vld [vmem:[%s387] sm:$0xf]
        %v1642 = vsel %vm1640, %v1607, %v1641
        %1643 = vst [vmem:[%s387] sm:$0xf] %v1642
        %v1644 = vld [vmem:[%s387 + $0x4] sm:$0x1]
        %v1645 = vsel %vm390, %v1608, %v1644
        %1646 = vst [vmem:[%s387 + $0x4] sm:$0x1] %v1645
        %v1647 = vld [vmem:[%s387 + $0x8] sm:$0xf]
        %v1648 = vsel %vm1640, %v1609, %v1647
        %1649 = vst [vmem:[%s387 + $0x8] sm:$0xf] %v1648
        %v1650 = vld [vmem:[%s387 + $0xc] sm:$0x1]
        %v1651 = vsel %vm390, %v1610, %v1650
        %1652 = vst [vmem:[%s387 + $0xc] sm:$0x1] %v1651
        %v1653 = vld [vmem:[%s387 + $0x10] sm:$0xf]
        %v1654 = vsel %vm1640, %v1611, %v1653
        %1655 = vst [vmem:[%s387 + $0x10] sm:$0xf] %v1654
        %v1656 = vld [vmem:[%s387 + $0x14] sm:$0x1]
        %v1657 = vsel %vm390, %v1612, %v1656
        %1658 = vst [vmem:[%s387 + $0x14] sm:$0x1] %v1657
        %v1659 = vld [vmem:[%s387 + $0x18] sm:$0xf]
        %v1660 = vsel %vm1640, %v1613, %v1659
        %1661 = vst [vmem:[%s387 + $0x18] sm:$0xf] %v1660
        %v1662 = vld [vmem:[%s387 + $0x1c] sm:$0x1]
        %v1663 = vsel %vm390, %v1614, %v1662
        %1664 = vst [vmem:[%s387 + $0x1c] sm:$0x1] %v1663
        %v1665 = vld [vmem:[%s387 + $0x20] sm:$0xf]
        %v1666 = vsel %vm1640, %v1615, %v1665
        %1667 = vst [vmem:[%s387 + $0x20] sm:$0xf] %v1666
        %v1668 = vld [vmem:[%s387 + $0x24] sm:$0x1]
        %v1669 = vsel %vm390, %v1616, %v1668
        %1670 = vst [vmem:[%s387 + $0x24] sm:$0x1] %v1669
        %v1671 = vld [vmem:[%s387 + $0x28] sm:$0xf]
        %v1672 = vsel %vm1640, %v1617, %v1671
        %1673 = vst [vmem:[%s387 + $0x28] sm:$0xf] %v1672
        %v1674 = vld [vmem:[%s387 + $0x2c] sm:$0x1]
        %v1675 = vsel %vm390, %v1618, %v1674
        %1676 = vst [vmem:[%s387 + $0x2c] sm:$0x1] %v1675
        %v1677 = vld [vmem:[%s387 + $0x30] sm:$0xf]
        %v1678 = vsel %vm1640, %v1619, %v1677
        %1679 = vst [vmem:[%s387 + $0x30] sm:$0xf] %v1678
        %v1680 = vld [vmem:[%s387 + $0x34] sm:$0x1]
        %v1681 = vsel %vm390, %v1620, %v1680
        %1682 = vst [vmem:[%s387 + $0x34] sm:$0x1] %v1681
        %v1683 = vld [vmem:[%s387 + $0x38] sm:$0xf]
        %v1684 = vsel %vm1640, %v1621, %v1683
        %1685 = vst [vmem:[%s387 + $0x38] sm:$0xf] %v1684
        %v1686 = vld [vmem:[%s387 + $0x3c] sm:$0x1]
        %v1687 = vsel %vm390, %v1622, %v1686
        %1688 = vst [vmem:[%s387 + $0x3c] sm:$0x1] %v1687
        %v1689 = vld [vmem:[#allocation2] sm:$0xf]
        %v1690 = vld [vmem:[#allocation2 + $0x8] sm:$0xf]
        %v1691 = vld [vmem:[#allocation2 + $0x10] sm:$0xf]
        %v1692 = vld [vmem:[#allocation2 + $0x18] sm:$0xf]
        %v1693 = vld [vmem:[#allocation2 + $0x20] sm:$0xf]
        %v1694 = vld [vmem:[#allocation2 + $0x28] sm:$0xf]
        %v1695 = vld [vmem:[#allocation2 + $0x30] sm:$0xf]
        %v1696 = vld [vmem:[#allocation2 + $0x38] sm:$0xf]
        %v1697 = vld [vmem:[#allocation9] sm:$0xf]
        %v1698 = vld [vmem:[#allocation9 + $0x4] sm:$0xf]
        %v1699 = vld [vmem:[#allocation9 + $0x8] sm:$0xf]
        %v1700 = vld [vmem:[#allocation9 + $0xc] sm:$0xf]
        %v1701 = vld [vmem:[#allocation9 + $0x10] sm:$0xf]
        %v1702 = vld [vmem:[#allocation9 + $0x14] sm:$0xf]
        %v1703 = vld [vmem:[#allocation9 + $0x18] sm:$0xf]
        %v1704 = vld [vmem:[#allocation9 + $0x1c] sm:$0xf]
        %v1705 = vld [vmem:[#allocation9 + $0x20] sm:$0xf]
        %v1706 = vld [vmem:[#allocation9 + $0x24] sm:$0xf]
        %v1707 = vld [vmem:[#allocation9 + $0x28] sm:$0xf]
        %v1708 = vld [vmem:[#allocation9 + $0x2c] sm:$0xf]
        %v1709 = vld [vmem:[#allocation9 + $0x30] sm:$0xf]
        %v1710 = vld [vmem:[#allocation9 + $0x34] sm:$0xf]
        %v1711 = vld [vmem:[#allocation9 + $0x38] sm:$0xf]
        %v1712 = vld [vmem:[#allocation9 + $0x3c] sm:$0xf]
        %v1713 = vld [vmem:[#allocation2 + $0x4] sm:$0x1]
        %v1714 = vld [vmem:[#allocation2 + $0xc] sm:$0x1]
        %v1715 = vld [vmem:[#allocation2 + $0x14] sm:$0x1]
        %v1716 = vld [vmem:[#allocation2 + $0x1c] sm:$0x1]
        %v1717 = vld [vmem:[#allocation2 + $0x24] sm:$0x1]
        %v1718 = vld [vmem:[#allocation2 + $0x2c] sm:$0x1]
        %v1719 = vld [vmem:[#allocation2 + $0x34] sm:$0x1]
        %v1720 = vld [vmem:[#allocation2 + $0x3c] sm:$0x1]
        %vm1721 = vsmask.f32 3328
        %vm1722 = vsmask.f32 7440
        %vm1723 = vmor %vm1721, %vm1722
        %v1725 = vshrl.u32 %v1689, 16
        %v1727 = vrot.slane %v1725, 4
        %v1728 = vshll.u32 %v1689, 16
        %v1730 = vrot.slane %v1728, 5
        %v1731 = vor.u32 %v1727, %v1730
        %v1732 = vrot.slane %v1731, 4
        %v1734 = vshll.u32 %v1713, 16
        %v1736 = vrot.slane %v1734, 5
        %v1737 = vsel %vm1723, %v1732, %v1736
        %v1739 = vshrl.u32 %v1690, 16
        %v1741 = vrot.slane %v1739, 4
        %v1742 = vshll.u32 %v1690, 16
        %v1744 = vrot.slane %v1742, 5
        %v1745 = vor.u32 %v1741, %v1744
        %v1746 = vrot.slane %v1745, 4
        %v1748 = vshll.u32 %v1714, 16
        %v1750 = vrot.slane %v1748, 5
        %v1751 = vsel %vm1723, %v1746, %v1750
        %v1753 = vshrl.u32 %v1691, 16
        %v1755 = vrot.slane %v1753, 4
        %v1756 = vshll.u32 %v1691, 16
        %v1758 = vrot.slane %v1756, 5
        %v1759 = vor.u32 %v1755, %v1758
        %v1760 = vrot.slane %v1759, 4
        %v1762 = vshll.u32 %v1715, 16
        %v1764 = vrot.slane %v1762, 5
        %v1765 = vsel %vm1723, %v1760, %v1764
        %v1767 = vshrl.u32 %v1692, 16
        %v1769 = vrot.slane %v1767, 4
        %v1770 = vshll.u32 %v1692, 16
        %v1772 = vrot.slane %v1770, 5
        %v1773 = vor.u32 %v1769, %v1772
        %v1774 = vrot.slane %v1773, 4
        %v1776 = vshll.u32 %v1716, 16
        %v1778 = vrot.slane %v1776, 5
        %v1779 = vsel %vm1723, %v1774, %v1778
        %v1781 = vshrl.u32 %v1693, 16
        %v1783 = vrot.slane %v1781, 4
        %v1784 = vshll.u32 %v1693, 16
        %v1786 = vrot.slane %v1784, 5
        %v1787 = vor.u32 %v1783, %v1786
        %v1788 = vrot.slane %v1787, 4
        %v1790 = vshll.u32 %v1717, 16
        %v1792 = vrot.slane %v1790, 5
        %v1793 = vsel %vm1723, %v1788, %v1792
        %v1795 = vshrl.u32 %v1694, 16
        %v1797 = vrot.slane %v1795, 4
        %v1798 = vshll.u32 %v1694, 16
        %v1800 = vrot.slane %v1798, 5
        %v1801 = vor.u32 %v1797, %v1800
        %v1802 = vrot.slane %v1801, 4
        %v1804 = vshll.u32 %v1718, 16
        %v1806 = vrot.slane %v1804, 5
        %v1807 = vsel %vm1723, %v1802, %v1806
        %v1809 = vshrl.u32 %v1695, 16
        %v1811 = vrot.slane %v1809, 4
        %v1812 = vshll.u32 %v1695, 16
        %v1814 = vrot.slane %v1812, 5
        %v1815 = vor.u32 %v1811, %v1814
        %v1816 = vrot.slane %v1815, 4
        %v1818 = vshll.u32 %v1719, 16
        %v1820 = vrot.slane %v1818, 5
        %v1821 = vsel %vm1723, %v1816, %v1820
        %v1823 = vshrl.u32 %v1696, 16
        %v1825 = vrot.slane %v1823, 4
        %v1826 = vshll.u32 %v1696, 16
        %v1828 = vrot.slane %v1826, 5
        %v1829 = vor.u32 %v1825, %v1828
        %v1830 = vrot.slane %v1829, 4
        %v1832 = vshll.u32 %v1720, 16
        %v1834 = vrot.slane %v1832, 5
        %v1835 = vsel %vm1723, %v1830, %v1834
        %v1836 = vld [vmem:[#allocation9 + $0x40] sm:$0xf]
        %v1837 = vld [vmem:[#allocation9 + $0x44] sm:$0xf]
        %v1838 = vld [vmem:[#allocation9 + $0x48] sm:$0xf]
        %v1839 = vld [vmem:[#allocation9 + $0x4c] sm:$0xf]
        %v1840 = vld [vmem:[#allocation9 + $0x50] sm:$0xf]
        %v1841 = vld [vmem:[#allocation9 + $0x54] sm:$0xf]
        %v1842 = vld [vmem:[#allocation9 + $0x58] sm:$0xf]
        %v1843 = vld [vmem:[#allocation9 + $0x5c] sm:$0xf]
        %v1844 = vld [vmem:[#allocation9 + $0x60] sm:$0xf]
        %v1845 = vld [vmem:[#allocation9 + $0x64] sm:$0xf]
        %v1846 = vld [vmem:[#allocation9 + $0x68] sm:$0xf]
        %v1847 = vld [vmem:[#allocation9 + $0x6c] sm:$0xf]
        %v1848 = vld [vmem:[#allocation9 + $0x70] sm:$0xf]
        %v1849 = vld [vmem:[#allocation9 + $0x74] sm:$0xf]
        %v1850 = vld [vmem:[#allocation9 + $0x78] sm:$0xf]
        %v1851 = vld [vmem:[#allocation9 + $0x7c] sm:$0xf]
        %v1852 = vunpack.c.l.b16 %v1737
        %v1853 = vunpack.c.l.b16 %v1751
        %v1854 = vunpack.c.l.b16 %v1765
        %v1855 = vunpack.c.l.b16 %v1779
        %v1856 = vunpack.c.l.b16 %v1793
        %v1857 = vunpack.c.l.b16 %v1807
        %v1858 = vunpack.c.l.b16 %v1821
        %v1859 = vunpack.c.l.b16 %v1835
        %v1860 = vpack.c.b16 %v1853, %v1852
        %v1861 = vpack.c.b16 %v1855, %v1854
        %v1862 = vpack.c.b16 %v1857, %v1856
        %v1863 = vpack.c.b16 %v1859, %v1858
        %v1884 = vunpack.c.l.b16 %v1836
        %v1885 = vunpack.c.l.b16 %v1837
        %v1886 = vunpack.c.l.b16 %v1838
        %v1887 = vunpack.c.l.b16 %v1839
        %v1888 = vunpack.c.l.b16 %v1840
        %v1889 = vunpack.c.l.b16 %v1841
        %v1890 = vunpack.c.l.b16 %v1842
        %v1891 = vunpack.c.l.b16 %v1843
        %v1892 = vunpack.c.l.b16 %v1844
        %v1893 = vunpack.c.l.b16 %v1845
        %v1894 = vunpack.c.l.b16 %v1846
        %v1895 = vunpack.c.l.b16 %v1847
        %v1896 = vunpack.c.l.b16 %v1848
        %v1897 = vunpack.c.l.b16 %v1849
        %v1898 = vunpack.c.l.b16 %v1850
        %v1899 = vunpack.c.l.b16 %v1851
        %v1900 = vpack.c.b16 %v1885, %v1884
        %v1901 = vpack.c.b16 %v1887, %v1886
        %v1902 = vpack.c.b16 %v1889, %v1888
        %v1903 = vpack.c.b16 %v1891, %v1890
        %v1904 = vpack.c.b16 %v1893, %v1892
        %v1905 = vpack.c.b16 %v1895, %v1894
        %v1906 = vpack.c.b16 %v1897, %v1896
        %v1907 = vpack.c.b16 %v1899, %v1898
        %1916 = vmatpush.bf16.msra.mxu0 %v1907
        %1917 = vmatpush.bf16.msra.mxu0 %v1906
        %1918 = vmatpush.bf16.msra.mxu0 %v1905
        %1919 = vmatpush.bf16.msra.mxu0 %v1904
        %1920 = vmatpush.bf16.msra.mxu0 %v1903
        %1921 = vmatpush.bf16.msra.mxu0 %v1902
        %1922 = vmatpush.bf16.msra.mxu0 %v1901
        %1923 = vmatpush.bf16.msra.mxu0 %v1900
        %1924 = vmatmul.bf16.gmra.mxu0 %v1860
        %v1925 = vpop.f32.mrf.mxu0
        %v1926 = vadd.f32 0.0, %v1925
        %v1927 = vpop.f32.mrf.mxu0
        %v1928 = vadd.f32 0.0, %v1927
        %1929 = vmatmul.bf16.gmra.mxu0 %v1861
        %v1930 = vpop.f32.mrf.mxu0
        %v1931 = vadd.f32 0.0, %v1930
        %v1932 = vpop.f32.mrf.mxu0
        %v1933 = vadd.f32 0.0, %v1932
        %1934 = vmatmul.bf16.gmra.mxu0 %v1862
        %v1935 = vpop.f32.mrf.mxu0
        %v1936 = vadd.f32 0.0, %v1935
        %v1937 = vpop.f32.mrf.mxu0
        %v1938 = vadd.f32 0.0, %v1937
        %1939 = vmatmul.bf16.gmra.mxu0 %v1863
        %v1940 = vpop.f32.mrf.mxu0
        %v1941 = vadd.f32 0.0, %v1940
        %v1942 = vpop.f32.mrf.mxu0
        %v1943 = vadd.f32 0.0, %v1942
        %1944 = vdwg.mxu0
        %v1953 = vunpack.c.l.b16 %v1689
        %v1954 = vunpack.c.l.b16 %v1690
        %v1955 = vunpack.c.l.b16 %v1691
        %v1956 = vunpack.c.l.b16 %v1692
        %v1957 = vunpack.c.l.b16 %v1693
        %v1958 = vunpack.c.l.b16 %v1694
        %v1959 = vunpack.c.l.b16 %v1695
        %v1960 = vunpack.c.l.b16 %v1696
        %v1961 = vpack.c.b16 %v1954, %v1953
        %v1962 = vpack.c.b16 %v1956, %v1955
        %v1963 = vpack.c.b16 %v1958, %v1957
        %v1964 = vpack.c.b16 %v1960, %v1959
        %v1985 = vunpack.c.l.b16 %v1697
        %v1986 = vunpack.c.l.b16 %v1698
        %v1987 = vunpack.c.l.b16 %v1699
        %v1988 = vunpack.c.l.b16 %v1700
        %v1989 = vunpack.c.l.b16 %v1701
        %v1990 = vunpack.c.l.b16 %v1702
        %v1991 = vunpack.c.l.b16 %v1703
        %v1992 = vunpack.c.l.b16 %v1704
        %v1993 = vunpack.c.l.b16 %v1705
        %v1994 = vunpack.c.l.b16 %v1706
        %v1995 = vunpack.c.l.b16 %v1707
        %v1996 = vunpack.c.l.b16 %v1708
        %v1997 = vunpack.c.l.b16 %v1709
        %v1998 = vunpack.c.l.b16 %v1710
        %v1999 = vunpack.c.l.b16 %v1711
        %v2000 = vunpack.c.l.b16 %v1712
        %v2001 = vpack.c.b16 %v1986, %v1985
        %v2002 = vpack.c.b16 %v1988, %v1987
        %v2003 = vpack.c.b16 %v1990, %v1989
        %v2004 = vpack.c.b16 %v1992, %v1991
        %v2005 = vpack.c.b16 %v1994, %v1993
        %v2006 = vpack.c.b16 %v1996, %v1995
        %v2007 = vpack.c.b16 %v1998, %v1997
        %v2008 = vpack.c.b16 %v2000, %v1999
        %2017 = vmatpush.bf16.msra.mxu0 %v2008
        %2018 = vmatpush.bf16.msra.mxu0 %v2007
        %2019 = vmatpush.bf16.msra.mxu0 %v2006
        %2020 = vmatpush.bf16.msra.mxu0 %v2005
        %2021 = vmatpush.bf16.msra.mxu0 %v2004
        %2022 = vmatpush.bf16.msra.mxu0 %v2003
        %2023 = vmatpush.bf16.msra.mxu0 %v2002
        %2024 = vmatpush.bf16.msra.mxu0 %v2001
        %2025 = vmatmul.bf16.gmra.mxu0 %v1961
        %v2026 = vpop.f32.mrf.mxu0
        %v2027 = vadd.f32 %v1926, %v2026
        %v2028 = vpop.f32.mrf.mxu0
        %v2029 = vadd.f32 %v1928, %v2028
        %2030 = vmatmul.bf16.gmra.mxu0 %v1962
        %v2031 = vpop.f32.mrf.mxu0
        %v2032 = vadd.f32 %v1931, %v2031
        %v2033 = vpop.f32.mrf.mxu0
        %v2034 = vadd.f32 %v1933, %v2033
        %2035 = vmatmul.bf16.gmra.mxu0 %v1963
        %v2036 = vpop.f32.mrf.mxu0
        %v2037 = vadd.f32 %v1936, %v2036
        %v2038 = vpop.f32.mrf.mxu0
        %v2039 = vadd.f32 %v1938, %v2038
        %2040 = vmatmul.bf16.gmra.mxu0 %v1964
        %v2041 = vpop.f32.mrf.mxu0
        %v2042 = vadd.f32 %v1941, %v2041
        %v2043 = vpop.f32.mrf.mxu0
        %v2044 = vadd.f32 %v1943, %v2043
        %2045 = vdwg.mxu0
        %v2046 = vld [vmem:[#allocation2] sm:$0xe]
        %v2047 = vld [vmem:[#allocation2 + $0x8] sm:$0xe]
        %v2048 = vld [vmem:[#allocation2 + $0x10] sm:$0xe]
        %v2049 = vld [vmem:[#allocation2 + $0x18] sm:$0xe]
        %v2050 = vld [vmem:[#allocation2 + $0x20] sm:$0xe]
        %v2051 = vld [vmem:[#allocation2 + $0x28] sm:$0xe]
        %v2052 = vld [vmem:[#allocation2 + $0x30] sm:$0xe]
        %v2053 = vld [vmem:[#allocation2 + $0x38] sm:$0xe]
        %vm2070 = vcmask 1042432
        %vm2071 = vcmask 1046532
        %vm2072 = vmor %vm2070, %vm2071
        %v2073 = vrot.slane %v2046, 5
        %v2074 = vrot.slane %v2073, 4
        %v2075 = vrot.slane %v1713, 5
        %v2076 = vsel %vm2072, %v2074, %v2075
        %v2077 = vrot.slane %v2047, 5
        %v2078 = vrot.slane %v2077, 4
        %v2079 = vrot.slane %v1714, 5
        %v2080 = vsel %vm2072, %v2078, %v2079
        %v2081 = vrot.slane %v2048, 5
        %v2082 = vrot.slane %v2081, 4
        %v2083 = vrot.slane %v1715, 5
        %v2084 = vsel %vm2072, %v2082, %v2083
        %v2085 = vrot.slane %v2049, 5
        %v2086 = vrot.slane %v2085, 4
        %v2087 = vrot.slane %v1716, 5
        %v2088 = vsel %vm2072, %v2086, %v2087
        %v2089 = vrot.slane %v2050, 5
        %v2090 = vrot.slane %v2089, 4
        %v2091 = vrot.slane %v1717, 5
        %v2092 = vsel %vm2072, %v2090, %v2091
        %v2093 = vrot.slane %v2051, 5
        %v2094 = vrot.slane %v2093, 4
        %v2095 = vrot.slane %v1718, 5
        %v2096 = vsel %vm2072, %v2094, %v2095
        %v2097 = vrot.slane %v2052, 5
        %v2098 = vrot.slane %v2097, 4
        %v2099 = vrot.slane %v1719, 5
        %v2100 = vsel %vm2072, %v2098, %v2099
        %v2101 = vrot.slane %v2053, 5
        %v2102 = vrot.slane %v2101, 4
        %v2103 = vrot.slane %v1720, 5
        %v2104 = vsel %vm2072, %v2102, %v2103
        %v2105 = vld [vmem:[#allocation9 + $0x80] sm:$0xf]
        %v2106 = vld [vmem:[#allocation9 + $0x84] sm:$0xf]
        %v2107 = vld [vmem:[#allocation9 + $0x88] sm:$0xf]
        %v2108 = vld [vmem:[#allocation9 + $0x8c] sm:$0xf]
        %v2109 = vld [vmem:[#allocation9 + $0x90] sm:$0xf]
        %v2110 = vld [vmem:[#allocation9 + $0x94] sm:$0xf]
        %v2111 = vld [vmem:[#allocation9 + $0x98] sm:$0xf]
        %v2112 = vld [vmem:[#allocation9 + $0x9c] sm:$0xf]
        %v2113 = vld [vmem:[#allocation9 + $0xa0] sm:$0xf]
        %v2114 = vld [vmem:[#allocation9 + $0xa4] sm:$0xf]
        %v2115 = vld [vmem:[#allocation9 + $0xa8] sm:$0xf]
        %v2116 = vld [vmem:[#allocation9 + $0xac] sm:$0xf]
        %v2117 = vld [vmem:[#allocation9 + $0xb0] sm:$0xf]
        %v2118 = vld [vmem:[#allocation9 + $0xb4] sm:$0xf]
        %v2119 = vld [vmem:[#allocation9 + $0xb8] sm:$0xf]
        %v2120 = vld [vmem:[#allocation9 + $0xbc] sm:$0xf]
        %v2121 = vunpack.c.l.b16 %v2076
        %v2122 = vunpack.c.l.b16 %v2080
        %v2123 = vunpack.c.l.b16 %v2084
        %v2124 = vunpack.c.l.b16 %v2088
        %v2125 = vunpack.c.l.b16 %v2092
        %v2126 = vunpack.c.l.b16 %v2096
        %v2127 = vunpack.c.l.b16 %v2100
        %v2128 = vunpack.c.l.b16 %v2104
        %v2129 = vpack.c.b16 %v2122, %v2121
        %v2130 = vpack.c.b16 %v2124, %v2123
        %v2131 = vpack.c.b16 %v2126, %v2125
        %v2132 = vpack.c.b16 %v2128, %v2127
        %v2153 = vunpack.c.l.b16 %v2105
        %v2154 = vunpack.c.l.b16 %v2106
        %v2155 = vunpack.c.l.b16 %v2107
        %v2156 = vunpack.c.l.b16 %v2108
        %v2157 = vunpack.c.l.b16 %v2109
        %v2158 = vunpack.c.l.b16 %v2110
        %v2159 = vunpack.c.l.b16 %v2111
        %v2160 = vunpack.c.l.b16 %v2112
        %v2161 = vunpack.c.l.b16 %v2113
        %v2162 = vunpack.c.l.b16 %v2114
        %v2163 = vunpack.c.l.b16 %v2115
        %v2164 = vunpack.c.l.b16 %v2116
        %v2165 = vunpack.c.l.b16 %v2117
        %v2166 = vunpack.c.l.b16 %v2118
        %v2167 = vunpack.c.l.b16 %v2119
        %v2168 = vunpack.c.l.b16 %v2120
        %v2169 = vpack.c.b16 %v2154, %v2153
        %v2170 = vpack.c.b16 %v2156, %v2155
        %v2171 = vpack.c.b16 %v2158, %v2157
        %v2172 = vpack.c.b16 %v2160, %v2159
        %v2173 = vpack.c.b16 %v2162, %v2161
        %v2174 = vpack.c.b16 %v2164, %v2163
        %v2175 = vpack.c.b16 %v2166, %v2165
        %v2176 = vpack.c.b16 %v2168, %v2167
        %2185 = vmatpush.bf16.msra.mxu0 %v2176
        %2186 = vmatpush.bf16.msra.mxu0 %v2175
        %2187 = vmatpush.bf16.msra.mxu0 %v2174
        %2188 = vmatpush.bf16.msra.mxu0 %v2173
        %2189 = vmatpush.bf16.msra.mxu0 %v2172
        %2190 = vmatpush.bf16.msra.mxu0 %v2171
        %2191 = vmatpush.bf16.msra.mxu0 %v2170
        %2192 = vmatpush.bf16.msra.mxu0 %v2169
        %2193 = vmatmul.bf16.gmra.mxu0 %v2129
        %v2194 = vpop.f32.mrf.mxu0
        %v2195 = vadd.f32 0.0, %v2194
        %v2196 = vpop.f32.mrf.mxu0
        %v2197 = vadd.f32 0.0, %v2196
        %2198 = vmatmul.bf16.gmra.mxu0 %v2130
        %v2199 = vpop.f32.mrf.mxu0
        %v2200 = vadd.f32 0.0, %v2199
        %v2201 = vpop.f32.mrf.mxu0
        %v2202 = vadd.f32 0.0, %v2201
        %2203 = vmatmul.bf16.gmra.mxu0 %v2131
        %v2204 = vpop.f32.mrf.mxu0
        %v2205 = vadd.f32 0.0, %v2204
        %v2206 = vpop.f32.mrf.mxu0
        %v2207 = vadd.f32 0.0, %v2206
        %2208 = vmatmul.bf16.gmra.mxu0 %v2132
        %v2209 = vpop.f32.mrf.mxu0
        %v2210 = vadd.f32 0.0, %v2209
        %v2211 = vpop.f32.mrf.mxu0
        %v2212 = vadd.f32 0.0, %v2211
        %2213 = vdwg.mxu0
        %v2214 = vadd.f32 %v2027, %v2195
        %v2215 = vadd.f32 %v2029, %v2197
        %v2216 = vadd.f32 %v2032, %v2200
        %v2217 = vadd.f32 %v2034, %v2202
        %v2218 = vadd.f32 %v2037, %v2205
        %v2219 = vadd.f32 %v2039, %v2207
        %v2220 = vadd.f32 %v2042, %v2210
        %v2221 = vadd.f32 %v2044, %v2212
        %v2222 = vld [vmem:[%s387] sm:$0xf]
        %v2223 = vld [vmem:[%s387 + $0x8] sm:$0xf]
        %v2224 = vld [vmem:[%s387 + $0x10] sm:$0xf]
        %v2225 = vld [vmem:[%s387 + $0x18] sm:$0xf]
        %v2226 = vld [vmem:[%s387 + $0x20] sm:$0xf]
        %v2227 = vld [vmem:[%s387 + $0x28] sm:$0xf]
        %v2228 = vld [vmem:[%s387 + $0x30] sm:$0xf]
        %v2229 = vld [vmem:[%s387 + $0x38] sm:$0xf]
        %v2230 = vld [vmem:[#allocation9 + $0xc0] sm:$0xf]
        %v2231 = vld [vmem:[#allocation9 + $0xc4] sm:$0xf]
        %v2232 = vld [vmem:[#allocation9 + $0xc8] sm:$0xf]
        %v2233 = vld [vmem:[#allocation9 + $0xcc] sm:$0xf]
        %v2234 = vld [vmem:[#allocation9 + $0xd0] sm:$0xf]
        %v2235 = vld [vmem:[#allocation9 + $0xd4] sm:$0xf]
        %v2236 = vld [vmem:[#allocation9 + $0xd8] sm:$0xf]
        %v2237 = vld [vmem:[#allocation9 + $0xdc] sm:$0xf]
        %v2238 = vld [vmem:[#allocation9 + $0xe0] sm:$0xf]
        %v2239 = vld [vmem:[#allocation9 + $0xe4] sm:$0xf]
        %v2240 = vld [vmem:[#allocation9 + $0xe8] sm:$0xf]
        %v2241 = vld [vmem:[#allocation9 + $0xec] sm:$0xf]
        %v2242 = vld [vmem:[#allocation9 + $0xf0] sm:$0xf]
        %v2243 = vld [vmem:[#allocation9 + $0xf4] sm:$0xf]
        %v2244 = vld [vmem:[#allocation9 + $0xf8] sm:$0xf]
        %v2245 = vld [vmem:[#allocation9 + $0xfc] sm:$0xf]
        %v2254 = vunpack.c.l.b16 %v2222
        %v2255 = vunpack.c.l.b16 %v2223
        %v2256 = vunpack.c.l.b16 %v2224
        %v2257 = vunpack.c.l.b16 %v2225
        %v2258 = vunpack.c.l.b16 %v2226
        %v2259 = vunpack.c.l.b16 %v2227
        %v2260 = vunpack.c.l.b16 %v2228
        %v2261 = vunpack.c.l.b16 %v2229
        %v2262 = vpack.c.b16 %v2255, %v2254
        %v2263 = vpack.c.b16 %v2257, %v2256
        %v2264 = vpack.c.b16 %v2259, %v2258
        %v2265 = vpack.c.b16 %v2261, %v2260
        %v2286 = vunpack.c.l.b16 %v2230
        %v2287 = vunpack.c.l.b16 %v2231
        %v2288 = vunpack.c.l.b16 %v2232
        %v2289 = vunpack.c.l.b16 %v2233
        %v2290 = vunpack.c.l.b16 %v2234
        %v2291 = vunpack.c.l.b16 %v2235
        %v2292 = vunpack.c.l.b16 %v2236
        %v2293 = vunpack.c.l.b16 %v2237
        %v2294 = vunpack.c.l.b16 %v2238
        %v2295 = vunpack.c.l.b16 %v2239
        %v2296 = vunpack.c.l.b16 %v2240
        %v2297 = vunpack.c.l.b16 %v2241
        %v2298 = vunpack.c.l.b16 %v2242
        %v2299 = vunpack.c.l.b16 %v2243
        %v2300 = vunpack.c.l.b16 %v2244
        %v2301 = vunpack.c.l.b16 %v2245
        %v2302 = vpack.c.b16 %v2287, %v2286
        %v2303 = vpack.c.b16 %v2289, %v2288
        %v2304 = vpack.c.b16 %v2291, %v2290
        %v2305 = vpack.c.b16 %v2293, %v2292
        %v2306 = vpack.c.b16 %v2295, %v2294
        %v2307 = vpack.c.b16 %v2297, %v2296
        %v2308 = vpack.c.b16 %v2299, %v2298
        %v2309 = vpack.c.b16 %v2301, %v2300
        %2318 = vmatpush.bf16.msra.mxu0 %v2309
        %2319 = vmatpush.bf16.msra.mxu0 %v2308
        %2320 = vmatpush.bf16.msra.mxu0 %v2307
        %2321 = vmatpush.bf16.msra.mxu0 %v2306
        %2322 = vmatpush.bf16.msra.mxu0 %v2305
        %2323 = vmatpush.bf16.msra.mxu0 %v2304
        %2324 = vmatpush.bf16.msra.mxu0 %v2303
        %2325 = vmatpush.bf16.msra.mxu0 %v2302
        %2326 = vmatmul.bf16.gmra.mxu0 %v2262
        %v2327 = vpop.f32.mrf.mxu0
        %v2328 = vadd.f32 0.0, %v2327
        %v2329 = vpop.f32.mrf.mxu0
        %v2330 = vadd.f32 0.0, %v2329
        %2331 = vmatmul.bf16.gmra.mxu0 %v2263
        %v2332 = vpop.f32.mrf.mxu0
        %v2333 = vadd.f32 0.0, %v2332
        %v2334 = vpop.f32.mrf.mxu0
        %v2335 = vadd.f32 0.0, %v2334
        %2336 = vmatmul.bf16.gmra.mxu0 %v2264
        %v2337 = vpop.f32.mrf.mxu0
        %v2338 = vadd.f32 0.0, %v2337
        %v2339 = vpop.f32.mrf.mxu0
        %v2340 = vadd.f32 0.0, %v2339
        %2341 = vmatmul.bf16.gmra.mxu0 %v2265
        %v2342 = vpop.f32.mrf.mxu0
        %v2343 = vadd.f32 0.0, %v2342
        %v2344 = vpop.f32.mrf.mxu0
        %v2345 = vadd.f32 0.0, %v2344
        %2346 = vdwg.mxu0
        %v2347 = vadd.f32 %v2214, %v2328
        %v2348 = vadd.f32 %v2215, %v2330
        %v2349 = vadd.f32 %v2216, %v2333
        %v2350 = vadd.f32 %v2217, %v2335
        %v2351 = vadd.f32 %v2218, %v2338
        %v2352 = vadd.f32 %v2219, %v2340
        %v2353 = vadd.f32 %v2220, %v2343
        %v2354 = vadd.f32 %v2221, %v2345
        %v2355 = vld [vmem:[%s387] sm:$0xf]
        %v2356 = vld [vmem:[%s387 + $0x4] sm:$0x1]
        %v2357 = vld [vmem:[%s387 + $0x8] sm:$0xf]
        %v2358 = vld [vmem:[%s387 + $0xc] sm:$0x1]
        %v2359 = vld [vmem:[%s387 + $0x10] sm:$0xf]
        %v2360 = vld [vmem:[%s387 + $0x14] sm:$0x1]
        %v2361 = vld [vmem:[%s387 + $0x18] sm:$0xf]
        %v2362 = vld [vmem:[%s387 + $0x1c] sm:$0x1]
        %v2363 = vld [vmem:[%s387 + $0x20] sm:$0xf]
        %v2364 = vld [vmem:[%s387 + $0x24] sm:$0x1]
        %v2365 = vld [vmem:[%s387 + $0x28] sm:$0xf]
        %v2366 = vld [vmem:[%s387 + $0x2c] sm:$0x1]
        %v2367 = vld [vmem:[%s387 + $0x30] sm:$0xf]
        %v2368 = vld [vmem:[%s387 + $0x34] sm:$0x1]
        %v2369 = vld [vmem:[%s387 + $0x38] sm:$0xf]
        %v2370 = vld [vmem:[%s387 + $0x3c] sm:$0x1]
        %v2372 = vshrl.u32 %v2355, 16
        %v2374 = vrot.slane %v2372, 4
        %v2375 = vshll.u32 %v2355, 16
        %v2377 = vrot.slane %v2375, 5
        %v2378 = vor.u32 %v2374, %v2377
        %v2379 = vrot.slane %v2378, 4
        %v2381 = vshll.u32 %v2356, 16
        %v2383 = vrot.slane %v2381, 5
        %v2384 = vsel %vm1723, %v2379, %v2383
        %v2386 = vshrl.u32 %v2357, 16
        %v2388 = vrot.slane %v2386, 4
        %v2389 = vshll.u32 %v2357, 16
        %v2391 = vrot.slane %v2389, 5
        %v2392 = vor.u32 %v2388, %v2391
        %v2393 = vrot.slane %v2392, 4
        %v2395 = vshll.u32 %v2358, 16
        %v2397 = vrot.slane %v2395, 5
        %v2398 = vsel %vm1723, %v2393, %v2397
        %v2400 = vshrl.u32 %v2359, 16
        %v2402 = vrot.slane %v2400, 4
        %v2403 = vshll.u32 %v2359, 16
        %v2405 = vrot.slane %v2403, 5
        %v2406 = vor.u32 %v2402, %v2405
        %v2407 = vrot.slane %v2406, 4
        %v2409 = vshll.u32 %v2360, 16
        %v2411 = vrot.slane %v2409, 5
        %v2412 = vsel %vm1723, %v2407, %v2411
        %v2414 = vshrl.u32 %v2361, 16
        %v2416 = vrot.slane %v2414, 4
        %v2417 = vshll.u32 %v2361, 16
        %v2419 = vrot.slane %v2417, 5
        %v2420 = vor.u32 %v2416, %v2419
        %v2421 = vrot.slane %v2420, 4
        %v2423 = vshll.u32 %v2362, 16
        %v2425 = vrot.slane %v2423, 5
        %v2426 = vsel %vm1723, %v2421, %v2425
        %v2428 = vshrl.u32 %v2363, 16
        %v2430 = vrot.slane %v2428, 4
        %v2431 = vshll.u32 %v2363, 16
        %v2433 = vrot.slane %v2431, 5
        %v2434 = vor.u32 %v2430, %v2433
        %v2435 = vrot.slane %v2434, 4
        %v2437 = vshll.u32 %v2364, 16
        %v2439 = vrot.slane %v2437, 5
        %v2440 = vsel %vm1723, %v2435, %v2439
        %v2442 = vshrl.u32 %v2365, 16
        %v2444 = vrot.slane %v2442, 4
        %v2445 = vshll.u32 %v2365, 16
        %v2447 = vrot.slane %v2445, 5
        %v2448 = vor.u32 %v2444, %v2447
        %v2449 = vrot.slane %v2448, 4
        %v2451 = vshll.u32 %v2366, 16
        %v2453 = vrot.slane %v2451, 5
        %v2454 = vsel %vm1723, %v2449, %v2453
        %v2456 = vshrl.u32 %v2367, 16
        %v2458 = vrot.slane %v2456, 4
        %v2459 = vshll.u32 %v2367, 16
        %v2461 = vrot.slane %v2459, 5
        %v2462 = vor.u32 %v2458, %v2461
        %v2463 = vrot.slane %v2462, 4
        %v2465 = vshll.u32 %v2368, 16
        %v2467 = vrot.slane %v2465, 5
        %v2468 = vsel %vm1723, %v2463, %v2467
        %v2470 = vshrl.u32 %v2369, 16
        %v2472 = vrot.slane %v2470, 4
        %v2473 = vshll.u32 %v2369, 16
        %v2475 = vrot.slane %v2473, 5
        %v2476 = vor.u32 %v2472, %v2475
        %v2477 = vrot.slane %v2476, 4
        %v2479 = vshll.u32 %v2370, 16
        %v2481 = vrot.slane %v2479, 5
        %v2482 = vsel %vm1723, %v2477, %v2481
        %v2483 = vld [vmem:[#allocation9 + $0x100] sm:$0xf]
        %v2484 = vld [vmem:[#allocation9 + $0x104] sm:$0xf]
        %v2485 = vld [vmem:[#allocation9 + $0x108] sm:$0xf]
        %v2486 = vld [vmem:[#allocation9 + $0x10c] sm:$0xf]
        %v2487 = vld [vmem:[#allocation9 + $0x110] sm:$0xf]
        %v2488 = vld [vmem:[#allocation9 + $0x114] sm:$0xf]
        %v2489 = vld [vmem:[#allocation9 + $0x118] sm:$0xf]
        %v2490 = vld [vmem:[#allocation9 + $0x11c] sm:$0xf]
        %v2491 = vld [vmem:[#allocation9 + $0x120] sm:$0xf]
        %v2492 = vld [vmem:[#allocation9 + $0x124] sm:$0xf]
        %v2493 = vld [vmem:[#allocation9 + $0x128] sm:$0xf]
        %v2494 = vld [vmem:[#allocation9 + $0x12c] sm:$0xf]
        %v2495 = vld [vmem:[#allocation9 + $0x130] sm:$0xf]
        %v2496 = vld [vmem:[#allocation9 + $0x134] sm:$0xf]
        %v2497 = vld [vmem:[#allocation9 + $0x138] sm:$0xf]
        %v2498 = vld [vmem:[#allocation9 + $0x13c] sm:$0xf]
        %v2499 = vunpack.c.l.b16 %v2384
        %v2500 = vunpack.c.l.b16 %v2398
        %v2501 = vunpack.c.l.b16 %v2412
        %v2502 = vunpack.c.l.b16 %v2426
        %v2503 = vunpack.c.l.b16 %v2440
        %v2504 = vunpack.c.l.b16 %v2454
        %v2505 = vunpack.c.l.b16 %v2468
        %v2506 = vunpack.c.l.b16 %v2482
        %v2507 = vpack.c.b16 %v2500, %v2499
        %v2508 = vpack.c.b16 %v2502, %v2501
        %v2509 = vpack.c.b16 %v2504, %v2503
        %v2510 = vpack.c.b16 %v2506, %v2505
        %v2531 = vunpack.c.l.b16 %v2483
        %v2532 = vunpack.c.l.b16 %v2484
        %v2533 = vunpack.c.l.b16 %v2485
        %v2534 = vunpack.c.l.b16 %v2486
        %v2535 = vunpack.c.l.b16 %v2487
        %v2536 = vunpack.c.l.b16 %v2488
        %v2537 = vunpack.c.l.b16 %v2489
        %v2538 = vunpack.c.l.b16 %v2490
        %v2539 = vunpack.c.l.b16 %v2491
        %v2540 = vunpack.c.l.b16 %v2492
        %v2541 = vunpack.c.l.b16 %v2493
        %v2542 = vunpack.c.l.b16 %v2494
        %v2543 = vunpack.c.l.b16 %v2495
        %v2544 = vunpack.c.l.b16 %v2496
        %v2545 = vunpack.c.l.b16 %v2497
        %v2546 = vunpack.c.l.b16 %v2498
        %v2547 = vpack.c.b16 %v2532, %v2531
        %v2548 = vpack.c.b16 %v2534, %v2533
        %v2549 = vpack.c.b16 %v2536, %v2535
        %v2550 = vpack.c.b16 %v2538, %v2537
        %v2551 = vpack.c.b16 %v2540, %v2539
        %v2552 = vpack.c.b16 %v2542, %v2541
        %v2553 = vpack.c.b16 %v2544, %v2543
        %v2554 = vpack.c.b16 %v2546, %v2545
        %2563 = vmatpush.bf16.msra.mxu0 %v2554
        %2564 = vmatpush.bf16.msra.mxu0 %v2553
        %2565 = vmatpush.bf16.msra.mxu0 %v2552
        %2566 = vmatpush.bf16.msra.mxu0 %v2551
        %2567 = vmatpush.bf16.msra.mxu0 %v2550
        %2568 = vmatpush.bf16.msra.mxu0 %v2549
        %2569 = vmatpush.bf16.msra.mxu0 %v2548
        %2570 = vmatpush.bf16.msra.mxu0 %v2547
        %2571 = vmatmul.bf16.gmra.mxu0 %v2507
        %v2572 = vpop.f32.mrf.mxu0
        %v2573 = vadd.f32 0.0, %v2572
        %v2574 = vpop.f32.mrf.mxu0
        %v2575 = vadd.f32 0.0, %v2574
        %2576 = vmatmul.bf16.gmra.mxu0 %v2508
        %v2577 = vpop.f32.mrf.mxu0
        %v2578 = vadd.f32 0.0, %v2577
        %v2579 = vpop.f32.mrf.mxu0
        %v2580 = vadd.f32 0.0, %v2579
        %2581 = vmatmul.bf16.gmra.mxu0 %v2509
        %v2582 = vpop.f32.mrf.mxu0
        %v2583 = vadd.f32 0.0, %v2582
        %v2584 = vpop.f32.mrf.mxu0
        %v2585 = vadd.f32 0.0, %v2584
        %2586 = vmatmul.bf16.gmra.mxu0 %v2510
        %v2587 = vpop.f32.mrf.mxu0
        %v2588 = vadd.f32 0.0, %v2587
        %v2589 = vpop.f32.mrf.mxu0
        %v2590 = vadd.f32 0.0, %v2589
        %2591 = vdwg.mxu0
        %v2592 = vadd.f32 %v2347, %v2573
        %v2593 = vadd.f32 %v2348, %v2575
        %v2594 = vadd.f32 %v2349, %v2578
        %v2595 = vadd.f32 %v2350, %v2580
        %v2596 = vadd.f32 %v2351, %v2583
        %v2597 = vadd.f32 %v2352, %v2585
        %v2598 = vadd.f32 %v2353, %v2588
        %v2599 = vadd.f32 %v2354, %v2590
        %v2600 = vld [vmem:[%s387] sm:$0xe]
        %v2601 = vld [vmem:[%s387 + $0x8] sm:$0xe]
        %v2602 = vld [vmem:[%s387 + $0x10] sm:$0xe]
        %v2603 = vld [vmem:[%s387 + $0x18] sm:$0xe]
        %v2604 = vld [vmem:[%s387 + $0x20] sm:$0xe]
        %v2605 = vld [vmem:[%s387 + $0x28] sm:$0xe]
        %v2606 = vld [vmem:[%s387 + $0x30] sm:$0xe]
        %v2607 = vld [vmem:[%s387 + $0x38] sm:$0xe]
        %v2624 = vrot.slane %v2600, 5
        %v2625 = vrot.slane %v2624, 4
        %v2626 = vrot.slane %v2356, 5
        %v2627 = vsel %vm2072, %v2625, %v2626
        %v2628 = vrot.slane %v2601, 5
        %v2629 = vrot.slane %v2628, 4
        %v2630 = vrot.slane %v2358, 5
        %v2631 = vsel %vm2072, %v2629, %v2630
        %v2632 = vrot.slane %v2602, 5
        %v2633 = vrot.slane %v2632, 4
        %v2634 = vrot.slane %v2360, 5
        %v2635 = vsel %vm2072, %v2633, %v2634
        %v2636 = vrot.slane %v2603, 5
        %v2637 = vrot.slane %v2636, 4
        %v2638 = vrot.slane %v2362, 5
        %v2639 = vsel %vm2072, %v2637, %v2638
        %v2640 = vrot.slane %v2604, 5
        %v2641 = vrot.slane %v2640, 4
        %v2642 = vrot.slane %v2364, 5
        %v2643 = vsel %vm2072, %v2641, %v2642
        %v2644 = vrot.slane %v2605, 5
        %v2645 = vrot.slane %v2644, 4
        %v2646 = vrot.slane %v2366, 5
        %v2647 = vsel %vm2072, %v2645, %v2646
        %v2648 = vrot.slane %v2606, 5
        %v2649 = vrot.slane %v2648, 4
        %v2650 = vrot.slane %v2368, 5
        %v2651 = vsel %vm2072, %v2649, %v2650
        %v2652 = vrot.slane %v2607, 5
        %v2653 = vrot.slane %v2652, 4
        %v2654 = vrot.slane %v2370, 5
        %v2655 = vsel %vm2072, %v2653, %v2654
        %v2656 = vld [vmem:[#allocation9 + $0x140] sm:$0xf]
        %v2657 = vld [vmem:[#allocation9 + $0x144] sm:$0xf]
        %v2658 = vld [vmem:[#allocation9 + $0x148] sm:$0xf]
        %v2659 = vld [vmem:[#allocation9 + $0x14c] sm:$0xf]
        %v2660 = vld [vmem:[#allocation9 + $0x150] sm:$0xf]
        %v2661 = vld [vmem:[#allocation9 + $0x154] sm:$0xf]
        %v2662 = vld [vmem:[#allocation9 + $0x158] sm:$0xf]
        %v2663 = vld [vmem:[#allocation9 + $0x15c] sm:$0xf]
        %v2664 = vld [vmem:[#allocation9 + $0x160] sm:$0xf]
        %v2665 = vld [vmem:[#allocation9 + $0x164] sm:$0xf]
        %v2666 = vld [vmem:[#allocation9 + $0x168] sm:$0xf]
        %v2667 = vld [vmem:[#allocation9 + $0x16c] sm:$0xf]
        %v2668 = vld [vmem:[#allocation9 + $0x170] sm:$0xf]
        %v2669 = vld [vmem:[#allocation9 + $0x174] sm:$0xf]
        %v2670 = vld [vmem:[#allocation9 + $0x178] sm:$0xf]
        %v2671 = vld [vmem:[#allocation9 + $0x17c] sm:$0xf]
        %v2672 = vunpack.c.l.b16 %v2627
        %v2673 = vunpack.c.l.b16 %v2631
        %v2674 = vunpack.c.l.b16 %v2635
        %v2675 = vunpack.c.l.b16 %v2639
        %v2676 = vunpack.c.l.b16 %v2643
        %v2677 = vunpack.c.l.b16 %v2647
        %v2678 = vunpack.c.l.b16 %v2651
        %v2679 = vunpack.c.l.b16 %v2655
        %v2680 = vpack.c.b16 %v2673, %v2672
        %v2681 = vpack.c.b16 %v2675, %v2674
        %v2682 = vpack.c.b16 %v2677, %v2676
        %v2683 = vpack.c.b16 %v2679, %v2678
        %v2704 = vunpack.c.l.b16 %v2656
        %v2705 = vunpack.c.l.b16 %v2657
        %v2706 = vunpack.c.l.b16 %v2658
        %v2707 = vunpack.c.l.b16 %v2659
        %v2708 = vunpack.c.l.b16 %v2660
        %v2709 = vunpack.c.l.b16 %v2661
        %v2710 = vunpack.c.l.b16 %v2662
        %v2711 = vunpack.c.l.b16 %v2663
        %v2712 = vunpack.c.l.b16 %v2664
        %v2713 = vunpack.c.l.b16 %v2665
        %v2714 = vunpack.c.l.b16 %v2666
        %v2715 = vunpack.c.l.b16 %v2667
        %v2716 = vunpack.c.l.b16 %v2668
        %v2717 = vunpack.c.l.b16 %v2669
        %v2718 = vunpack.c.l.b16 %v2670
        %v2719 = vunpack.c.l.b16 %v2671
        %v2720 = vpack.c.b16 %v2705, %v2704
        %v2721 = vpack.c.b16 %v2707, %v2706
        %v2722 = vpack.c.b16 %v2709, %v2708
        %v2723 = vpack.c.b16 %v2711, %v2710
        %v2724 = vpack.c.b16 %v2713, %v2712
        %v2725 = vpack.c.b16 %v2715, %v2714
        %v2726 = vpack.c.b16 %v2717, %v2716
        %v2727 = vpack.c.b16 %v2719, %v2718
        %2736 = vmatpush.bf16.msra.mxu0 %v2727
        %2737 = vmatpush.bf16.msra.mxu0 %v2726
        %2738 = vmatpush.bf16.msra.mxu0 %v2725
        %2739 = vmatpush.bf16.msra.mxu0 %v2724
        %2740 = vmatpush.bf16.msra.mxu0 %v2723
        %2741 = vmatpush.bf16.msra.mxu0 %v2722
        %2742 = vmatpush.bf16.msra.mxu0 %v2721
        %2743 = vmatpush.bf16.msra.mxu0 %v2720
        %2744 = vmatmul.bf16.gmra.mxu0 %v2680
        %v2745 = vpop.f32.mrf.mxu0
        %v2746 = vadd.f32 0.0, %v2745
        %v2747 = vpop.f32.mrf.mxu0
        %v2748 = vadd.f32 0.0, %v2747
        %2749 = vmatmul.bf16.gmra.mxu0 %v2681
        %v2750 = vpop.f32.mrf.mxu0
        %v2751 = vadd.f32 0.0, %v2750
        %v2752 = vpop.f32.mrf.mxu0
        %v2753 = vadd.f32 0.0, %v2752
        %2754 = vmatmul.bf16.gmra.mxu0 %v2682
        %v2755 = vpop.f32.mrf.mxu0
        %v2756 = vadd.f32 0.0, %v2755
        %v2757 = vpop.f32.mrf.mxu0
        %v2758 = vadd.f32 0.0, %v2757
        %2759 = vmatmul.bf16.gmra.mxu0 %v2683
        %v2760 = vpop.f32.mrf.mxu0
        %v2761 = vadd.f32 0.0, %v2760
        %v2762 = vpop.f32.mrf.mxu0
        %v2763 = vadd.f32 0.0, %v2762
        %2764 = vdwg.mxu0
        %v2765 = vadd.f32 %v2592, %v2746
        %v2766 = vadd.f32 %v2593, %v2748
        %v2767 = vadd.f32 %v2594, %v2751
        %v2768 = vadd.f32 %v2595, %v2753
        %v2769 = vadd.f32 %v2596, %v2756
        %v2770 = vadd.f32 %v2597, %v2758
        %v2771 = vadd.f32 %v2598, %v2761
        %v2772 = vadd.f32 %v2599, %v2763
        %s2773 = scalar_lea.vmem [#allocation2], 16
        %v2774 = vld [vmem:[%s2773] sm:$0xf]
        %v2775 = vld [vmem:[%s2773 + $0x8] sm:$0xf]
        %v2776 = vld [vmem:[%s2773 + $0x10] sm:$0xf]
        %v2777 = vld [vmem:[%s2773 + $0x18] sm:$0xf]
        %v2778 = vld [vmem:[%s2773 + $0x20] sm:$0xf]
        %v2779 = vld [vmem:[%s2773 + $0x28] sm:$0xf]
        %v2780 = vld [vmem:[%s2773 + $0x30] sm:$0xf]
        %v2781 = vld [vmem:[%s2773 + $0x38] sm:$0xf]
        %v2782 = vld [vmem:[#allocation9 + $0x180] sm:$0xf]
        %v2783 = vld [vmem:[#allocation9 + $0x184] sm:$0xf]
        %v2784 = vld [vmem:[#allocation9 + $0x188] sm:$0xf]
        %v2785 = vld [vmem:[#allocation9 + $0x18c] sm:$0xf]
        %v2786 = vld [vmem:[#allocation9 + $0x190] sm:$0xf]
        %v2787 = vld [vmem:[#allocation9 + $0x194] sm:$0xf]
        %v2788 = vld [vmem:[#allocation9 + $0x198] sm:$0xf]
        %v2789 = vld [vmem:[#allocation9 + $0x19c] sm:$0xf]
        %v2790 = vld [vmem:[#allocation9 + $0x1a0] sm:$0xf]
        %v2791 = vld [vmem:[#allocation9 + $0x1a4] sm:$0xf]
        %v2792 = vld [vmem:[#allocation9 + $0x1a8] sm:$0xf]
        %v2793 = vld [vmem:[#allocation9 + $0x1ac] sm:$0xf]
        %v2794 = vld [vmem:[#allocation9 + $0x1b0] sm:$0xf]
        %v2795 = vld [vmem:[#allocation9 + $0x1b4] sm:$0xf]
        %v2796 = vld [vmem:[#allocation9 + $0x1b8] sm:$0xf]
        %v2797 = vld [vmem:[#allocation9 + $0x1bc] sm:$0xf]
        %v2806 = vunpack.c.l.b16 %v2774
        %v2807 = vunpack.c.l.b16 %v2775
        %v2808 = vunpack.c.l.b16 %v2776
        %v2809 = vunpack.c.l.b16 %v2777
        %v2810 = vunpack.c.l.b16 %v2778
        %v2811 = vunpack.c.l.b16 %v2779
        %v2812 = vunpack.c.l.b16 %v2780
        %v2813 = vunpack.c.l.b16 %v2781
        %v2814 = vpack.c.b16 %v2807, %v2806
        %v2815 = vpack.c.b16 %v2809, %v2808
        %v2816 = vpack.c.b16 %v2811, %v2810
        %v2817 = vpack.c.b16 %v2813, %v2812
        %v2838 = vunpack.c.l.b16 %v2782
        %v2839 = vunpack.c.l.b16 %v2783
        %v2840 = vunpack.c.l.b16 %v2784
        %v2841 = vunpack.c.l.b16 %v2785
        %v2842 = vunpack.c.l.b16 %v2786
        %v2843 = vunpack.c.l.b16 %v2787
        %v2844 = vunpack.c.l.b16 %v2788
        %v2845 = vunpack.c.l.b16 %v2789
        %v2846 = vunpack.c.l.b16 %v2790
        %v2847 = vunpack.c.l.b16 %v2791
        %v2848 = vunpack.c.l.b16 %v2792
        %v2849 = vunpack.c.l.b16 %v2793
        %v2850 = vunpack.c.l.b16 %v2794
        %v2851 = vunpack.c.l.b16 %v2795
        %v2852 = vunpack.c.l.b16 %v2796
        %v2853 = vunpack.c.l.b16 %v2797
        %v2854 = vpack.c.b16 %v2839, %v2838
        %v2855 = vpack.c.b16 %v2841, %v2840
        %v2856 = vpack.c.b16 %v2843, %v2842
        %v2857 = vpack.c.b16 %v2845, %v2844
        %v2858 = vpack.c.b16 %v2847, %v2846
        %v2859 = vpack.c.b16 %v2849, %v2848
        %v2860 = vpack.c.b16 %v2851, %v2850
        %v2861 = vpack.c.b16 %v2853, %v2852
        %2870 = vmatpush.bf16.msra.mxu0 %v2861
        %2871 = vmatpush.bf16.msra.mxu0 %v2860
        %2872 = vmatpush.bf16.msra.mxu0 %v2859
        %2873 = vmatpush.bf16.msra.mxu0 %v2858
        %2874 = vmatpush.bf16.msra.mxu0 %v2857
        %2875 = vmatpush.bf16.msra.mxu0 %v2856
        %2876 = vmatpush.bf16.msra.mxu0 %v2855
        %2877 = vmatpush.bf16.msra.mxu0 %v2854
        %2878 = vmatmul.bf16.gmra.mxu0 %v2814
        %v2879 = vpop.f32.mrf.mxu0
        %v2880 = vadd.f32 0.0, %v2879
        %v2881 = vpop.f32.mrf.mxu0
        %v2882 = vadd.f32 0.0, %v2881
        %2883 = vmatmul.bf16.gmra.mxu0 %v2815
        %v2884 = vpop.f32.mrf.mxu0
        %v2885 = vadd.f32 0.0, %v2884
        %v2886 = vpop.f32.mrf.mxu0
        %v2887 = vadd.f32 0.0, %v2886
        %2888 = vmatmul.bf16.gmra.mxu0 %v2816
        %v2889 = vpop.f32.mrf.mxu0
        %v2890 = vadd.f32 0.0, %v2889
        %v2891 = vpop.f32.mrf.mxu0
        %v2892 = vadd.f32 0.0, %v2891
        %2893 = vmatmul.bf16.gmra.mxu0 %v2817
        %v2894 = vpop.f32.mrf.mxu0
        %v2895 = vadd.f32 0.0, %v2894
        %v2896 = vpop.f32.mrf.mxu0
        %v2897 = vadd.f32 0.0, %v2896
        %2898 = vdwg.mxu0
        %v2899 = vadd.f32 %v2765, %v2880
        %v2900 = vadd.f32 %v2766, %v2882
        %v2901 = vadd.f32 %v2767, %v2885
        %v2902 = vadd.f32 %v2768, %v2887
        %v2903 = vadd.f32 %v2769, %v2890
        %v2904 = vadd.f32 %v2770, %v2892
        %v2905 = vadd.f32 %v2771, %v2895
        %v2906 = vadd.f32 %v2772, %v2897
        %v2907 = vld [vmem:[%s2773] sm:$0xf]
        %v2908 = vld [vmem:[%s2773 + $0x4] sm:$0x1]
        %v2909 = vld [vmem:[%s2773 + $0x8] sm:$0xf]
        %v2910 = vld [vmem:[%s2773 + $0xc] sm:$0x1]
        %v2911 = vld [vmem:[%s2773 + $0x10] sm:$0xf]
        %v2912 = vld [vmem:[%s2773 + $0x14] sm:$0x1]
        %v2913 = vld [vmem:[%s2773 + $0x18] sm:$0xf]
        %v2914 = vld [vmem:[%s2773 + $0x1c] sm:$0x1]
        %v2915 = vld [vmem:[%s2773 + $0x20] sm:$0xf]
        %v2916 = vld [vmem:[%s2773 + $0x24] sm:$0x1]
        %v2917 = vld [vmem:[%s2773 + $0x28] sm:$0xf]
        %v2918 = vld [vmem:[%s2773 + $0x2c] sm:$0x1]
        %v2919 = vld [vmem:[%s2773 + $0x30] sm:$0xf]
        %v2920 = vld [vmem:[%s2773 + $0x34] sm:$0x1]
        %v2921 = vld [vmem:[%s2773 + $0x38] sm:$0xf]
        %v2922 = vld [vmem:[%s2773 + $0x3c] sm:$0x1]
        %v2924 = vshrl.u32 %v2907, 16
        %v2926 = vrot.slane %v2924, 4
        %v2927 = vshll.u32 %v2907, 16
        %v2929 = vrot.slane %v2927, 5
        %v2930 = vor.u32 %v2926, %v2929
        %v2931 = vrot.slane %v2930, 4
        %v2933 = vshll.u32 %v2908, 16
        %v2935 = vrot.slane %v2933, 5
        %v2936 = vsel %vm1723, %v2931, %v2935
        %v2938 = vshrl.u32 %v2909, 16
        %v2940 = vrot.slane %v2938, 4
        %v2941 = vshll.u32 %v2909, 16
        %v2943 = vrot.slane %v2941, 5
        %v2944 = vor.u32 %v2940, %v2943
        %v2945 = vrot.slane %v2944, 4
        %v2947 = vshll.u32 %v2910, 16
        %v2949 = vrot.slane %v2947, 5
        %v2950 = vsel %vm1723, %v2945, %v2949
        %v2952 = vshrl.u32 %v2911, 16
        %v2954 = vrot.slane %v2952, 4
        %v2955 = vshll.u32 %v2911, 16
        %v2957 = vrot.slane %v2955, 5
        %v2958 = vor.u32 %v2954, %v2957
        %v2959 = vrot.slane %v2958, 4
        %v2961 = vshll.u32 %v2912, 16
        %v2963 = vrot.slane %v2961, 5
        %v2964 = vsel %vm1723, %v2959, %v2963
        %v2966 = vshrl.u32 %v2913, 16
        %v2968 = vrot.slane %v2966, 4
        %v2969 = vshll.u32 %v2913, 16
        %v2971 = vrot.slane %v2969, 5
        %v2972 = vor.u32 %v2968, %v2971
        %v2973 = vrot.slane %v2972, 4
        %v2975 = vshll.u32 %v2914, 16
        %v2977 = vrot.slane %v2975, 5
        %v2978 = vsel %vm1723, %v2973, %v2977
        %v2980 = vshrl.u32 %v2915, 16
        %v2982 = vrot.slane %v2980, 4
        %v2983 = vshll.u32 %v2915, 16
        %v2985 = vrot.slane %v2983, 5
        %v2986 = vor.u32 %v2982, %v2985
        %v2987 = vrot.slane %v2986, 4
        %v2989 = vshll.u32 %v2916, 16
        %v2991 = vrot.slane %v2989, 5
        %v2992 = vsel %vm1723, %v2987, %v2991
        %v2994 = vshrl.u32 %v2917, 16
        %v2996 = vrot.slane %v2994, 4
        %v2997 = vshll.u32 %v2917, 16
        %v2999 = vrot.slane %v2997, 5
        %v3000 = vor.u32 %v2996, %v2999
        %v3001 = vrot.slane %v3000, 4
        %v3003 = vshll.u32 %v2918, 16
        %v3005 = vrot.slane %v3003, 5
        %v3006 = vsel %vm1723, %v3001, %v3005
        %v3008 = vshrl.u32 %v2919, 16
        %v3010 = vrot.slane %v3008, 4
        %v3011 = vshll.u32 %v2919, 16
        %v3013 = vrot.slane %v3011, 5
        %v3014 = vor.u32 %v3010, %v3013
        %v3015 = vrot.slane %v3014, 4
        %v3017 = vshll.u32 %v2920, 16
        %v3019 = vrot.slane %v3017, 5
        %v3020 = vsel %vm1723, %v3015, %v3019
        %v3022 = vshrl.u32 %v2921, 16
        %v3024 = vrot.slane %v3022, 4
        %v3025 = vshll.u32 %v2921, 16
        %v3027 = vrot.slane %v3025, 5
        %v3028 = vor.u32 %v3024, %v3027
        %v3029 = vrot.slane %v3028, 4
        %v3031 = vshll.u32 %v2922, 16
        %v3033 = vrot.slane %v3031, 5
        %v3034 = vsel %vm1723, %v3029, %v3033
        %v3035 = vld [vmem:[#allocation9 + $0x1c0] sm:$0xf]
        %v3036 = vld [vmem:[#allocation9 + $0x1c4] sm:$0xf]
        %v3037 = vld [vmem:[#allocation9 + $0x1c8] sm:$0xf]
        %v3038 = vld [vmem:[#allocation9 + $0x1cc] sm:$0xf]
        %v3039 = vld [vmem:[#allocation9 + $0x1d0] sm:$0xf]
        %v3040 = vld [vmem:[#allocation9 + $0x1d4] sm:$0xf]
        %v3041 = vld [vmem:[#allocation9 + $0x1d8] sm:$0xf]
        %v3042 = vld [vmem:[#allocation9 + $0x1dc] sm:$0xf]
        %v3043 = vld [vmem:[#allocation9 + $0x1e0] sm:$0xf]
        %v3044 = vld [vmem:[#allocation9 + $0x1e4] sm:$0xf]
        %v3045 = vld [vmem:[#allocation9 + $0x1e8] sm:$0xf]
        %v3046 = vld [vmem:[#allocation9 + $0x1ec] sm:$0xf]
        %v3047 = vld [vmem:[#allocation9 + $0x1f0] sm:$0xf]
        %v3048 = vld [vmem:[#allocation9 + $0x1f4] sm:$0xf]
        %v3049 = vld [vmem:[#allocation9 + $0x1f8] sm:$0xf]
        %v3050 = vld [vmem:[#allocation9 + $0x1fc] sm:$0xf]
        %v3051 = vunpack.c.l.b16 %v2936
        %v3052 = vunpack.c.l.b16 %v2950
        %v3053 = vunpack.c.l.b16 %v2964
        %v3054 = vunpack.c.l.b16 %v2978
        %v3055 = vunpack.c.l.b16 %v2992
        %v3056 = vunpack.c.l.b16 %v3006
        %v3057 = vunpack.c.l.b16 %v3020
        %v3058 = vunpack.c.l.b16 %v3034
        %v3059 = vpack.c.b16 %v3052, %v3051
        %v3060 = vpack.c.b16 %v3054, %v3053
        %v3061 = vpack.c.b16 %v3056, %v3055
        %v3062 = vpack.c.b16 %v3058, %v3057
        %v3083 = vunpack.c.l.b16 %v3035
        %v3084 = vunpack.c.l.b16 %v3036
        %v3085 = vunpack.c.l.b16 %v3037
        %v3086 = vunpack.c.l.b16 %v3038
        %v3087 = vunpack.c.l.b16 %v3039
        %v3088 = vunpack.c.l.b16 %v3040
        %v3089 = vunpack.c.l.b16 %v3041
        %v3090 = vunpack.c.l.b16 %v3042
        %v3091 = vunpack.c.l.b16 %v3043
        %v3092 = vunpack.c.l.b16 %v3044
        %v3093 = vunpack.c.l.b16 %v3045
        %v3094 = vunpack.c.l.b16 %v3046
        %v3095 = vunpack.c.l.b16 %v3047
        %v3096 = vunpack.c.l.b16 %v3048
        %v3097 = vunpack.c.l.b16 %v3049
        %v3098 = vunpack.c.l.b16 %v3050
        %v3099 = vpack.c.b16 %v3084, %v3083
        %v3100 = vpack.c.b16 %v3086, %v3085
        %v3101 = vpack.c.b16 %v3088, %v3087
        %v3102 = vpack.c.b16 %v3090, %v3089
        %v3103 = vpack.c.b16 %v3092, %v3091
        %v3104 = vpack.c.b16 %v3094, %v3093
        %v3105 = vpack.c.b16 %v3096, %v3095
        %v3106 = vpack.c.b16 %v3098, %v3097
        %3115 = vmatpush.bf16.msra.mxu0 %v3106
        %3116 = vmatpush.bf16.msra.mxu0 %v3105
        %3117 = vmatpush.bf16.msra.mxu0 %v3104
        %3118 = vmatpush.bf16.msra.mxu0 %v3103
        %3119 = vmatpush.bf16.msra.mxu0 %v3102
        %3120 = vmatpush.bf16.msra.mxu0 %v3101
        %3121 = vmatpush.bf16.msra.mxu0 %v3100
        %3122 = vmatpush.bf16.msra.mxu0 %v3099
        %3123 = vmatmul.bf16.gmra.mxu0 %v3059
        %v3124 = vpop.f32.mrf.mxu0
        %v3125 = vadd.f32 0.0, %v3124
        %v3126 = vpop.f32.mrf.mxu0
        %v3127 = vadd.f32 0.0, %v3126
        %3128 = vmatmul.bf16.gmra.mxu0 %v3060
        %v3129 = vpop.f32.mrf.mxu0
        %v3130 = vadd.f32 0.0, %v3129
        %v3131 = vpop.f32.mrf.mxu0
        %v3132 = vadd.f32 0.0, %v3131
        %3133 = vmatmul.bf16.gmra.mxu0 %v3061
        %v3134 = vpop.f32.mrf.mxu0
        %v3135 = vadd.f32 0.0, %v3134
        %v3136 = vpop.f32.mrf.mxu0
        %v3137 = vadd.f32 0.0, %v3136
        %3138 = vmatmul.bf16.gmra.mxu0 %v3062
        %v3139 = vpop.f32.mrf.mxu0
        %v3140 = vadd.f32 0.0, %v3139
        %v3141 = vpop.f32.mrf.mxu0
        %v3142 = vadd.f32 0.0, %v3141
        %3143 = vdwg.mxu0
        %v3144 = vadd.f32 %v2899, %v3125
        %v3145 = vadd.f32 %v2900, %v3127
        %v3146 = vadd.f32 %v2901, %v3130
        %v3147 = vadd.f32 %v2902, %v3132
        %v3148 = vadd.f32 %v2903, %v3135
        %v3149 = vadd.f32 %v2904, %v3137
        %v3150 = vadd.f32 %v2905, %v3140
        %v3151 = vadd.f32 %v2906, %v3142
        %v3152 = vld [vmem:[%s2773] sm:$0xe]
        %v3153 = vld [vmem:[%s2773 + $0x8] sm:$0xe]
        %v3154 = vld [vmem:[%s2773 + $0x10] sm:$0xe]
        %v3155 = vld [vmem:[%s2773 + $0x18] sm:$0xe]
        %v3156 = vld [vmem:[%s2773 + $0x20] sm:$0xe]
        %v3157 = vld [vmem:[%s2773 + $0x28] sm:$0xe]
        %v3158 = vld [vmem:[%s2773 + $0x30] sm:$0xe]
        %v3159 = vld [vmem:[%s2773 + $0x38] sm:$0xe]
        %v3176 = vrot.slane %v3152, 5
        %v3177 = vrot.slane %v3176, 4
        %v3178 = vrot.slane %v2908, 5
        %v3179 = vsel %vm2072, %v3177, %v3178
        %v3180 = vrot.slane %v3153, 5
        %v3181 = vrot.slane %v3180, 4
        %v3182 = vrot.slane %v2910, 5
        %v3183 = vsel %vm2072, %v3181, %v3182
        %v3184 = vrot.slane %v3154, 5
        %v3185 = vrot.slane %v3184, 4
        %v3186 = vrot.slane %v2912, 5
        %v3187 = vsel %vm2072, %v3185, %v3186
        %v3188 = vrot.slane %v3155, 5
        %v3189 = vrot.slane %v3188, 4
        %v3190 = vrot.slane %v2914, 5
        %v3191 = vsel %vm2072, %v3189, %v3190
        %v3192 = vrot.slane %v3156, 5
        %v3193 = vrot.slane %v3192, 4
        %v3194 = vrot.slane %v2916, 5
        %v3195 = vsel %vm2072, %v3193, %v3194
        %v3196 = vrot.slane %v3157, 5
        %v3197 = vrot.slane %v3196, 4
        %v3198 = vrot.slane %v2918, 5
        %v3199 = vsel %vm2072, %v3197, %v3198
        %v3200 = vrot.slane %v3158, 5
        %v3201 = vrot.slane %v3200, 4
        %v3202 = vrot.slane %v2920, 5
        %v3203 = vsel %vm2072, %v3201, %v3202
        %v3204 = vrot.slane %v3159, 5
        %v3205 = vrot.slane %v3204, 4
        %v3206 = vrot.slane %v2922, 5
        %v3207 = vsel %vm2072, %v3205, %v3206
        %v3208 = vld [vmem:[#allocation9 + $0x200] sm:$0xf]
        %v3209 = vld [vmem:[#allocation9 + $0x204] sm:$0xf]
        %v3210 = vld [vmem:[#allocation9 + $0x208] sm:$0xf]
        %v3211 = vld [vmem:[#allocation9 + $0x20c] sm:$0xf]
        %v3212 = vld [vmem:[#allocation9 + $0x210] sm:$0xf]
        %v3213 = vld [vmem:[#allocation9 + $0x214] sm:$0xf]
        %v3214 = vld [vmem:[#allocation9 + $0x218] sm:$0xf]
        %v3215 = vld [vmem:[#allocation9 + $0x21c] sm:$0xf]
        %v3216 = vld [vmem:[#allocation9 + $0x220] sm:$0xf]
        %v3217 = vld [vmem:[#allocation9 + $0x224] sm:$0xf]
        %v3218 = vld [vmem:[#allocation9 + $0x228] sm:$0xf]
        %v3219 = vld [vmem:[#allocation9 + $0x22c] sm:$0xf]
        %v3220 = vld [vmem:[#allocation9 + $0x230] sm:$0xf]
        %v3221 = vld [vmem:[#allocation9 + $0x234] sm:$0xf]
        %v3222 = vld [vmem:[#allocation9 + $0x238] sm:$0xf]
        %v3223 = vld [vmem:[#allocation9 + $0x23c] sm:$0xf]
        %v3224 = vunpack.c.l.b16 %v3179
        %v3225 = vunpack.c.l.b16 %v3183
        %v3226 = vunpack.c.l.b16 %v3187
        %v3227 = vunpack.c.l.b16 %v3191
        %v3228 = vunpack.c.l.b16 %v3195
        %v3229 = vunpack.c.l.b16 %v3199
        %v3230 = vunpack.c.l.b16 %v3203
        %v3231 = vunpack.c.l.b16 %v3207
        %v3232 = vpack.c.b16 %v3225, %v3224
        %v3233 = vpack.c.b16 %v3227, %v3226
        %v3234 = vpack.c.b16 %v3229, %v3228
        %v3235 = vpack.c.b16 %v3231, %v3230
        %v3256 = vunpack.c.l.b16 %v3208
        %v3257 = vunpack.c.l.b16 %v3209
        %v3258 = vunpack.c.l.b16 %v3210
        %v3259 = vunpack.c.l.b16 %v3211
        %v3260 = vunpack.c.l.b16 %v3212
        %v3261 = vunpack.c.l.b16 %v3213
        %v3262 = vunpack.c.l.b16 %v3214
        %v3263 = vunpack.c.l.b16 %v3215
        %v3264 = vunpack.c.l.b16 %v3216
        %v3265 = vunpack.c.l.b16 %v3217
        %v3266 = vunpack.c.l.b16 %v3218
        %v3267 = vunpack.c.l.b16 %v3219
        %v3268 = vunpack.c.l.b16 %v3220
        %v3269 = vunpack.c.l.b16 %v3221
        %v3270 = vunpack.c.l.b16 %v3222
        %v3271 = vunpack.c.l.b16 %v3223
        %v3272 = vpack.c.b16 %v3257, %v3256
        %v3273 = vpack.c.b16 %v3259, %v3258
        %v3274 = vpack.c.b16 %v3261, %v3260
        %v3275 = vpack.c.b16 %v3263, %v3262
        %v3276 = vpack.c.b16 %v3265, %v3264
        %v3277 = vpack.c.b16 %v3267, %v3266
        %v3278 = vpack.c.b16 %v3269, %v3268
        %v3279 = vpack.c.b16 %v3271, %v3270
        %3288 = vmatpush.bf16.msra.mxu0 %v3279
        %3289 = vmatpush.bf16.msra.mxu0 %v3278
        %3290 = vmatpush.bf16.msra.mxu0 %v3277
        %3291 = vmatpush.bf16.msra.mxu0 %v3276
        %3292 = vmatpush.bf16.msra.mxu0 %v3275
        %3293 = vmatpush.bf16.msra.mxu0 %v3274
        %3294 = vmatpush.bf16.msra.mxu0 %v3273
        %3295 = vmatpush.bf16.msra.mxu0 %v3272
        %3296 = vmatmul.bf16.gmra.mxu0 %v3232
        %v3297 = vpop.f32.mrf.mxu0
        %v3298 = vadd.f32 0.0, %v3297
        %v3299 = vpop.f32.mrf.mxu0
        %v3300 = vadd.f32 0.0, %v3299
        %3301 = vmatmul.bf16.gmra.mxu0 %v3233
        %v3302 = vpop.f32.mrf.mxu0
        %v3303 = vadd.f32 0.0, %v3302
        %v3304 = vpop.f32.mrf.mxu0
        %v3305 = vadd.f32 0.0, %v3304
        %3306 = vmatmul.bf16.gmra.mxu0 %v3234
        %v3307 = vpop.f32.mrf.mxu0
        %v3308 = vadd.f32 0.0, %v3307
        %v3309 = vpop.f32.mrf.mxu0
        %v3310 = vadd.f32 0.0, %v3309
        %3311 = vmatmul.bf16.gmra.mxu0 %v3235
        %v3312 = vpop.f32.mrf.mxu0
        %v3313 = vadd.f32 0.0, %v3312
        %v3314 = vpop.f32.mrf.mxu0
        %v3315 = vadd.f32 0.0, %v3314
        %3316 = vdwg.mxu0
        %v3317 = vadd.f32 %v3144, %v3298
        %v3318 = vadd.f32 %v3145, %v3300
        %v3319 = vadd.f32 %v3146, %v3303
        %v3320 = vadd.f32 %v3147, %v3305
        %v3321 = vadd.f32 %v3148, %v3308
        %v3322 = vadd.f32 %v3149, %v3310
        %v3323 = vadd.f32 %v3150, %v3313
        %v3324 = vadd.f32 %v3151, %v3315
        %v3325 = vld [vmem:[%s6] sm:$0x1]
        %v3327 = vperm.slane %v3325, 0
        %v3329 = vadd.f32 %v3317, %v3327
        %v3330 = vadd.f32 %v3318, %v3327
        %v3331 = vadd.f32 %v3319, %v3327
        %v3332 = vadd.f32 %v3320, %v3327
        %v3333 = vadd.f32 %v3321, %v3327
        %v3334 = vadd.f32 %v3322, %v3327
        %v3335 = vadd.f32 %v3323, %v3327
        %v3336 = vadd.f32 %v3324, %v3327
        %3337 = vst [vmem:[%s348] sm:$0xff] %v3329
        %3338 = vst [vmem:[%s348 + $0x8] sm:$0xff] %v3330
        %3339 = vst [vmem:[%s348 + $0x10] sm:$0xff] %v3331
        %3340 = vst [vmem:[%s348 + $0x18] sm:$0xff] %v3332
        %3341 = vst [vmem:[%s348 + $0x20] sm:$0xff] %v3333
        %3342 = vst [vmem:[%s348 + $0x28] sm:$0xff] %v3334
        %3343 = vst [vmem:[%s348 + $0x30] sm:$0xff] %v3335
        %3344 = vst [vmem:[%s348 + $0x38] sm:$0xff] %v3336
        %v3345 = vmax.f32 %v350, 0.0
        %v3346 = vmax.f32 %v351, 0.0
        %v3347 = vmax.f32 %v352, 0.0
        %v3348 = vmax.f32 %v353, 0.0
        %v3349 = vmax.f32 %v354, 0.0
        %v3350 = vmax.f32 %v355, 0.0
        %v3351 = vmax.f32 %v356, 0.0
        %v3352 = vmax.f32 %v357, 0.0
        %v3353 = vmax.f32 %v358, 0.0
        %v3354 = vmax.f32 %v359, 0.0
        %v3355 = vmax.f32 %v360, 0.0
        %v3356 = vmax.f32 %v361, 0.0
        %v3357 = vmax.f32 %v362, 0.0
        %v3358 = vmax.f32 %v363, 0.0
        %v3359 = vmax.f32 %v364, 0.0
        %v3360 = vmax.f32 %v365, 0.0
        %v3361 = vmax.f32 %v366, 0.0
        %v3362 = vmax.f32 %v367, 0.0
        %v3363 = vmax.f32 %v368, 0.0
        %v3364 = vmax.f32 %v369, 0.0
        %v3365 = vmax.f32 %v370, 0.0
        %v3366 = vmax.f32 %v371, 0.0
        %v3367 = vmax.f32 %v372, 0.0
        %v3368 = vmax.f32 %v373, 0.0
        %v3369 = vmax.f32 %v374, 0.0
        %v3370 = vmax.f32 %v375, 0.0
        %v3371 = vmax.f32 %v376, 0.0
        %v3372 = vmax.f32 %v377, 0.0
        %v3373 = vmax.f32 %v378, 0.0
        %v3374 = vmax.f32 %v379, 0.0
        %v3375 = vmax.f32 %v380, 0.0
        %v3376 = vmax.f32 %v381, 0.0
        %v3409 = vrot.slane %v3345, 2
        %v3410 = vrot.slane %v3345, 4
        %v3411 = vrot.slane %v3345, 6
        %v3412 = vrot.slane %v3346, 2
        %v3413 = vrot.slane %v3346, 4
        %v3414 = vrot.slane %v3346, 6
        %v3415 = vrot.slane %v3347, 2
        %v3416 = vrot.slane %v3347, 4
        %v3417 = vrot.slane %v3347, 6
        %v3418 = vrot.slane %v3348, 2
        %v3419 = vrot.slane %v3348, 4
        %v3420 = vrot.slane %v3348, 6
        %v3421 = vrot.slane %v3349, 2
        %v3422 = vrot.slane %v3349, 4
        %v3423 = vrot.slane %v3349, 6
        %v3424 = vrot.slane %v3350, 2
        %v3425 = vrot.slane %v3350, 4
        %v3426 = vrot.slane %v3350, 6
        %v3427 = vrot.slane %v3351, 2
        %v3428 = vrot.slane %v3351, 4
        %v3429 = vrot.slane %v3351, 6
        %v3430 = vrot.slane %v3352, 2
        %v3431 = vrot.slane %v3352, 4
        %v3432 = vrot.slane %v3352, 6
        %v3433 = vrot.slane %v3353, 2
        %v3434 = vrot.slane %v3353, 4
        %v3435 = vrot.slane %v3353, 6
        %v3436 = vrot.slane %v3354, 2
        %v3437 = vrot.slane %v3354, 4
        %v3438 = vrot.slane %v3354, 6
        %v3439 = vrot.slane %v3355, 2
        %v3440 = vrot.slane %v3355, 4
        %v3441 = vrot.slane %v3355, 6
        %v3442 = vrot.slane %v3356, 2
        %v3443 = vrot.slane %v3356, 4
        %v3444 = vrot.slane %v3356, 6
        %v3445 = vrot.slane %v3357, 2
        %v3446 = vrot.slane %v3357, 4
        %v3447 = vrot.slane %v3357, 6
        %v3448 = vrot.slane %v3358, 2
        %v3449 = vrot.slane %v3358, 4
        %v3450 = vrot.slane %v3358, 6
        %v3451 = vrot.slane %v3359, 2
        %v3452 = vrot.slane %v3359, 4
        %v3453 = vrot.slane %v3359, 6
        %v3454 = vrot.slane %v3360, 2
        %v3455 = vrot.slane %v3360, 4
        %v3456 = vrot.slane %v3360, 6
        %v3457 = vrot.slane %v3361, 2
        %v3458 = vrot.slane %v3361, 4
        %v3459 = vrot.slane %v3361, 6
        %v3460 = vrot.slane %v3362, 2
        %v3461 = vrot.slane %v3362, 4
        %v3462 = vrot.slane %v3362, 6
        %v3463 = vrot.slane %v3363, 2
        %v3464 = vrot.slane %v3363, 4
        %v3465 = vrot.slane %v3363, 6
        %v3466 = vrot.slane %v3364, 2
        %v3467 = vrot.slane %v3364, 4
        %v3468 = vrot.slane %v3364, 6
        %v3469 = vrot.slane %v3365, 2
        %v3470 = vrot.slane %v3365, 4
        %v3471 = vrot.slane %v3365, 6
        %v3472 = vrot.slane %v3366, 2
        %v3473 = vrot.slane %v3366, 4
        %v3474 = vrot.slane %v3366, 6
        %v3475 = vrot.slane %v3367, 2
        %v3476 = vrot.slane %v3367, 4
        %v3477 = vrot.slane %v3367, 6
        %v3478 = vrot.slane %v3368, 2
        %v3479 = vrot.slane %v3368, 4
        %v3480 = vrot.slane %v3368, 6
        %v3481 = vrot.slane %v3369, 2
        %v3482 = vrot.slane %v3369, 4
        %v3483 = vrot.slane %v3369, 6
        %v3484 = vrot.slane %v3370, 2
        %v3485 = vrot.slane %v3370, 4
        %v3486 = vrot.slane %v3370, 6
        %v3487 = vrot.slane %v3371, 2
        %v3488 = vrot.slane %v3371, 4
        %v3489 = vrot.slane %v3371, 6
        %v3490 = vrot.slane %v3372, 2
        %v3491 = vrot.slane %v3372, 4
        %v3492 = vrot.slane %v3372, 6
        %v3493 = vrot.slane %v3373, 2
        %v3494 = vrot.slane %v3373, 4
        %v3495 = vrot.slane %v3373, 6
        %v3496 = vrot.slane %v3374, 2
        %v3497 = vrot.slane %v3374, 4
        %v3498 = vrot.slane %v3374, 6
        %v3499 = vrot.slane %v3375, 2
        %v3500 = vrot.slane %v3375, 4
        %v3501 = vrot.slane %v3375, 6
        %v3502 = vrot.slane %v3376, 2
        %v3503 = vrot.slane %v3376, 4
        %v3504 = vrot.slane %v3376, 6
        %v3601 = vrot.slane %v3345, 7
        %v3602 = vrot.slane %v3601, 2
        %v3603 = vrot.slane %v3409, 7
        %v3604 = vrot.slane %v3603, 2
        %v3605 = vrot.slane %v3410, 7
        %v3606 = vrot.slane %v3605, 2
        %v3607 = vrot.slane %v3411, 7
        %v3608 = vrot.slane %v3607, 2
        %v3609 = vrot.slane %v3346, 7
        %v3610 = vrot.slane %v3609, 2
        %v3611 = vrot.slane %v3412, 7
        %v3612 = vrot.slane %v3611, 2
        %v3613 = vrot.slane %v3413, 7
        %v3614 = vrot.slane %v3613, 2
        %v3615 = vrot.slane %v3414, 7
        %v3616 = vrot.slane %v3615, 2
        %v3617 = vrot.slane %v3347, 7
        %v3618 = vrot.slane %v3617, 2
        %v3619 = vrot.slane %v3415, 7
        %v3620 = vrot.slane %v3619, 2
        %v3621 = vrot.slane %v3416, 7
        %v3622 = vrot.slane %v3621, 2
        %v3623 = vrot.slane %v3417, 7
        %v3624 = vrot.slane %v3623, 2
        %v3625 = vrot.slane %v3348, 7
        %v3626 = vrot.slane %v3625, 2
        %v3627 = vrot.slane %v3418, 7
        %v3628 = vrot.slane %v3627, 2
        %v3629 = vrot.slane %v3419, 7
        %v3630 = vrot.slane %v3629, 2
        %v3631 = vrot.slane %v3420, 7
        %v3632 = vrot.slane %v3631, 2
        %v3633 = vrot.slane %v3349, 7
        %v3634 = vrot.slane %v3633, 2
        %v3635 = vrot.slane %v3421, 7
        %v3636 = vrot.slane %v3635, 2
        %v3637 = vrot.slane %v3422, 7
        %v3638 = vrot.slane %v3637, 2
        %v3639 = vrot.slane %v3423, 7
        %v3640 = vrot.slane %v3639, 2
        %v3641 = vrot.slane %v3350, 7
        %v3642 = vrot.slane %v3641, 2
        %v3643 = vrot.slane %v3424, 7
        %v3644 = vrot.slane %v3643, 2
        %v3645 = vrot.slane %v3425, 7
        %v3646 = vrot.slane %v3645, 2
        %v3647 = vrot.slane %v3426, 7
        %v3648 = vrot.slane %v3647, 2
        %v3649 = vrot.slane %v3351, 7
        %v3650 = vrot.slane %v3649, 2
        %v3651 = vrot.slane %v3427, 7
        %v3652 = vrot.slane %v3651, 2
        %v3653 = vrot.slane %v3428, 7
        %v3654 = vrot.slane %v3653, 2
        %v3655 = vrot.slane %v3429, 7
        %v3656 = vrot.slane %v3655, 2
        %v3657 = vrot.slane %v3352, 7
        %v3658 = vrot.slane %v3657, 2
        %v3659 = vrot.slane %v3430, 7
        %v3660 = vrot.slane %v3659, 2
        %v3661 = vrot.slane %v3431, 7
        %v3662 = vrot.slane %v3661, 2
        %v3663 = vrot.slane %v3432, 7
        %v3664 = vrot.slane %v3663, 2
        %v3665 = vrot.slane %v3353, 7
        %v3666 = vrot.slane %v3665, 2
        %v3667 = vrot.slane %v3433, 7
        %v3668 = vrot.slane %v3667, 2
        %v3669 = vrot.slane %v3434, 7
        %v3670 = vrot.slane %v3669, 2
        %v3671 = vrot.slane %v3435, 7
        %v3672 = vrot.slane %v3671, 2
        %v3673 = vrot.slane %v3354, 7
        %v3674 = vrot.slane %v3673, 2
        %v3675 = vrot.slane %v3436, 7
        %v3676 = vrot.slane %v3675, 2
        %v3677 = vrot.slane %v3437, 7
        %v3678 = vrot.slane %v3677, 2
        %v3679 = vrot.slane %v3438, 7
        %v3680 = vrot.slane %v3679, 2
        %v3681 = vrot.slane %v3355, 7
        %v3682 = vrot.slane %v3681, 2
        %v3683 = vrot.slane %v3439, 7
        %v3684 = vrot.slane %v3683, 2
        %v3685 = vrot.slane %v3440, 7
        %v3686 = vrot.slane %v3685, 2
        %v3687 = vrot.slane %v3441, 7
        %v3688 = vrot.slane %v3687, 2
        %v3689 = vrot.slane %v3356, 7
        %v3690 = vrot.slane %v3689, 2
        %v3691 = vrot.slane %v3442, 7
        %v3692 = vrot.slane %v3691, 2
        %v3693 = vrot.slane %v3443, 7
        %v3694 = vrot.slane %v3693, 2
        %v3695 = vrot.slane %v3444, 7
        %v3696 = vrot.slane %v3695, 2
        %v3697 = vrot.slane %v3357, 7
        %v3698 = vrot.slane %v3697, 2
        %v3699 = vrot.slane %v3445, 7
        %v3700 = vrot.slane %v3699, 2
        %v3701 = vrot.slane %v3446, 7
        %v3702 = vrot.slane %v3701, 2
        %v3703 = vrot.slane %v3447, 7
        %v3704 = vrot.slane %v3703, 2
        %v3705 = vrot.slane %v3358, 7
        %v3706 = vrot.slane %v3705, 2
        %v3707 = vrot.slane %v3448, 7
        %v3708 = vrot.slane %v3707, 2
        %v3709 = vrot.slane %v3449, 7
        %v3710 = vrot.slane %v3709, 2
        %v3711 = vrot.slane %v3450, 7
        %v3712 = vrot.slane %v3711, 2
        %v3713 = vrot.slane %v3359, 7
        %v3714 = vrot.slane %v3713, 2
        %v3715 = vrot.slane %v3451, 7
        %v3716 = vrot.slane %v3715, 2
        %v3717 = vrot.slane %v3452, 7
        %v3718 = vrot.slane %v3717, 2
        %v3719 = vrot.slane %v3453, 7
        %v3720 = vrot.slane %v3719, 2
        %v3721 = vrot.slane %v3360, 7
        %v3722 = vrot.slane %v3721, 2
        %v3723 = vrot.slane %v3454, 7
        %v3724 = vrot.slane %v3723, 2
        %v3725 = vrot.slane %v3455, 7
        %v3726 = vrot.slane %v3725, 2
        %v3727 = vrot.slane %v3456, 7
        %v3728 = vrot.slane %v3727, 2
        %v3729 = vrot.slane %v3361, 7
        %v3730 = vrot.slane %v3729, 2
        %v3731 = vrot.slane %v3457, 7
        %v3732 = vrot.slane %v3731, 2
        %v3733 = vrot.slane %v3458, 7
        %v3734 = vrot.slane %v3733, 2
        %v3735 = vrot.slane %v3459, 7
        %v3736 = vrot.slane %v3735, 2
        %v3737 = vrot.slane %v3362, 7
        %v3738 = vrot.slane %v3737, 2
        %v3739 = vrot.slane %v3460, 7
        %v3740 = vrot.slane %v3739, 2
        %v3741 = vrot.slane %v3461, 7
        %v3742 = vrot.slane %v3741, 2
        %v3743 = vrot.slane %v3462, 7
        %v3744 = vrot.slane %v3743, 2
        %v3745 = vrot.slane %v3363, 7
        %v3746 = vrot.slane %v3745, 2
        %v3747 = vrot.slane %v3463, 7
        %v3748 = vrot.slane %v3747, 2
        %v3749 = vrot.slane %v3464, 7
        %v3750 = vrot.slane %v3749, 2
        %v3751 = vrot.slane %v3465, 7
        %v3752 = vrot.slane %v3751, 2
        %v3753 = vrot.slane %v3364, 7
        %v3754 = vrot.slane %v3753, 2
        %v3755 = vrot.slane %v3466, 7
        %v3756 = vrot.slane %v3755, 2
        %v3757 = vrot.slane %v3467, 7
        %v3758 = vrot.slane %v3757, 2
        %v3759 = vrot.slane %v3468, 7
        %v3760 = vrot.slane %v3759, 2
        %v3761 = vrot.slane %v3365, 7
        %v3762 = vrot.slane %v3761, 2
        %v3763 = vrot.slane %v3469, 7
        %v3764 = vrot.slane %v3763, 2
        %v3765 = vrot.slane %v3470, 7
        %v3766 = vrot.slane %v3765, 2
        %v3767 = vrot.slane %v3471, 7
        %v3768 = vrot.slane %v3767, 2
        %v3769 = vrot.slane %v3366, 7
        %v3770 = vrot.slane %v3769, 2
        %v3771 = vrot.slane %v3472, 7
        %v3772 = vrot.slane %v3771, 2
        %v3773 = vrot.slane %v3473, 7
        %v3774 = vrot.slane %v3773, 2
        %v3775 = vrot.slane %v3474, 7
        %v3776 = vrot.slane %v3775, 2
        %v3777 = vrot.slane %v3367, 7
        %v3778 = vrot.slane %v3777, 2
        %v3779 = vrot.slane %v3475, 7
        %v3780 = vrot.slane %v3779, 2
        %v3781 = vrot.slane %v3476, 7
        %v3782 = vrot.slane %v3781, 2
        %v3783 = vrot.slane %v3477, 7
        %v3784 = vrot.slane %v3783, 2
        %v3785 = vrot.slane %v3368, 7
        %v3786 = vrot.slane %v3785, 2
        %v3787 = vrot.slane %v3478, 7
        %v3788 = vrot.slane %v3787, 2
        %v3789 = vrot.slane %v3479, 7
        %v3790 = vrot.slane %v3789, 2
        %v3791 = vrot.slane %v3480, 7
        %v3792 = vrot.slane %v3791, 2
        %v3793 = vrot.slane %v3369, 7
        %v3794 = vrot.slane %v3793, 2
        %v3795 = vrot.slane %v3481, 7
        %v3796 = vrot.slane %v3795, 2
        %v3797 = vrot.slane %v3482, 7
        %v3798 = vrot.slane %v3797, 2
        %v3799 = vrot.slane %v3483, 7
        %v3800 = vrot.slane %v3799, 2
        %v3801 = vrot.slane %v3370, 7
        %v3802 = vrot.slane %v3801, 2
        %v3803 = vrot.slane %v3484, 7
        %v3804 = vrot.slane %v3803, 2
        %v3805 = vrot.slane %v3485, 7
        %v3806 = vrot.slane %v3805, 2
        %v3807 = vrot.slane %v3486, 7
        %v3808 = vrot.slane %v3807, 2
        %v3809 = vrot.slane %v3371, 7
        %v3810 = vrot.slane %v3809, 2
        %v3811 = vrot.slane %v3487, 7
        %v3812 = vrot.slane %v3811, 2
        %v3813 = vrot.slane %v3488, 7
        %v3814 = vrot.slane %v3813, 2
        %v3815 = vrot.slane %v3489, 7
        %v3816 = vrot.slane %v3815, 2
        %v3817 = vrot.slane %v3372, 7
        %v3818 = vrot.slane %v3817, 2
        %v3819 = vrot.slane %v3490, 7
        %v3820 = vrot.slane %v3819, 2
        %v3821 = vrot.slane %v3491, 7
        %v3822 = vrot.slane %v3821, 2
        %v3823 = vrot.slane %v3492, 7
        %v3824 = vrot.slane %v3823, 2
        %v3825 = vrot.slane %v3373, 7
        %v3826 = vrot.slane %v3825, 2
        %v3827 = vrot.slane %v3493, 7
        %v3828 = vrot.slane %v3827, 2
        %v3829 = vrot.slane %v3494, 7
        %v3830 = vrot.slane %v3829, 2
        %v3831 = vrot.slane %v3495, 7
        %v3832 = vrot.slane %v3831, 2
        %v3833 = vrot.slane %v3374, 7
        %v3834 = vrot.slane %v3833, 2
        %v3835 = vrot.slane %v3496, 7
        %v3836 = vrot.slane %v3835, 2
        %v3837 = vrot.slane %v3497, 7
        %v3838 = vrot.slane %v3837, 2
        %v3839 = vrot.slane %v3498, 7
        %v3840 = vrot.slane %v3839, 2
        %v3841 = vrot.slane %v3375, 7
        %v3842 = vrot.slane %v3841, 2
        %v3843 = vrot.slane %v3499, 7
        %v3844 = vrot.slane %v3843, 2
        %v3845 = vrot.slane %v3500, 7
        %v3846 = vrot.slane %v3845, 2
        %v3847 = vrot.slane %v3501, 7
        %v3848 = vrot.slane %v3847, 2
        %v3849 = vrot.slane %v3376, 7
        %v3850 = vrot.slane %v3849, 2
        %v3851 = vrot.slane %v3502, 7
        %v3852 = vrot.slane %v3851, 2
        %v3853 = vrot.slane %v3503, 7
        %v3854 = vrot.slane %v3853, 2
        %v3855 = vrot.slane %v3504, 7
        %v3856 = vrot.slane %v3855, 2
        %v3985 = vadd.f32 %v3345, %v3602
        %v3986 = vadd.f32 %v3409, %v3604
        %v3987 = vadd.f32 %v3410, %v3606
        %v3988 = vadd.f32 %v3411, %v3608
        %v3989 = vadd.f32 %v3346, %v3610
        %v3990 = vadd.f32 %v3412, %v3612
        %v3991 = vadd.f32 %v3413, %v3614
        %v3992 = vadd.f32 %v3414, %v3616
        %v3993 = vadd.f32 %v3347, %v3618
        %v3994 = vadd.f32 %v3415, %v3620
        %v3995 = vadd.f32 %v3416, %v3622
        %v3996 = vadd.f32 %v3417, %v3624
        %v3997 = vadd.f32 %v3348, %v3626
        %v3998 = vadd.f32 %v3418, %v3628
        %v3999 = vadd.f32 %v3419, %v3630
        %v4000 = vadd.f32 %v3420, %v3632
        %v4001 = vadd.f32 %v3349, %v3634
        %v4002 = vadd.f32 %v3421, %v3636
        %v4003 = vadd.f32 %v3422, %v3638
        %v4004 = vadd.f32 %v3423, %v3640
        %v4005 = vadd.f32 %v3350, %v3642
        %v4006 = vadd.f32 %v3424, %v3644
        %v4007 = vadd.f32 %v3425, %v3646
        %v4008 = vadd.f32 %v3426, %v3648
        %v4009 = vadd.f32 %v3351, %v3650
        %v4010 = vadd.f32 %v3427, %v3652
        %v4011 = vadd.f32 %v3428, %v3654
        %v4012 = vadd.f32 %v3429, %v3656
        %v4013 = vadd.f32 %v3352, %v3658
        %v4014 = vadd.f32 %v3430, %v3660
        %v4015 = vadd.f32 %v3431, %v3662
        %v4016 = vadd.f32 %v3432, %v3664
        %v4017 = vadd.f32 %v3353, %v3666
        %v4018 = vadd.f32 %v3433, %v3668
        %v4019 = vadd.f32 %v3434, %v3670
        %v4020 = vadd.f32 %v3435, %v3672
        %v4021 = vadd.f32 %v3354, %v3674
        %v4022 = vadd.f32 %v3436, %v3676
        %v4023 = vadd.f32 %v3437, %v3678
        %v4024 = vadd.f32 %v3438, %v3680
        %v4025 = vadd.f32 %v3355, %v3682
        %v4026 = vadd.f32 %v3439, %v3684
        %v4027 = vadd.f32 %v3440, %v3686
        %v4028 = vadd.f32 %v3441, %v3688
        %v4029 = vadd.f32 %v3356, %v3690
        %v4030 = vadd.f32 %v3442, %v3692
        %v4031 = vadd.f32 %v3443, %v3694
        %v4032 = vadd.f32 %v3444, %v3696
        %v4033 = vadd.f32 %v3357, %v3698
        %v4034 = vadd.f32 %v3445, %v3700
        %v4035 = vadd.f32 %v3446, %v3702
        %v4036 = vadd.f32 %v3447, %v3704
        %v4037 = vadd.f32 %v3358, %v3706
        %v4038 = vadd.f32 %v3448, %v3708
        %v4039 = vadd.f32 %v3449, %v3710
        %v4040 = vadd.f32 %v3450, %v3712
        %v4041 = vadd.f32 %v3359, %v3714
        %v4042 = vadd.f32 %v3451, %v3716
        %v4043 = vadd.f32 %v3452, %v3718
        %v4044 = vadd.f32 %v3453, %v3720
        %v4045 = vadd.f32 %v3360, %v3722
        %v4046 = vadd.f32 %v3454, %v3724
        %v4047 = vadd.f32 %v3455, %v3726
        %v4048 = vadd.f32 %v3456, %v3728
        %v4049 = vadd.f32 %v3361, %v3730
        %v4050 = vadd.f32 %v3457, %v3732
        %v4051 = vadd.f32 %v3458, %v3734
        %v4052 = vadd.f32 %v3459, %v3736
        %v4053 = vadd.f32 %v3362, %v3738
        %v4054 = vadd.f32 %v3460, %v3740
        %v4055 = vadd.f32 %v3461, %v3742
        %v4056 = vadd.f32 %v3462, %v3744
        %v4057 = vadd.f32 %v3363, %v3746
        %v4058 = vadd.f32 %v3463, %v3748
        %v4059 = vadd.f32 %v3464, %v3750
        %v4060 = vadd.f32 %v3465, %v3752
        %v4061 = vadd.f32 %v3364, %v3754
        %v4062 = vadd.f32 %v3466, %v3756
        %v4063 = vadd.f32 %v3467, %v3758
        %v4064 = vadd.f32 %v3468, %v3760
        %v4065 = vadd.f32 %v3365, %v3762
        %v4066 = vadd.f32 %v3469, %v3764
        %v4067 = vadd.f32 %v3470, %v3766
        %v4068 = vadd.f32 %v3471, %v3768
        %v4069 = vadd.f32 %v3366, %v3770
        %v4070 = vadd.f32 %v3472, %v3772
        %v4071 = vadd.f32 %v3473, %v3774
        %v4072 = vadd.f32 %v3474, %v3776
        %v4073 = vadd.f32 %v3367, %v3778
        %v4074 = vadd.f32 %v3475, %v3780
        %v4075 = vadd.f32 %v3476, %v3782
        %v4076 = vadd.f32 %v3477, %v3784
        %v4077 = vadd.f32 %v3368, %v3786
        %v4078 = vadd.f32 %v3478, %v3788
        %v4079 = vadd.f32 %v3479, %v3790
        %v4080 = vadd.f32 %v3480, %v3792
        %v4081 = vadd.f32 %v3369, %v3794
        %v4082 = vadd.f32 %v3481, %v3796
        %v4083 = vadd.f32 %v3482, %v3798
        %v4084 = vadd.f32 %v3483, %v3800
        %v4085 = vadd.f32 %v3370, %v3802
        %v4086 = vadd.f32 %v3484, %v3804
        %v4087 = vadd.f32 %v3485, %v3806
        %v4088 = vadd.f32 %v3486, %v3808
        %v4089 = vadd.f32 %v3371, %v3810
        %v4090 = vadd.f32 %v3487, %v3812
        %v4091 = vadd.f32 %v3488, %v3814
        %v4092 = vadd.f32 %v3489, %v3816
        %v4093 = vadd.f32 %v3372, %v3818
        %v4094 = vadd.f32 %v3490, %v3820
        %v4095 = vadd.f32 %v3491, %v3822
        %v4096 = vadd.f32 %v3492, %v3824
        %v4097 = vadd.f32 %v3373, %v3826
        %v4098 = vadd.f32 %v3493, %v3828
        %v4099 = vadd.f32 %v3494, %v3830
        %v4100 = vadd.f32 %v3495, %v3832
        %v4101 = vadd.f32 %v3374, %v3834
        %v4102 = vadd.f32 %v3496, %v3836
        %v4103 = vadd.f32 %v3497, %v3838
        %v4104 = vadd.f32 %v3498, %v3840
        %v4105 = vadd.f32 %v3375, %v3842
        %v4106 = vadd.f32 %v3499, %v3844
        %v4107 = vadd.f32 %v3500, %v3846
        %v4108 = vadd.f32 %v3501, %v3848
        %v4109 = vadd.f32 %v3376, %v3850
        %v4110 = vadd.f32 %v3502, %v3852
        %v4111 = vadd.f32 %v3503, %v3854
        %v4112 = vadd.f32 %v3504, %v3856
        %v4113 = vadd.f32 %v3985, %v3993
        %v4114 = vadd.f32 %v3986, %v3994
        %v4115 = vadd.f32 %v3987, %v3995
        %v4116 = vadd.f32 %v3988, %v3996
        %v4117 = vadd.f32 %v3989, %v3997
        %v4118 = vadd.f32 %v3990, %v3998
        %v4119 = vadd.f32 %v3991, %v3999
        %v4120 = vadd.f32 %v3992, %v4000
        %v4121 = vadd.f32 %v4001, %v4009
        %v4122 = vadd.f32 %v4002, %v4010
        %v4123 = vadd.f32 %v4003, %v4011
        %v4124 = vadd.f32 %v4004, %v4012
        %v4125 = vadd.f32 %v4005, %v4013
        %v4126 = vadd.f32 %v4006, %v4014
        %v4127 = vadd.f32 %v4007, %v4015
        %v4128 = vadd.f32 %v4008, %v4016
        %v4129 = vadd.f32 %v4017, %v4025
        %v4130 = vadd.f32 %v4018, %v4026
        %v4131 = vadd.f32 %v4019, %v4027
        %v4132 = vadd.f32 %v4020, %v4028
        %v4133 = vadd.f32 %v4021, %v4029
        %v4134 = vadd.f32 %v4022, %v4030
        %v4135 = vadd.f32 %v4023, %v4031
        %v4136 = vadd.f32 %v4024, %v4032
        %v4137 = vadd.f32 %v4033, %v4041
        %v4138 = vadd.f32 %v4034, %v4042
        %v4139 = vadd.f32 %v4035, %v4043
        %v4140 = vadd.f32 %v4036, %v4044
        %v4141 = vadd.f32 %v4037, %v4045
        %v4142 = vadd.f32 %v4038, %v4046
        %v4143 = vadd.f32 %v4039, %v4047
        %v4144 = vadd.f32 %v4040, %v4048
        %v4145 = vadd.f32 %v4049, %v4057
        %v4146 = vadd.f32 %v4050, %v4058
        %v4147 = vadd.f32 %v4051, %v4059
        %v4148 = vadd.f32 %v4052, %v4060
        %v4149 = vadd.f32 %v4053, %v4061
        %v4150 = vadd.f32 %v4054, %v4062
        %v4151 = vadd.f32 %v4055, %v4063
        %v4152 = vadd.f32 %v4056, %v4064
        %v4153 = vadd.f32 %v4065, %v4073
        %v4154 = vadd.f32 %v4066, %v4074
        %v4155 = vadd.f32 %v4067, %v4075
        %v4156 = vadd.f32 %v4068, %v4076
        %v4157 = vadd.f32 %v4069, %v4077
        %v4158 = vadd.f32 %v4070, %v4078
        %v4159 = vadd.f32 %v4071, %v4079
        %v4160 = vadd.f32 %v4072, %v4080
        %v4161 = vadd.f32 %v4081, %v4089
        %v4162 = vadd.f32 %v4082, %v4090
        %v4163 = vadd.f32 %v4083, %v4091
        %v4164 = vadd.f32 %v4084, %v4092
        %v4165 = vadd.f32 %v4085, %v4093
        %v4166 = vadd.f32 %v4086, %v4094
        %v4167 = vadd.f32 %v4087, %v4095
        %v4168 = vadd.f32 %v4088, %v4096
        %v4169 = vadd.f32 %v4097, %v4105
        %v4170 = vadd.f32 %v4098, %v4106
        %v4171 = vadd.f32 %v4099, %v4107
        %v4172 = vadd.f32 %v4100, %v4108
        %v4173 = vadd.f32 %v4101, %v4109
        %v4174 = vadd.f32 %v4102, %v4110
        %v4175 = vadd.f32 %v4103, %v4111
        %v4176 = vadd.f32 %v4104, %v4112
        %v4177 = vmul.f32 %v4113, 0.25
        %v4178 = vmul.f32 %v4114, 0.25
        %v4179 = vmul.f32 %v4115, 0.25
        %v4180 = vmul.f32 %v4116, 0.25
        %v4181 = vmul.f32 %v4117, 0.25
        %v4182 = vmul.f32 %v4118, 0.25
        %v4183 = vmul.f32 %v4119, 0.25
        %v4184 = vmul.f32 %v4120, 0.25
        %v4185 = vmul.f32 %v4121, 0.25
        %v4186 = vmul.f32 %v4122, 0.25
        %v4187 = vmul.f32 %v4123, 0.25
        %v4188 = vmul.f32 %v4124, 0.25
        %v4189 = vmul.f32 %v4125, 0.25
        %v4190 = vmul.f32 %v4126, 0.25
        %v4191 = vmul.f32 %v4127, 0.25
        %v4192 = vmul.f32 %v4128, 0.25
        %v4193 = vmul.f32 %v4129, 0.25
        %v4194 = vmul.f32 %v4130, 0.25
        %v4195 = vmul.f32 %v4131, 0.25
        %v4196 = vmul.f32 %v4132, 0.25
        %v4197 = vmul.f32 %v4133, 0.25
        %v4198 = vmul.f32 %v4134, 0.25
        %v4199 = vmul.f32 %v4135, 0.25
        %v4200 = vmul.f32 %v4136, 0.25
        %v4201 = vmul.f32 %v4137, 0.25
        %v4202 = vmul.f32 %v4138, 0.25
        %v4203 = vmul.f32 %v4139, 0.25
        %v4204 = vmul.f32 %v4140, 0.25
        %v4205 = vmul.f32 %v4141, 0.25
        %v4206 = vmul.f32 %v4142, 0.25
        %v4207 = vmul.f32 %v4143, 0.25
        %v4208 = vmul.f32 %v4144, 0.25
        %v4209 = vmul.f32 %v4145, 0.25
        %v4210 = vmul.f32 %v4146, 0.25
        %v4211 = vmul.f32 %v4147, 0.25
        %v4212 = vmul.f32 %v4148, 0.25
        %v4213 = vmul.f32 %v4149, 0.25
        %v4214 = vmul.f32 %v4150, 0.25
        %v4215 = vmul.f32 %v4151, 0.25
        %v4216 = vmul.f32 %v4152, 0.25
        %v4217 = vmul.f32 %v4153, 0.25
        %v4218 = vmul.f32 %v4154, 0.25
        %v4219 = vmul.f32 %v4155, 0.25
        %v4220 = vmul.f32 %v4156, 0.25
        %v4221 = vmul.f32 %v4157, 0.25
        %v4222 = vmul.f32 %v4158, 0.25
        %v4223 = vmul.f32 %v4159, 0.25
        %v4224 = vmul.f32 %v4160, 0.25
        %v4225 = vmul.f32 %v4161, 0.25
        %v4226 = vmul.f32 %v4162, 0.25
        %v4227 = vmul.f32 %v4163, 0.25
        %v4228 = vmul.f32 %v4164, 0.25
        %v4229 = vmul.f32 %v4165, 0.25
        %v4230 = vmul.f32 %v4166, 0.25
        %v4231 = vmul.f32 %v4167, 0.25
        %v4232 = vmul.f32 %v4168, 0.25
        %v4233 = vmul.f32 %v4169, 0.25
        %v4234 = vmul.f32 %v4170, 0.25
        %v4235 = vmul.f32 %v4171, 0.25
        %v4236 = vmul.f32 %v4172, 0.25
        %v4237 = vmul.f32 %v4173, 0.25
        %v4238 = vmul.f32 %v4174, 0.25
        %v4239 = vmul.f32 %v4175, 0.25
        %v4240 = vmul.f32 %v4176, 0.25
        %v4241 = vpack.c.bf16 %v4177, %v4177
        %v4242 = vpack.c.bf16 %v4178, %v4178
        %v4243 = vpack.c.bf16 %v4179, %v4179
        %v4244 = vpack.c.bf16 %v4180, %v4180
        %v4245 = vpack.c.bf16 %v4181, %v4181
        %v4246 = vpack.c.bf16 %v4182, %v4182
        %v4247 = vpack.c.bf16 %v4183, %v4183
        %v4248 = vpack.c.bf16 %v4184, %v4184
        %v4249 = vpack.c.bf16 %v4185, %v4185
        %v4250 = vpack.c.bf16 %v4186, %v4186
        %v4251 = vpack.c.bf16 %v4187, %v4187
        %v4252 = vpack.c.bf16 %v4188, %v4188
        %v4253 = vpack.c.bf16 %v4189, %v4189
        %v4254 = vpack.c.bf16 %v4190, %v4190
        %v4255 = vpack.c.bf16 %v4191, %v4191
        %v4256 = vpack.c.bf16 %v4192, %v4192
        %v4257 = vpack.c.bf16 %v4193, %v4193
        %v4258 = vpack.c.bf16 %v4194, %v4194
        %v4259 = vpack.c.bf16 %v4195, %v4195
        %v4260 = vpack.c.bf16 %v4196, %v4196
        %v4261 = vpack.c.bf16 %v4197, %v4197
        %v4262 = vpack.c.bf16 %v4198, %v4198
        %v4263 = vpack.c.bf16 %v4199, %v4199
        %v4264 = vpack.c.bf16 %v4200, %v4200
        %v4265 = vpack.c.bf16 %v4201, %v4201
        %v4266 = vpack.c.bf16 %v4202, %v4202
        %v4267 = vpack.c.bf16 %v4203, %v4203
        %v4268 = vpack.c.bf16 %v4204, %v4204
        %v4269 = vpack.c.bf16 %v4205, %v4205
        %v4270 = vpack.c.bf16 %v4206, %v4206
        %v4271 = vpack.c.bf16 %v4207, %v4207
        %v4272 = vpack.c.bf16 %v4208, %v4208
        %v4273 = vpack.c.bf16 %v4209, %v4209
        %v4274 = vpack.c.bf16 %v4210, %v4210
        %v4275 = vpack.c.bf16 %v4211, %v4211
        %v4276 = vpack.c.bf16 %v4212, %v4212
        %v4277 = vpack.c.bf16 %v4213, %v4213
        %v4278 = vpack.c.bf16 %v4214, %v4214
        %v4279 = vpack.c.bf16 %v4215, %v4215
        %v4280 = vpack.c.bf16 %v4216, %v4216
        %v4281 = vpack.c.bf16 %v4217, %v4217
        %v4282 = vpack.c.bf16 %v4218, %v4218
        %v4283 = vpack.c.bf16 %v4219, %v4219
        %v4284 = vpack.c.bf16 %v4220, %v4220
        %v4285 = vpack.c.bf16 %v4221, %v4221
        %v4286 = vpack.c.bf16 %v4222, %v4222
        %v4287 = vpack.c.bf16 %v4223, %v4223
        %v4288 = vpack.c.bf16 %v4224, %v4224
        %v4289 = vpack.c.bf16 %v4225, %v4225
        %v4290 = vpack.c.bf16 %v4226, %v4226
        %v4291 = vpack.c.bf16 %v4227, %v4227
        %v4292 = vpack.c.bf16 %v4228, %v4228
        %v4293 = vpack.c.bf16 %v4229, %v4229
        %v4294 = vpack.c.bf16 %v4230, %v4230
        %v4295 = vpack.c.bf16 %v4231, %v4231
        %v4296 = vpack.c.bf16 %v4232, %v4232
        %v4297 = vpack.c.bf16 %v4233, %v4233
        %v4298 = vpack.c.bf16 %v4234, %v4234
        %v4299 = vpack.c.bf16 %v4235, %v4235
        %v4300 = vpack.c.bf16 %v4236, %v4236
        %v4301 = vpack.c.bf16 %v4237, %v4237
        %v4302 = vpack.c.bf16 %v4238, %v4238
        %v4303 = vpack.c.bf16 %v4239, %v4239
        %v4304 = vpack.c.bf16 %v4240, %v4240
        %v4369 = vunpack.c.l.b16 %v4241
        %v4370 = vunpack.c.l.b16 %v4242
        %v4371 = vunpack.c.l.b16 %v4243
        %v4372 = vunpack.c.l.b16 %v4244
        %v4373 = vunpack.c.l.b16 %v4245
        %v4374 = vunpack.c.l.b16 %v4246
        %v4375 = vunpack.c.l.b16 %v4247
        %v4376 = vunpack.c.l.b16 %v4248
        %v4377 = vunpack.c.l.b16 %v4249
        %v4378 = vunpack.c.l.b16 %v4250
        %v4379 = vunpack.c.l.b16 %v4251
        %v4380 = vunpack.c.l.b16 %v4252
        %v4381 = vunpack.c.l.b16 %v4253
        %v4382 = vunpack.c.l.b16 %v4254
        %v4383 = vunpack.c.l.b16 %v4255
        %v4384 = vunpack.c.l.b16 %v4256
        %v4385 = vunpack.c.l.b16 %v4257
        %v4386 = vunpack.c.l.b16 %v4258
        %v4387 = vunpack.c.l.b16 %v4259
        %v4388 = vunpack.c.l.b16 %v4260
        %v4389 = vunpack.c.l.b16 %v4261
        %v4390 = vunpack.c.l.b16 %v4262
        %v4391 = vunpack.c.l.b16 %v4263
        %v4392 = vunpack.c.l.b16 %v4264
        %v4393 = vunpack.c.l.b16 %v4265
        %v4394 = vunpack.c.l.b16 %v4266
        %v4395 = vunpack.c.l.b16 %v4267
        %v4396 = vunpack.c.l.b16 %v4268
        %v4397 = vunpack.c.l.b16 %v4269
        %v4398 = vunpack.c.l.b16 %v4270
        %v4399 = vunpack.c.l.b16 %v4271
        %v4400 = vunpack.c.l.b16 %v4272
        %v4401 = vunpack.c.l.b16 %v4273
        %v4402 = vunpack.c.l.b16 %v4274
        %v4403 = vunpack.c.l.b16 %v4275
        %v4404 = vunpack.c.l.b16 %v4276
        %v4405 = vunpack.c.l.b16 %v4277
        %v4406 = vunpack.c.l.b16 %v4278
        %v4407 = vunpack.c.l.b16 %v4279
        %v4408 = vunpack.c.l.b16 %v4280
        %v4409 = vunpack.c.l.b16 %v4281
        %v4410 = vunpack.c.l.b16 %v4282
        %v4411 = vunpack.c.l.b16 %v4283
        %v4412 = vunpack.c.l.b16 %v4284
        %v4413 = vunpack.c.l.b16 %v4285
        %v4414 = vunpack.c.l.b16 %v4286
        %v4415 = vunpack.c.l.b16 %v4287
        %v4416 = vunpack.c.l.b16 %v4288
        %v4417 = vunpack.c.l.b16 %v4289
        %v4418 = vunpack.c.l.b16 %v4290
        %v4419 = vunpack.c.l.b16 %v4291
        %v4420 = vunpack.c.l.b16 %v4292
        %v4421 = vunpack.c.l.b16 %v4293
        %v4422 = vunpack.c.l.b16 %v4294
        %v4423 = vunpack.c.l.b16 %v4295
        %v4424 = vunpack.c.l.b16 %v4296
        %v4425 = vunpack.c.l.b16 %v4297
        %v4426 = vunpack.c.l.b16 %v4298
        %v4427 = vunpack.c.l.b16 %v4299
        %v4428 = vunpack.c.l.b16 %v4300
        %v4429 = vunpack.c.l.b16 %v4301
        %v4430 = vunpack.c.l.b16 %v4302
        %v4431 = vunpack.c.l.b16 %v4303
        %v4432 = vunpack.c.l.b16 %v4304
        %v4433 = vrot.slane %v4369, 7
        %v4434 = vrot.slane %v4370, 6
        %v4435 = vsel %vm1499, %v4434, %v4433
        %v4436 = vrot.slane %v4371, 5
        %v4437 = vsel %vm1502, %v4436, %v4435
        %v4438 = vrot.slane %v4372, 4
        %v4439 = vsel %vm1505, %v4438, %v4437
        %v4440 = vrot.slane %v4373, 3
        %v4441 = vsel %vm1508, %v4440, %v4439
        %v4442 = vrot.slane %v4374, 2
        %v4443 = vsel %vm1511, %v4442, %v4441
        %v4444 = vrot.slane %v4375, 1
        %v4445 = vsel %vm1514, %v4444, %v4443
        %v4446 = vrot.slane %v4377, 7
        %v4447 = vrot.slane %v4378, 6
        %v4448 = vsel %vm1499, %v4447, %v4446
        %v4449 = vrot.slane %v4379, 5
        %v4450 = vsel %vm1502, %v4449, %v4448
        %v4451 = vrot.slane %v4380, 4
        %v4452 = vsel %vm1505, %v4451, %v4450
        %v4453 = vrot.slane %v4381, 3
        %v4454 = vsel %vm1508, %v4453, %v4452
        %v4455 = vrot.slane %v4382, 2
        %v4456 = vsel %vm1511, %v4455, %v4454
        %v4457 = vrot.slane %v4383, 1
        %v4458 = vsel %vm1514, %v4457, %v4456
        %v4459 = vrot.slane %v4385, 7
        %v4460 = vrot.slane %v4386, 6
        %v4461 = vsel %vm1499, %v4460, %v4459
        %v4462 = vrot.slane %v4387, 5
        %v4463 = vsel %vm1502, %v4462, %v4461
        %v4464 = vrot.slane %v4388, 4
        %v4465 = vsel %vm1505, %v4464, %v4463
        %v4466 = vrot.slane %v4389, 3
        %v4467 = vsel %vm1508, %v4466, %v4465
        %v4468 = vrot.slane %v4390, 2
        %v4469 = vsel %vm1511, %v4468, %v4467
        %v4470 = vrot.slane %v4391, 1
        %v4471 = vsel %vm1514, %v4470, %v4469
        %v4472 = vrot.slane %v4393, 7
        %v4473 = vrot.slane %v4394, 6
        %v4474 = vsel %vm1499, %v4473, %v4472
        %v4475 = vrot.slane %v4395, 5
        %v4476 = vsel %vm1502, %v4475, %v4474
        %v4477 = vrot.slane %v4396, 4
        %v4478 = vsel %vm1505, %v4477, %v4476
        %v4479 = vrot.slane %v4397, 3
        %v4480 = vsel %vm1508, %v4479, %v4478
        %v4481 = vrot.slane %v4398, 2
        %v4482 = vsel %vm1511, %v4481, %v4480
        %v4483 = vrot.slane %v4399, 1
        %v4484 = vsel %vm1514, %v4483, %v4482
        %v4485 = vrot.slane %v4401, 7
        %v4486 = vrot.slane %v4402, 6
        %v4487 = vsel %vm1499, %v4486, %v4485
        %v4488 = vrot.slane %v4403, 5
        %v4489 = vsel %vm1502, %v4488, %v4487
        %v4490 = vrot.slane %v4404, 4
        %v4491 = vsel %vm1505, %v4490, %v4489
        %v4492 = vrot.slane %v4405, 3
        %v4493 = vsel %vm1508, %v4492, %v4491
        %v4494 = vrot.slane %v4406, 2
        %v4495 = vsel %vm1511, %v4494, %v4493
        %v4496 = vrot.slane %v4407, 1
        %v4497 = vsel %vm1514, %v4496, %v4495
        %v4498 = vrot.slane %v4409, 7
        %v4499 = vrot.slane %v4410, 6
        %v4500 = vsel %vm1499, %v4499, %v4498
        %v4501 = vrot.slane %v4411, 5
        %v4502 = vsel %vm1502, %v4501, %v4500
        %v4503 = vrot.slane %v4412, 4
        %v4504 = vsel %vm1505, %v4503, %v4502
        %v4505 = vrot.slane %v4413, 3
        %v4506 = vsel %vm1508, %v4505, %v4504
        %v4507 = vrot.slane %v4414, 2
        %v4508 = vsel %vm1511, %v4507, %v4506
        %v4509 = vrot.slane %v4415, 1
        %v4510 = vsel %vm1514, %v4509, %v4508
        %v4511 = vrot.slane %v4417, 7
        %v4512 = vrot.slane %v4418, 6
        %v4513 = vsel %vm1499, %v4512, %v4511
        %v4514 = vrot.slane %v4419, 5
        %v4515 = vsel %vm1502, %v4514, %v4513
        %v4516 = vrot.slane %v4420, 4
        %v4517 = vsel %vm1505, %v4516, %v4515
        %v4518 = vrot.slane %v4421, 3
        %v4519 = vsel %vm1508, %v4518, %v4517
        %v4520 = vrot.slane %v4422, 2
        %v4521 = vsel %vm1511, %v4520, %v4519
        %v4522 = vrot.slane %v4423, 1
        %v4523 = vsel %vm1514, %v4522, %v4521
        %v4524 = vrot.slane %v4425, 7
        %v4525 = vrot.slane %v4426, 6
        %v4526 = vsel %vm1499, %v4525, %v4524
        %v4527 = vrot.slane %v4427, 5
        %v4528 = vsel %vm1502, %v4527, %v4526
        %v4529 = vrot.slane %v4428, 4
        %v4530 = vsel %vm1505, %v4529, %v4528
        %v4531 = vrot.slane %v4429, 3
        %v4532 = vsel %vm1508, %v4531, %v4530
        %v4533 = vrot.slane %v4430, 2
        %v4534 = vsel %vm1511, %v4533, %v4532
        %v4535 = vrot.slane %v4431, 1
        %v4536 = vsel %vm1514, %v4535, %v4534
        %v4537 = vpack.c.b16 %v4445, %v4445
        %v4538 = vpack.c.b16 %v4376, %v4376
        %v4539 = vpack.c.b16 %v4458, %v4458
        %v4540 = vpack.c.b16 %v4384, %v4384
        %v4541 = vpack.c.b16 %v4471, %v4471
        %v4542 = vpack.c.b16 %v4392, %v4392
        %v4543 = vpack.c.b16 %v4484, %v4484
        %v4544 = vpack.c.b16 %v4400, %v4400
        %v4545 = vpack.c.b16 %v4497, %v4497
        %v4546 = vpack.c.b16 %v4408, %v4408
        %v4547 = vpack.c.b16 %v4510, %v4510
        %v4548 = vpack.c.b16 %v4416, %v4416
        %v4549 = vpack.c.b16 %v4523, %v4523
        %v4550 = vpack.c.b16 %v4424, %v4424
        %v4551 = vpack.c.b16 %v4536, %v4536
        %v4552 = vpack.c.b16 %v4432, %v4432
        %v4569 = vld [vmem:[%s387] sm:$0xf]
        %v4570 = vsel %vm1640, %v4537, %v4569
        %4571 = vst [vmem:[%s387] sm:$0xf] %v4570
        %v4572 = vld [vmem:[%s387 + $0x4] sm:$0x1]
        %v4573 = vsel %vm390, %v4538, %v4572
        %4574 = vst [vmem:[%s387 + $0x4] sm:$0x1] %v4573
        %v4575 = vld [vmem:[%s387 + $0x8] sm:$0xf]
        %v4576 = vsel %vm1640, %v4539, %v4575
        %4577 = vst [vmem:[%s387 + $0x8] sm:$0xf] %v4576
        %v4578 = vld [vmem:[%s387 + $0xc] sm:$0x1]
        %v4579 = vsel %vm390, %v4540, %v4578
        %4580 = vst [vmem:[%s387 + $0xc] sm:$0x1] %v4579
        %v4581 = vld [vmem:[%s387 + $0x10] sm:$0xf]
        %v4582 = vsel %vm1640, %v4541, %v4581
        %4583 = vst [vmem:[%s387 + $0x10] sm:$0xf] %v4582
        %v4584 = vld [vmem:[%s387 + $0x14] sm:$0x1]
        %v4585 = vsel %vm390, %v4542, %v4584
        %4586 = vst [vmem:[%s387 + $0x14] sm:$0x1] %v4585
        %v4587 = vld [vmem:[%s387 + $0x18] sm:$0xf]
        %v4588 = vsel %vm1640, %v4543, %v4587
        %4589 = vst [vmem:[%s387 + $0x18] sm:$0xf] %v4588
        %v4590 = vld [vmem:[%s387 + $0x1c] sm:$0x1]
        %v4591 = vsel %vm390, %v4544, %v4590
        %4592 = vst [vmem:[%s387 + $0x1c] sm:$0x1] %v4591
        %v4593 = vld [vmem:[%s387 + $0x20] sm:$0xf]
        %v4594 = vsel %vm1640, %v4545, %v4593
        %4595 = vst [vmem:[%s387 + $0x20] sm:$0xf] %v4594
        %v4596 = vld [vmem:[%s387 + $0x24] sm:$0x1]
        %v4597 = vsel %vm390, %v4546, %v4596
        %4598 = vst [vmem:[%s387 + $0x24] sm:$0x1] %v4597
        %v4599 = vld [vmem:[%s387 + $0x28] sm:$0xf]
        %v4600 = vsel %vm1640, %v4547, %v4599
        %4601 = vst [vmem:[%s387 + $0x28] sm:$0xf] %v4600
        %v4602 = vld [vmem:[%s387 + $0x2c] sm:$0x1]
        %v4603 = vsel %vm390, %v4548, %v4602
        %4604 = vst [vmem:[%s387 + $0x2c] sm:$0x1] %v4603
        %v4605 = vld [vmem:[%s387 + $0x30] sm:$0xf]
        %v4606 = vsel %vm1640, %v4549, %v4605
        %4607 = vst [vmem:[%s387 + $0x30] sm:$0xf] %v4606
        %v4608 = vld [vmem:[%s387 + $0x34] sm:$0x1]
        %v4609 = vsel %vm390, %v4550, %v4608
        %4610 = vst [vmem:[%s387 + $0x34] sm:$0x1] %v4609
        %v4611 = vld [vmem:[%s387 + $0x38] sm:$0xf]
        %v4612 = vsel %vm1640, %v4551, %v4611
        %4613 = vst [vmem:[%s387 + $0x38] sm:$0xf] %v4612
        %v4614 = vld [vmem:[%s387 + $0x3c] sm:$0x1]
        %v4615 = vsel %vm390, %v4552, %v4614
        %4616 = vst [vmem:[%s387 + $0x3c] sm:$0x1] %v4615
        %v4617 = vld [vmem:[#allocation2] sm:$0xf]
        %v4618 = vld [vmem:[#allocation2 + $0x8] sm:$0xf]
        %v4619 = vld [vmem:[#allocation2 + $0x10] sm:$0xf]
        %v4620 = vld [vmem:[#allocation2 + $0x18] sm:$0xf]
        %v4621 = vld [vmem:[#allocation2 + $0x20] sm:$0xf]
        %v4622 = vld [vmem:[#allocation2 + $0x28] sm:$0xf]
        %v4623 = vld [vmem:[#allocation2 + $0x30] sm:$0xf]
        %v4624 = vld [vmem:[#allocation2 + $0x38] sm:$0xf]
        %v4625 = vld [vmem:[#allocation6] sm:$0xf]
        %v4626 = vld [vmem:[#allocation6 + $0x4] sm:$0xf]
        %v4627 = vld [vmem:[#allocation6 + $0x8] sm:$0xf]
        %v4628 = vld [vmem:[#allocation6 + $0xc] sm:$0xf]
        %v4629 = vld [vmem:[#allocation6 + $0x10] sm:$0xf]
        %v4630 = vld [vmem:[#allocation6 + $0x14] sm:$0xf]
        %v4631 = vld [vmem:[#allocation6 + $0x18] sm:$0xf]
        %v4632 = vld [vmem:[#allocation6 + $0x1c] sm:$0xf]
        %v4633 = vld [vmem:[#allocation6 + $0x20] sm:$0xf]
        %v4634 = vld [vmem:[#allocation6 + $0x24] sm:$0xf]
        %v4635 = vld [vmem:[#allocation6 + $0x28] sm:$0xf]
        %v4636 = vld [vmem:[#allocation6 + $0x2c] sm:$0xf]
        %v4637 = vld [vmem:[#allocation6 + $0x30] sm:$0xf]
        %v4638 = vld [vmem:[#allocation6 + $0x34] sm:$0xf]
        %v4639 = vld [vmem:[#allocation6 + $0x38] sm:$0xf]
        %v4640 = vld [vmem:[#allocation6 + $0x3c] sm:$0xf]
        %v4641 = vld [vmem:[#allocation2 + $0x4] sm:$0x1]
        %v4642 = vld [vmem:[#allocation2 + $0xc] sm:$0x1]
        %v4643 = vld [vmem:[#allocation2 + $0x14] sm:$0x1]
        %v4644 = vld [vmem:[#allocation2 + $0x1c] sm:$0x1]
        %v4645 = vld [vmem:[#allocation2 + $0x24] sm:$0x1]
        %v4646 = vld [vmem:[#allocation2 + $0x2c] sm:$0x1]
        %v4647 = vld [vmem:[#allocation2 + $0x34] sm:$0x1]
        %v4648 = vld [vmem:[#allocation2 + $0x3c] sm:$0x1]
        %v4650 = vshrl.u32 %v4617, 16
        %v4652 = vrot.slane %v4650, 4
        %v4653 = vshll.u32 %v4617, 16
        %v4655 = vrot.slane %v4653, 5
        %v4656 = vor.u32 %v4652, %v4655
        %v4657 = vrot.slane %v4656, 4
        %v4659 = vshll.u32 %v4641, 16
        %v4661 = vrot.slane %v4659, 5
        %v4662 = vsel %vm1723, %v4657, %v4661
        %v4664 = vshrl.u32 %v4618, 16
        %v4666 = vrot.slane %v4664, 4
        %v4667 = vshll.u32 %v4618, 16
        %v4669 = vrot.slane %v4667, 5
        %v4670 = vor.u32 %v4666, %v4669
        %v4671 = vrot.slane %v4670, 4
        %v4673 = vshll.u32 %v4642, 16
        %v4675 = vrot.slane %v4673, 5
        %v4676 = vsel %vm1723, %v4671, %v4675
        %v4678 = vshrl.u32 %v4619, 16
        %v4680 = vrot.slane %v4678, 4
        %v4681 = vshll.u32 %v4619, 16
        %v4683 = vrot.slane %v4681, 5
        %v4684 = vor.u32 %v4680, %v4683
        %v4685 = vrot.slane %v4684, 4
        %v4687 = vshll.u32 %v4643, 16
        %v4689 = vrot.slane %v4687, 5
        %v4690 = vsel %vm1723, %v4685, %v4689
        %v4692 = vshrl.u32 %v4620, 16
        %v4694 = vrot.slane %v4692, 4
        %v4695 = vshll.u32 %v4620, 16
        %v4697 = vrot.slane %v4695, 5
        %v4698 = vor.u32 %v4694, %v4697
        %v4699 = vrot.slane %v4698, 4
        %v4701 = vshll.u32 %v4644, 16
        %v4703 = vrot.slane %v4701, 5
        %v4704 = vsel %vm1723, %v4699, %v4703
        %v4706 = vshrl.u32 %v4621, 16
        %v4708 = vrot.slane %v4706, 4
        %v4709 = vshll.u32 %v4621, 16
        %v4711 = vrot.slane %v4709, 5
        %v4712 = vor.u32 %v4708, %v4711
        %v4713 = vrot.slane %v4712, 4
        %v4715 = vshll.u32 %v4645, 16
        %v4717 = vrot.slane %v4715, 5
        %v4718 = vsel %vm1723, %v4713, %v4717
        %v4720 = vshrl.u32 %v4622, 16
        %v4722 = vrot.slane %v4720, 4
        %v4723 = vshll.u32 %v4622, 16
        %v4725 = vrot.slane %v4723, 5
        %v4726 = vor.u32 %v4722, %v4725
        %v4727 = vrot.slane %v4726, 4
        %v4729 = vshll.u32 %v4646, 16
        %v4731 = vrot.slane %v4729, 5
        %v4732 = vsel %vm1723, %v4727, %v4731
        %v4734 = vshrl.u32 %v4623, 16
        %v4736 = vrot.slane %v4734, 4
        %v4737 = vshll.u32 %v4623, 16
        %v4739 = vrot.slane %v4737, 5
        %v4740 = vor.u32 %v4736, %v4739
        %v4741 = vrot.slane %v4740, 4
        %v4743 = vshll.u32 %v4647, 16
        %v4745 = vrot.slane %v4743, 5
        %v4746 = vsel %vm1723, %v4741, %v4745
        %v4748 = vshrl.u32 %v4624, 16
        %v4750 = vrot.slane %v4748, 4
        %v4751 = vshll.u32 %v4624, 16
        %v4753 = vrot.slane %v4751, 5
        %v4754 = vor.u32 %v4750, %v4753
        %v4755 = vrot.slane %v4754, 4
        %v4757 = vshll.u32 %v4648, 16
        %v4759 = vrot.slane %v4757, 5
        %v4760 = vsel %vm1723, %v4755, %v4759
        %v4761 = vld [vmem:[#allocation6 + $0x40] sm:$0xf]
        %v4762 = vld [vmem:[#allocation6 + $0x44] sm:$0xf]
        %v4763 = vld [vmem:[#allocation6 + $0x48] sm:$0xf]
        %v4764 = vld [vmem:[#allocation6 + $0x4c] sm:$0xf]
        %v4765 = vld [vmem:[#allocation6 + $0x50] sm:$0xf]
        %v4766 = vld [vmem:[#allocation6 + $0x54] sm:$0xf]
        %v4767 = vld [vmem:[#allocation6 + $0x58] sm:$0xf]
        %v4768 = vld [vmem:[#allocation6 + $0x5c] sm:$0xf]
        %v4769 = vld [vmem:[#allocation6 + $0x60] sm:$0xf]
        %v4770 = vld [vmem:[#allocation6 + $0x64] sm:$0xf]
        %v4771 = vld [vmem:[#allocation6 + $0x68] sm:$0xf]
        %v4772 = vld [vmem:[#allocation6 + $0x6c] sm:$0xf]
        %v4773 = vld [vmem:[#allocation6 + $0x70] sm:$0xf]
        %v4774 = vld [vmem:[#allocation6 + $0x74] sm:$0xf]
        %v4775 = vld [vmem:[#allocation6 + $0x78] sm:$0xf]
        %v4776 = vld [vmem:[#allocation6 + $0x7c] sm:$0xf]
        %v4777 = vunpack.c.l.b16 %v4662
        %v4778 = vunpack.c.l.b16 %v4676
        %v4779 = vunpack.c.l.b16 %v4690
        %v4780 = vunpack.c.l.b16 %v4704
        %v4781 = vunpack.c.l.b16 %v4718
        %v4782 = vunpack.c.l.b16 %v4732
        %v4783 = vunpack.c.l.b16 %v4746
        %v4784 = vunpack.c.l.b16 %v4760
        %v4785 = vpack.c.b16 %v4778, %v4777
        %v4786 = vpack.c.b16 %v4780, %v4779
        %v4787 = vpack.c.b16 %v4782, %v4781
        %v4788 = vpack.c.b16 %v4784, %v4783
        %v4809 = vunpack.c.l.b16 %v4761
        %v4810 = vunpack.c.l.b16 %v4762
        %v4811 = vunpack.c.l.b16 %v4763
        %v4812 = vunpack.c.l.b16 %v4764
        %v4813 = vunpack.c.l.b16 %v4765
        %v4814 = vunpack.c.l.b16 %v4766
        %v4815 = vunpack.c.l.b16 %v4767
        %v4816 = vunpack.c.l.b16 %v4768
        %v4817 = vunpack.c.l.b16 %v4769
        %v4818 = vunpack.c.l.b16 %v4770
        %v4819 = vunpack.c.l.b16 %v4771
        %v4820 = vunpack.c.l.b16 %v4772
        %v4821 = vunpack.c.l.b16 %v4773
        %v4822 = vunpack.c.l.b16 %v4774
        %v4823 = vunpack.c.l.b16 %v4775
        %v4824 = vunpack.c.l.b16 %v4776
        %v4825 = vpack.c.b16 %v4810, %v4809
        %v4826 = vpack.c.b16 %v4812, %v4811
        %v4827 = vpack.c.b16 %v4814, %v4813
        %v4828 = vpack.c.b16 %v4816, %v4815
        %v4829 = vpack.c.b16 %v4818, %v4817
        %v4830 = vpack.c.b16 %v4820, %v4819
        %v4831 = vpack.c.b16 %v4822, %v4821
        %v4832 = vpack.c.b16 %v4824, %v4823
        %4841 = vmatpush.bf16.msra.mxu0 %v4832
        %4842 = vmatpush.bf16.msra.mxu0 %v4831
        %4843 = vmatpush.bf16.msra.mxu0 %v4830
        %4844 = vmatpush.bf16.msra.mxu0 %v4829
        %4845 = vmatpush.bf16.msra.mxu0 %v4828
        %4846 = vmatpush.bf16.msra.mxu0 %v4827
        %4847 = vmatpush.bf16.msra.mxu0 %v4826
        %4848 = vmatpush.bf16.msra.mxu0 %v4825
        %4849 = vmatmul.bf16.gmra.mxu0 %v4785
        %v4850 = vpop.f32.mrf.mxu0
        %v4851 = vadd.f32 0.0, %v4850
        %v4852 = vpop.f32.mrf.mxu0
        %v4853 = vadd.f32 0.0, %v4852
        %4854 = vmatmul.bf16.gmra.mxu0 %v4786
        %v4855 = vpop.f32.mrf.mxu0
        %v4856 = vadd.f32 0.0, %v4855
        %v4857 = vpop.f32.mrf.mxu0
        %v4858 = vadd.f32 0.0, %v4857
        %4859 = vmatmul.bf16.gmra.mxu0 %v4787
        %v4860 = vpop.f32.mrf.mxu0
        %v4861 = vadd.f32 0.0, %v4860
        %v4862 = vpop.f32.mrf.mxu0
        %v4863 = vadd.f32 0.0, %v4862
        %4864 = vmatmul.bf16.gmra.mxu0 %v4788
        %v4865 = vpop.f32.mrf.mxu0
        %v4866 = vadd.f32 0.0, %v4865
        %v4867 = vpop.f32.mrf.mxu0
        %v4868 = vadd.f32 0.0, %v4867
        %4869 = vdwg.mxu0
        %v4878 = vunpack.c.l.b16 %v4617
        %v4879 = vunpack.c.l.b16 %v4618
        %v4880 = vunpack.c.l.b16 %v4619
        %v4881 = vunpack.c.l.b16 %v4620
        %v4882 = vunpack.c.l.b16 %v4621
        %v4883 = vunpack.c.l.b16 %v4622
        %v4884 = vunpack.c.l.b16 %v4623
        %v4885 = vunpack.c.l.b16 %v4624
        %v4886 = vpack.c.b16 %v4879, %v4878
        %v4887 = vpack.c.b16 %v4881, %v4880
        %v4888 = vpack.c.b16 %v4883, %v4882
        %v4889 = vpack.c.b16 %v4885, %v4884
        %v4910 = vunpack.c.l.b16 %v4625
        %v4911 = vunpack.c.l.b16 %v4626
        %v4912 = vunpack.c.l.b16 %v4627
        %v4913 = vunpack.c.l.b16 %v4628
        %v4914 = vunpack.c.l.b16 %v4629
        %v4915 = vunpack.c.l.b16 %v4630
        %v4916 = vunpack.c.l.b16 %v4631
        %v4917 = vunpack.c.l.b16 %v4632
        %v4918 = vunpack.c.l.b16 %v4633
        %v4919 = vunpack.c.l.b16 %v4634
        %v4920 = vunpack.c.l.b16 %v4635
        %v4921 = vunpack.c.l.b16 %v4636
        %v4922 = vunpack.c.l.b16 %v4637
        %v4923 = vunpack.c.l.b16 %v4638
        %v4924 = vunpack.c.l.b16 %v4639
        %v4925 = vunpack.c.l.b16 %v4640
        %v4926 = vpack.c.b16 %v4911, %v4910
        %v4927 = vpack.c.b16 %v4913, %v4912
        %v4928 = vpack.c.b16 %v4915, %v4914
        %v4929 = vpack.c.b16 %v4917, %v4916
        %v4930 = vpack.c.b16 %v4919, %v4918
        %v4931 = vpack.c.b16 %v4921, %v4920
        %v4932 = vpack.c.b16 %v4923, %v4922
        %v4933 = vpack.c.b16 %v4925, %v4924
        %4942 = vmatpush.bf16.msra.mxu0 %v4933
        %4943 = vmatpush.bf16.msra.mxu0 %v4932
        %4944 = vmatpush.bf16.msra.mxu0 %v4931
        %4945 = vmatpush.bf16.msra.mxu0 %v4930
        %4946 = vmatpush.bf16.msra.mxu0 %v4929
        %4947 = vmatpush.bf16.msra.mxu0 %v4928
        %4948 = vmatpush.bf16.msra.mxu0 %v4927
        %4949 = vmatpush.bf16.msra.mxu0 %v4926
        %4950 = vmatmul.bf16.gmra.mxu0 %v4886
        %v4951 = vpop.f32.mrf.mxu0
        %v4952 = vadd.f32 %v4851, %v4951
        %v4953 = vpop.f32.mrf.mxu0
        %v4954 = vadd.f32 %v4853, %v4953
        %4955 = vmatmul.bf16.gmra.mxu0 %v4887
        %v4956 = vpop.f32.mrf.mxu0
        %v4957 = vadd.f32 %v4856, %v4956
        %v4958 = vpop.f32.mrf.mxu0
        %v4959 = vadd.f32 %v4858, %v4958
        %4960 = vmatmul.bf16.gmra.mxu0 %v4888
        %v4961 = vpop.f32.mrf.mxu0
        %v4962 = vadd.f32 %v4861, %v4961
        %v4963 = vpop.f32.mrf.mxu0
        %v4964 = vadd.f32 %v4863, %v4963
        %4965 = vmatmul.bf16.gmra.mxu0 %v4889
        %v4966 = vpop.f32.mrf.mxu0
        %v4967 = vadd.f32 %v4866, %v4966
        %v4968 = vpop.f32.mrf.mxu0
        %v4969 = vadd.f32 %v4868, %v4968
        %4970 = vdwg.mxu0
        %v4971 = vld [vmem:[#allocation2] sm:$0xe]
        %v4972 = vld [vmem:[#allocation2 + $0x8] sm:$0xe]
        %v4973 = vld [vmem:[#allocation2 + $0x10] sm:$0xe]
        %v4974 = vld [vmem:[#allocation2 + $0x18] sm:$0xe]
        %v4975 = vld [vmem:[#allocation2 + $0x20] sm:$0xe]
        %v4976 = vld [vmem:[#allocation2 + $0x28] sm:$0xe]
        %v4977 = vld [vmem:[#allocation2 + $0x30] sm:$0xe]
        %v4978 = vld [vmem:[#allocation2 + $0x38] sm:$0xe]
        %v4995 = vrot.slane %v4971, 5
        %v4996 = vrot.slane %v4995, 4
        %v4997 = vrot.slane %v4641, 5
        %v4998 = vsel %vm2072, %v4996, %v4997
        %v4999 = vrot.slane %v4972, 5
        %v5000 = vrot.slane %v4999, 4
        %v5001 = vrot.slane %v4642, 5
        %v5002 = vsel %vm2072, %v5000, %v5001
        %v5003 = vrot.slane %v4973, 5
        %v5004 = vrot.slane %v5003, 4
        %v5005 = vrot.slane %v4643, 5
        %v5006 = vsel %vm2072, %v5004, %v5005
        %v5007 = vrot.slane %v4974, 5
        %v5008 = vrot.slane %v5007, 4
        %v5009 = vrot.slane %v4644, 5
        %v5010 = vsel %vm2072, %v5008, %v5009
        %v5011 = vrot.slane %v4975, 5
        %v5012 = vrot.slane %v5011, 4
        %v5013 = vrot.slane %v4645, 5
        %v5014 = vsel %vm2072, %v5012, %v5013
        %v5015 = vrot.slane %v4976, 5
        %v5016 = vrot.slane %v5015, 4
        %v5017 = vrot.slane %v4646, 5
        %v5018 = vsel %vm2072, %v5016, %v5017
        %v5019 = vrot.slane %v4977, 5
        %v5020 = vrot.slane %v5019, 4
        %v5021 = vrot.slane %v4647, 5
        %v5022 = vsel %vm2072, %v5020, %v5021
        %v5023 = vrot.slane %v4978, 5
        %v5024 = vrot.slane %v5023, 4
        %v5025 = vrot.slane %v4648, 5
        %v5026 = vsel %vm2072, %v5024, %v5025
        %v5027 = vld [vmem:[#allocation6 + $0x80] sm:$0xf]
        %v5028 = vld [vmem:[#allocation6 + $0x84] sm:$0xf]
        %v5029 = vld [vmem:[#allocation6 + $0x88] sm:$0xf]
        %v5030 = vld [vmem:[#allocation6 + $0x8c] sm:$0xf]
        %v5031 = vld [vmem:[#allocation6 + $0x90] sm:$0xf]
        %v5032 = vld [vmem:[#allocation6 + $0x94] sm:$0xf]
        %v5033 = vld [vmem:[#allocation6 + $0x98] sm:$0xf]
        %v5034 = vld [vmem:[#allocation6 + $0x9c] sm:$0xf]
        %v5035 = vld [vmem:[#allocation6 + $0xa0] sm:$0xf]
        %v5036 = vld [vmem:[#allocation6 + $0xa4] sm:$0xf]
        %v5037 = vld [vmem:[#allocation6 + $0xa8] sm:$0xf]
        %v5038 = vld [vmem:[#allocation6 + $0xac] sm:$0xf]
        %v5039 = vld [vmem:[#allocation6 + $0xb0] sm:$0xf]
        %v5040 = vld [vmem:[#allocation6 + $0xb4] sm:$0xf]
        %v5041 = vld [vmem:[#allocation6 + $0xb8] sm:$0xf]
        %v5042 = vld [vmem:[#allocation6 + $0xbc] sm:$0xf]
        %v5043 = vunpack.c.l.b16 %v4998
        %v5044 = vunpack.c.l.b16 %v5002
        %v5045 = vunpack.c.l.b16 %v5006
        %v5046 = vunpack.c.l.b16 %v5010
        %v5047 = vunpack.c.l.b16 %v5014
        %v5048 = vunpack.c.l.b16 %v5018
        %v5049 = vunpack.c.l.b16 %v5022
        %v5050 = vunpack.c.l.b16 %v5026
        %v5051 = vpack.c.b16 %v5044, %v5043
        %v5052 = vpack.c.b16 %v5046, %v5045
        %v5053 = vpack.c.b16 %v5048, %v5047
        %v5054 = vpack.c.b16 %v5050, %v5049
        %v5075 = vunpack.c.l.b16 %v5027
        %v5076 = vunpack.c.l.b16 %v5028
        %v5077 = vunpack.c.l.b16 %v5029
        %v5078 = vunpack.c.l.b16 %v5030
        %v5079 = vunpack.c.l.b16 %v5031
        %v5080 = vunpack.c.l.b16 %v5032
        %v5081 = vunpack.c.l.b16 %v5033
        %v5082 = vunpack.c.l.b16 %v5034
        %v5083 = vunpack.c.l.b16 %v5035
        %v5084 = vunpack.c.l.b16 %v5036
        %v5085 = vunpack.c.l.b16 %v5037
        %v5086 = vunpack.c.l.b16 %v5038
        %v5087 = vunpack.c.l.b16 %v5039
        %v5088 = vunpack.c.l.b16 %v5040
        %v5089 = vunpack.c.l.b16 %v5041
        %v5090 = vunpack.c.l.b16 %v5042
        %v5091 = vpack.c.b16 %v5076, %v5075
        %v5092 = vpack.c.b16 %v5078, %v5077
        %v5093 = vpack.c.b16 %v5080, %v5079
        %v5094 = vpack.c.b16 %v5082, %v5081
        %v5095 = vpack.c.b16 %v5084, %v5083
        %v5096 = vpack.c.b16 %v5086, %v5085
        %v5097 = vpack.c.b16 %v5088, %v5087
        %v5098 = vpack.c.b16 %v5090, %v5089
        %5107 = vmatpush.bf16.msra.mxu0 %v5098
        %5108 = vmatpush.bf16.msra.mxu0 %v5097
        %5109 = vmatpush.bf16.msra.mxu0 %v5096
        %5110 = vmatpush.bf16.msra.mxu0 %v5095
        %5111 = vmatpush.bf16.msra.mxu0 %v5094
        %5112 = vmatpush.bf16.msra.mxu0 %v5093
        %5113 = vmatpush.bf16.msra.mxu0 %v5092
        %5114 = vmatpush.bf16.msra.mxu0 %v5091
        %5115 = vmatmul.bf16.gmra.mxu0 %v5051
        %v5116 = vpop.f32.mrf.mxu0
        %v5117 = vadd.f32 0.0, %v5116
        %v5118 = vpop.f32.mrf.mxu0
        %v5119 = vadd.f32 0.0, %v5118
        %5120 = vmatmul.bf16.gmra.mxu0 %v5052
        %v5121 = vpop.f32.mrf.mxu0
        %v5122 = vadd.f32 0.0, %v5121
        %v5123 = vpop.f32.mrf.mxu0
        %v5124 = vadd.f32 0.0, %v5123
        %5125 = vmatmul.bf16.gmra.mxu0 %v5053
        %v5126 = vpop.f32.mrf.mxu0
        %v5127 = vadd.f32 0.0, %v5126
        %v5128 = vpop.f32.mrf.mxu0
        %v5129 = vadd.f32 0.0, %v5128
        %5130 = vmatmul.bf16.gmra.mxu0 %v5054
        %v5131 = vpop.f32.mrf.mxu0
        %v5132 = vadd.f32 0.0, %v5131
        %v5133 = vpop.f32.mrf.mxu0
        %v5134 = vadd.f32 0.0, %v5133
        %5135 = vdwg.mxu0
        %v5136 = vadd.f32 %v4952, %v5117
        %v5137 = vadd.f32 %v4954, %v5119
        %v5138 = vadd.f32 %v4957, %v5122
        %v5139 = vadd.f32 %v4959, %v5124
        %v5140 = vadd.f32 %v4962, %v5127
        %v5141 = vadd.f32 %v4964, %v5129
        %v5142 = vadd.f32 %v4967, %v5132
        %v5143 = vadd.f32 %v4969, %v5134
        %v5144 = vld [vmem:[%s387] sm:$0xf]
        %v5145 = vld [vmem:[%s387 + $0x8] sm:$0xf]
        %v5146 = vld [vmem:[%s387 + $0x10] sm:$0xf]
        %v5147 = vld [vmem:[%s387 + $0x18] sm:$0xf]
        %v5148 = vld [vmem:[%s387 + $0x20] sm:$0xf]
        %v5149 = vld [vmem:[%s387 + $0x28] sm:$0xf]
        %v5150 = vld [vmem:[%s387 + $0x30] sm:$0xf]
        %v5151 = vld [vmem:[%s387 + $0x38] sm:$0xf]
        %v5152 = vld [vmem:[#allocation6 + $0xc0] sm:$0xf]
        %v5153 = vld [vmem:[#allocation6 + $0xc4] sm:$0xf]
        %v5154 = vld [vmem:[#allocation6 + $0xc8] sm:$0xf]
        %v5155 = vld [vmem:[#allocation6 + $0xcc] sm:$0xf]
        %v5156 = vld [vmem:[#allocation6 + $0xd0] sm:$0xf]
        %v5157 = vld [vmem:[#allocation6 + $0xd4] sm:$0xf]
        %v5158 = vld [vmem:[#allocation6 + $0xd8] sm:$0xf]
        %v5159 = vld [vmem:[#allocation6 + $0xdc] sm:$0xf]
        %v5160 = vld [vmem:[#allocation6 + $0xe0] sm:$0xf]
        %v5161 = vld [vmem:[#allocation6 + $0xe4] sm:$0xf]
        %v5162 = vld [vmem:[#allocation6 + $0xe8] sm:$0xf]
        %v5163 = vld [vmem:[#allocation6 + $0xec] sm:$0xf]
        %v5164 = vld [vmem:[#allocation6 + $0xf0] sm:$0xf]
        %v5165 = vld [vmem:[#allocation6 + $0xf4] sm:$0xf]
        %v5166 = vld [vmem:[#allocation6 + $0xf8] sm:$0xf]
        %v5167 = vld [vmem:[#allocation6 + $0xfc] sm:$0xf]
        %v5176 = vunpack.c.l.b16 %v5144
        %v5177 = vunpack.c.l.b16 %v5145
        %v5178 = vunpack.c.l.b16 %v5146
        %v5179 = vunpack.c.l.b16 %v5147
        %v5180 = vunpack.c.l.b16 %v5148
        %v5181 = vunpack.c.l.b16 %v5149
        %v5182 = vunpack.c.l.b16 %v5150
        %v5183 = vunpack.c.l.b16 %v5151
        %v5184 = vpack.c.b16 %v5177, %v5176
        %v5185 = vpack.c.b16 %v5179, %v5178
        %v5186 = vpack.c.b16 %v5181, %v5180
        %v5187 = vpack.c.b16 %v5183, %v5182
        %v5208 = vunpack.c.l.b16 %v5152
        %v5209 = vunpack.c.l.b16 %v5153
        %v5210 = vunpack.c.l.b16 %v5154
        %v5211 = vunpack.c.l.b16 %v5155
        %v5212 = vunpack.c.l.b16 %v5156
        %v5213 = vunpack.c.l.b16 %v5157
        %v5214 = vunpack.c.l.b16 %v5158
        %v5215 = vunpack.c.l.b16 %v5159
        %v5216 = vunpack.c.l.b16 %v5160
        %v5217 = vunpack.c.l.b16 %v5161
        %v5218 = vunpack.c.l.b16 %v5162
        %v5219 = vunpack.c.l.b16 %v5163
        %v5220 = vunpack.c.l.b16 %v5164
        %v5221 = vunpack.c.l.b16 %v5165
        %v5222 = vunpack.c.l.b16 %v5166
        %v5223 = vunpack.c.l.b16 %v5167
        %v5224 = vpack.c.b16 %v5209, %v5208
        %v5225 = vpack.c.b16 %v5211, %v5210
        %v5226 = vpack.c.b16 %v5213, %v5212
        %v5227 = vpack.c.b16 %v5215, %v5214
        %v5228 = vpack.c.b16 %v5217, %v5216
        %v5229 = vpack.c.b16 %v5219, %v5218
        %v5230 = vpack.c.b16 %v5221, %v5220
        %v5231 = vpack.c.b16 %v5223, %v5222
        %5240 = vmatpush.bf16.msra.mxu0 %v5231
        %5241 = vmatpush.bf16.msra.mxu0 %v5230
        %5242 = vmatpush.bf16.msra.mxu0 %v5229
        %5243 = vmatpush.bf16.msra.mxu0 %v5228
        %5244 = vmatpush.bf16.msra.mxu0 %v5227
        %5245 = vmatpush.bf16.msra.mxu0 %v5226
        %5246 = vmatpush.bf16.msra.mxu0 %v5225
        %5247 = vmatpush.bf16.msra.mxu0 %v5224
        %5248 = vmatmul.bf16.gmra.mxu0 %v5184
        %v5249 = vpop.f32.mrf.mxu0
        %v5250 = vadd.f32 0.0, %v5249
        %v5251 = vpop.f32.mrf.mxu0
        %v5252 = vadd.f32 0.0, %v5251
        %5253 = vmatmul.bf16.gmra.mxu0 %v5185
        %v5254 = vpop.f32.mrf.mxu0
        %v5255 = vadd.f32 0.0, %v5254
        %v5256 = vpop.f32.mrf.mxu0
        %v5257 = vadd.f32 0.0, %v5256
        %5258 = vmatmul.bf16.gmra.mxu0 %v5186
        %v5259 = vpop.f32.mrf.mxu0
        %v5260 = vadd.f32 0.0, %v5259
        %v5261 = vpop.f32.mrf.mxu0
        %v5262 = vadd.f32 0.0, %v5261
        %5263 = vmatmul.bf16.gmra.mxu0 %v5187
        %v5264 = vpop.f32.mrf.mxu0
        %v5265 = vadd.f32 0.0, %v5264
        %v5266 = vpop.f32.mrf.mxu0
        %v5267 = vadd.f32 0.0, %v5266
        %5268 = vdwg.mxu0
        %v5269 = vadd.f32 %v5136, %v5250
        %v5270 = vadd.f32 %v5137, %v5252
        %v5271 = vadd.f32 %v5138, %v5255
        %v5272 = vadd.f32 %v5139, %v5257
        %v5273 = vadd.f32 %v5140, %v5260
        %v5274 = vadd.f32 %v5141, %v5262
        %v5275 = vadd.f32 %v5142, %v5265
        %v5276 = vadd.f32 %v5143, %v5267
        %v5277 = vld [vmem:[%s387] sm:$0xf]
        %v5278 = vld [vmem:[%s387 + $0x4] sm:$0x1]
        %v5279 = vld [vmem:[%s387 + $0x8] sm:$0xf]
        %v5280 = vld [vmem:[%s387 + $0xc] sm:$0x1]
        %v5281 = vld [vmem:[%s387 + $0x10] sm:$0xf]
        %v5282 = vld [vmem:[%s387 + $0x14] sm:$0x1]
        %v5283 = vld [vmem:[%s387 + $0x18] sm:$0xf]
        %v5284 = vld [vmem:[%s387 + $0x1c] sm:$0x1]
        %v5285 = vld [vmem:[%s387 + $0x20] sm:$0xf]
        %v5286 = vld [vmem:[%s387 + $0x24] sm:$0x1]
        %v5287 = vld [vmem:[%s387 + $0x28] sm:$0xf]
        %v5288 = vld [vmem:[%s387 + $0x2c] sm:$0x1]
        %v5289 = vld [vmem:[%s387 + $0x30] sm:$0xf]
        %v5290 = vld [vmem:[%s387 + $0x34] sm:$0x1]
        %v5291 = vld [vmem:[%s387 + $0x38] sm:$0xf]
        %v5292 = vld [vmem:[%s387 + $0x3c] sm:$0x1]
        %v5294 = vshrl.u32 %v5277, 16
        %v5296 = vrot.slane %v5294, 4
        %v5297 = vshll.u32 %v5277, 16
        %v5299 = vrot.slane %v5297, 5
        %v5300 = vor.u32 %v5296, %v5299
        %v5301 = vrot.slane %v5300, 4
        %v5303 = vshll.u32 %v5278, 16
        %v5305 = vrot.slane %v5303, 5
        %v5306 = vsel %vm1723, %v5301, %v5305
        %v5308 = vshrl.u32 %v5279, 16
        %v5310 = vrot.slane %v5308, 4
        %v5311 = vshll.u32 %v5279, 16
        %v5313 = vrot.slane %v5311, 5
        %v5314 = vor.u32 %v5310, %v5313
        %v5315 = vrot.slane %v5314, 4
        %v5317 = vshll.u32 %v5280, 16
        %v5319 = vrot.slane %v5317, 5
        %v5320 = vsel %vm1723, %v5315, %v5319
        %v5322 = vshrl.u32 %v5281, 16
        %v5324 = vrot.slane %v5322, 4
        %v5325 = vshll.u32 %v5281, 16
        %v5327 = vrot.slane %v5325, 5
        %v5328 = vor.u32 %v5324, %v5327
        %v5329 = vrot.slane %v5328, 4
        %v5331 = vshll.u32 %v5282, 16
        %v5333 = vrot.slane %v5331, 5
        %v5334 = vsel %vm1723, %v5329, %v5333
        %v5336 = vshrl.u32 %v5283, 16
        %v5338 = vrot.slane %v5336, 4
        %v5339 = vshll.u32 %v5283, 16
        %v5341 = vrot.slane %v5339, 5
        %v5342 = vor.u32 %v5338, %v5341
        %v5343 = vrot.slane %v5342, 4
        %v5345 = vshll.u32 %v5284, 16
        %v5347 = vrot.slane %v5345, 5
        %v5348 = vsel %vm1723, %v5343, %v5347
        %v5350 = vshrl.u32 %v5285, 16
        %v5352 = vrot.slane %v5350, 4
        %v5353 = vshll.u32 %v5285, 16
        %v5355 = vrot.slane %v5353, 5
        %v5356 = vor.u32 %v5352, %v5355
        %v5357 = vrot.slane %v5356, 4
        %v5359 = vshll.u32 %v5286, 16
        %v5361 = vrot.slane %v5359, 5
        %v5362 = vsel %vm1723, %v5357, %v5361
        %v5364 = vshrl.u32 %v5287, 16
        %v5366 = vrot.slane %v5364, 4
        %v5367 = vshll.u32 %v5287, 16
        %v5369 = vrot.slane %v5367, 5
        %v5370 = vor.u32 %v5366, %v5369
        %v5371 = vrot.slane %v5370, 4
        %v5373 = vshll.u32 %v5288, 16
        %v5375 = vrot.slane %v5373, 5
        %v5376 = vsel %vm1723, %v5371, %v5375
        %v5378 = vshrl.u32 %v5289, 16
        %v5380 = vrot.slane %v5378, 4
        %v5381 = vshll.u32 %v5289, 16
        %v5383 = vrot.slane %v5381, 5
        %v5384 = vor.u32 %v5380, %v5383
        %v5385 = vrot.slane %v5384, 4
        %v5387 = vshll.u32 %v5290, 16
        %v5389 = vrot.slane %v5387, 5
        %v5390 = vsel %vm1723, %v5385, %v5389
        %v5392 = vshrl.u32 %v5291, 16
        %v5394 = vrot.slane %v5392, 4
        %v5395 = vshll.u32 %v5291, 16
        %v5397 = vrot.slane %v5395, 5
        %v5398 = vor.u32 %v5394, %v5397
        %v5399 = vrot.slane %v5398, 4
        %v5401 = vshll.u32 %v5292, 16
        %v5403 = vrot.slane %v5401, 5
        %v5404 = vsel %vm1723, %v5399, %v5403
        %v5405 = vld [vmem:[#allocation6 + $0x100] sm:$0xf]
        %v5406 = vld [vmem:[#allocation6 + $0x104] sm:$0xf]
        %v5407 = vld [vmem:[#allocation6 + $0x108] sm:$0xf]
        %v5408 = vld [vmem:[#allocation6 + $0x10c] sm:$0xf]
        %v5409 = vld [vmem:[#allocation6 + $0x110] sm:$0xf]
        %v5410 = vld [vmem:[#allocation6 + $0x114] sm:$0xf]
        %v5411 = vld [vmem:[#allocation6 + $0x118] sm:$0xf]
        %v5412 = vld [vmem:[#allocation6 + $0x11c] sm:$0xf]
        %v5413 = vld [vmem:[#allocation6 + $0x120] sm:$0xf]
        %v5414 = vld [vmem:[#allocation6 + $0x124] sm:$0xf]
        %v5415 = vld [vmem:[#allocation6 + $0x128] sm:$0xf]
        %v5416 = vld [vmem:[#allocation6 + $0x12c] sm:$0xf]
        %v5417 = vld [vmem:[#allocation6 + $0x130] sm:$0xf]
        %v5418 = vld [vmem:[#allocation6 + $0x134] sm:$0xf]
        %v5419 = vld [vmem:[#allocation6 + $0x138] sm:$0xf]
        %v5420 = vld [vmem:[#allocation6 + $0x13c] sm:$0xf]
        %v5421 = vunpack.c.l.b16 %v5306
        %v5422 = vunpack.c.l.b16 %v5320
        %v5423 = vunpack.c.l.b16 %v5334
        %v5424 = vunpack.c.l.b16 %v5348
        %v5425 = vunpack.c.l.b16 %v5362
        %v5426 = vunpack.c.l.b16 %v5376
        %v5427 = vunpack.c.l.b16 %v5390
        %v5428 = vunpack.c.l.b16 %v5404
        %v5429 = vpack.c.b16 %v5422, %v5421
        %v5430 = vpack.c.b16 %v5424, %v5423
        %v5431 = vpack.c.b16 %v5426, %v5425
        %v5432 = vpack.c.b16 %v5428, %v5427
        %v5453 = vunpack.c.l.b16 %v5405
        %v5454 = vunpack.c.l.b16 %v5406
        %v5455 = vunpack.c.l.b16 %v5407
        %v5456 = vunpack.c.l.b16 %v5408
        %v5457 = vunpack.c.l.b16 %v5409
        %v5458 = vunpack.c.l.b16 %v5410
        %v5459 = vunpack.c.l.b16 %v5411
        %v5460 = vunpack.c.l.b16 %v5412
        %v5461 = vunpack.c.l.b16 %v5413
        %v5462 = vunpack.c.l.b16 %v5414
        %v5463 = vunpack.c.l.b16 %v5415
        %v5464 = vunpack.c.l.b16 %v5416
        %v5465 = vunpack.c.l.b16 %v5417
        %v5466 = vunpack.c.l.b16 %v5418
        %v5467 = vunpack.c.l.b16 %v5419
        %v5468 = vunpack.c.l.b16 %v5420
        %v5469 = vpack.c.b16 %v5454, %v5453
        %v5470 = vpack.c.b16 %v5456, %v5455
        %v5471 = vpack.c.b16 %v5458, %v5457
        %v5472 = vpack.c.b16 %v5460, %v5459
        %v5473 = vpack.c.b16 %v5462, %v5461
        %v5474 = vpack.c.b16 %v5464, %v5463
        %v5475 = vpack.c.b16 %v5466, %v5465
        %v5476 = vpack.c.b16 %v5468, %v5467
        %5485 = vmatpush.bf16.msra.mxu0 %v5476
        %5486 = vmatpush.bf16.msra.mxu0 %v5475
        %5487 = vmatpush.bf16.msra.mxu0 %v5474
        %5488 = vmatpush.bf16.msra.mxu0 %v5473
        %5489 = vmatpush.bf16.msra.mxu0 %v5472
        %5490 = vmatpush.bf16.msra.mxu0 %v5471
        %5491 = vmatpush.bf16.msra.mxu0 %v5470
        %5492 = vmatpush.bf16.msra.mxu0 %v5469
        %5493 = vmatmul.bf16.gmra.mxu0 %v5429
        %v5494 = vpop.f32.mrf.mxu0
        %v5495 = vadd.f32 0.0, %v5494
        %v5496 = vpop.f32.mrf.mxu0
        %v5497 = vadd.f32 0.0, %v5496
        %5498 = vmatmul.bf16.gmra.mxu0 %v5430
        %v5499 = vpop.f32.mrf.mxu0
        %v5500 = vadd.f32 0.0, %v5499
        %v5501 = vpop.f32.mrf.mxu0
        %v5502 = vadd.f32 0.0, %v5501
        %5503 = vmatmul.bf16.gmra.mxu0 %v5431
        %v5504 = vpop.f32.mrf.mxu0
        %v5505 = vadd.f32 0.0, %v5504
        %v5506 = vpop.f32.mrf.mxu0
        %v5507 = vadd.f32 0.0, %v5506
        %5508 = vmatmul.bf16.gmra.mxu0 %v5432
        %v5509 = vpop.f32.mrf.mxu0
        %v5510 = vadd.f32 0.0, %v5509
        %v5511 = vpop.f32.mrf.mxu0
        %v5512 = vadd.f32 0.0, %v5511
        %5513 = vdwg.mxu0
        %v5514 = vadd.f32 %v5269, %v5495
        %v5515 = vadd.f32 %v5270, %v5497
        %v5516 = vadd.f32 %v5271, %v5500
        %v5517 = vadd.f32 %v5272, %v5502
        %v5518 = vadd.f32 %v5273, %v5505
        %v5519 = vadd.f32 %v5274, %v5507
        %v5520 = vadd.f32 %v5275, %v5510
        %v5521 = vadd.f32 %v5276, %v5512
        %v5522 = vld [vmem:[%s387] sm:$0xe]
        %v5523 = vld [vmem:[%s387 + $0x8] sm:$0xe]
        %v5524 = vld [vmem:[%s387 + $0x10] sm:$0xe]
        %v5525 = vld [vmem:[%s387 + $0x18] sm:$0xe]
        %v5526 = vld [vmem:[%s387 + $0x20] sm:$0xe]
        %v5527 = vld [vmem:[%s387 + $0x28] sm:$0xe]
        %v5528 = vld [vmem:[%s387 + $0x30] sm:$0xe]
        %v5529 = vld [vmem:[%s387 + $0x38] sm:$0xe]
        %v5546 = vrot.slane %v5522, 5
        %v5547 = vrot.slane %v5546, 4
        %v5548 = vrot.slane %v5278, 5
        %v5549 = vsel %vm2072, %v5547, %v5548
        %v5550 = vrot.slane %v5523, 5
        %v5551 = vrot.slane %v5550, 4
        %v5552 = vrot.slane %v5280, 5
        %v5553 = vsel %vm2072, %v5551, %v5552
        %v5554 = vrot.slane %v5524, 5
        %v5555 = vrot.slane %v5554, 4
        %v5556 = vrot.slane %v5282, 5
        %v5557 = vsel %vm2072, %v5555, %v5556
        %v5558 = vrot.slane %v5525, 5
        %v5559 = vrot.slane %v5558, 4
        %v5560 = vrot.slane %v5284, 5
        %v5561 = vsel %vm2072, %v5559, %v5560
        %v5562 = vrot.slane %v5526, 5
        %v5563 = vrot.slane %v5562, 4
        %v5564 = vrot.slane %v5286, 5
        %v5565 = vsel %vm2072, %v5563, %v5564
        %v5566 = vrot.slane %v5527, 5
        %v5567 = vrot.slane %v5566, 4
        %v5568 = vrot.slane %v5288, 5
        %v5569 = vsel %vm2072, %v5567, %v5568
        %v5570 = vrot.slane %v5528, 5
        %v5571 = vrot.slane %v5570, 4
        %v5572 = vrot.slane %v5290, 5
        %v5573 = vsel %vm2072, %v5571, %v5572
        %v5574 = vrot.slane %v5529, 5
        %v5575 = vrot.slane %v5574, 4
        %v5576 = vrot.slane %v5292, 5
        %v5577 = vsel %vm2072, %v5575, %v5576
        %v5578 = vld [vmem:[#allocation6 + $0x140] sm:$0xf]
        %v5579 = vld [vmem:[#allocation6 + $0x144] sm:$0xf]
        %v5580 = vld [vmem:[#allocation6 + $0x148] sm:$0xf]
        %v5581 = vld [vmem:[#allocation6 + $0x14c] sm:$0xf]
        %v5582 = vld [vmem:[#allocation6 + $0x150] sm:$0xf]
        %v5583 = vld [vmem:[#allocation6 + $0x154] sm:$0xf]
        %v5584 = vld [vmem:[#allocation6 + $0x158] sm:$0xf]
        %v5585 = vld [vmem:[#allocation6 + $0x15c] sm:$0xf]
        %v5586 = vld [vmem:[#allocation6 + $0x160] sm:$0xf]
        %v5587 = vld [vmem:[#allocation6 + $0x164] sm:$0xf]
        %v5588 = vld [vmem:[#allocation6 + $0x168] sm:$0xf]
        %v5589 = vld [vmem:[#allocation6 + $0x16c] sm:$0xf]
        %v5590 = vld [vmem:[#allocation6 + $0x170] sm:$0xf]
        %v5591 = vld [vmem:[#allocation6 + $0x174] sm:$0xf]
        %v5592 = vld [vmem:[#allocation6 + $0x178] sm:$0xf]
        %v5593 = vld [vmem:[#allocation6 + $0x17c] sm:$0xf]
        %v5594 = vunpack.c.l.b16 %v5549
        %v5595 = vunpack.c.l.b16 %v5553
        %v5596 = vunpack.c.l.b16 %v5557
        %v5597 = vunpack.c.l.b16 %v5561
        %v5598 = vunpack.c.l.b16 %v5565
        %v5599 = vunpack.c.l.b16 %v5569
        %v5600 = vunpack.c.l.b16 %v5573
        %v5601 = vunpack.c.l.b16 %v5577
        %v5602 = vpack.c.b16 %v5595, %v5594
        %v5603 = vpack.c.b16 %v5597, %v5596
        %v5604 = vpack.c.b16 %v5599, %v5598
        %v5605 = vpack.c.b16 %v5601, %v5600
        %v5626 = vunpack.c.l.b16 %v5578
        %v5627 = vunpack.c.l.b16 %v5579
        %v5628 = vunpack.c.l.b16 %v5580
        %v5629 = vunpack.c.l.b16 %v5581
        %v5630 = vunpack.c.l.b16 %v5582
        %v5631 = vunpack.c.l.b16 %v5583
        %v5632 = vunpack.c.l.b16 %v5584
        %v5633 = vunpack.c.l.b16 %v5585
        %v5634 = vunpack.c.l.b16 %v5586
        %v5635 = vunpack.c.l.b16 %v5587
        %v5636 = vunpack.c.l.b16 %v5588
        %v5637 = vunpack.c.l.b16 %v5589
        %v5638 = vunpack.c.l.b16 %v5590
        %v5639 = vunpack.c.l.b16 %v5591
        %v5640 = vunpack.c.l.b16 %v5592
        %v5641 = vunpack.c.l.b16 %v5593
        %v5642 = vpack.c.b16 %v5627, %v5626
        %v5643 = vpack.c.b16 %v5629, %v5628
        %v5644 = vpack.c.b16 %v5631, %v5630
        %v5645 = vpack.c.b16 %v5633, %v5632
        %v5646 = vpack.c.b16 %v5635, %v5634
        %v5647 = vpack.c.b16 %v5637, %v5636
        %v5648 = vpack.c.b16 %v5639, %v5638
        %v5649 = vpack.c.b16 %v5641, %v5640
        %5658 = vmatpush.bf16.msra.mxu0 %v5649
        %5659 = vmatpush.bf16.msra.mxu0 %v5648
        %5660 = vmatpush.bf16.msra.mxu0 %v5647
        %5661 = vmatpush.bf16.msra.mxu0 %v5646
        %5662 = vmatpush.bf16.msra.mxu0 %v5645
        %5663 = vmatpush.bf16.msra.mxu0 %v5644
        %5664 = vmatpush.bf16.msra.mxu0 %v5643
        %5665 = vmatpush.bf16.msra.mxu0 %v5642
        %5666 = vmatmul.bf16.gmra.mxu0 %v5602
        %v5667 = vpop.f32.mrf.mxu0
        %v5668 = vadd.f32 0.0, %v5667
        %v5669 = vpop.f32.mrf.mxu0
        %v5670 = vadd.f32 0.0, %v5669
        %5671 = vmatmul.bf16.gmra.mxu0 %v5603
        %v5672 = vpop.f32.mrf.mxu0
        %v5673 = vadd.f32 0.0, %v5672
        %v5674 = vpop.f32.mrf.mxu0
        %v5675 = vadd.f32 0.0, %v5674
        %5676 = vmatmul.bf16.gmra.mxu0 %v5604
        %v5677 = vpop.f32.mrf.mxu0
        %v5678 = vadd.f32 0.0, %v5677
        %v5679 = vpop.f32.mrf.mxu0
        %v5680 = vadd.f32 0.0, %v5679
        %5681 = vmatmul.bf16.gmra.mxu0 %v5605
        %v5682 = vpop.f32.mrf.mxu0
        %v5683 = vadd.f32 0.0, %v5682
        %v5684 = vpop.f32.mrf.mxu0
        %v5685 = vadd.f32 0.0, %v5684
        %5686 = vdwg.mxu0
        %v5687 = vadd.f32 %v5514, %v5668
        %v5688 = vadd.f32 %v5515, %v5670
        %v5689 = vadd.f32 %v5516, %v5673
        %v5690 = vadd.f32 %v5517, %v5675
        %v5691 = vadd.f32 %v5518, %v5678
        %v5692 = vadd.f32 %v5519, %v5680
        %v5693 = vadd.f32 %v5520, %v5683
        %v5694 = vadd.f32 %v5521, %v5685
        %v5695 = vld [vmem:[%s2773] sm:$0xf]
        %v5696 = vld [vmem:[%s2773 + $0x8] sm:$0xf]
        %v5697 = vld [vmem:[%s2773 + $0x10] sm:$0xf]
        %v5698 = vld [vmem:[%s2773 + $0x18] sm:$0xf]
        %v5699 = vld [vmem:[%s2773 + $0x20] sm:$0xf]
        %v5700 = vld [vmem:[%s2773 + $0x28] sm:$0xf]
        %v5701 = vld [vmem:[%s2773 + $0x30] sm:$0xf]
        %v5702 = vld [vmem:[%s2773 + $0x38] sm:$0xf]
        %v5703 = vld [vmem:[#allocation6 + $0x180] sm:$0xf]
        %v5704 = vld [vmem:[#allocation6 + $0x184] sm:$0xf]
        %v5705 = vld [vmem:[#allocation6 + $0x188] sm:$0xf]
        %v5706 = vld [vmem:[#allocation6 + $0x18c] sm:$0xf]
        %v5707 = vld [vmem:[#allocation6 + $0x190] sm:$0xf]
        %v5708 = vld [vmem:[#allocation6 + $0x194] sm:$0xf]
        %v5709 = vld [vmem:[#allocation6 + $0x198] sm:$0xf]
        %v5710 = vld [vmem:[#allocation6 + $0x19c] sm:$0xf]
        %v5711 = vld [vmem:[#allocation6 + $0x1a0] sm:$0xf]
        %v5712 = vld [vmem:[#allocation6 + $0x1a4] sm:$0xf]
        %v5713 = vld [vmem:[#allocation6 + $0x1a8] sm:$0xf]
        %v5714 = vld [vmem:[#allocation6 + $0x1ac] sm:$0xf]
        %v5715 = vld [vmem:[#allocation6 + $0x1b0] sm:$0xf]
        %v5716 = vld [vmem:[#allocation6 + $0x1b4] sm:$0xf]
        %v5717 = vld [vmem:[#allocation6 + $0x1b8] sm:$0xf]
        %v5718 = vld [vmem:[#allocation6 + $0x1bc] sm:$0xf]
        %v5727 = vunpack.c.l.b16 %v5695
        %v5728 = vunpack.c.l.b16 %v5696
        %v5729 = vunpack.c.l.b16 %v5697
        %v5730 = vunpack.c.l.b16 %v5698
        %v5731 = vunpack.c.l.b16 %v5699
        %v5732 = vunpack.c.l.b16 %v5700
        %v5733 = vunpack.c.l.b16 %v5701
        %v5734 = vunpack.c.l.b16 %v5702
        %v5735 = vpack.c.b16 %v5728, %v5727
        %v5736 = vpack.c.b16 %v5730, %v5729
        %v5737 = vpack.c.b16 %v5732, %v5731
        %v5738 = vpack.c.b16 %v5734, %v5733
        %v5759 = vunpack.c.l.b16 %v5703
        %v5760 = vunpack.c.l.b16 %v5704
        %v5761 = vunpack.c.l.b16 %v5705
        %v5762 = vunpack.c.l.b16 %v5706
        %v5763 = vunpack.c.l.b16 %v5707
        %v5764 = vunpack.c.l.b16 %v5708
        %v5765 = vunpack.c.l.b16 %v5709
        %v5766 = vunpack.c.l.b16 %v5710
        %v5767 = vunpack.c.l.b16 %v5711
        %v5768 = vunpack.c.l.b16 %v5712
        %v5769 = vunpack.c.l.b16 %v5713
        %v5770 = vunpack.c.l.b16 %v5714
        %v5771 = vunpack.c.l.b16 %v5715
        %v5772 = vunpack.c.l.b16 %v5716
        %v5773 = vunpack.c.l.b16 %v5717
        %v5774 = vunpack.c.l.b16 %v5718
        %v5775 = vpack.c.b16 %v5760, %v5759
        %v5776 = vpack.c.b16 %v5762, %v5761
        %v5777 = vpack.c.b16 %v5764, %v5763
        %v5778 = vpack.c.b16 %v5766, %v5765
        %v5779 = vpack.c.b16 %v5768, %v5767
        %v5780 = vpack.c.b16 %v5770, %v5769
        %v5781 = vpack.c.b16 %v5772, %v5771
        %v5782 = vpack.c.b16 %v5774, %v5773
        %5791 = vmatpush.bf16.msra.mxu0 %v5782
        %5792 = vmatpush.bf16.msra.mxu0 %v5781
        %5793 = vmatpush.bf16.msra.mxu0 %v5780
        %5794 = vmatpush.bf16.msra.mxu0 %v5779
        %5795 = vmatpush.bf16.msra.mxu0 %v5778
        %5796 = vmatpush.bf16.msra.mxu0 %v5777
        %5797 = vmatpush.bf16.msra.mxu0 %v5776
        %5798 = vmatpush.bf16.msra.mxu0 %v5775
        %5799 = vmatmul.bf16.gmra.mxu0 %v5735
        %v5800 = vpop.f32.mrf.mxu0
        %v5801 = vadd.f32 0.0, %v5800
        %v5802 = vpop.f32.mrf.mxu0
        %v5803 = vadd.f32 0.0, %v5802
        %5804 = vmatmul.bf16.gmra.mxu0 %v5736
        %v5805 = vpop.f32.mrf.mxu0
        %v5806 = vadd.f32 0.0, %v5805
        %v5807 = vpop.f32.mrf.mxu0
        %v5808 = vadd.f32 0.0, %v5807
        %5809 = vmatmul.bf16.gmra.mxu0 %v5737
        %v5810 = vpop.f32.mrf.mxu0
        %v5811 = vadd.f32 0.0, %v5810
        %v5812 = vpop.f32.mrf.mxu0
        %v5813 = vadd.f32 0.0, %v5812
        %5814 = vmatmul.bf16.gmra.mxu0 %v5738
        %v5815 = vpop.f32.mrf.mxu0
        %v5816 = vadd.f32 0.0, %v5815
        %v5817 = vpop.f32.mrf.mxu0
        %v5818 = vadd.f32 0.0, %v5817
        %5819 = vdwg.mxu0
        %v5820 = vadd.f32 %v5687, %v5801
        %v5821 = vadd.f32 %v5688, %v5803
        %v5822 = vadd.f32 %v5689, %v5806
        %v5823 = vadd.f32 %v5690, %v5808
        %v5824 = vadd.f32 %v5691, %v5811
        %v5825 = vadd.f32 %v5692, %v5813
        %v5826 = vadd.f32 %v5693, %v5816
        %v5827 = vadd.f32 %v5694, %v5818
        %v5828 = vld [vmem:[%s2773] sm:$0xf]
        %v5829 = vld [vmem:[%s2773 + $0x4] sm:$0x1]
        %v5830 = vld [vmem:[%s2773 + $0x8] sm:$0xf]
        %v5831 = vld [vmem:[%s2773 + $0xc] sm:$0x1]
        %v5832 = vld [vmem:[%s2773 + $0x10] sm:$0xf]
        %v5833 = vld [vmem:[%s2773 + $0x14] sm:$0x1]
        %v5834 = vld [vmem:[%s2773 + $0x18] sm:$0xf]
        %v5835 = vld [vmem:[%s2773 + $0x1c] sm:$0x1]
        %v5836 = vld [vmem:[%s2773 + $0x20] sm:$0xf]
        %v5837 = vld [vmem:[%s2773 + $0x24] sm:$0x1]
        %v5838 = vld [vmem:[%s2773 + $0x28] sm:$0xf]
        %v5839 = vld [vmem:[%s2773 + $0x2c] sm:$0x1]
        %v5840 = vld [vmem:[%s2773 + $0x30] sm:$0xf]
        %v5841 = vld [vmem:[%s2773 + $0x34] sm:$0x1]
        %v5842 = vld [vmem:[%s2773 + $0x38] sm:$0xf]
        %v5843 = vld [vmem:[%s2773 + $0x3c] sm:$0x1]
        %v5845 = vshrl.u32 %v5828, 16
        %v5847 = vrot.slane %v5845, 4
        %v5848 = vshll.u32 %v5828, 16
        %v5850 = vrot.slane %v5848, 5
        %v5851 = vor.u32 %v5847, %v5850
        %v5852 = vrot.slane %v5851, 4
        %v5854 = vshll.u32 %v5829, 16
        %v5856 = vrot.slane %v5854, 5
        %v5857 = vsel %vm1723, %v5852, %v5856
        %v5859 = vshrl.u32 %v5830, 16
        %v5861 = vrot.slane %v5859, 4
        %v5862 = vshll.u32 %v5830, 16
        %v5864 = vrot.slane %v5862, 5
        %v5865 = vor.u32 %v5861, %v5864
        %v5866 = vrot.slane %v5865, 4
        %v5868 = vshll.u32 %v5831, 16
        %v5870 = vrot.slane %v5868, 5
        %v5871 = vsel %vm1723, %v5866, %v5870
        %v5873 = vshrl.u32 %v5832, 16
        %v5875 = vrot.slane %v5873, 4
        %v5876 = vshll.u32 %v5832, 16
        %v5878 = vrot.slane %v5876, 5
        %v5879 = vor.u32 %v5875, %v5878
        %v5880 = vrot.slane %v5879, 4
        %v5882 = vshll.u32 %v5833, 16
        %v5884 = vrot.slane %v5882, 5
        %v5885 = vsel %vm1723, %v5880, %v5884
        %v5887 = vshrl.u32 %v5834, 16
        %v5889 = vrot.slane %v5887, 4
        %v5890 = vshll.u32 %v5834, 16
        %v5892 = vrot.slane %v5890, 5
        %v5893 = vor.u32 %v5889, %v5892
        %v5894 = vrot.slane %v5893, 4
        %v5896 = vshll.u32 %v5835, 16
        %v5898 = vrot.slane %v5896, 5
        %v5899 = vsel %vm1723, %v5894, %v5898
        %v5901 = vshrl.u32 %v5836, 16
        %v5903 = vrot.slane %v5901, 4
        %v5904 = vshll.u32 %v5836, 16
        %v5906 = vrot.slane %v5904, 5
        %v5907 = vor.u32 %v5903, %v5906
        %v5908 = vrot.slane %v5907, 4
        %v5910 = vshll.u32 %v5837, 16
        %v5912 = vrot.slane %v5910, 5
        %v5913 = vsel %vm1723, %v5908, %v5912
        %v5915 = vshrl.u32 %v5838, 16
        %v5917 = vrot.slane %v5915, 4
        %v5918 = vshll.u32 %v5838, 16
        %v5920 = vrot.slane %v5918, 5
        %v5921 = vor.u32 %v5917, %v5920
        %v5922 = vrot.slane %v5921, 4
        %v5924 = vshll.u32 %v5839, 16
        %v5926 = vrot.slane %v5924, 5
        %v5927 = vsel %vm1723, %v5922, %v5926
        %v5929 = vshrl.u32 %v5840, 16
        %v5931 = vrot.slane %v5929, 4
        %v5932 = vshll.u32 %v5840, 16
        %v5934 = vrot.slane %v5932, 5
        %v5935 = vor.u32 %v5931, %v5934
        %v5936 = vrot.slane %v5935, 4
        %v5938 = vshll.u32 %v5841, 16
        %v5940 = vrot.slane %v5938, 5
        %v5941 = vsel %vm1723, %v5936, %v5940
        %v5943 = vshrl.u32 %v5842, 16
        %v5945 = vrot.slane %v5943, 4
        %v5946 = vshll.u32 %v5842, 16
        %v5948 = vrot.slane %v5946, 5
        %v5949 = vor.u32 %v5945, %v5948
        %v5950 = vrot.slane %v5949, 4
        %v5952 = vshll.u32 %v5843, 16
        %v5954 = vrot.slane %v5952, 5
        %v5955 = vsel %vm1723, %v5950, %v5954
        %v5956 = vld [vmem:[#allocation6 + $0x1c0] sm:$0xf]
        %v5957 = vld [vmem:[#allocation6 + $0x1c4] sm:$0xf]
        %v5958 = vld [vmem:[#allocation6 + $0x1c8] sm:$0xf]
        %v5959 = vld [vmem:[#allocation6 + $0x1cc] sm:$0xf]
        %v5960 = vld [vmem:[#allocation6 + $0x1d0] sm:$0xf]
        %v5961 = vld [vmem:[#allocation6 + $0x1d4] sm:$0xf]
        %v5962 = vld [vmem:[#allocation6 + $0x1d8] sm:$0xf]
        %v5963 = vld [vmem:[#allocation6 + $0x1dc] sm:$0xf]
        %v5964 = vld [vmem:[#allocation6 + $0x1e0] sm:$0xf]
        %v5965 = vld [vmem:[#allocation6 + $0x1e4] sm:$0xf]
        %v5966 = vld [vmem:[#allocation6 + $0x1e8] sm:$0xf]
        %v5967 = vld [vmem:[#allocation6 + $0x1ec] sm:$0xf]
        %v5968 = vld [vmem:[#allocation6 + $0x1f0] sm:$0xf]
        %v5969 = vld [vmem:[#allocation6 + $0x1f4] sm:$0xf]
        %v5970 = vld [vmem:[#allocation6 + $0x1f8] sm:$0xf]
        %v5971 = vld [vmem:[#allocation6 + $0x1fc] sm:$0xf]
        %v5972 = vunpack.c.l.b16 %v5857
        %v5973 = vunpack.c.l.b16 %v5871
        %v5974 = vunpack.c.l.b16 %v5885
        %v5975 = vunpack.c.l.b16 %v5899
        %v5976 = vunpack.c.l.b16 %v5913
        %v5977 = vunpack.c.l.b16 %v5927
        %v5978 = vunpack.c.l.b16 %v5941
        %v5979 = vunpack.c.l.b16 %v5955
        %v5980 = vpack.c.b16 %v5973, %v5972
        %v5981 = vpack.c.b16 %v5975, %v5974
        %v5982 = vpack.c.b16 %v5977, %v5976
        %v5983 = vpack.c.b16 %v5979, %v5978
        %v6004 = vunpack.c.l.b16 %v5956
        %v6005 = vunpack.c.l.b16 %v5957
        %v6006 = vunpack.c.l.b16 %v5958
        %v6007 = vunpack.c.l.b16 %v5959
        %v6008 = vunpack.c.l.b16 %v5960
        %v6009 = vunpack.c.l.b16 %v5961
        %v6010 = vunpack.c.l.b16 %v5962
        %v6011 = vunpack.c.l.b16 %v5963
        %v6012 = vunpack.c.l.b16 %v5964
        %v6013 = vunpack.c.l.b16 %v5965
        %v6014 = vunpack.c.l.b16 %v5966
        %v6015 = vunpack.c.l.b16 %v5967
        %v6016 = vunpack.c.l.b16 %v5968
        %v6017 = vunpack.c.l.b16 %v5969
        %v6018 = vunpack.c.l.b16 %v5970
        %v6019 = vunpack.c.l.b16 %v5971
        %v6020 = vpack.c.b16 %v6005, %v6004
        %v6021 = vpack.c.b16 %v6007, %v6006
        %v6022 = vpack.c.b16 %v6009, %v6008
        %v6023 = vpack.c.b16 %v6011, %v6010
        %v6024 = vpack.c.b16 %v6013, %v6012
        %v6025 = vpack.c.b16 %v6015, %v6014
        %v6026 = vpack.c.b16 %v6017, %v6016
        %v6027 = vpack.c.b16 %v6019, %v6018
        %6036 = vmatpush.bf16.msra.mxu0 %v6027
        %6037 = vmatpush.bf16.msra.mxu0 %v6026
        %6038 = vmatpush.bf16.msra.mxu0 %v6025
        %6039 = vmatpush.bf16.msra.mxu0 %v6024
        %6040 = vmatpush.bf16.msra.mxu0 %v6023
        %6041 = vmatpush.bf16.msra.mxu0 %v6022
        %6042 = vmatpush.bf16.msra.mxu0 %v6021
        %6043 = vmatpush.bf16.msra.mxu0 %v6020
        %6044 = vmatmul.bf16.gmra.mxu0 %v5980
        %v6045 = vpop.f32.mrf.mxu0
        %v6046 = vadd.f32 0.0, %v6045
        %v6047 = vpop.f32.mrf.mxu0
        %v6048 = vadd.f32 0.0, %v6047
        %6049 = vmatmul.bf16.gmra.mxu0 %v5981
        %v6050 = vpop.f32.mrf.mxu0
        %v6051 = vadd.f32 0.0, %v6050
        %v6052 = vpop.f32.mrf.mxu0
        %v6053 = vadd.f32 0.0, %v6052
        %6054 = vmatmul.bf16.gmra.mxu0 %v5982
        %v6055 = vpop.f32.mrf.mxu0
        %v6056 = vadd.f32 0.0, %v6055
        %v6057 = vpop.f32.mrf.mxu0
        %v6058 = vadd.f32 0.0, %v6057
        %6059 = vmatmul.bf16.gmra.mxu0 %v5983
        %v6060 = vpop.f32.mrf.mxu0
        %v6061 = vadd.f32 0.0, %v6060
        %v6062 = vpop.f32.mrf.mxu0
        %v6063 = vadd.f32 0.0, %v6062
        %6064 = vdwg.mxu0
        %v6065 = vadd.f32 %v5820, %v6046
        %v6066 = vadd.f32 %v5821, %v6048
        %v6067 = vadd.f32 %v5822, %v6051
        %v6068 = vadd.f32 %v5823, %v6053
        %v6069 = vadd.f32 %v5824, %v6056
        %v6070 = vadd.f32 %v5825, %v6058
        %v6071 = vadd.f32 %v5826, %v6061
        %v6072 = vadd.f32 %v5827, %v6063
        %v6073 = vld [vmem:[%s2773] sm:$0xe]
        %v6074 = vld [vmem:[%s2773 + $0x8] sm:$0xe]
        %v6075 = vld [vmem:[%s2773 + $0x10] sm:$0xe]
        %v6076 = vld [vmem:[%s2773 + $0x18] sm:$0xe]
        %v6077 = vld [vmem:[%s2773 + $0x20] sm:$0xe]
        %v6078 = vld [vmem:[%s2773 + $0x28] sm:$0xe]
        %v6079 = vld [vmem:[%s2773 + $0x30] sm:$0xe]
        %v6080 = vld [vmem:[%s2773 + $0x38] sm:$0xe]
        %v6097 = vrot.slane %v6073, 5
        %v6098 = vrot.slane %v6097, 4
        %v6099 = vrot.slane %v5829, 5
        %v6100 = vsel %vm2072, %v6098, %v6099
        %v6101 = vrot.slane %v6074, 5
        %v6102 = vrot.slane %v6101, 4
        %v6103 = vrot.slane %v5831, 5
        %v6104 = vsel %vm2072, %v6102, %v6103
        %v6105 = vrot.slane %v6075, 5
        %v6106 = vrot.slane %v6105, 4
        %v6107 = vrot.slane %v5833, 5
        %v6108 = vsel %vm2072, %v6106, %v6107
        %v6109 = vrot.slane %v6076, 5
        %v6110 = vrot.slane %v6109, 4
        %v6111 = vrot.slane %v5835, 5
        %v6112 = vsel %vm2072, %v6110, %v6111
        %v6113 = vrot.slane %v6077, 5
        %v6114 = vrot.slane %v6113, 4
        %v6115 = vrot.slane %v5837, 5
        %v6116 = vsel %vm2072, %v6114, %v6115
        %v6117 = vrot.slane %v6078, 5
        %v6118 = vrot.slane %v6117, 4
        %v6119 = vrot.slane %v5839, 5
        %v6120 = vsel %vm2072, %v6118, %v6119
        %v6121 = vrot.slane %v6079, 5
        %v6122 = vrot.slane %v6121, 4
        %v6123 = vrot.slane %v5841, 5
        %v6124 = vsel %vm2072, %v6122, %v6123
        %v6125 = vrot.slane %v6080, 5
        %v6126 = vrot.slane %v6125, 4
        %v6127 = vrot.slane %v5843, 5
        %v6128 = vsel %vm2072, %v6126, %v6127
        %v6129 = vld [vmem:[#allocation6 + $0x200] sm:$0xf]
        %v6130 = vld [vmem:[#allocation6 + $0x204] sm:$0xf]
        %v6131 = vld [vmem:[#allocation6 + $0x208] sm:$0xf]
        %v6132 = vld [vmem:[#allocation6 + $0x20c] sm:$0xf]
        %v6133 = vld [vmem:[#allocation6 + $0x210] sm:$0xf]
        %v6134 = vld [vmem:[#allocation6 + $0x214] sm:$0xf]
        %v6135 = vld [vmem:[#allocation6 + $0x218] sm:$0xf]
        %v6136 = vld [vmem:[#allocation6 + $0x21c] sm:$0xf]
        %v6137 = vld [vmem:[#allocation6 + $0x220] sm:$0xf]
        %v6138 = vld [vmem:[#allocation6 + $0x224] sm:$0xf]
        %v6139 = vld [vmem:[#allocation6 + $0x228] sm:$0xf]
        %v6140 = vld [vmem:[#allocation6 + $0x22c] sm:$0xf]
        %v6141 = vld [vmem:[#allocation6 + $0x230] sm:$0xf]
        %v6142 = vld [vmem:[#allocation6 + $0x234] sm:$0xf]
        %v6143 = vld [vmem:[#allocation6 + $0x238] sm:$0xf]
        %v6144 = vld [vmem:[#allocation6 + $0x23c] sm:$0xf]
        %v6145 = vunpack.c.l.b16 %v6100
        %v6146 = vunpack.c.l.b16 %v6104
        %v6147 = vunpack.c.l.b16 %v6108
        %v6148 = vunpack.c.l.b16 %v6112
        %v6149 = vunpack.c.l.b16 %v6116
        %v6150 = vunpack.c.l.b16 %v6120
        %v6151 = vunpack.c.l.b16 %v6124
        %v6152 = vunpack.c.l.b16 %v6128
        %v6153 = vpack.c.b16 %v6146, %v6145
        %v6154 = vpack.c.b16 %v6148, %v6147
        %v6155 = vpack.c.b16 %v6150, %v6149
        %v6156 = vpack.c.b16 %v6152, %v6151
        %v6177 = vunpack.c.l.b16 %v6129
        %v6178 = vunpack.c.l.b16 %v6130
        %v6179 = vunpack.c.l.b16 %v6131
        %v6180 = vunpack.c.l.b16 %v6132
        %v6181 = vunpack.c.l.b16 %v6133
        %v6182 = vunpack.c.l.b16 %v6134
        %v6183 = vunpack.c.l.b16 %v6135
        %v6184 = vunpack.c.l.b16 %v6136
        %v6185 = vunpack.c.l.b16 %v6137
        %v6186 = vunpack.c.l.b16 %v6138
        %v6187 = vunpack.c.l.b16 %v6139
        %v6188 = vunpack.c.l.b16 %v6140
        %v6189 = vunpack.c.l.b16 %v6141
        %v6190 = vunpack.c.l.b16 %v6142
        %v6191 = vunpack.c.l.b16 %v6143
        %v6192 = vunpack.c.l.b16 %v6144
        %v6193 = vpack.c.b16 %v6178, %v6177
        %v6194 = vpack.c.b16 %v6180, %v6179
        %v6195 = vpack.c.b16 %v6182, %v6181
        %v6196 = vpack.c.b16 %v6184, %v6183
        %v6197 = vpack.c.b16 %v6186, %v6185
        %v6198 = vpack.c.b16 %v6188, %v6187
        %v6199 = vpack.c.b16 %v6190, %v6189
        %v6200 = vpack.c.b16 %v6192, %v6191
        %6209 = vmatpush.bf16.msra.mxu0 %v6200
        %6210 = vmatpush.bf16.msra.mxu0 %v6199
        %6211 = vmatpush.bf16.msra.mxu0 %v6198
        %6212 = vmatpush.bf16.msra.mxu0 %v6197
        %6213 = vmatpush.bf16.msra.mxu0 %v6196
        %6214 = vmatpush.bf16.msra.mxu0 %v6195
        %6215 = vmatpush.bf16.msra.mxu0 %v6194
        %6216 = vmatpush.bf16.msra.mxu0 %v6193
        %6217 = vmatmul.bf16.gmra.mxu0 %v6153
        %v6218 = vpop.f32.mrf.mxu0
        %v6219 = vadd.f32 0.0, %v6218
        %v6220 = vpop.f32.mrf.mxu0
        %v6221 = vadd.f32 0.0, %v6220
        %6222 = vmatmul.bf16.gmra.mxu0 %v6154
        %v6223 = vpop.f32.mrf.mxu0
        %v6224 = vadd.f32 0.0, %v6223
        %v6225 = vpop.f32.mrf.mxu0
        %v6226 = vadd.f32 0.0, %v6225
        %6227 = vmatmul.bf16.gmra.mxu0 %v6155
        %v6228 = vpop.f32.mrf.mxu0
        %v6229 = vadd.f32 0.0, %v6228
        %v6230 = vpop.f32.mrf.mxu0
        %v6231 = vadd.f32 0.0, %v6230
        %6232 = vmatmul.bf16.gmra.mxu0 %v6156
        %v6233 = vpop.f32.mrf.mxu0
        %v6234 = vadd.f32 0.0, %v6233
        %v6235 = vpop.f32.mrf.mxu0
        %v6236 = vadd.f32 0.0, %v6235
        %6237 = vdwg.mxu0
        %v6238 = vadd.f32 %v6065, %v6219
        %v6239 = vadd.f32 %v6066, %v6221
        %v6240 = vadd.f32 %v6067, %v6224
        %v6241 = vadd.f32 %v6068, %v6226
        %v6242 = vadd.f32 %v6069, %v6229
        %v6243 = vadd.f32 %v6070, %v6231
        %v6244 = vadd.f32 %v6071, %v6234
        %v6245 = vadd.f32 %v6072, %v6236
        %v6246 = vld [vmem:[%s2] sm:$0x1]
        %v6248 = vperm.slane %v6246, 0
        %v6250 = vadd.f32 %v6238, %v6248
        %v6251 = vadd.f32 %v6239, %v6248
        %v6252 = vadd.f32 %v6240, %v6248
        %v6253 = vadd.f32 %v6241, %v6248
        %v6254 = vadd.f32 %v6242, %v6248
        %v6255 = vadd.f32 %v6243, %v6248
        %v6256 = vadd.f32 %v6244, %v6248
        %v6257 = vadd.f32 %v6245, %v6248
        %v6258 = vmax.f32 %v6250, 0.0
        %v6259 = vmax.f32 %v6251, 0.0
        %v6260 = vmax.f32 %v6252, 0.0
        %v6261 = vmax.f32 %v6253, 0.0
        %v6262 = vmax.f32 %v6254, 0.0
        %v6263 = vmax.f32 %v6255, 0.0
        %v6264 = vmax.f32 %v6256, 0.0
        %v6265 = vmax.f32 %v6257, 0.0
        %v6266 = vpack.c.bf16 %v6259, %v6258
        %v6267 = vpack.c.bf16 %v6261, %v6260
        %v6268 = vpack.c.bf16 %v6263, %v6262
        %v6269 = vpack.c.bf16 %v6265, %v6264
        %v6270 = vld [vmem:[#allocation8] sm:$0xf]
        %v6271 = vld [vmem:[#allocation8 + $0x4] sm:$0xf]
        %v6272 = vld [vmem:[#allocation8 + $0x8] sm:$0xf]
        %v6273 = vld [vmem:[#allocation8 + $0xc] sm:$0xf]
        %v6274 = vld [vmem:[#allocation8 + $0x10] sm:$0xf]
        %v6275 = vld [vmem:[#allocation8 + $0x14] sm:$0xf]
        %v6276 = vld [vmem:[#allocation8 + $0x18] sm:$0xf]
        %v6277 = vld [vmem:[#allocation8 + $0x1c] sm:$0xf]
        %v6278 = vld [vmem:[#allocation8 + $0x20] sm:$0xf]
        %v6279 = vld [vmem:[#allocation8 + $0x24] sm:$0xf]
        %v6280 = vld [vmem:[#allocation8 + $0x28] sm:$0xf]
        %v6281 = vld [vmem:[#allocation8 + $0x2c] sm:$0xf]
        %v6282 = vld [vmem:[#allocation8 + $0x30] sm:$0xf]
        %v6283 = vld [vmem:[#allocation8 + $0x34] sm:$0xf]
        %v6284 = vld [vmem:[#allocation8 + $0x38] sm:$0xf]
        %v6285 = vld [vmem:[#allocation8 + $0x3c] sm:$0xf]
        %v6286 = vld [vmem:[%s4] sm:$0x1]
        %v6288 = vperm.slane %v6286, 0
        %v6306 = vunpack.c.l.b16 %v6270
        %v6307 = vunpack.c.l.b16 %v6271
        %v6308 = vunpack.c.l.b16 %v6272
        %v6309 = vunpack.c.l.b16 %v6273
        %v6310 = vunpack.c.l.b16 %v6274
        %v6311 = vunpack.c.l.b16 %v6275
        %v6312 = vunpack.c.l.b16 %v6276
        %v6313 = vunpack.c.l.b16 %v6277
        %v6314 = vunpack.c.l.b16 %v6278
        %v6315 = vunpack.c.l.b16 %v6279
        %v6316 = vunpack.c.l.b16 %v6280
        %v6317 = vunpack.c.l.b16 %v6281
        %v6318 = vunpack.c.l.b16 %v6282
        %v6319 = vunpack.c.l.b16 %v6283
        %v6320 = vunpack.c.l.b16 %v6284
        %v6321 = vunpack.c.l.b16 %v6285
        %v6322 = vpack.c.b16 %v6307, %v6306
        %v6323 = vpack.c.b16 %v6309, %v6308
        %v6324 = vpack.c.b16 %v6311, %v6310
        %v6325 = vpack.c.b16 %v6313, %v6312
        %v6326 = vpack.c.b16 %v6315, %v6314
        %v6327 = vpack.c.b16 %v6317, %v6316
        %v6328 = vpack.c.b16 %v6319, %v6318
        %v6329 = vpack.c.b16 %v6321, %v6320
        %6338 = vmatpush.bf16.msra.mxu0 %v6329
        %6339 = vmatpush.bf16.msra.mxu0 %v6328
        %6340 = vmatpush.bf16.msra.mxu0 %v6327
        %6341 = vmatpush.bf16.msra.mxu0 %v6326
        %6342 = vmatpush.bf16.msra.mxu0 %v6325
        %6343 = vmatpush.bf16.msra.mxu0 %v6324
        %6344 = vmatpush.bf16.msra.mxu0 %v6323
        %6345 = vmatpush.bf16.msra.mxu0 %v6322
        %6346 = vmatmul.bf16.gmra.mxu0 %v6266
        %v6347 = vpop.f32.mrf.mxu0
        %v6348 = vadd.f32 %v6288, %v6347
        %v6349 = vpop.f32.mrf.mxu0
        %v6350 = vadd.f32 %v6288, %v6349
        %6351 = vmatmul.bf16.gmra.mxu0 %v6267
        %v6352 = vpop.f32.mrf.mxu0
        %v6353 = vadd.f32 %v6288, %v6352
        %v6354 = vpop.f32.mrf.mxu0
        %v6355 = vadd.f32 %v6288, %v6354
        %6356 = vmatmul.bf16.gmra.mxu0 %v6268
        %v6357 = vpop.f32.mrf.mxu0
        %v6358 = vadd.f32 %v6288, %v6357
        %v6359 = vpop.f32.mrf.mxu0
        %v6360 = vadd.f32 %v6288, %v6359
        %6361 = vmatmul.bf16.gmra.mxu0 %v6269
        %v6362 = vpop.f32.mrf.mxu0
        %v6363 = vadd.f32 %v6288, %v6362
        %v6364 = vpop.f32.mrf.mxu0
        %v6365 = vadd.f32 %v6288, %v6364
        %6366 = vdwg.mxu0
        %v6367 = vld [vmem:[%s348] sm:$0xff]
        %v6368 = vld [vmem:[%s348 + $0x8] sm:$0xff]
        %v6369 = vld [vmem:[%s348 + $0x10] sm:$0xff]
        %v6370 = vld [vmem:[%s348 + $0x18] sm:$0xff]
        %v6371 = vld [vmem:[%s348 + $0x20] sm:$0xff]
        %v6372 = vld [vmem:[%s348 + $0x28] sm:$0xff]
        %v6373 = vld [vmem:[%s348 + $0x30] sm:$0xff]
        %v6374 = vld [vmem:[%s348 + $0x38] sm:$0xff]
        %v6375 = vadd.f32 %v6367, %v6348
        %v6376 = vadd.f32 %v6368, %v6350
        %v6377 = vadd.f32 %v6369, %v6353
        %v6378 = vadd.f32 %v6370, %v6355
        %v6379 = vadd.f32 %v6371, %v6358
        %v6380 = vadd.f32 %v6372, %v6360
        %v6381 = vadd.f32 %v6373, %v6363
        %v6382 = vadd.f32 %v6374, %v6365
        %6383 = vst [vmem:[%s348] sm:$0xff] %v6375
        %6384 = vst [vmem:[%s348 + $0x8] sm:$0xff] %v6376
        %6385 = vst [vmem:[%s348 + $0x10] sm:$0xff] %v6377
        %6386 = vst [vmem:[%s348 + $0x18] sm:$0xff] %v6378
        %6387 = vst [vmem:[%s348 + $0x20] sm:$0xff] %v6379
        %6388 = vst [vmem:[%s348 + $0x28] sm:$0xff] %v6380
        %6389 = vst [vmem:[%s348 + $0x30] sm:$0xff] %v6381
        %6390 = vst [vmem:[%s348 + $0x38] sm:$0xff] %v6382
        %s6391 = sand.u32 %s186, 1
        %s6392 = scalar_lea.sflag [#allocation5], %s6391
        %s6393 = sand.u32 %s186, 1
        %s6394 = smul.addr %s6393, 64
        %s6395 = scalar_lea.vmem [#allocation11], %s6394
        // Predicated region
        $region65: #{tpu_custom_call.1} parent=47 // pred_check
          %p6396 = pneg %p196
        $region66: #{tpu_custom_call.1} parent=47 // pred_check_branch
          %6398 = sbr.rel (%p6396) target = $region68
        $region67: #{tpu_custom_call.1} parent=47 // pred_region
          %6400 = vsyncadd %s6392, 0
          %s6401 = smul.addr %s26, 8
          %s6402 = smul.addr %s6401, 8
          %s6403 = scalar_lea.hbm %s7, %s6402
          %s6404 = sshll.u32 %s6395, 4
          %s6405 = int_to_ptr.vmem [resolvable:$true] %s6404
          %s6406 = sshll.u32 %s6403, 4
          %s6407 = int_to_ptr.hbm [resolvable:$true] %s6406
          %6412 = dma.vmem_to_hbm [thread:$0]  %s6405, 1024, %s6407, %s6392, 128, 128, 8
        $region68: #{tpu_custom_call.1} parent=47 // pred_fallthru
          _
      $region48: #{tpu_custom_call.1} parent=5 // pred_fallthru
        _
      %p6413 = scmp.le.s32.totalorder 2, %s21
      // Predicated region
      $region69: #{tpu_custom_call.1} parent=5 // pred_check
        %p6414 = pneg %p6413
      $region70: #{tpu_custom_call.1} parent=5 // pred_check_branch
        %6416 = sbr.rel (%p6414) target = $region72
      $region71: #{tpu_custom_call.1} parent=5 // pred_region
        %s6417 = ssub.s32 %s21, 2
        // Predicated region
        $region73: #{tpu_custom_call.1} parent=71 // pred_check
          %p6418 = pneg %p202
        $region74: #{tpu_custom_call.1} parent=71 // pred_check_branch
          %6420 = sbr.rel (%p6418) target = $region76
        $region75: #{tpu_custom_call.1} parent=71 // pred_region
          %s6421 = sand.u32 %s187, 1
          %s6422 = scalar_lea.sflag [#allocation5], %s6421
          %s6423 = sand.u32 %s187, 1
          %s6424 = smul.addr %s6423, 64
          %s6425 = scalar_lea.vmem [#allocation11], %s6424
          %6427 = dma.done %s6422, 1024
        $region76: #{tpu_custom_call.1} parent=71 // pred_fallthru
          _
      $region72: #{tpu_custom_call.1} parent=5 // pred_fallthru
        _
    $region6: #{tpu_custom_call.1} parent=1 // loop_footer
      %s25 = sadd.s32 1, %s21
    $region7: #{tpu_custom_call.1} parent=1 // loop_footer_branch
      %20 = sbr.rel target = $region3
    $region8: #{tpu_custom_call.1} parent=1 // loop_exit
      _
    %6428 = vsyncpa [#allocation4], 1
    %s6429 = scalar_lea.sflag [#allocation4], 1
    %6430 = vsyncpa %s6429, 1
    %6431 = vsyncpa [#allocation7], 1
    %6432 = vsyncpa [#allocation10], 1
    %6433 = vsyncpa [#allocation5], 1
    %s6434 = scalar_lea.sflag [#allocation5], 1
    %6435 = vsyncpa %s6434, 1

</llo_original>
